<compile_context>
chip_gen: v7x
topology: tpu7x:2x2x1
jax: 0.10.0
libtpu: 0.0.40
codegen_flags: <defaults>
</compile_context>

<pallas_src>
import functools

import jax
import jax.numpy as jnp
from jax.experimental import pallas as pl
from jax.experimental.pallas import tpu as pltpu

N_LAYERS = 15
D = 2
D_HALF = D // 2          # == 1
HID = 8
PACK = 2 * HID           # 16 = both nets packed side by side


def _leaky_relu(h):
    return jnp.where(h > 0, h, 0.01 * h)


# ----------------------------------------------------------------------------
# Kernel
# ----------------------------------------------------------------------------
def make_nf_kernel(n_layers, swap_flags):
    """swap_flags: tuple of python bools (len n_layers-1), fixed at model init
    (mirrors PermutationLayer.should_swap decided in __init__) -> trace-time."""

    def kernel(xT_ref, wv_ref, whT_ref, wlT_ref, blT_ref, x_out_ref, ld_out_ref):
        # xT_ref block: (2, Bt) -- batch on lanes.
        zI = xT_ref[0:1, :]                       # (1, Bt)
        zII = xT_ref[1:2, :]                      # (1, Bt)
        logdet = jnp.zeros_like(zI)               # (1, Bt)

        for i in range(n_layers):
            wv = wv_ref[i]                        # (16, 5): [w1 | b1 | bh0 | bh1 | bh2]
            # Linear(1, 8) for both nets at once: broadcast FMA on the VPU.
            h = _leaky_relu(wv[:, 0:1] * zI + wv[:, 1:2])        # (16, Bt)
            # 3x Linear(8, 8) for both nets: one block-diagonal (16,16) dot each.
            for j in range(3):
                h = jnp.dot(whT_ref[i, j], h,
                            preferred_element_type=jnp.float32)  # (16, Bt)
                h = _leaky_relu(h + wv[:, 2 + j:3 + j])
            # Both Linear(8, 1) heads as a single (2,16) @ (16,Bt) dot.
            sb = jnp.dot(wlT_ref[i], h,
                         preferred_element_type=jnp.float32) + blT_ref[i]  # (2, Bt)
            log_s = sb[0:1, :]
            b = sb[1:2, :]

            y_II = jnp.exp(log_s) * zII + b
            logdet = logdet + log_s               # D_half == 1 -> sum is identity

            # Coupling output is [zI, y_II]; PermutationLayer applied at trace
            # time as a Python variable swap (no data movement in the kernel).
            if i < n_layers - 1 and swap_flags[i]:
                zI, zII = y_II, zI
            else:
                zII = y_II

        # Build the (2, Bt) output exactly once, lane-dense store.
        x_out_ref[...] = jnp.concatenate([zI, zII], axis=0)
        ld_out_ref[...] = logdet

    return kernel


# ----------------------------------------------------------------------------
# Parameter init (raw, PyTorch-style math orientation) and host-side packing
# ----------------------------------------------------------------------------
def init_raw_params(key, n_layers=N_LAYERS):
    ks = jax.random.split(key, 7)
    s = 0.1
    w1 = s * jax.random.normal(ks[0], (n_layers, 2, HID), jnp.float32)        # Linear(1,8)
    b1 = s * jax.random.normal(ks[1], (n_layers, 2, HID), jnp.float32)
    wh = s * jax.random.normal(ks[2], (n_layers, 2, 3, HID, HID), jnp.float32)  # (in,out)
    bh = s * jax.random.normal(ks[3], (n_layers, 2, 3, HID), jnp.float32)
    wl = s * jax.random.normal(ks[4], (n_layers, 2, HID), jnp.float32)        # Linear(8,1)
    bl = s * jax.random.normal(ks[5], (n_layers, 2), jnp.float32)
    swap_raw = jax.random.uniform(ks[6], (n_layers - 1,))
    swap_flags = tuple(bool(v) for v in (swap_raw > 0.5))
    return (w1, b1, wh, bh, wl, bl), swap_flags


def pack_params(raw, n_layers=N_LAYERS):
    """Pack both nets of each layer into lane-friendly slabs, output-major so
    the kernel computes dot(W^T, h) with h = (16, Bt)."""
    w1, b1, wh, bh, wl, bl = raw
    # (L, 16) concatenations: log_s net in rows 0..7, b net in rows 8..15.
    w1c = jnp.concatenate([w1[:, 0], w1[:, 1]], axis=-1)            # (L, 16)
    b1c = jnp.concatenate([b1[:, 0], b1[:, 1]], axis=-1)            # (L, 16)
    bhc = jnp.concatenate([bh[:, 0], bh[:, 1]], axis=-1)            # (L, 3, 16)
    wv = jnp.stack([w1c, b1c, bhc[:, 0], bhc[:, 1], bhc[:, 2]], axis=-1)  # (L, 16, 5)

    # Block-diagonal hidden weights, transposed to (out, in).
    whT = jnp.zeros((n_layers, 3, PACK, PACK), jnp.float32)
    whT = whT.at[:, :, :HID, :HID].set(jnp.swapaxes(wh[:, 0], -1, -2))
    whT = whT.at[:, :, HID:, HID:].set(jnp.swapaxes(wh[:, 1], -1, -2))

    # Final Linear(8,1) heads: row 0 reads h[0:8], row 1 reads h[8:16].
    wlT = jnp.zeros((n_layers, 2, PACK), jnp.float32)
    wlT = wlT.at[:, 0, :HID].set(wl[:, 0])
    wlT = wlT.at[:, 1, HID:].set(wl[:, 1])

    blT = bl[..., None]                                             # (L, 2, 1)
    return wv, whT, wlT, blT


# ----------------------------------------------------------------------------
# Wrapper
# ----------------------------------------------------------------------------
def normalizing_flow_forward(x, packed, swap_flags, n_layers=N_LAYERS, b_tile=256):
    assert b_tile % 128 == 0
    wv, whT, wlT, blT = packed
    B = x.shape[0]
    num_tiles = pl.cdiv(B, b_tile)
    Bp = num_tiles * b_tile

    # Layout plumbing in the wrapper: batch -> lanes (lane-dense blocks).
    xT = jnp.pad(x.astype(jnp.float32).T, ((0, 0), (0, Bp - B)))    # (2, Bp)

    kernel = make_nf_kernel(n_layers, swap_flags)
    x_outT, ldT = pl.pallas_call(
        kernel,
        out_shape=(
            jax.ShapeDtypeStruct((D, Bp), jnp.float32),
            jax.ShapeDtypeStruct((1, Bp), jnp.float32),
        ),
        grid=(num_tiles,),
        in_specs=[
            pl.BlockSpec((D, b_tile), lambda t: (0, t)),
            pl.BlockSpec((n_layers, PACK, 5), lambda t: (0, 0, 0)),
            pl.BlockSpec((n_layers, 3, PACK, PACK), lambda t: (0, 0, 0, 0)),
            pl.BlockSpec((n_layers, 2, PACK), lambda t: (0, 0, 0)),
            pl.BlockSpec((n_layers, 2, 1), lambda t: (0, 0, 0)),
        ],
        out_specs=(
            pl.BlockSpec((D, b_tile), lambda t: (0, t)),
            pl.BlockSpec((1, b_tile), lambda t: (0, t)),
        ),
        compiler_params=pltpu.CompilerParams(
            dimension_semantics=("parallel",)),   # batch tiles split across TCs on v7x
    )(xT, wv, whT, wlT, blT)

    return x_outT[:, :B].T, ldT[0, :B]


# ----------------------------------------------------------------------------
# Pure-JAX reference (same math as NormalizingFlowModel.forward)
# ----------------------------------------------------------------------------
def reference_forward(x, raw, swap_flags, n_layers=N_LAYERS):
    w1, b1, wh, bh, wl, bl = raw
    hp = jax.lax.Precision.HIGHEST
    logdet = jnp.zeros((x.shape[0],), jnp.float32)
    for i in range(n_layers):
        z_I, z_II = x[:, 0:1], x[:, 1:2]
        outs = []
        for n in range(2):                                  # 0: log_s_net, 1: b_net
            h = _leaky_relu(z_I * w1[i, n][None, :] + b1[i, n][None, :])
            for j in range(3):
                h = _leaky_relu(jnp.dot(h, wh[i, n, j], precision=hp)
                                + bh[i, n, j][None, :])
            outs.append(jnp.sum(h * wl[i, n][None, :], axis=1, keepdims=True)
                        + bl[i, n])
        log_s, b = outs
        y_II = jnp.exp(log_s) * z_II + b
        logdet = logdet + jnp.sum(log_s, axis=1)
        x = jnp.concatenate([z_I, y_II], axis=1)
        if i < n_layers - 1 and swap_flags[i]:
            x = x[:, ::-1]
    return x, logdet


# TODO(synk): only forward() is implemented; inverse(), log_prob() and
# sample() (MultivariateNormal base distribution) are not translated.

if __name__ == "__main__":
    key = jax.random.PRNGKey(0)
    k_param, k_data = jax.random.split(key)

    raw_params, swap_flags = init_raw_params(k_param)
    packed = pack_params(raw_params)

    B = 512                                            # batch amortizes fixed cost
    z = jax.random.normal(k_data, (B, D), jnp.float32)

    x_out, logdet = normalizing_flow_forward(z, packed, swap_flags)
    jax.block_until_ready((x_out, logdet))

    x_ref, logdet_ref = reference_forward(z, raw_params, swap_flags)
    assert x_out.shape == (B, D) and logdet.shape == (B,)
    assert jnp.allclose(x_out, x_ref, atol=2e-3, rtol=2e-3)
    assert jnp.allclose(logdet, logdet_ref, atol=2e-3, rtol=2e-3)
    print("KERNEL_OK")
</pallas_src>

<mosaic_0001>
module attributes {stable_mosaic.version = 11 : i64} {
  func.func @kernel(%arg0: i32, %arg1: memref<2x256xf32, #tpu.memory_space<vmem>>, %arg2: memref<15x16x5xf32, #tpu.memory_space<vmem>>, %arg3: memref<15x3x16x16xf32, #tpu.memory_space<vmem>>, %arg4: memref<15x2x16xf32, #tpu.memory_space<vmem>>, %arg5: memref<15x2x1xf32, #tpu.memory_space<vmem>>, %arg6: memref<2x256xf32, #tpu.memory_space<vmem>>, %arg7: memref<1x256xf32, #tpu.memory_space<vmem>>) attributes {dimension_semantics = [#tpu.dimension_semantics<parallel>], iteration_bounds = array<i64: 2>, scalar_prefetch = 0 : i64, scratch_operands = 0 : i64, tpu.core_type = #tpu.core_type<tc>, window_params = [{transform_indices = @transform_0, window_bounds = array<i64: 2, 256>}, {pipeline_mode = #tpu.pipeline_mode<synchronous>, transform_indices = @transform_1, window_bounds = array<i64: 15, 16, 5>}, {pipeline_mode = #tpu.pipeline_mode<synchronous>, transform_indices = @transform_2, window_bounds = array<i64: 15, 3, 16, 16>}, {pipeline_mode = #tpu.pipeline_mode<synchronous>, transform_indices = @transform_3, window_bounds = array<i64: 15, 2, 16>}, {pipeline_mode = #tpu.pipeline_mode<synchronous>, transform_indices = @transform_4, window_bounds = array<i64: 15, 2, 1>}, {transform_indices = @transform_5, window_bounds = array<i64: 2, 256>}, {transform_indices = @transform_6, window_bounds = array<i64: 1, 256>}]} {
    %c0 = arith.constant 0 : index
    %c0_0 = arith.constant 0 : index
    %0 = vector.load %arg1[%c0, %c0_0] : memref<2x256xf32, #tpu.memory_space<vmem>>, vector<1x256xf32>
    %c1 = arith.constant 1 : index
    %c0_1 = arith.constant 0 : index
    %1 = vector.load %arg1[%c1, %c0_1] : memref<2x256xf32, #tpu.memory_space<vmem>>, vector<1x256xf32>
    %cst = arith.constant 0.000000e+00 : f32
    %2 = vector.broadcast %cst : f32 to vector<1x256xf32>
    %c0_2 = arith.constant 0 : index
    %c0_3 = arith.constant 0 : index
    %c0_4 = arith.constant 0 : index
    %3 = vector.load %arg2[%c0_2, %c0_3, %c0_4] : memref<15x16x5xf32, #tpu.memory_space<vmem>>, vector<1x16x5xf32>
    %4 = vector.shape_cast %3 : vector<1x16x5xf32> to vector<16x5xf32>
    %5 = vector.extract_strided_slice %4 {offsets = [0, 0], sizes = [16, 1], strides = [1, 1]} : vector<16x5xf32> to vector<16x1xf32>
    %6 = vector.broadcast %5 : vector<16x1xf32> to vector<16x256xf32>
    %7 = vector.broadcast %0 : vector<1x256xf32> to vector<16x256xf32>
    %8 = arith.mulf %6, %7 : vector<16x256xf32>
    %9 = vector.extract_strided_slice %4 {offsets = [0, 1], sizes = [16, 1], strides = [1, 1]} : vector<16x5xf32> to vector<16x1xf32>
    %10 = vector.broadcast %9 : vector<16x1xf32> to vector<16x256xf32>
    %11 = arith.addf %8, %10 : vector<16x256xf32>
    %cst_5 = arith.constant 0.000000e+00 : f32
    %12 = vector.broadcast %cst_5 : f32 to vector<16x256xf32>
    %13 = arith.cmpf ogt, %11, %12 : vector<16x256xf32>
    %cst_6 = arith.constant 0.00999999977 : f32
    %14 = vector.broadcast %cst_6 : f32 to vector<16x256xf32>
    %15 = arith.mulf %14, %11 : vector<16x256xf32>
    %16 = arith.select %13, %11, %15 : vector<16x256xi1>, vector<16x256xf32>
    %c0_7 = arith.constant 0 : index
    %c0_8 = arith.constant 0 : index
    %c0_9 = arith.constant 0 : index
    %c0_10 = arith.constant 0 : index
    %17 = vector.load %arg3[%c0_7, %c0_8, %c0_9, %c0_10] : memref<15x3x16x16xf32, #tpu.memory_space<vmem>>, vector<1x1x16x16xf32>
    %18 = vector.shape_cast %17 : vector<1x1x16x16xf32> to vector<16x16xf32>
    %cst_11 = arith.constant dense<0.000000e+00> : vector<16x256xf32>
    %19 = tpu.matmul %18, %16, %cst_11 {dimension_numbers = #tpu.dot_dimension_numbers<[1], [0], [0], [1], [0, 0, 1, 1], [], []>} : vector<16x16xf32>, vector<16x256xf32>, vector<16x256xf32> -> vector<16x256xf32>
    %20 = vector.extract_strided_slice %4 {offsets = [0, 2], sizes = [16, 1], strides = [1, 1]} : vector<16x5xf32> to vector<16x1xf32>
    %21 = vector.broadcast %20 : vector<16x1xf32> to vector<16x256xf32>
    %22 = arith.addf %19, %21 : vector<16x256xf32>
    %cst_12 = arith.constant 0.000000e+00 : f32
    %23 = vector.broadcast %cst_12 : f32 to vector<16x256xf32>
    %24 = arith.cmpf ogt, %22, %23 : vector<16x256xf32>
    %cst_13 = arith.constant 0.00999999977 : f32
    %25 = vector.broadcast %cst_13 : f32 to vector<16x256xf32>
    %26 = arith.mulf %25, %22 : vector<16x256xf32>
    %27 = arith.select %24, %22, %26 : vector<16x256xi1>, vector<16x256xf32>
    %c0_14 = arith.constant 0 : index
    %c1_15 = arith.constant 1 : index
    %c0_16 = arith.constant 0 : index
    %c0_17 = arith.constant 0 : index
    %28 = vector.load %arg3[%c0_14, %c1_15, %c0_16, %c0_17] : memref<15x3x16x16xf32, #tpu.memory_space<vmem>>, vector<1x1x16x16xf32>
    %29 = vector.shape_cast %28 : vector<1x1x16x16xf32> to vector<16x16xf32>
    %cst_18 = arith.constant dense<0.000000e+00> : vector<16x256xf32>
    %30 = tpu.matmul %29, %27, %cst_18 {dimension_numbers = #tpu.dot_dimension_numbers<[1], [0], [0], [1], [0, 0, 1, 1], [], []>} : vector<16x16xf32>, vector<16x256xf32>, vector<16x256xf32> -> vector<16x256xf32>
    %31 = vector.extract_strided_slice %4 {offsets = [0, 3], sizes = [16, 1], strides = [1, 1]} : vector<16x5xf32> to vector<16x1xf32>
    %32 = vector.broadcast %31 : vector<16x1xf32> to vector<16x256xf32>
    %33 = arith.addf %30, %32 : vector<16x256xf32>
    %cst_19 = arith.constant 0.000000e+00 : f32
    %34 = vector.broadcast %cst_19 : f32 to vector<16x256xf32>
    %35 = arith.cmpf ogt, %33, %34 : vector<16x256xf32>
    %cst_20 = arith.constant 0.00999999977 : f32
    %36 = vector.broadcast %cst_20 : f32 to vector<16x256xf32>
    %37 = arith.mulf %36, %33 : vector<16x256xf32>
    %38 = arith.select %35, %33, %37 : vector<16x256xi1>, vector<16x256xf32>
    %c0_21 = arith.constant 0 : index
    %c2 = arith.constant 2 : index
    %c0_22 = arith.constant 0 : index
    %c0_23 = arith.constant 0 : index
    %39 = vector.load %arg3[%c0_21, %c2, %c0_22, %c0_23] : memref<15x3x16x16xf32, #tpu.memory_space<vmem>>, vector<1x1x16x16xf32>
    %40 = vector.shape_cast %39 : vector<1x1x16x16xf32> to vector<16x16xf32>
    %cst_24 = arith.constant dense<0.000000e+00> : vector<16x256xf32>
    %41 = tpu.matmul %40, %38, %cst_24 {dimension_numbers = #tpu.dot_dimension_numbers<[1], [0], [0], [1], [0, 0, 1, 1], [], []>} : vector<16x16xf32>, vector<16x256xf32>, vector<16x256xf32> -> vector<16x256xf32>
    %42 = vector.extract_strided_slice %4 {offsets = [0, 4], sizes = [16, 1], strides = [1, 1]} : vector<16x5xf32> to vector<16x1xf32>
    %43 = vector.broadcast %42 : vector<16x1xf32> to vector<16x256xf32>
    %44 = arith.addf %41, %43 : vector<16x256xf32>
    %cst_25 = arith.constant 0.000000e+00 : f32
    %45 = vector.broadcast %cst_25 : f32 to vector<16x256xf32>
    %46 = arith.cmpf ogt, %44, %45 : vector<16x256xf32>
    %cst_26 = arith.constant 0.00999999977 : f32
    %47 = vector.broadcast %cst_26 : f32 to vector<16x256xf32>
    %48 = arith.mulf %47, %44 : vector<16x256xf32>
    %49 = arith.select %46, %44, %48 : vector<16x256xi1>, vector<16x256xf32>
    %c0_27 = arith.constant 0 : index
    %c0_28 = arith.constant 0 : index
    %c0_29 = arith.constant 0 : index
    %50 = vector.load %arg4[%c0_27, %c0_28, %c0_29] : memref<15x2x16xf32, #tpu.memory_space<vmem>>, vector<1x2x16xf32>
    %51 = vector.shape_cast %50 : vector<1x2x16xf32> to vector<2x16xf32>
    %cst_30 = arith.constant dense<0.000000e+00> : vector<2x256xf32>
    %52 = tpu.matmul %51, %49, %cst_30 {dimension_numbers = #tpu.dot_dimension_numbers<[1], [0], [0], [1], [0, 0, 1, 1], [], []>} : vector<2x16xf32>, vector<16x256xf32>, vector<2x256xf32> -> vector<2x256xf32>
    %c0_31 = arith.constant 0 : index
    %c0_32 = arith.constant 0 : index
    %c0_33 = arith.constant 0 : index
    %53 = vector.load %arg5[%c0_31, %c0_32, %c0_33] : memref<15x2x1xf32, #tpu.memory_space<vmem>>, vector<1x2x1xf32>
    %54 = vector.shape_cast %53 : vector<1x2x1xf32> to vector<2x1xf32>
    %55 = vector.broadcast %54 : vector<2x1xf32> to vector<2x256xf32>
    %56 = arith.addf %52, %55 : vector<2x256xf32>
    %57 = vector.extract_strided_slice %56 {offsets = [0, 0], sizes = [1, 256], strides = [1, 1]} : vector<2x256xf32> to vector<1x256xf32>
    %58 = vector.extract_strided_slice %56 {offsets = [1, 0], sizes = [1, 256], strides = [1, 1]} : vector<2x256xf32> to vector<1x256xf32>
    %59 = math.exp %57 : vector<1x256xf32>
    %60 = arith.mulf %59, %1 : vector<1x256xf32>
    %61 = arith.addf %60, %58 : vector<1x256xf32>
    %62 = arith.addf %2, %57 : vector<1x256xf32>
    %c1_34 = arith.constant 1 : index
    %c0_35 = arith.constant 0 : index
    %c0_36 = arith.constant 0 : index
    %63 = vector.load %arg2[%c1_34, %c0_35, %c0_36] : memref<15x16x5xf32, #tpu.memory_space<vmem>>, vector<1x16x5xf32>
    %64 = vector.shape_cast %63 : vector<1x16x5xf32> to vector<16x5xf32>
    %65 = vector.extract_strided_slice %64 {offsets = [0, 0], sizes = [16, 1], strides = [1, 1]} : vector<16x5xf32> to vector<16x1xf32>
    %66 = vector.broadcast %65 : vector<16x1xf32> to vector<16x256xf32>
    %67 = vector.broadcast %0 : vector<1x256xf32> to vector<16x256xf32>
    %68 = arith.mulf %66, %67 : vector<16x256xf32>
    %69 = vector.extract_strided_slice %64 {offsets = [0, 1], sizes = [16, 1], strides = [1, 1]} : vector<16x5xf32> to vector<16x1xf32>
    %70 = vector.broadcast %69 : vector<16x1xf32> to vector<16x256xf32>
    %71 = arith.addf %68, %70 : vector<16x256xf32>
    %cst_37 = arith.constant 0.000000e+00 : f32
    %72 = vector.broadcast %cst_37 : f32 to vector<16x256xf32>
    %73 = arith.cmpf ogt, %71, %72 : vector<16x256xf32>
    %cst_38 = arith.constant 0.00999999977 : f32
    %74 = vector.broadcast %cst_38 : f32 to vector<16x256xf32>
    %75 = arith.mulf %74, %71 : vector<16x256xf32>
    %76 = arith.select %73, %71, %75 : vector<16x256xi1>, vector<16x256xf32>
    %c1_39 = arith.constant 1 : index
    %c0_40 = arith.constant 0 : index
    %c0_41 = arith.constant 0 : index
    %c0_42 = arith.constant 0 : index
    %77 = vector.load %arg3[%c1_39, %c0_40, %c0_41, %c0_42] : memref<15x3x16x16xf32, #tpu.memory_space<vmem>>, vector<1x1x16x16xf32>
    %78 = vector.shape_cast %77 : vector<1x1x16x16xf32> to vector<16x16xf32>
    %cst_43 = arith.constant dense<0.000000e+00> : vector<16x256xf32>
    %79 = tpu.matmul %78, %76, %cst_43 {dimension_numbers = #tpu.dot_dimension_numbers<[1], [0], [0], [1], [0, 0, 1, 1], [], []>} : vector<16x16xf32>, vector<16x256xf32>, vector<16x256xf32> -> vector<16x256xf32>
    %80 = vector.extract_strided_slice %64 {offsets = [0, 2], sizes = [16, 1], strides = [1, 1]} : vector<16x5xf32> to vector<16x1xf32>
    %81 = vector.broadcast %80 : vector<16x1xf32> to vector<16x256xf32>
    %82 = arith.addf %79, %81 : vector<16x256xf32>
    %cst_44 = arith.constant 0.000000e+00 : f32
    %83 = vector.broadcast %cst_44 : f32 to vector<16x256xf32>
    %84 = arith.cmpf ogt, %82, %83 : vector<16x256xf32>
    %cst_45 = arith.constant 0.00999999977 : f32
    %85 = vector.broadcast %cst_45 : f32 to vector<16x256xf32>
    %86 = arith.mulf %85, %82 : vector<16x256xf32>
    %87 = arith.select %84, %82, %86 : vector<16x256xi1>, vector<16x256xf32>
    %c1_46 = arith.constant 1 : index
    %c1_47 = arith.constant 1 : index
    %c0_48 = arith.constant 0 : index
    %c0_49 = arith.constant 0 : index
    %88 = vector.load %arg3[%c1_46, %c1_47, %c0_48, %c0_49] : memref<15x3x16x16xf32, #tpu.memory_space<vmem>>, vector<1x1x16x16xf32>
    %89 = vector.shape_cast %88 : vector<1x1x16x16xf32> to vector<16x16xf32>
    %cst_50 = arith.constant dense<0.000000e+00> : vector<16x256xf32>
    %90 = tpu.matmul %89, %87, %cst_50 {dimension_numbers = #tpu.dot_dimension_numbers<[1], [0], [0], [1], [0, 0, 1, 1], [], []>} : vector<16x16xf32>, vector<16x256xf32>, vector<16x256xf32> -> vector<16x256xf32>
    %91 = vector.extract_strided_slice %64 {offsets = [0, 3], sizes = [16, 1], strides = [1, 1]} : vector<16x5xf32> to vector<16x1xf32>
    %92 = vector.broadcast %91 : vector<16x1xf32> to vector<16x256xf32>
    %93 = arith.addf %90, %92 : vector<16x256xf32>
    %cst_51 = arith.constant 0.000000e+00 : f32
    %94 = vector.broadcast %cst_51 : f32 to vector<16x256xf32>
    %95 = arith.cmpf ogt, %93, %94 : vector<16x256xf32>
    %cst_52 = arith.constant 0.00999999977 : f32
    %96 = vector.broadcast %cst_52 : f32 to vector<16x256xf32>
    %97 = arith.mulf %96, %93 : vector<16x256xf32>
    %98 = arith.select %95, %93, %97 : vector<16x256xi1>, vector<16x256xf32>
    %c1_53 = arith.constant 1 : index
    %c2_54 = arith.constant 2 : index
    %c0_55 = arith.constant 0 : index
    %c0_56 = arith.constant 0 : index
    %99 = vector.load %arg3[%c1_53, %c2_54, %c0_55, %c0_56] : memref<15x3x16x16xf32, #tpu.memory_space<vmem>>, vector<1x1x16x16xf32>
    %100 = vector.shape_cast %99 : vector<1x1x16x16xf32> to vector<16x16xf32>
    %cst_57 = arith.constant dense<0.000000e+00> : vector<16x256xf32>
    %101 = tpu.matmul %100, %98, %cst_57 {dimension_numbers = #tpu.dot_dimension_numbers<[1], [0], [0], [1], [0, 0, 1, 1], [], []>} : vector<16x16xf32>, vector<16x256xf32>, vector<16x256xf32> -> vector<16x256xf32>
    %102 = vector.extract_strided_slice %64 {offsets = [0, 4], sizes = [16, 1], strides = [1, 1]} : vector<16x5xf32> to vector<16x1xf32>
    %103 = vector.broadcast %102 : vector<16x1xf32> to vector<16x256xf32>
    %104 = arith.addf %101, %103 : vector<16x256xf32>
    %cst_58 = arith.constant 0.000000e+00 : f32
    %105 = vector.broadcast %cst_58 : f32 to vector<16x256xf32>
    %106 = arith.cmpf ogt, %104, %105 : vector<16x256xf32>
    %cst_59 = arith.constant 0.00999999977 : f32
    %107 = vector.broadcast %cst_59 : f32 to vector<16x256xf32>
    %108 = arith.mulf %107, %104 : vector<16x256xf32>
    %109 = arith.select %106, %104, %108 : vector<16x256xi1>, vector<16x256xf32>
    %c1_60 = arith.constant 1 : index
    %c0_61 = arith.constant 0 : index
    %c0_62 = arith.constant 0 : index
    %110 = vector.load %arg4[%c1_60, %c0_61, %c0_62] : memref<15x2x16xf32, #tpu.memory_space<vmem>>, vector<1x2x16xf32>
    %111 = vector.shape_cast %110 : vector<1x2x16xf32> to vector<2x16xf32>
    %cst_63 = arith.constant dense<0.000000e+00> : vector<2x256xf32>
    %112 = tpu.matmul %111, %109, %cst_63 {dimension_numbers = #tpu.dot_dimension_numbers<[1], [0], [0], [1], [0, 0, 1, 1], [], []>} : vector<2x16xf32>, vector<16x256xf32>, vector<2x256xf32> -> vector<2x256xf32>
    %c1_64 = arith.constant 1 : index
    %c0_65 = arith.constant 0 : index
    %c0_66 = arith.constant 0 : index
    %113 = vector.load %arg5[%c1_64, %c0_65, %c0_66] : memref<15x2x1xf32, #tpu.memory_space<vmem>>, vector<1x2x1xf32>
    %114 = vector.shape_cast %113 : vector<1x2x1xf32> to vector<2x1xf32>
    %115 = vector.broadcast %114 : vector<2x1xf32> to vector<2x256xf32>
    %116 = arith.addf %112, %115 : vector<2x256xf32>
    %117 = vector.extract_strided_slice %116 {offsets = [0, 0], sizes = [1, 256], strides = [1, 1]} : vector<2x256xf32> to vector<1x256xf32>
    %118 = vector.extract_strided_slice %116 {offsets = [1, 0], sizes = [1, 256], strides = [1, 1]} : vector<2x256xf32> to vector<1x256xf32>
    %119 = math.exp %117 : vector<1x256xf32>
    %120 = arith.mulf %119, %61 : vector<1x256xf32>
    %121 = arith.addf %120, %118 : vector<1x256xf32>
    %122 = arith.addf %62, %117 : vector<1x256xf32>
    %c2_67 = arith.constant 2 : index
    %c0_68 = arith.constant 0 : index
    %c0_69 = arith.constant 0 : index
    %123 = vector.load %arg2[%c2_67, %c0_68, %c0_69] : memref<15x16x5xf32, #tpu.memory_space<vmem>>, vector<1x16x5xf32>
    %124 = vector.shape_cast %123 : vector<1x16x5xf32> to vector<16x5xf32>
    %125 = vector.extract_strided_slice %124 {offsets = [0, 0], sizes = [16, 1], strides = [1, 1]} : vector<16x5xf32> to vector<16x1xf32>
    %126 = vector.broadcast %125 : vector<16x1xf32> to vector<16x256xf32>
    %127 = vector.broadcast %0 : vector<1x256xf32> to vector<16x256xf32>
    %128 = arith.mulf %126, %127 : vector<16x256xf32>
    %129 = vector.extract_strided_slice %124 {offsets = [0, 1], sizes = [16, 1], strides = [1, 1]} : vector<16x5xf32> to vector<16x1xf32>
    %130 = vector.broadcast %129 : vector<16x1xf32> to vector<16x256xf32>
    %131 = arith.addf %128, %130 : vector<16x256xf32>
    %cst_70 = arith.constant 0.000000e+00 : f32
    %132 = vector.broadcast %cst_70 : f32 to vector<16x256xf32>
    %133 = arith.cmpf ogt, %131, %132 : vector<16x256xf32>
    %cst_71 = arith.constant 0.00999999977 : f32
    %134 = vector.broadcast %cst_71 : f32 to vector<16x256xf32>
    %135 = arith.mulf %134, %131 : vector<16x256xf32>
    %136 = arith.select %133, %131, %135 : vector<16x256xi1>, vector<16x256xf32>
    %c2_72 = arith.constant 2 : index
    %c0_73 = arith.constant 0 : index
    %c0_74 = arith.constant 0 : index
    %c0_75 = arith.constant 0 : index
    %137 = vector.load %arg3[%c2_72, %c0_73, %c0_74, %c0_75] : memref<15x3x16x16xf32, #tpu.memory_space<vmem>>, vector<1x1x16x16xf32>
    %138 = vector.shape_cast %137 : vector<1x1x16x16xf32> to vector<16x16xf32>
    %cst_76 = arith.constant dense<0.000000e+00> : vector<16x256xf32>
    %139 = tpu.matmul %138, %136, %cst_76 {dimension_numbers = #tpu.dot_dimension_numbers<[1], [0], [0], [1], [0, 0, 1, 1], [], []>} : vector<16x16xf32>, vector<16x256xf32>, vector<16x256xf32> -> vector<16x256xf32>
    %140 = vector.extract_strided_slice %124 {offsets = [0, 2], sizes = [16, 1], strides = [1, 1]} : vector<16x5xf32> to vector<16x1xf32>
    %141 = vector.broadcast %140 : vector<16x1xf32> to vector<16x256xf32>
    %142 = arith.addf %139, %141 : vector<16x256xf32>
    %cst_77 = arith.constant 0.000000e+00 : f32
    %143 = vector.broadcast %cst_77 : f32 to vector<16x256xf32>
    %144 = arith.cmpf ogt, %142, %143 : vector<16x256xf32>
    %cst_78 = arith.constant 0.00999999977 : f32
    %145 = vector.broadcast %cst_78 : f32 to vector<16x256xf32>
    %146 = arith.mulf %145, %142 : vector<16x256xf32>
    %147 = arith.select %144, %142, %146 : vector<16x256xi1>, vector<16x256xf32>
    %c2_79 = arith.constant 2 : index
    %c1_80 = arith.constant 1 : index
    %c0_81 = arith.constant 0 : index
    %c0_82 = arith.constant 0 : index
    %148 = vector.load %arg3[%c2_79, %c1_80, %c0_81, %c0_82] : memref<15x3x16x16xf32, #tpu.memory_space<vmem>>, vector<1x1x16x16xf32>
    %149 = vector.shape_cast %148 : vector<1x1x16x16xf32> to vector<16x16xf32>
    %cst_83 = arith.constant dense<0.000000e+00> : vector<16x256xf32>
    %150 = tpu.matmul %149, %147, %cst_83 {dimension_numbers = #tpu.dot_dimension_numbers<[1], [0], [0], [1], [0, 0, 1, 1], [], []>} : vector<16x16xf32>, vector<16x256xf32>, vector<16x256xf32> -> vector<16x256xf32>
    %151 = vector.extract_strided_slice %124 {offsets = [0, 3], sizes = [16, 1], strides = [1, 1]} : vector<16x5xf32> to vector<16x1xf32>
    %152 = vector.broadcast %151 : vector<16x1xf32> to vector<16x256xf32>
    %153 = arith.addf %150, %152 : vector<16x256xf32>
    %cst_84 = arith.constant 0.000000e+00 : f32
    %154 = vector.broadcast %cst_84 : f32 to vector<16x256xf32>
    %155 = arith.cmpf ogt, %153, %154 : vector<16x256xf32>
    %cst_85 = arith.constant 0.00999999977 : f32
    %156 = vector.broadcast %cst_85 : f32 to vector<16x256xf32>
    %157 = arith.mulf %156, %153 : vector<16x256xf32>
    %158 = arith.select %155, %153, %157 : vector<16x256xi1>, vector<16x256xf32>
    %c2_86 = arith.constant 2 : index
    %c2_87 = arith.constant 2 : index
    %c0_88 = arith.constant 0 : index
    %c0_89 = arith.constant 0 : index
    %159 = vector.load %arg3[%c2_86, %c2_87, %c0_88, %c0_89] : memref<15x3x16x16xf32, #tpu.memory_space<vmem>>, vector<1x1x16x16xf32>
    %160 = vector.shape_cast %159 : vector<1x1x16x16xf32> to vector<16x16xf32>
    %cst_90 = arith.constant dense<0.000000e+00> : vector<16x256xf32>
    %161 = tpu.matmul %160, %158, %cst_90 {dimension_numbers = #tpu.dot_dimension_numbers<[1], [0], [0], [1], [0, 0, 1, 1], [], []>} : vector<16x16xf32>, vector<16x256xf32>, vector<16x256xf32> -> vector<16x256xf32>
    %162 = vector.extract_strided_slice %124 {offsets = [0, 4], sizes = [16, 1], strides = [1, 1]} : vector<16x5xf32> to vector<16x1xf32>
    %163 = vector.broadcast %162 : vector<16x1xf32> to vector<16x256xf32>
    %164 = arith.addf %161, %163 : vector<16x256xf32>
    %cst_91 = arith.constant 0.000000e+00 : f32
    %165 = vector.broadcast %cst_91 : f32 to vector<16x256xf32>
    %166 = arith.cmpf ogt, %164, %165 : vector<16x256xf32>
    %cst_92 = arith.constant 0.00999999977 : f32
    %167 = vector.broadcast %cst_92 : f32 to vector<16x256xf32>
    %168 = arith.mulf %167, %164 : vector<16x256xf32>
    %169 = arith.select %166, %164, %168 : vector<16x256xi1>, vector<16x256xf32>
    %c2_93 = arith.constant 2 : index
    %c0_94 = arith.constant 0 : index
    %c0_95 = arith.constant 0 : index
    %170 = vector.load %arg4[%c2_93, %c0_94, %c0_95] : memref<15x2x16xf32, #tpu.memory_space<vmem>>, vector<1x2x16xf32>
    %171 = vector.shape_cast %170 : vector<1x2x16xf32> to vector<2x16xf32>
    %cst_96 = arith.constant dense<0.000000e+00> : vector<2x256xf32>
    %172 = tpu.matmul %171, %169, %cst_96 {dimension_numbers = #tpu.dot_dimension_numbers<[1], [0], [0], [1], [0, 0, 1, 1], [], []>} : vector<2x16xf32>, vector<16x256xf32>, vector<2x256xf32> -> vector<2x256xf32>
    %c2_97 = arith.constant 2 : index
    %c0_98 = arith.constant 0 : index
    %c0_99 = arith.constant 0 : index
    %173 = vector.load %arg5[%c2_97, %c0_98, %c0_99] : memref<15x2x1xf32, #tpu.memory_space<vmem>>, vector<1x2x1xf32>
    %174 = vector.shape_cast %173 : vector<1x2x1xf32> to vector<2x1xf32>
    %175 = vector.broadcast %174 : vector<2x1xf32> to vector<2x256xf32>
    %176 = arith.addf %172, %175 : vector<2x256xf32>
    %177 = vector.extract_strided_slice %176 {offsets = [0, 0], sizes = [1, 256], strides = [1, 1]} : vector<2x256xf32> to vector<1x256xf32>
    %178 = vector.extract_strided_slice %176 {offsets = [1, 0], sizes = [1, 256], strides = [1, 1]} : vector<2x256xf32> to vector<1x256xf32>
    %179 = math.exp %177 : vector<1x256xf32>
    %180 = arith.mulf %179, %121 : vector<1x256xf32>
    %181 = arith.addf %180, %178 : vector<1x256xf32>
    %182 = arith.addf %122, %177 : vector<1x256xf32>
    %c3 = arith.constant 3 : index
    %c0_100 = arith.constant 0 : index
    %c0_101 = arith.constant 0 : index
    %183 = vector.load %arg2[%c3, %c0_100, %c0_101] : memref<15x16x5xf32, #tpu.memory_space<vmem>>, vector<1x16x5xf32>
    %184 = vector.shape_cast %183 : vector<1x16x5xf32> to vector<16x5xf32>
    %185 = vector.extract_strided_slice %184 {offsets = [0, 0], sizes = [16, 1], strides = [1, 1]} : vector<16x5xf32> to vector<16x1xf32>
    %186 = vector.broadcast %185 : vector<16x1xf32> to vector<16x256xf32>
    %187 = vector.broadcast %0 : vector<1x256xf32> to vector<16x256xf32>
    %188 = arith.mulf %186, %187 : vector<16x256xf32>
    %189 = vector.extract_strided_slice %184 {offsets = [0, 1], sizes = [16, 1], strides = [1, 1]} : vector<16x5xf32> to vector<16x1xf32>
    %190 = vector.broadcast %189 : vector<16x1xf32> to vector<16x256xf32>
    %191 = arith.addf %188, %190 : vector<16x256xf32>
    %cst_102 = arith.constant 0.000000e+00 : f32
    %192 = vector.broadcast %cst_102 : f32 to vector<16x256xf32>
    %193 = arith.cmpf ogt, %191, %192 : vector<16x256xf32>
    %cst_103 = arith.constant 0.00999999977 : f32
    %194 = vector.broadcast %cst_103 : f32 to vector<16x256xf32>
    %195 = arith.mulf %194, %191 : vector<16x256xf32>
    %196 = arith.select %193, %191, %195 : vector<16x256xi1>, vector<16x256xf32>
    %c3_104 = arith.constant 3 : index
    %c0_105 = arith.constant 0 : index
    %c0_106 = arith.constant 0 : index
    %c0_107 = arith.constant 0 : index
    %197 = vector.load %arg3[%c3_104, %c0_105, %c0_106, %c0_107] : memref<15x3x16x16xf32, #tpu.memory_space<vmem>>, vector<1x1x16x16xf32>
    %198 = vector.shape_cast %197 : vector<1x1x16x16xf32> to vector<16x16xf32>
    %cst_108 = arith.constant dense<0.000000e+00> : vector<16x256xf32>
    %199 = tpu.matmul %198, %196, %cst_108 {dimension_numbers = #tpu.dot_dimension_numbers<[1], [0], [0], [1], [0, 0, 1, 1], [], []>} : vector<16x16xf32>, vector<16x256xf32>, vector<16x256xf32> -> vector<16x256xf32>
    %200 = vector.extract_strided_slice %184 {offsets = [0, 2], sizes = [16, 1], strides = [1, 1]} : vector<16x5xf32> to vector<16x1xf32>
    %201 = vector.broadcast %200 : vector<16x1xf32> to vector<16x256xf32>
    %202 = arith.addf %199, %201 : vector<16x256xf32>
    %cst_109 = arith.constant 0.000000e+00 : f32
    %203 = vector.broadcast %cst_109 : f32 to vector<16x256xf32>
    %204 = arith.cmpf ogt, %202, %203 : vector<16x256xf32>
    %cst_110 = arith.constant 0.00999999977 : f32
    %205 = vector.broadcast %cst_110 : f32 to vector<16x256xf32>
    %206 = arith.mulf %205, %202 : vector<16x256xf32>
    %207 = arith.select %204, %202, %206 : vector<16x256xi1>, vector<16x256xf32>
    %c3_111 = arith.constant 3 : index
    %c1_112 = arith.constant 1 : index
    %c0_113 = arith.constant 0 : index
    %c0_114 = arith.constant 0 : index
    %208 = vector.load %arg3[%c3_111, %c1_112, %c0_113, %c0_114] : memref<15x3x16x16xf32, #tpu.memory_space<vmem>>, vector<1x1x16x16xf32>
    %209 = vector.shape_cast %208 : vector<1x1x16x16xf32> to vector<16x16xf32>
    %cst_115 = arith.constant dense<0.000000e+00> : vector<16x256xf32>
    %210 = tpu.matmul %209, %207, %cst_115 {dimension_numbers = #tpu.dot_dimension_numbers<[1], [0], [0], [1], [0, 0, 1, 1], [], []>} : vector<16x16xf32>, vector<16x256xf32>, vector<16x256xf32> -> vector<16x256xf32>
    %211 = vector.extract_strided_slice %184 {offsets = [0, 3], sizes = [16, 1], strides = [1, 1]} : vector<16x5xf32> to vector<16x1xf32>
    %212 = vector.broadcast %211 : vector<16x1xf32> to vector<16x256xf32>
    %213 = arith.addf %210, %212 : vector<16x256xf32>
    %cst_116 = arith.constant 0.000000e+00 : f32
    %214 = vector.broadcast %cst_116 : f32 to vector<16x256xf32>
    %215 = arith.cmpf ogt, %213, %214 : vector<16x256xf32>
    %cst_117 = arith.constant 0.00999999977 : f32
    %216 = vector.broadcast %cst_117 : f32 to vector<16x256xf32>
    %217 = arith.mulf %216, %213 : vector<16x256xf32>
    %218 = arith.select %215, %213, %217 : vector<16x256xi1>, vector<16x256xf32>
    %c3_118 = arith.constant 3 : index
    %c2_119 = arith.constant 2 : index
    %c0_120 = arith.constant 0 : index
    %c0_121 = arith.constant 0 : index
    %219 = vector.load %arg3[%c3_118, %c2_119, %c0_120, %c0_121] : memref<15x3x16x16xf32, #tpu.memory_space<vmem>>, vector<1x1x16x16xf32>
    %220 = vector.shape_cast %219 : vector<1x1x16x16xf32> to vector<16x16xf32>
    %cst_122 = arith.constant dense<0.000000e+00> : vector<16x256xf32>
    %221 = tpu.matmul %220, %218, %cst_122 {dimension_numbers = #tpu.dot_dimension_numbers<[1], [0], [0], [1], [0, 0, 1, 1], [], []>} : vector<16x16xf32>, vector<16x256xf32>, vector<16x256xf32> -> vector<16x256xf32>
    %222 = vector.extract_strided_slice %184 {offsets = [0, 4], sizes = [16, 1], strides = [1, 1]} : vector<16x5xf32> to vector<16x1xf32>
    %223 = vector.broadcast %222 : vector<16x1xf32> to vector<16x256xf32>
    %224 = arith.addf %221, %223 : vector<16x256xf32>
    %cst_123 = arith.constant 0.000000e+00 : f32
    %225 = vector.broadcast %cst_123 : f32 to vector<16x256xf32>
    %226 = arith.cmpf ogt, %224, %225 : vector<16x256xf32>
    %cst_124 = arith.constant 0.00999999977 : f32
    %227 = vector.broadcast %cst_124 : f32 to vector<16x256xf32>
    %228 = arith.mulf %227, %224 : vector<16x256xf32>
    %229 = arith.select %226, %224, %228 : vector<16x256xi1>, vector<16x256xf32>
    %c3_125 = arith.constant 3 : index
    %c0_126 = arith.constant 0 : index
    %c0_127 = arith.constant 0 : index
    %230 = vector.load %arg4[%c3_125, %c0_126, %c0_127] : memref<15x2x16xf32, #tpu.memory_space<vmem>>, vector<1x2x16xf32>
    %231 = vector.shape_cast %230 : vector<1x2x16xf32> to vector<2x16xf32>
    %cst_128 = arith.constant dense<0.000000e+00> : vector<2x256xf32>
    %232 = tpu.matmul %231, %229, %cst_128 {dimension_numbers = #tpu.dot_dimension_numbers<[1], [0], [0], [1], [0, 0, 1, 1], [], []>} : vector<2x16xf32>, vector<16x256xf32>, vector<2x256xf32> -> vector<2x256xf32>
    %c3_129 = arith.constant 3 : index
    %c0_130 = arith.constant 0 : index
    %c0_131 = arith.constant 0 : index
    %233 = vector.load %arg5[%c3_129, %c0_130, %c0_131] : memref<15x2x1xf32, #tpu.memory_space<vmem>>, vector<1x2x1xf32>
    %234 = vector.shape_cast %233 : vector<1x2x1xf32> to vector<2x1xf32>
    %235 = vector.broadcast %234 : vector<2x1xf32> to vector<2x256xf32>
    %236 = arith.addf %232, %235 : vector<2x256xf32>
    %237 = vector.extract_strided_slice %236 {offsets = [0, 0], sizes = [1, 256], strides = [1, 1]} : vector<2x256xf32> to vector<1x256xf32>
    %238 = vector.extract_strided_slice %236 {offsets = [1, 0], sizes = [1, 256], strides = [1, 1]} : vector<2x256xf32> to vector<1x256xf32>
    %239 = math.exp %237 : vector<1x256xf32>
    %240 = arith.mulf %239, %181 : vector<1x256xf32>
    %241 = arith.addf %240, %238 : vector<1x256xf32>
    %242 = arith.addf %182, %237 : vector<1x256xf32>
    %c4 = arith.constant 4 : index
    %c0_132 = arith.constant 0 : index
    %c0_133 = arith.constant 0 : index
    %243 = vector.load %arg2[%c4, %c0_132, %c0_133] : memref<15x16x5xf32, #tpu.memory_space<vmem>>, vector<1x16x5xf32>
    %244 = vector.shape_cast %243 : vector<1x16x5xf32> to vector<16x5xf32>
    %245 = vector.extract_strided_slice %244 {offsets = [0, 0], sizes = [16, 1], strides = [1, 1]} : vector<16x5xf32> to vector<16x1xf32>
    %246 = vector.broadcast %245 : vector<16x1xf32> to vector<16x256xf32>
    %247 = vector.broadcast %0 : vector<1x256xf32> to vector<16x256xf32>
    %248 = arith.mulf %246, %247 : vector<16x256xf32>
    %249 = vector.extract_strided_slice %244 {offsets = [0, 1], sizes = [16, 1], strides = [1, 1]} : vector<16x5xf32> to vector<16x1xf32>
    %250 = vector.broadcast %249 : vector<16x1xf32> to vector<16x256xf32>
    %251 = arith.addf %248, %250 : vector<16x256xf32>
    %cst_134 = arith.constant 0.000000e+00 : f32
    %252 = vector.broadcast %cst_134 : f32 to vector<16x256xf32>
    %253 = arith.cmpf ogt, %251, %252 : vector<16x256xf32>
    %cst_135 = arith.constant 0.00999999977 : f32
    %254 = vector.broadcast %cst_135 : f32 to vector<16x256xf32>
    %255 = arith.mulf %254, %251 : vector<16x256xf32>
    %256 = arith.select %253, %251, %255 : vector<16x256xi1>, vector<16x256xf32>
    %c4_136 = arith.constant 4 : index
    %c0_137 = arith.constant 0 : index
    %c0_138 = arith.constant 0 : index
    %c0_139 = arith.constant 0 : index
    %257 = vector.load %arg3[%c4_136, %c0_137, %c0_138, %c0_139] : memref<15x3x16x16xf32, #tpu.memory_space<vmem>>, vector<1x1x16x16xf32>
    %258 = vector.shape_cast %257 : vector<1x1x16x16xf32> to vector<16x16xf32>
    %cst_140 = arith.constant dense<0.000000e+00> : vector<16x256xf32>
    %259 = tpu.matmul %258, %256, %cst_140 {dimension_numbers = #tpu.dot_dimension_numbers<[1], [0], [0], [1], [0, 0, 1, 1], [], []>} : vector<16x16xf32>, vector<16x256xf32>, vector<16x256xf32> -> vector<16x256xf32>
    %260 = vector.extract_strided_slice %244 {offsets = [0, 2], sizes = [16, 1], strides = [1, 1]} : vector<16x5xf32> to vector<16x1xf32>
    %261 = vector.broadcast %260 : vector<16x1xf32> to vector<16x256xf32>
    %262 = arith.addf %259, %261 : vector<16x256xf32>
    %cst_141 = arith.constant 0.000000e+00 : f32
    %263 = vector.broadcast %cst_141 : f32 to vector<16x256xf32>
    %264 = arith.cmpf ogt, %262, %263 : vector<16x256xf32>
    %cst_142 = arith.constant 0.00999999977 : f32
    %265 = vector.broadcast %cst_142 : f32 to vector<16x256xf32>
    %266 = arith.mulf %265, %262 : vector<16x256xf32>
    %267 = arith.select %264, %262, %266 : vector<16x256xi1>, vector<16x256xf32>
    %c4_143 = arith.constant 4 : index
    %c1_144 = arith.constant 1 : index
    %c0_145 = arith.constant 0 : index
    %c0_146 = arith.constant 0 : index
    %268 = vector.load %arg3[%c4_143, %c1_144, %c0_145, %c0_146] : memref<15x3x16x16xf32, #tpu.memory_space<vmem>>, vector<1x1x16x16xf32>
    %269 = vector.shape_cast %268 : vector<1x1x16x16xf32> to vector<16x16xf32>
    %cst_147 = arith.constant dense<0.000000e+00> : vector<16x256xf32>
    %270 = tpu.matmul %269, %267, %cst_147 {dimension_numbers = #tpu.dot_dimension_numbers<[1], [0], [0], [1], [0, 0, 1, 1], [], []>} : vector<16x16xf32>, vector<16x256xf32>, vector<16x256xf32> -> vector<16x256xf32>
    %271 = vector.extract_strided_slice %244 {offsets = [0, 3], sizes = [16, 1], strides = [1, 1]} : vector<16x5xf32> to vector<16x1xf32>
    %272 = vector.broadcast %271 : vector<16x1xf32> to vector<16x256xf32>
    %273 = arith.addf %270, %272 : vector<16x256xf32>
    %cst_148 = arith.constant 0.000000e+00 : f32
    %274 = vector.broadcast %cst_148 : f32 to vector<16x256xf32>
    %275 = arith.cmpf ogt, %273, %274 : vector<16x256xf32>
    %cst_149 = arith.constant 0.00999999977 : f32
    %276 = vector.broadcast %cst_149 : f32 to vector<16x256xf32>
    %277 = arith.mulf %276, %273 : vector<16x256xf32>
    %278 = arith.select %275, %273, %277 : vector<16x256xi1>, vector<16x256xf32>
    %c4_150 = arith.constant 4 : index
    %c2_151 = arith.constant 2 : index
    %c0_152 = arith.constant 0 : index
    %c0_153 = arith.constant 0 : index
    %279 = vector.load %arg3[%c4_150, %c2_151, %c0_152, %c0_153] : memref<15x3x16x16xf32, #tpu.memory_space<vmem>>, vector<1x1x16x16xf32>
    %280 = vector.shape_cast %279 : vector<1x1x16x16xf32> to vector<16x16xf32>
    %cst_154 = arith.constant dense<0.000000e+00> : vector<16x256xf32>
    %281 = tpu.matmul %280, %278, %cst_154 {dimension_numbers = #tpu.dot_dimension_numbers<[1], [0], [0], [1], [0, 0, 1, 1], [], []>} : vector<16x16xf32>, vector<16x256xf32>, vector<16x256xf32> -> vector<16x256xf32>
    %282 = vector.extract_strided_slice %244 {offsets = [0, 4], sizes = [16, 1], strides = [1, 1]} : vector<16x5xf32> to vector<16x1xf32>
    %283 = vector.broadcast %282 : vector<16x1xf32> to vector<16x256xf32>
    %284 = arith.addf %281, %283 : vector<16x256xf32>
    %cst_155 = arith.constant 0.000000e+00 : f32
    %285 = vector.broadcast %cst_155 : f32 to vector<16x256xf32>
    %286 = arith.cmpf ogt, %284, %285 : vector<16x256xf32>
    %cst_156 = arith.constant 0.00999999977 : f32
    %287 = vector.broadcast %cst_156 : f32 to vector<16x256xf32>
    %288 = arith.mulf %287, %284 : vector<16x256xf32>
    %289 = arith.select %286, %284, %288 : vector<16x256xi1>, vector<16x256xf32>
    %c4_157 = arith.constant 4 : index
    %c0_158 = arith.constant 0 : index
    %c0_159 = arith.constant 0 : index
    %290 = vector.load %arg4[%c4_157, %c0_158, %c0_159] : memref<15x2x16xf32, #tpu.memory_space<vmem>>, vector<1x2x16xf32>
    %291 = vector.shape_cast %290 : vector<1x2x16xf32> to vector<2x16xf32>
    %cst_160 = arith.constant dense<0.000000e+00> : vector<2x256xf32>
    %292 = tpu.matmul %291, %289, %cst_160 {dimension_numbers = #tpu.dot_dimension_numbers<[1], [0], [0], [1], [0, 0, 1, 1], [], []>} : vector<2x16xf32>, vector<16x256xf32>, vector<2x256xf32> -> vector<2x256xf32>
    %c4_161 = arith.constant 4 : index
    %c0_162 = arith.constant 0 : index
    %c0_163 = arith.constant 0 : index
    %293 = vector.load %arg5[%c4_161, %c0_162, %c0_163] : memref<15x2x1xf32, #tpu.memory_space<vmem>>, vector<1x2x1xf32>
    %294 = vector.shape_cast %293 : vector<1x2x1xf32> to vector<2x1xf32>
    %295 = vector.broadcast %294 : vector<2x1xf32> to vector<2x256xf32>
    %296 = arith.addf %292, %295 : vector<2x256xf32>
    %297 = vector.extract_strided_slice %296 {offsets = [0, 0], sizes = [1, 256], strides = [1, 1]} : vector<2x256xf32> to vector<1x256xf32>
    %298 = vector.extract_strided_slice %296 {offsets = [1, 0], sizes = [1, 256], strides = [1, 1]} : vector<2x256xf32> to vector<1x256xf32>
    %299 = math.exp %297 : vector<1x256xf32>
    %300 = arith.mulf %299, %241 : vector<1x256xf32>
    %301 = arith.addf %300, %298 : vector<1x256xf32>
    %302 = arith.addf %242, %297 : vector<1x256xf32>
    %c5 = arith.constant 5 : index
    %c0_164 = arith.constant 0 : index
    %c0_165 = arith.constant 0 : index
    %303 = vector.load %arg2[%c5, %c0_164, %c0_165] : memref<15x16x5xf32, #tpu.memory_space<vmem>>, vector<1x16x5xf32>
    %304 = vector.shape_cast %303 : vector<1x16x5xf32> to vector<16x5xf32>
    %305 = vector.extract_strided_slice %304 {offsets = [0, 0], sizes = [16, 1], strides = [1, 1]} : vector<16x5xf32> to vector<16x1xf32>
    %306 = vector.broadcast %305 : vector<16x1xf32> to vector<16x256xf32>
    %307 = vector.broadcast %0 : vector<1x256xf32> to vector<16x256xf32>
    %308 = arith.mulf %306, %307 : vector<16x256xf32>
    %309 = vector.extract_strided_slice %304 {offsets = [0, 1], sizes = [16, 1], strides = [1, 1]} : vector<16x5xf32> to vector<16x1xf32>
    %310 = vector.broadcast %309 : vector<16x1xf32> to vector<16x256xf32>
    %311 = arith.addf %308, %310 : vector<16x256xf32>
    %cst_166 = arith.constant 0.000000e+00 : f32
    %312 = vector.broadcast %cst_166 : f32 to vector<16x256xf32>
    %313 = arith.cmpf ogt, %311, %312 : vector<16x256xf32>
    %cst_167 = arith.constant 0.00999999977 : f32
    %314 = vector.broadcast %cst_167 : f32 to vector<16x256xf32>
    %315 = arith.mulf %314, %311 : vector<16x256xf32>
    %316 = arith.select %313, %311, %315 : vector<16x256xi1>, vector<16x256xf32>
    %c5_168 = arith.constant 5 : index
    %c0_169 = arith.constant 0 : index
    %c0_170 = arith.constant 0 : index
    %c0_171 = arith.constant 0 : index
    %317 = vector.load %arg3[%c5_168, %c0_169, %c0_170, %c0_171] : memref<15x3x16x16xf32, #tpu.memory_space<vmem>>, vector<1x1x16x16xf32>
    %318 = vector.shape_cast %317 : vector<1x1x16x16xf32> to vector<16x16xf32>
    %cst_172 = arith.constant dense<0.000000e+00> : vector<16x256xf32>
    %319 = tpu.matmul %318, %316, %cst_172 {dimension_numbers = #tpu.dot_dimension_numbers<[1], [0], [0], [1], [0, 0, 1, 1], [], []>} : vector<16x16xf32>, vector<16x256xf32>, vector<16x256xf32> -> vector<16x256xf32>
    %320 = vector.extract_strided_slice %304 {offsets = [0, 2], sizes = [16, 1], strides = [1, 1]} : vector<16x5xf32> to vector<16x1xf32>
    %321 = vector.broadcast %320 : vector<16x1xf32> to vector<16x256xf32>
    %322 = arith.addf %319, %321 : vector<16x256xf32>
    %cst_173 = arith.constant 0.000000e+00 : f32
    %323 = vector.broadcast %cst_173 : f32 to vector<16x256xf32>
    %324 = arith.cmpf ogt, %322, %323 : vector<16x256xf32>
    %cst_174 = arith.constant 0.00999999977 : f32
    %325 = vector.broadcast %cst_174 : f32 to vector<16x256xf32>
    %326 = arith.mulf %325, %322 : vector<16x256xf32>
    %327 = arith.select %324, %322, %326 : vector<16x256xi1>, vector<16x256xf32>
    %c5_175 = arith.constant 5 : index
    %c1_176 = arith.constant 1 : index
    %c0_177 = arith.constant 0 : index
    %c0_178 = arith.constant 0 : index
    %328 = vector.load %arg3[%c5_175, %c1_176, %c0_177, %c0_178] : memref<15x3x16x16xf32, #tpu.memory_space<vmem>>, vector<1x1x16x16xf32>
    %329 = vector.shape_cast %328 : vector<1x1x16x16xf32> to vector<16x16xf32>
    %cst_179 = arith.constant dense<0.000000e+00> : vector<16x256xf32>
    %330 = tpu.matmul %329, %327, %cst_179 {dimension_numbers = #tpu.dot_dimension_numbers<[1], [0], [0], [1], [0, 0, 1, 1], [], []>} : vector<16x16xf32>, vector<16x256xf32>, vector<16x256xf32> -> vector<16x256xf32>
    %331 = vector.extract_strided_slice %304 {offsets = [0, 3], sizes = [16, 1], strides = [1, 1]} : vector<16x5xf32> to vector<16x1xf32>
    %332 = vector.broadcast %331 : vector<16x1xf32> to vector<16x256xf32>
    %333 = arith.addf %330, %332 : vector<16x256xf32>
    %cst_180 = arith.constant 0.000000e+00 : f32
    %334 = vector.broadcast %cst_180 : f32 to vector<16x256xf32>
    %335 = arith.cmpf ogt, %333, %334 : vector<16x256xf32>
    %cst_181 = arith.constant 0.00999999977 : f32
    %336 = vector.broadcast %cst_181 : f32 to vector<16x256xf32>
    %337 = arith.mulf %336, %333 : vector<16x256xf32>
    %338 = arith.select %335, %333, %337 : vector<16x256xi1>, vector<16x256xf32>
    %c5_182 = arith.constant 5 : index
    %c2_183 = arith.constant 2 : index
    %c0_184 = arith.constant 0 : index
    %c0_185 = arith.constant 0 : index
    %339 = vector.load %arg3[%c5_182, %c2_183, %c0_184, %c0_185] : memref<15x3x16x16xf32, #tpu.memory_space<vmem>>, vector<1x1x16x16xf32>
    %340 = vector.shape_cast %339 : vector<1x1x16x16xf32> to vector<16x16xf32>
    %cst_186 = arith.constant dense<0.000000e+00> : vector<16x256xf32>
    %341 = tpu.matmul %340, %338, %cst_186 {dimension_numbers = #tpu.dot_dimension_numbers<[1], [0], [0], [1], [0, 0, 1, 1], [], []>} : vector<16x16xf32>, vector<16x256xf32>, vector<16x256xf32> -> vector<16x256xf32>
    %342 = vector.extract_strided_slice %304 {offsets = [0, 4], sizes = [16, 1], strides = [1, 1]} : vector<16x5xf32> to vector<16x1xf32>
    %343 = vector.broadcast %342 : vector<16x1xf32> to vector<16x256xf32>
    %344 = arith.addf %341, %343 : vector<16x256xf32>
    %cst_187 = arith.constant 0.000000e+00 : f32
    %345 = vector.broadcast %cst_187 : f32 to vector<16x256xf32>
    %346 = arith.cmpf ogt, %344, %345 : vector<16x256xf32>
    %cst_188 = arith.constant 0.00999999977 : f32
    %347 = vector.broadcast %cst_188 : f32 to vector<16x256xf32>
    %348 = arith.mulf %347, %344 : vector<16x256xf32>
    %349 = arith.select %346, %344, %348 : vector<16x256xi1>, vector<16x256xf32>
    %c5_189 = arith.constant 5 : index
    %c0_190 = arith.constant 0 : index
    %c0_191 = arith.constant 0 : index
    %350 = vector.load %arg4[%c5_189, %c0_190, %c0_191] : memref<15x2x16xf32, #tpu.memory_space<vmem>>, vector<1x2x16xf32>
    %351 = vector.shape_cast %350 : vector<1x2x16xf32> to vector<2x16xf32>
    %cst_192 = arith.constant dense<0.000000e+00> : vector<2x256xf32>
    %352 = tpu.matmul %351, %349, %cst_192 {dimension_numbers = #tpu.dot_dimension_numbers<[1], [0], [0], [1], [0, 0, 1, 1], [], []>} : vector<2x16xf32>, vector<16x256xf32>, vector<2x256xf32> -> vector<2x256xf32>
    %c5_193 = arith.constant 5 : index
    %c0_194 = arith.constant 0 : index
    %c0_195 = arith.constant 0 : index
    %353 = vector.load %arg5[%c5_193, %c0_194, %c0_195] : memref<15x2x1xf32, #tpu.memory_space<vmem>>, vector<1x2x1xf32>
    %354 = vector.shape_cast %353 : vector<1x2x1xf32> to vector<2x1xf32>
    %355 = vector.broadcast %354 : vector<2x1xf32> to vector<2x256xf32>
    %356 = arith.addf %352, %355 : vector<2x256xf32>
    %357 = vector.extract_strided_slice %356 {offsets = [0, 0], sizes = [1, 256], strides = [1, 1]} : vector<2x256xf32> to vector<1x256xf32>
    %358 = vector.extract_strided_slice %356 {offsets = [1, 0], sizes = [1, 256], strides = [1, 1]} : vector<2x256xf32> to vector<1x256xf32>
    %359 = math.exp %357 : vector<1x256xf32>
    %360 = arith.mulf %359, %301 : vector<1x256xf32>
    %361 = arith.addf %360, %358 : vector<1x256xf32>
    %362 = arith.addf %302, %357 : vector<1x256xf32>
    %c6 = arith.constant 6 : index
    %c0_196 = arith.constant 0 : index
    %c0_197 = arith.constant 0 : index
    %363 = vector.load %arg2[%c6, %c0_196, %c0_197] : memref<15x16x5xf32, #tpu.memory_space<vmem>>, vector<1x16x5xf32>
    %364 = vector.shape_cast %363 : vector<1x16x5xf32> to vector<16x5xf32>
    %365 = vector.extract_strided_slice %364 {offsets = [0, 0], sizes = [16, 1], strides = [1, 1]} : vector<16x5xf32> to vector<16x1xf32>
    %366 = vector.broadcast %365 : vector<16x1xf32> to vector<16x256xf32>
    %367 = vector.broadcast %361 : vector<1x256xf32> to vector<16x256xf32>
    %368 = arith.mulf %366, %367 : vector<16x256xf32>
    %369 = vector.extract_strided_slice %364 {offsets = [0, 1], sizes = [16, 1], strides = [1, 1]} : vector<16x5xf32> to vector<16x1xf32>
    %370 = vector.broadcast %369 : vector<16x1xf32> to vector<16x256xf32>
    %371 = arith.addf %368, %370 : vector<16x256xf32>
    %cst_198 = arith.constant 0.000000e+00 : f32
    %372 = vector.broadcast %cst_198 : f32 to vector<16x256xf32>
    %373 = arith.cmpf ogt, %371, %372 : vector<16x256xf32>
    %cst_199 = arith.constant 0.00999999977 : f32
    %374 = vector.broadcast %cst_199 : f32 to vector<16x256xf32>
    %375 = arith.mulf %374, %371 : vector<16x256xf32>
    %376 = arith.select %373, %371, %375 : vector<16x256xi1>, vector<16x256xf32>
    %c6_200 = arith.constant 6 : index
    %c0_201 = arith.constant 0 : index
    %c0_202 = arith.constant 0 : index
    %c0_203 = arith.constant 0 : index
    %377 = vector.load %arg3[%c6_200, %c0_201, %c0_202, %c0_203] : memref<15x3x16x16xf32, #tpu.memory_space<vmem>>, vector<1x1x16x16xf32>
    %378 = vector.shape_cast %377 : vector<1x1x16x16xf32> to vector<16x16xf32>
    %cst_204 = arith.constant dense<0.000000e+00> : vector<16x256xf32>
    %379 = tpu.matmul %378, %376, %cst_204 {dimension_numbers = #tpu.dot_dimension_numbers<[1], [0], [0], [1], [0, 0, 1, 1], [], []>} : vector<16x16xf32>, vector<16x256xf32>, vector<16x256xf32> -> vector<16x256xf32>
    %380 = vector.extract_strided_slice %364 {offsets = [0, 2], sizes = [16, 1], strides = [1, 1]} : vector<16x5xf32> to vector<16x1xf32>
    %381 = vector.broadcast %380 : vector<16x1xf32> to vector<16x256xf32>
    %382 = arith.addf %379, %381 : vector<16x256xf32>
    %cst_205 = arith.constant 0.000000e+00 : f32
    %383 = vector.broadcast %cst_205 : f32 to vector<16x256xf32>
    %384 = arith.cmpf ogt, %382, %383 : vector<16x256xf32>
    %cst_206 = arith.constant 0.00999999977 : f32
    %385 = vector.broadcast %cst_206 : f32 to vector<16x256xf32>
    %386 = arith.mulf %385, %382 : vector<16x256xf32>
    %387 = arith.select %384, %382, %386 : vector<16x256xi1>, vector<16x256xf32>
    %c6_207 = arith.constant 6 : index
    %c1_208 = arith.constant 1 : index
    %c0_209 = arith.constant 0 : index
    %c0_210 = arith.constant 0 : index
    %388 = vector.load %arg3[%c6_207, %c1_208, %c0_209, %c0_210] : memref<15x3x16x16xf32, #tpu.memory_space<vmem>>, vector<1x1x16x16xf32>
    %389 = vector.shape_cast %388 : vector<1x1x16x16xf32> to vector<16x16xf32>
    %cst_211 = arith.constant dense<0.000000e+00> : vector<16x256xf32>
    %390 = tpu.matmul %389, %387, %cst_211 {dimension_numbers = #tpu.dot_dimension_numbers<[1], [0], [0], [1], [0, 0, 1, 1], [], []>} : vector<16x16xf32>, vector<16x256xf32>, vector<16x256xf32> -> vector<16x256xf32>
    %391 = vector.extract_strided_slice %364 {offsets = [0, 3], sizes = [16, 1], strides = [1, 1]} : vector<16x5xf32> to vector<16x1xf32>
    %392 = vector.broadcast %391 : vector<16x1xf32> to vector<16x256xf32>
    %393 = arith.addf %390, %392 : vector<16x256xf32>
    %cst_212 = arith.constant 0.000000e+00 : f32
    %394 = vector.broadcast %cst_212 : f32 to vector<16x256xf32>
    %395 = arith.cmpf ogt, %393, %394 : vector<16x256xf32>
    %cst_213 = arith.constant 0.00999999977 : f32
    %396 = vector.broadcast %cst_213 : f32 to vector<16x256xf32>
    %397 = arith.mulf %396, %393 : vector<16x256xf32>
    %398 = arith.select %395, %393, %397 : vector<16x256xi1>, vector<16x256xf32>
    %c6_214 = arith.constant 6 : index
    %c2_215 = arith.constant 2 : index
    %c0_216 = arith.constant 0 : index
    %c0_217 = arith.constant 0 : index
    %399 = vector.load %arg3[%c6_214, %c2_215, %c0_216, %c0_217] : memref<15x3x16x16xf32, #tpu.memory_space<vmem>>, vector<1x1x16x16xf32>
    %400 = vector.shape_cast %399 : vector<1x1x16x16xf32> to vector<16x16xf32>
    %cst_218 = arith.constant dense<0.000000e+00> : vector<16x256xf32>
    %401 = tpu.matmul %400, %398, %cst_218 {dimension_numbers = #tpu.dot_dimension_numbers<[1], [0], [0], [1], [0, 0, 1, 1], [], []>} : vector<16x16xf32>, vector<16x256xf32>, vector<16x256xf32> -> vector<16x256xf32>
    %402 = vector.extract_strided_slice %364 {offsets = [0, 4], sizes = [16, 1], strides = [1, 1]} : vector<16x5xf32> to vector<16x1xf32>
    %403 = vector.broadcast %402 : vector<16x1xf32> to vector<16x256xf32>
    %404 = arith.addf %401, %403 : vector<16x256xf32>
    %cst_219 = arith.constant 0.000000e+00 : f32
    %405 = vector.broadcast %cst_219 : f32 to vector<16x256xf32>
    %406 = arith.cmpf ogt, %404, %405 : vector<16x256xf32>
    %cst_220 = arith.constant 0.00999999977 : f32
    %407 = vector.broadcast %cst_220 : f32 to vector<16x256xf32>
    %408 = arith.mulf %407, %404 : vector<16x256xf32>
    %409 = arith.select %406, %404, %408 : vector<16x256xi1>, vector<16x256xf32>
    %c6_221 = arith.constant 6 : index
    %c0_222 = arith.constant 0 : index
    %c0_223 = arith.constant 0 : index
    %410 = vector.load %arg4[%c6_221, %c0_222, %c0_223] : memref<15x2x16xf32, #tpu.memory_space<vmem>>, vector<1x2x16xf32>
    %411 = vector.shape_cast %410 : vector<1x2x16xf32> to vector<2x16xf32>
    %cst_224 = arith.constant dense<0.000000e+00> : vector<2x256xf32>
    %412 = tpu.matmul %411, %409, %cst_224 {dimension_numbers = #tpu.dot_dimension_numbers<[1], [0], [0], [1], [0, 0, 1, 1], [], []>} : vector<2x16xf32>, vector<16x256xf32>, vector<2x256xf32> -> vector<2x256xf32>
    %c6_225 = arith.constant 6 : index
    %c0_226 = arith.constant 0 : index
    %c0_227 = arith.constant 0 : index
    %413 = vector.load %arg5[%c6_225, %c0_226, %c0_227] : memref<15x2x1xf32, #tpu.memory_space<vmem>>, vector<1x2x1xf32>
    %414 = vector.shape_cast %413 : vector<1x2x1xf32> to vector<2x1xf32>
    %415 = vector.broadcast %414 : vector<2x1xf32> to vector<2x256xf32>
    %416 = arith.addf %412, %415 : vector<2x256xf32>
    %417 = vector.extract_strided_slice %416 {offsets = [0, 0], sizes = [1, 256], strides = [1, 1]} : vector<2x256xf32> to vector<1x256xf32>
    %418 = vector.extract_strided_slice %416 {offsets = [1, 0], sizes = [1, 256], strides = [1, 1]} : vector<2x256xf32> to vector<1x256xf32>
    %419 = math.exp %417 : vector<1x256xf32>
    %420 = arith.mulf %419, %0 : vector<1x256xf32>
    %421 = arith.addf %420, %418 : vector<1x256xf32>
    %422 = arith.addf %362, %417 : vector<1x256xf32>
    %c7 = arith.constant 7 : index
    %c0_228 = arith.constant 0 : index
    %c0_229 = arith.constant 0 : index
    %423 = vector.load %arg2[%c7, %c0_228, %c0_229] : memref<15x16x5xf32, #tpu.memory_space<vmem>>, vector<1x16x5xf32>
    %424 = vector.shape_cast %423 : vector<1x16x5xf32> to vector<16x5xf32>
    %425 = vector.extract_strided_slice %424 {offsets = [0, 0], sizes = [16, 1], strides = [1, 1]} : vector<16x5xf32> to vector<16x1xf32>
    %426 = vector.broadcast %425 : vector<16x1xf32> to vector<16x256xf32>
    %427 = vector.broadcast %361 : vector<1x256xf32> to vector<16x256xf32>
    %428 = arith.mulf %426, %427 : vector<16x256xf32>
    %429 = vector.extract_strided_slice %424 {offsets = [0, 1], sizes = [16, 1], strides = [1, 1]} : vector<16x5xf32> to vector<16x1xf32>
    %430 = vector.broadcast %429 : vector<16x1xf32> to vector<16x256xf32>
    %431 = arith.addf %428, %430 : vector<16x256xf32>
    %cst_230 = arith.constant 0.000000e+00 : f32
    %432 = vector.broadcast %cst_230 : f32 to vector<16x256xf32>
    %433 = arith.cmpf ogt, %431, %432 : vector<16x256xf32>
    %cst_231 = arith.constant 0.00999999977 : f32
    %434 = vector.broadcast %cst_231 : f32 to vector<16x256xf32>
    %435 = arith.mulf %434, %431 : vector<16x256xf32>
    %436 = arith.select %433, %431, %435 : vector<16x256xi1>, vector<16x256xf32>
    %c7_232 = arith.constant 7 : index
    %c0_233 = arith.constant 0 : index
    %c0_234 = arith.constant 0 : index
    %c0_235 = arith.constant 0 : index
    %437 = vector.load %arg3[%c7_232, %c0_233, %c0_234, %c0_235] : memref<15x3x16x16xf32, #tpu.memory_space<vmem>>, vector<1x1x16x16xf32>
    %438 = vector.shape_cast %437 : vector<1x1x16x16xf32> to vector<16x16xf32>
    %cst_236 = arith.constant dense<0.000000e+00> : vector<16x256xf32>
    %439 = tpu.matmul %438, %436, %cst_236 {dimension_numbers = #tpu.dot_dimension_numbers<[1], [0], [0], [1], [0, 0, 1, 1], [], []>} : vector<16x16xf32>, vector<16x256xf32>, vector<16x256xf32> -> vector<16x256xf32>
    %440 = vector.extract_strided_slice %424 {offsets = [0, 2], sizes = [16, 1], strides = [1, 1]} : vector<16x5xf32> to vector<16x1xf32>
    %441 = vector.broadcast %440 : vector<16x1xf32> to vector<16x256xf32>
    %442 = arith.addf %439, %441 : vector<16x256xf32>
    %cst_237 = arith.constant 0.000000e+00 : f32
    %443 = vector.broadcast %cst_237 : f32 to vector<16x256xf32>
    %444 = arith.cmpf ogt, %442, %443 : vector<16x256xf32>
    %cst_238 = arith.constant 0.00999999977 : f32
    %445 = vector.broadcast %cst_238 : f32 to vector<16x256xf32>
    %446 = arith.mulf %445, %442 : vector<16x256xf32>
    %447 = arith.select %444, %442, %446 : vector<16x256xi1>, vector<16x256xf32>
    %c7_239 = arith.constant 7 : index
    %c1_240 = arith.constant 1 : index
    %c0_241 = arith.constant 0 : index
    %c0_242 = arith.constant 0 : index
    %448 = vector.load %arg3[%c7_239, %c1_240, %c0_241, %c0_242] : memref<15x3x16x16xf32, #tpu.memory_space<vmem>>, vector<1x1x16x16xf32>
    %449 = vector.shape_cast %448 : vector<1x1x16x16xf32> to vector<16x16xf32>
    %cst_243 = arith.constant dense<0.000000e+00> : vector<16x256xf32>
    %450 = tpu.matmul %449, %447, %cst_243 {dimension_numbers = #tpu.dot_dimension_numbers<[1], [0], [0], [1], [0, 0, 1, 1], [], []>} : vector<16x16xf32>, vector<16x256xf32>, vector<16x256xf32> -> vector<16x256xf32>
    %451 = vector.extract_strided_slice %424 {offsets = [0, 3], sizes = [16, 1], strides = [1, 1]} : vector<16x5xf32> to vector<16x1xf32>
    %452 = vector.broadcast %451 : vector<16x1xf32> to vector<16x256xf32>
    %453 = arith.addf %450, %452 : vector<16x256xf32>
    %cst_244 = arith.constant 0.000000e+00 : f32
    %454 = vector.broadcast %cst_244 : f32 to vector<16x256xf32>
    %455 = arith.cmpf ogt, %453, %454 : vector<16x256xf32>
    %cst_245 = arith.constant 0.00999999977 : f32
    %456 = vector.broadcast %cst_245 : f32 to vector<16x256xf32>
    %457 = arith.mulf %456, %453 : vector<16x256xf32>
    %458 = arith.select %455, %453, %457 : vector<16x256xi1>, vector<16x256xf32>
    %c7_246 = arith.constant 7 : index
    %c2_247 = arith.constant 2 : index
    %c0_248 = arith.constant 0 : index
    %c0_249 = arith.constant 0 : index
    %459 = vector.load %arg3[%c7_246, %c2_247, %c0_248, %c0_249] : memref<15x3x16x16xf32, #tpu.memory_space<vmem>>, vector<1x1x16x16xf32>
    %460 = vector.shape_cast %459 : vector<1x1x16x16xf32> to vector<16x16xf32>
    %cst_250 = arith.constant dense<0.000000e+00> : vector<16x256xf32>
    %461 = tpu.matmul %460, %458, %cst_250 {dimension_numbers = #tpu.dot_dimension_numbers<[1], [0], [0], [1], [0, 0, 1, 1], [], []>} : vector<16x16xf32>, vector<16x256xf32>, vector<16x256xf32> -> vector<16x256xf32>
    %462 = vector.extract_strided_slice %424 {offsets = [0, 4], sizes = [16, 1], strides = [1, 1]} : vector<16x5xf32> to vector<16x1xf32>
    %463 = vector.broadcast %462 : vector<16x1xf32> to vector<16x256xf32>
    %464 = arith.addf %461, %463 : vector<16x256xf32>
    %cst_251 = arith.constant 0.000000e+00 : f32
    %465 = vector.broadcast %cst_251 : f32 to vector<16x256xf32>
    %466 = arith.cmpf ogt, %464, %465 : vector<16x256xf32>
    %cst_252 = arith.constant 0.00999999977 : f32
    %467 = vector.broadcast %cst_252 : f32 to vector<16x256xf32>
    %468 = arith.mulf %467, %464 : vector<16x256xf32>
    %469 = arith.select %466, %464, %468 : vector<16x256xi1>, vector<16x256xf32>
    %c7_253 = arith.constant 7 : index
    %c0_254 = arith.constant 0 : index
    %c0_255 = arith.constant 0 : index
    %470 = vector.load %arg4[%c7_253, %c0_254, %c0_255] : memref<15x2x16xf32, #tpu.memory_space<vmem>>, vector<1x2x16xf32>
    %471 = vector.shape_cast %470 : vector<1x2x16xf32> to vector<2x16xf32>
    %cst_256 = arith.constant dense<0.000000e+00> : vector<2x256xf32>
    %472 = tpu.matmul %471, %469, %cst_256 {dimension_numbers = #tpu.dot_dimension_numbers<[1], [0], [0], [1], [0, 0, 1, 1], [], []>} : vector<2x16xf32>, vector<16x256xf32>, vector<2x256xf32> -> vector<2x256xf32>
    %c7_257 = arith.constant 7 : index
    %c0_258 = arith.constant 0 : index
    %c0_259 = arith.constant 0 : index
    %473 = vector.load %arg5[%c7_257, %c0_258, %c0_259] : memref<15x2x1xf32, #tpu.memory_space<vmem>>, vector<1x2x1xf32>
    %474 = vector.shape_cast %473 : vector<1x2x1xf32> to vector<2x1xf32>
    %475 = vector.broadcast %474 : vector<2x1xf32> to vector<2x256xf32>
    %476 = arith.addf %472, %475 : vector<2x256xf32>
    %477 = vector.extract_strided_slice %476 {offsets = [0, 0], sizes = [1, 256], strides = [1, 1]} : vector<2x256xf32> to vector<1x256xf32>
    %478 = vector.extract_strided_slice %476 {offsets = [1, 0], sizes = [1, 256], strides = [1, 1]} : vector<2x256xf32> to vector<1x256xf32>
    %479 = math.exp %477 : vector<1x256xf32>
    %480 = arith.mulf %479, %421 : vector<1x256xf32>
    %481 = arith.addf %480, %478 : vector<1x256xf32>
    %482 = arith.addf %422, %477 : vector<1x256xf32>
    %c8 = arith.constant 8 : index
    %c0_260 = arith.constant 0 : index
    %c0_261 = arith.constant 0 : index
    %483 = vector.load %arg2[%c8, %c0_260, %c0_261] : memref<15x16x5xf32, #tpu.memory_space<vmem>>, vector<1x16x5xf32>
    %484 = vector.shape_cast %483 : vector<1x16x5xf32> to vector<16x5xf32>
    %485 = vector.extract_strided_slice %484 {offsets = [0, 0], sizes = [16, 1], strides = [1, 1]} : vector<16x5xf32> to vector<16x1xf32>
    %486 = vector.broadcast %485 : vector<16x1xf32> to vector<16x256xf32>
    %487 = vector.broadcast %361 : vector<1x256xf32> to vector<16x256xf32>
    %488 = arith.mulf %486, %487 : vector<16x256xf32>
    %489 = vector.extract_strided_slice %484 {offsets = [0, 1], sizes = [16, 1], strides = [1, 1]} : vector<16x5xf32> to vector<16x1xf32>
    %490 = vector.broadcast %489 : vector<16x1xf32> to vector<16x256xf32>
    %491 = arith.addf %488, %490 : vector<16x256xf32>
    %cst_262 = arith.constant 0.000000e+00 : f32
    %492 = vector.broadcast %cst_262 : f32 to vector<16x256xf32>
    %493 = arith.cmpf ogt, %491, %492 : vector<16x256xf32>
    %cst_263 = arith.constant 0.00999999977 : f32
    %494 = vector.broadcast %cst_263 : f32 to vector<16x256xf32>
    %495 = arith.mulf %494, %491 : vector<16x256xf32>
    %496 = arith.select %493, %491, %495 : vector<16x256xi1>, vector<16x256xf32>
    %c8_264 = arith.constant 8 : index
    %c0_265 = arith.constant 0 : index
    %c0_266 = arith.constant 0 : index
    %c0_267 = arith.constant 0 : index
    %497 = vector.load %arg3[%c8_264, %c0_265, %c0_266, %c0_267] : memref<15x3x16x16xf32, #tpu.memory_space<vmem>>, vector<1x1x16x16xf32>
    %498 = vector.shape_cast %497 : vector<1x1x16x16xf32> to vector<16x16xf32>
    %cst_268 = arith.constant dense<0.000000e+00> : vector<16x256xf32>
    %499 = tpu.matmul %498, %496, %cst_268 {dimension_numbers = #tpu.dot_dimension_numbers<[1], [0], [0], [1], [0, 0, 1, 1], [], []>} : vector<16x16xf32>, vector<16x256xf32>, vector<16x256xf32> -> vector<16x256xf32>
    %500 = vector.extract_strided_slice %484 {offsets = [0, 2], sizes = [16, 1], strides = [1, 1]} : vector<16x5xf32> to vector<16x1xf32>
    %501 = vector.broadcast %500 : vector<16x1xf32> to vector<16x256xf32>
    %502 = arith.addf %499, %501 : vector<16x256xf32>
    %cst_269 = arith.constant 0.000000e+00 : f32
    %503 = vector.broadcast %cst_269 : f32 to vector<16x256xf32>
    %504 = arith.cmpf ogt, %502, %503 : vector<16x256xf32>
    %cst_270 = arith.constant 0.00999999977 : f32
    %505 = vector.broadcast %cst_270 : f32 to vector<16x256xf32>
    %506 = arith.mulf %505, %502 : vector<16x256xf32>
    %507 = arith.select %504, %502, %506 : vector<16x256xi1>, vector<16x256xf32>
    %c8_271 = arith.constant 8 : index
    %c1_272 = arith.constant 1 : index
    %c0_273 = arith.constant 0 : index
    %c0_274 = arith.constant 0 : index
    %508 = vector.load %arg3[%c8_271, %c1_272, %c0_273, %c0_274] : memref<15x3x16x16xf32, #tpu.memory_space<vmem>>, vector<1x1x16x16xf32>
    %509 = vector.shape_cast %508 : vector<1x1x16x16xf32> to vector<16x16xf32>
    %cst_275 = arith.constant dense<0.000000e+00> : vector<16x256xf32>
    %510 = tpu.matmul %509, %507, %cst_275 {dimension_numbers = #tpu.dot_dimension_numbers<[1], [0], [0], [1], [0, 0, 1, 1], [], []>} : vector<16x16xf32>, vector<16x256xf32>, vector<16x256xf32> -> vector<16x256xf32>
    %511 = vector.extract_strided_slice %484 {offsets = [0, 3], sizes = [16, 1], strides = [1, 1]} : vector<16x5xf32> to vector<16x1xf32>
    %512 = vector.broadcast %511 : vector<16x1xf32> to vector<16x256xf32>
    %513 = arith.addf %510, %512 : vector<16x256xf32>
    %cst_276 = arith.constant 0.000000e+00 : f32
    %514 = vector.broadcast %cst_276 : f32 to vector<16x256xf32>
    %515 = arith.cmpf ogt, %513, %514 : vector<16x256xf32>
    %cst_277 = arith.constant 0.00999999977 : f32
    %516 = vector.broadcast %cst_277 : f32 to vector<16x256xf32>
    %517 = arith.mulf %516, %513 : vector<16x256xf32>
    %518 = arith.select %515, %513, %517 : vector<16x256xi1>, vector<16x256xf32>
    %c8_278 = arith.constant 8 : index
    %c2_279 = arith.constant 2 : index
    %c0_280 = arith.constant 0 : index
    %c0_281 = arith.constant 0 : index
    %519 = vector.load %arg3[%c8_278, %c2_279, %c0_280, %c0_281] : memref<15x3x16x16xf32, #tpu.memory_space<vmem>>, vector<1x1x16x16xf32>
    %520 = vector.shape_cast %519 : vector<1x1x16x16xf32> to vector<16x16xf32>
    %cst_282 = arith.constant dense<0.000000e+00> : vector<16x256xf32>
    %521 = tpu.matmul %520, %518, %cst_282 {dimension_numbers = #tpu.dot_dimension_numbers<[1], [0], [0], [1], [0, 0, 1, 1], [], []>} : vector<16x16xf32>, vector<16x256xf32>, vector<16x256xf32> -> vector<16x256xf32>
    %522 = vector.extract_strided_slice %484 {offsets = [0, 4], sizes = [16, 1], strides = [1, 1]} : vector<16x5xf32> to vector<16x1xf32>
    %523 = vector.broadcast %522 : vector<16x1xf32> to vector<16x256xf32>
    %524 = arith.addf %521, %523 : vector<16x256xf32>
    %cst_283 = arith.constant 0.000000e+00 : f32
    %525 = vector.broadcast %cst_283 : f32 to vector<16x256xf32>
    %526 = arith.cmpf ogt, %524, %525 : vector<16x256xf32>
    %cst_284 = arith.constant 0.00999999977 : f32
    %527 = vector.broadcast %cst_284 : f32 to vector<16x256xf32>
    %528 = arith.mulf %527, %524 : vector<16x256xf32>
    %529 = arith.select %526, %524, %528 : vector<16x256xi1>, vector<16x256xf32>
    %c8_285 = arith.constant 8 : index
    %c0_286 = arith.constant 0 : index
    %c0_287 = arith.constant 0 : index
    %530 = vector.load %arg4[%c8_285, %c0_286, %c0_287] : memref<15x2x16xf32, #tpu.memory_space<vmem>>, vector<1x2x16xf32>
    %531 = vector.shape_cast %530 : vector<1x2x16xf32> to vector<2x16xf32>
    %cst_288 = arith.constant dense<0.000000e+00> : vector<2x256xf32>
    %532 = tpu.matmul %531, %529, %cst_288 {dimension_numbers = #tpu.dot_dimension_numbers<[1], [0], [0], [1], [0, 0, 1, 1], [], []>} : vector<2x16xf32>, vector<16x256xf32>, vector<2x256xf32> -> vector<2x256xf32>
    %c8_289 = arith.constant 8 : index
    %c0_290 = arith.constant 0 : index
    %c0_291 = arith.constant 0 : index
    %533 = vector.load %arg5[%c8_289, %c0_290, %c0_291] : memref<15x2x1xf32, #tpu.memory_space<vmem>>, vector<1x2x1xf32>
    %534 = vector.shape_cast %533 : vector<1x2x1xf32> to vector<2x1xf32>
    %535 = vector.broadcast %534 : vector<2x1xf32> to vector<2x256xf32>
    %536 = arith.addf %532, %535 : vector<2x256xf32>
    %537 = vector.extract_strided_slice %536 {offsets = [0, 0], sizes = [1, 256], strides = [1, 1]} : vector<2x256xf32> to vector<1x256xf32>
    %538 = vector.extract_strided_slice %536 {offsets = [1, 0], sizes = [1, 256], strides = [1, 1]} : vector<2x256xf32> to vector<1x256xf32>
    %539 = math.exp %537 : vector<1x256xf32>
    %540 = arith.mulf %539, %481 : vector<1x256xf32>
    %541 = arith.addf %540, %538 : vector<1x256xf32>
    %542 = arith.addf %482, %537 : vector<1x256xf32>
    %c9 = arith.constant 9 : index
    %c0_292 = arith.constant 0 : index
    %c0_293 = arith.constant 0 : index
    %543 = vector.load %arg2[%c9, %c0_292, %c0_293] : memref<15x16x5xf32, #tpu.memory_space<vmem>>, vector<1x16x5xf32>
    %544 = vector.shape_cast %543 : vector<1x16x5xf32> to vector<16x5xf32>
    %545 = vector.extract_strided_slice %544 {offsets = [0, 0], sizes = [16, 1], strides = [1, 1]} : vector<16x5xf32> to vector<16x1xf32>
    %546 = vector.broadcast %545 : vector<16x1xf32> to vector<16x256xf32>
    %547 = vector.broadcast %361 : vector<1x256xf32> to vector<16x256xf32>
    %548 = arith.mulf %546, %547 : vector<16x256xf32>
    %549 = vector.extract_strided_slice %544 {offsets = [0, 1], sizes = [16, 1], strides = [1, 1]} : vector<16x5xf32> to vector<16x1xf32>
    %550 = vector.broadcast %549 : vector<16x1xf32> to vector<16x256xf32>
    %551 = arith.addf %548, %550 : vector<16x256xf32>
    %cst_294 = arith.constant 0.000000e+00 : f32
    %552 = vector.broadcast %cst_294 : f32 to vector<16x256xf32>
    %553 = arith.cmpf ogt, %551, %552 : vector<16x256xf32>
    %cst_295 = arith.constant 0.00999999977 : f32
    %554 = vector.broadcast %cst_295 : f32 to vector<16x256xf32>
    %555 = arith.mulf %554, %551 : vector<16x256xf32>
    %556 = arith.select %553, %551, %555 : vector<16x256xi1>, vector<16x256xf32>
    %c9_296 = arith.constant 9 : index
    %c0_297 = arith.constant 0 : index
    %c0_298 = arith.constant 0 : index
    %c0_299 = arith.constant 0 : index
    %557 = vector.load %arg3[%c9_296, %c0_297, %c0_298, %c0_299] : memref<15x3x16x16xf32, #tpu.memory_space<vmem>>, vector<1x1x16x16xf32>
    %558 = vector.shape_cast %557 : vector<1x1x16x16xf32> to vector<16x16xf32>
    %cst_300 = arith.constant dense<0.000000e+00> : vector<16x256xf32>
    %559 = tpu.matmul %558, %556, %cst_300 {dimension_numbers = #tpu.dot_dimension_numbers<[1], [0], [0], [1], [0, 0, 1, 1], [], []>} : vector<16x16xf32>, vector<16x256xf32>, vector<16x256xf32> -> vector<16x256xf32>
    %560 = vector.extract_strided_slice %544 {offsets = [0, 2], sizes = [16, 1], strides = [1, 1]} : vector<16x5xf32> to vector<16x1xf32>
    %561 = vector.broadcast %560 : vector<16x1xf32> to vector<16x256xf32>
    %562 = arith.addf %559, %561 : vector<16x256xf32>
    %cst_301 = arith.constant 0.000000e+00 : f32
    %563 = vector.broadcast %cst_301 : f32 to vector<16x256xf32>
    %564 = arith.cmpf ogt, %562, %563 : vector<16x256xf32>
    %cst_302 = arith.constant 0.00999999977 : f32
    %565 = vector.broadcast %cst_302 : f32 to vector<16x256xf32>
    %566 = arith.mulf %565, %562 : vector<16x256xf32>
    %567 = arith.select %564, %562, %566 : vector<16x256xi1>, vector<16x256xf32>
    %c9_303 = arith.constant 9 : index
    %c1_304 = arith.constant 1 : index
    %c0_305 = arith.constant 0 : index
    %c0_306 = arith.constant 0 : index
    %568 = vector.load %arg3[%c9_303, %c1_304, %c0_305, %c0_306] : memref<15x3x16x16xf32, #tpu.memory_space<vmem>>, vector<1x1x16x16xf32>
    %569 = vector.shape_cast %568 : vector<1x1x16x16xf32> to vector<16x16xf32>
    %cst_307 = arith.constant dense<0.000000e+00> : vector<16x256xf32>
    %570 = tpu.matmul %569, %567, %cst_307 {dimension_numbers = #tpu.dot_dimension_numbers<[1], [0], [0], [1], [0, 0, 1, 1], [], []>} : vector<16x16xf32>, vector<16x256xf32>, vector<16x256xf32> -> vector<16x256xf32>
    %571 = vector.extract_strided_slice %544 {offsets = [0, 3], sizes = [16, 1], strides = [1, 1]} : vector<16x5xf32> to vector<16x1xf32>
    %572 = vector.broadcast %571 : vector<16x1xf32> to vector<16x256xf32>
    %573 = arith.addf %570, %572 : vector<16x256xf32>
    %cst_308 = arith.constant 0.000000e+00 : f32
    %574 = vector.broadcast %cst_308 : f32 to vector<16x256xf32>
    %575 = arith.cmpf ogt, %573, %574 : vector<16x256xf32>
    %cst_309 = arith.constant 0.00999999977 : f32
    %576 = vector.broadcast %cst_309 : f32 to vector<16x256xf32>
    %577 = arith.mulf %576, %573 : vector<16x256xf32>
    %578 = arith.select %575, %573, %577 : vector<16x256xi1>, vector<16x256xf32>
    %c9_310 = arith.constant 9 : index
    %c2_311 = arith.constant 2 : index
    %c0_312 = arith.constant 0 : index
    %c0_313 = arith.constant 0 : index
    %579 = vector.load %arg3[%c9_310, %c2_311, %c0_312, %c0_313] : memref<15x3x16x16xf32, #tpu.memory_space<vmem>>, vector<1x1x16x16xf32>
    %580 = vector.shape_cast %579 : vector<1x1x16x16xf32> to vector<16x16xf32>
    %cst_314 = arith.constant dense<0.000000e+00> : vector<16x256xf32>
    %581 = tpu.matmul %580, %578, %cst_314 {dimension_numbers = #tpu.dot_dimension_numbers<[1], [0], [0], [1], [0, 0, 1, 1], [], []>} : vector<16x16xf32>, vector<16x256xf32>, vector<16x256xf32> -> vector<16x256xf32>
    %582 = vector.extract_strided_slice %544 {offsets = [0, 4], sizes = [16, 1], strides = [1, 1]} : vector<16x5xf32> to vector<16x1xf32>
    %583 = vector.broadcast %582 : vector<16x1xf32> to vector<16x256xf32>
    %584 = arith.addf %581, %583 : vector<16x256xf32>
    %cst_315 = arith.constant 0.000000e+00 : f32
    %585 = vector.broadcast %cst_315 : f32 to vector<16x256xf32>
    %586 = arith.cmpf ogt, %584, %585 : vector<16x256xf32>
    %cst_316 = arith.constant 0.00999999977 : f32
    %587 = vector.broadcast %cst_316 : f32 to vector<16x256xf32>
    %588 = arith.mulf %587, %584 : vector<16x256xf32>
    %589 = arith.select %586, %584, %588 : vector<16x256xi1>, vector<16x256xf32>
    %c9_317 = arith.constant 9 : index
    %c0_318 = arith.constant 0 : index
    %c0_319 = arith.constant 0 : index
    %590 = vector.load %arg4[%c9_317, %c0_318, %c0_319] : memref<15x2x16xf32, #tpu.memory_space<vmem>>, vector<1x2x16xf32>
    %591 = vector.shape_cast %590 : vector<1x2x16xf32> to vector<2x16xf32>
    %cst_320 = arith.constant dense<0.000000e+00> : vector<2x256xf32>
    %592 = tpu.matmul %591, %589, %cst_320 {dimension_numbers = #tpu.dot_dimension_numbers<[1], [0], [0], [1], [0, 0, 1, 1], [], []>} : vector<2x16xf32>, vector<16x256xf32>, vector<2x256xf32> -> vector<2x256xf32>
    %c9_321 = arith.constant 9 : index
    %c0_322 = arith.constant 0 : index
    %c0_323 = arith.constant 0 : index
    %593 = vector.load %arg5[%c9_321, %c0_322, %c0_323] : memref<15x2x1xf32, #tpu.memory_space<vmem>>, vector<1x2x1xf32>
    %594 = vector.shape_cast %593 : vector<1x2x1xf32> to vector<2x1xf32>
    %595 = vector.broadcast %594 : vector<2x1xf32> to vector<2x256xf32>
    %596 = arith.addf %592, %595 : vector<2x256xf32>
    %597 = vector.extract_strided_slice %596 {offsets = [0, 0], sizes = [1, 256], strides = [1, 1]} : vector<2x256xf32> to vector<1x256xf32>
    %598 = vector.extract_strided_slice %596 {offsets = [1, 0], sizes = [1, 256], strides = [1, 1]} : vector<2x256xf32> to vector<1x256xf32>
    %599 = math.exp %597 : vector<1x256xf32>
    %600 = arith.mulf %599, %541 : vector<1x256xf32>
    %601 = arith.addf %600, %598 : vector<1x256xf32>
    %602 = arith.addf %542, %597 : vector<1x256xf32>
    %c10 = arith.constant 10 : index
    %c0_324 = arith.constant 0 : index
    %c0_325 = arith.constant 0 : index
    %603 = vector.load %arg2[%c10, %c0_324, %c0_325] : memref<15x16x5xf32, #tpu.memory_space<vmem>>, vector<1x16x5xf32>
    %604 = vector.shape_cast %603 : vector<1x16x5xf32> to vector<16x5xf32>
    %605 = vector.extract_strided_slice %604 {offsets = [0, 0], sizes = [16, 1], strides = [1, 1]} : vector<16x5xf32> to vector<16x1xf32>
    %606 = vector.broadcast %605 : vector<16x1xf32> to vector<16x256xf32>
    %607 = vector.broadcast %601 : vector<1x256xf32> to vector<16x256xf32>
    %608 = arith.mulf %606, %607 : vector<16x256xf32>
    %609 = vector.extract_strided_slice %604 {offsets = [0, 1], sizes = [16, 1], strides = [1, 1]} : vector<16x5xf32> to vector<16x1xf32>
    %610 = vector.broadcast %609 : vector<16x1xf32> to vector<16x256xf32>
    %611 = arith.addf %608, %610 : vector<16x256xf32>
    %cst_326 = arith.constant 0.000000e+00 : f32
    %612 = vector.broadcast %cst_326 : f32 to vector<16x256xf32>
    %613 = arith.cmpf ogt, %611, %612 : vector<16x256xf32>
    %cst_327 = arith.constant 0.00999999977 : f32
    %614 = vector.broadcast %cst_327 : f32 to vector<16x256xf32>
    %615 = arith.mulf %614, %611 : vector<16x256xf32>
    %616 = arith.select %613, %611, %615 : vector<16x256xi1>, vector<16x256xf32>
    %c10_328 = arith.constant 10 : index
    %c0_329 = arith.constant 0 : index
    %c0_330 = arith.constant 0 : index
    %c0_331 = arith.constant 0 : index
    %617 = vector.load %arg3[%c10_328, %c0_329, %c0_330, %c0_331] : memref<15x3x16x16xf32, #tpu.memory_space<vmem>>, vector<1x1x16x16xf32>
    %618 = vector.shape_cast %617 : vector<1x1x16x16xf32> to vector<16x16xf32>
    %cst_332 = arith.constant dense<0.000000e+00> : vector<16x256xf32>
    %619 = tpu.matmul %618, %616, %cst_332 {dimension_numbers = #tpu.dot_dimension_numbers<[1], [0], [0], [1], [0, 0, 1, 1], [], []>} : vector<16x16xf32>, vector<16x256xf32>, vector<16x256xf32> -> vector<16x256xf32>
    %620 = vector.extract_strided_slice %604 {offsets = [0, 2], sizes = [16, 1], strides = [1, 1]} : vector<16x5xf32> to vector<16x1xf32>
    %621 = vector.broadcast %620 : vector<16x1xf32> to vector<16x256xf32>
    %622 = arith.addf %619, %621 : vector<16x256xf32>
    %cst_333 = arith.constant 0.000000e+00 : f32
    %623 = vector.broadcast %cst_333 : f32 to vector<16x256xf32>
    %624 = arith.cmpf ogt, %622, %623 : vector<16x256xf32>
    %cst_334 = arith.constant 0.00999999977 : f32
    %625 = vector.broadcast %cst_334 : f32 to vector<16x256xf32>
    %626 = arith.mulf %625, %622 : vector<16x256xf32>
    %627 = arith.select %624, %622, %626 : vector<16x256xi1>, vector<16x256xf32>
    %c10_335 = arith.constant 10 : index
    %c1_336 = arith.constant 1 : index
    %c0_337 = arith.constant 0 : index
    %c0_338 = arith.constant 0 : index
    %628 = vector.load %arg3[%c10_335, %c1_336, %c0_337, %c0_338] : memref<15x3x16x16xf32, #tpu.memory_space<vmem>>, vector<1x1x16x16xf32>
    %629 = vector.shape_cast %628 : vector<1x1x16x16xf32> to vector<16x16xf32>
    %cst_339 = arith.constant dense<0.000000e+00> : vector<16x256xf32>
    %630 = tpu.matmul %629, %627, %cst_339 {dimension_numbers = #tpu.dot_dimension_numbers<[1], [0], [0], [1], [0, 0, 1, 1], [], []>} : vector<16x16xf32>, vector<16x256xf32>, vector<16x256xf32> -> vector<16x256xf32>
    %631 = vector.extract_strided_slice %604 {offsets = [0, 3], sizes = [16, 1], strides = [1, 1]} : vector<16x5xf32> to vector<16x1xf32>
    %632 = vector.broadcast %631 : vector<16x1xf32> to vector<16x256xf32>
    %633 = arith.addf %630, %632 : vector<16x256xf32>
    %cst_340 = arith.constant 0.000000e+00 : f32
    %634 = vector.broadcast %cst_340 : f32 to vector<16x256xf32>
    %635 = arith.cmpf ogt, %633, %634 : vector<16x256xf32>
    %cst_341 = arith.constant 0.00999999977 : f32
    %636 = vector.broadcast %cst_341 : f32 to vector<16x256xf32>
    %637 = arith.mulf %636, %633 : vector<16x256xf32>
    %638 = arith.select %635, %633, %637 : vector<16x256xi1>, vector<16x256xf32>
    %c10_342 = arith.constant 10 : index
    %c2_343 = arith.constant 2 : index
    %c0_344 = arith.constant 0 : index
    %c0_345 = arith.constant 0 : index
    %639 = vector.load %arg3[%c10_342, %c2_343, %c0_344, %c0_345] : memref<15x3x16x16xf32, #tpu.memory_space<vmem>>, vector<1x1x16x16xf32>
    %640 = vector.shape_cast %639 : vector<1x1x16x16xf32> to vector<16x16xf32>
    %cst_346 = arith.constant dense<0.000000e+00> : vector<16x256xf32>
    %641 = tpu.matmul %640, %638, %cst_346 {dimension_numbers = #tpu.dot_dimension_numbers<[1], [0], [0], [1], [0, 0, 1, 1], [], []>} : vector<16x16xf32>, vector<16x256xf32>, vector<16x256xf32> -> vector<16x256xf32>
    %642 = vector.extract_strided_slice %604 {offsets = [0, 4], sizes = [16, 1], strides = [1, 1]} : vector<16x5xf32> to vector<16x1xf32>
    %643 = vector.broadcast %642 : vector<16x1xf32> to vector<16x256xf32>
    %644 = arith.addf %641, %643 : vector<16x256xf32>
    %cst_347 = arith.constant 0.000000e+00 : f32
    %645 = vector.broadcast %cst_347 : f32 to vector<16x256xf32>
    %646 = arith.cmpf ogt, %644, %645 : vector<16x256xf32>
    %cst_348 = arith.constant 0.00999999977 : f32
    %647 = vector.broadcast %cst_348 : f32 to vector<16x256xf32>
    %648 = arith.mulf %647, %644 : vector<16x256xf32>
    %649 = arith.select %646, %644, %648 : vector<16x256xi1>, vector<16x256xf32>
    %c10_349 = arith.constant 10 : index
    %c0_350 = arith.constant 0 : index
    %c0_351 = arith.constant 0 : index
    %650 = vector.load %arg4[%c10_349, %c0_350, %c0_351] : memref<15x2x16xf32, #tpu.memory_space<vmem>>, vector<1x2x16xf32>
    %651 = vector.shape_cast %650 : vector<1x2x16xf32> to vector<2x16xf32>
    %cst_352 = arith.constant dense<0.000000e+00> : vector<2x256xf32>
    %652 = tpu.matmul %651, %649, %cst_352 {dimension_numbers = #tpu.dot_dimension_numbers<[1], [0], [0], [1], [0, 0, 1, 1], [], []>} : vector<2x16xf32>, vector<16x256xf32>, vector<2x256xf32> -> vector<2x256xf32>
    %c10_353 = arith.constant 10 : index
    %c0_354 = arith.constant 0 : index
    %c0_355 = arith.constant 0 : index
    %653 = vector.load %arg5[%c10_353, %c0_354, %c0_355] : memref<15x2x1xf32, #tpu.memory_space<vmem>>, vector<1x2x1xf32>
    %654 = vector.shape_cast %653 : vector<1x2x1xf32> to vector<2x1xf32>
    %655 = vector.broadcast %654 : vector<2x1xf32> to vector<2x256xf32>
    %656 = arith.addf %652, %655 : vector<2x256xf32>
    %657 = vector.extract_strided_slice %656 {offsets = [0, 0], sizes = [1, 256], strides = [1, 1]} : vector<2x256xf32> to vector<1x256xf32>
    %658 = vector.extract_strided_slice %656 {offsets = [1, 0], sizes = [1, 256], strides = [1, 1]} : vector<2x256xf32> to vector<1x256xf32>
    %659 = math.exp %657 : vector<1x256xf32>
    %660 = arith.mulf %659, %361 : vector<1x256xf32>
    %661 = arith.addf %660, %658 : vector<1x256xf32>
    %662 = arith.addf %602, %657 : vector<1x256xf32>
    %c11 = arith.constant 11 : index
    %c0_356 = arith.constant 0 : index
    %c0_357 = arith.constant 0 : index
    %663 = vector.load %arg2[%c11, %c0_356, %c0_357] : memref<15x16x5xf32, #tpu.memory_space<vmem>>, vector<1x16x5xf32>
    %664 = vector.shape_cast %663 : vector<1x16x5xf32> to vector<16x5xf32>
    %665 = vector.extract_strided_slice %664 {offsets = [0, 0], sizes = [16, 1], strides = [1, 1]} : vector<16x5xf32> to vector<16x1xf32>
    %666 = vector.broadcast %665 : vector<16x1xf32> to vector<16x256xf32>
    %667 = vector.broadcast %601 : vector<1x256xf32> to vector<16x256xf32>
    %668 = arith.mulf %666, %667 : vector<16x256xf32>
    %669 = vector.extract_strided_slice %664 {offsets = [0, 1], sizes = [16, 1], strides = [1, 1]} : vector<16x5xf32> to vector<16x1xf32>
    %670 = vector.broadcast %669 : vector<16x1xf32> to vector<16x256xf32>
    %671 = arith.addf %668, %670 : vector<16x256xf32>
    %cst_358 = arith.constant 0.000000e+00 : f32
    %672 = vector.broadcast %cst_358 : f32 to vector<16x256xf32>
    %673 = arith.cmpf ogt, %671, %672 : vector<16x256xf32>
    %cst_359 = arith.constant 0.00999999977 : f32
    %674 = vector.broadcast %cst_359 : f32 to vector<16x256xf32>
    %675 = arith.mulf %674, %671 : vector<16x256xf32>
    %676 = arith.select %673, %671, %675 : vector<16x256xi1>, vector<16x256xf32>
    %c11_360 = arith.constant 11 : index
    %c0_361 = arith.constant 0 : index
    %c0_362 = arith.constant 0 : index
    %c0_363 = arith.constant 0 : index
    %677 = vector.load %arg3[%c11_360, %c0_361, %c0_362, %c0_363] : memref<15x3x16x16xf32, #tpu.memory_space<vmem>>, vector<1x1x16x16xf32>
    %678 = vector.shape_cast %677 : vector<1x1x16x16xf32> to vector<16x16xf32>
    %cst_364 = arith.constant dense<0.000000e+00> : vector<16x256xf32>
    %679 = tpu.matmul %678, %676, %cst_364 {dimension_numbers = #tpu.dot_dimension_numbers<[1], [0], [0], [1], [0, 0, 1, 1], [], []>} : vector<16x16xf32>, vector<16x256xf32>, vector<16x256xf32> -> vector<16x256xf32>
    %680 = vector.extract_strided_slice %664 {offsets = [0, 2], sizes = [16, 1], strides = [1, 1]} : vector<16x5xf32> to vector<16x1xf32>
    %681 = vector.broadcast %680 : vector<16x1xf32> to vector<16x256xf32>
    %682 = arith.addf %679, %681 : vector<16x256xf32>
    %cst_365 = arith.constant 0.000000e+00 : f32
    %683 = vector.broadcast %cst_365 : f32 to vector<16x256xf32>
    %684 = arith.cmpf ogt, %682, %683 : vector<16x256xf32>
    %cst_366 = arith.constant 0.00999999977 : f32
    %685 = vector.broadcast %cst_366 : f32 to vector<16x256xf32>
    %686 = arith.mulf %685, %682 : vector<16x256xf32>
    %687 = arith.select %684, %682, %686 : vector<16x256xi1>, vector<16x256xf32>
    %c11_367 = arith.constant 11 : index
    %c1_368 = arith.constant 1 : index
    %c0_369 = arith.constant 0 : index
    %c0_370 = arith.constant 0 : index
    %688 = vector.load %arg3[%c11_367, %c1_368, %c0_369, %c0_370] : memref<15x3x16x16xf32, #tpu.memory_space<vmem>>, vector<1x1x16x16xf32>
    %689 = vector.shape_cast %688 : vector<1x1x16x16xf32> to vector<16x16xf32>
    %cst_371 = arith.constant dense<0.000000e+00> : vector<16x256xf32>
    %690 = tpu.matmul %689, %687, %cst_371 {dimension_numbers = #tpu.dot_dimension_numbers<[1], [0], [0], [1], [0, 0, 1, 1], [], []>} : vector<16x16xf32>, vector<16x256xf32>, vector<16x256xf32> -> vector<16x256xf32>
    %691 = vector.extract_strided_slice %664 {offsets = [0, 3], sizes = [16, 1], strides = [1, 1]} : vector<16x5xf32> to vector<16x1xf32>
    %692 = vector.broadcast %691 : vector<16x1xf32> to vector<16x256xf32>
    %693 = arith.addf %690, %692 : vector<16x256xf32>
    %cst_372 = arith.constant 0.000000e+00 : f32
    %694 = vector.broadcast %cst_372 : f32 to vector<16x256xf32>
    %695 = arith.cmpf ogt, %693, %694 : vector<16x256xf32>
    %cst_373 = arith.constant 0.00999999977 : f32
    %696 = vector.broadcast %cst_373 : f32 to vector<16x256xf32>
    %697 = arith.mulf %696, %693 : vector<16x256xf32>
    %698 = arith.select %695, %693, %697 : vector<16x256xi1>, vector<16x256xf32>
    %c11_374 = arith.constant 11 : index
    %c2_375 = arith.constant 2 : index
    %c0_376 = arith.constant 0 : index
    %c0_377 = arith.constant 0 : index
    %699 = vector.load %arg3[%c11_374, %c2_375, %c0_376, %c0_377] : memref<15x3x16x16xf32, #tpu.memory_space<vmem>>, vector<1x1x16x16xf32>
    %700 = vector.shape_cast %699 : vector<1x1x16x16xf32> to vector<16x16xf32>
    %cst_378 = arith.constant dense<0.000000e+00> : vector<16x256xf32>
    %701 = tpu.matmul %700, %698, %cst_378 {dimension_numbers = #tpu.dot_dimension_numbers<[1], [0], [0], [1], [0, 0, 1, 1], [], []>} : vector<16x16xf32>, vector<16x256xf32>, vector<16x256xf32> -> vector<16x256xf32>
    %702 = vector.extract_strided_slice %664 {offsets = [0, 4], sizes = [16, 1], strides = [1, 1]} : vector<16x5xf32> to vector<16x1xf32>
    %703 = vector.broadcast %702 : vector<16x1xf32> to vector<16x256xf32>
    %704 = arith.addf %701, %703 : vector<16x256xf32>
    %cst_379 = arith.constant 0.000000e+00 : f32
    %705 = vector.broadcast %cst_379 : f32 to vector<16x256xf32>
    %706 = arith.cmpf ogt, %704, %705 : vector<16x256xf32>
    %cst_380 = arith.constant 0.00999999977 : f32
    %707 = vector.broadcast %cst_380 : f32 to vector<16x256xf32>
    %708 = arith.mulf %707, %704 : vector<16x256xf32>
    %709 = arith.select %706, %704, %708 : vector<16x256xi1>, vector<16x256xf32>
    %c11_381 = arith.constant 11 : index
    %c0_382 = arith.constant 0 : index
    %c0_383 = arith.constant 0 : index
    %710 = vector.load %arg4[%c11_381, %c0_382, %c0_383] : memref<15x2x16xf32, #tpu.memory_space<vmem>>, vector<1x2x16xf32>
    %711 = vector.shape_cast %710 : vector<1x2x16xf32> to vector<2x16xf32>
    %cst_384 = arith.constant dense<0.000000e+00> : vector<2x256xf32>
    %712 = tpu.matmul %711, %709, %cst_384 {dimension_numbers = #tpu.dot_dimension_numbers<[1], [0], [0], [1], [0, 0, 1, 1], [], []>} : vector<2x16xf32>, vector<16x256xf32>, vector<2x256xf32> -> vector<2x256xf32>
    %c11_385 = arith.constant 11 : index
    %c0_386 = arith.constant 0 : index
    %c0_387 = arith.constant 0 : index
    %713 = vector.load %arg5[%c11_385, %c0_386, %c0_387] : memref<15x2x1xf32, #tpu.memory_space<vmem>>, vector<1x2x1xf32>
    %714 = vector.shape_cast %713 : vector<1x2x1xf32> to vector<2x1xf32>
    %715 = vector.broadcast %714 : vector<2x1xf32> to vector<2x256xf32>
    %716 = arith.addf %712, %715 : vector<2x256xf32>
    %717 = vector.extract_strided_slice %716 {offsets = [0, 0], sizes = [1, 256], strides = [1, 1]} : vector<2x256xf32> to vector<1x256xf32>
    %718 = vector.extract_strided_slice %716 {offsets = [1, 0], sizes = [1, 256], strides = [1, 1]} : vector<2x256xf32> to vector<1x256xf32>
    %719 = math.exp %717 : vector<1x256xf32>
    %720 = arith.mulf %719, %661 : vector<1x256xf32>
    %721 = arith.addf %720, %718 : vector<1x256xf32>
    %722 = arith.addf %662, %717 : vector<1x256xf32>
    %c12 = arith.constant 12 : index
    %c0_388 = arith.constant 0 : index
    %c0_389 = arith.constant 0 : index
    %723 = vector.load %arg2[%c12, %c0_388, %c0_389] : memref<15x16x5xf32, #tpu.memory_space<vmem>>, vector<1x16x5xf32>
    %724 = vector.shape_cast %723 : vector<1x16x5xf32> to vector<16x5xf32>
    %725 = vector.extract_strided_slice %724 {offsets = [0, 0], sizes = [16, 1], strides = [1, 1]} : vector<16x5xf32> to vector<16x1xf32>
    %726 = vector.broadcast %725 : vector<16x1xf32> to vector<16x256xf32>
    %727 = vector.broadcast %721 : vector<1x256xf32> to vector<16x256xf32>
    %728 = arith.mulf %726, %727 : vector<16x256xf32>
    %729 = vector.extract_strided_slice %724 {offsets = [0, 1], sizes = [16, 1], strides = [1, 1]} : vector<16x5xf32> to vector<16x1xf32>
    %730 = vector.broadcast %729 : vector<16x1xf32> to vector<16x256xf32>
    %731 = arith.addf %728, %730 : vector<16x256xf32>
    %cst_390 = arith.constant 0.000000e+00 : f32
    %732 = vector.broadcast %cst_390 : f32 to vector<16x256xf32>
    %733 = arith.cmpf ogt, %731, %732 : vector<16x256xf32>
    %cst_391 = arith.constant 0.00999999977 : f32
    %734 = vector.broadcast %cst_391 : f32 to vector<16x256xf32>
    %735 = arith.mulf %734, %731 : vector<16x256xf32>
    %736 = arith.select %733, %731, %735 : vector<16x256xi1>, vector<16x256xf32>
    %c12_392 = arith.constant 12 : index
    %c0_393 = arith.constant 0 : index
    %c0_394 = arith.constant 0 : index
    %c0_395 = arith.constant 0 : index
    %737 = vector.load %arg3[%c12_392, %c0_393, %c0_394, %c0_395] : memref<15x3x16x16xf32, #tpu.memory_space<vmem>>, vector<1x1x16x16xf32>
    %738 = vector.shape_cast %737 : vector<1x1x16x16xf32> to vector<16x16xf32>
    %cst_396 = arith.constant dense<0.000000e+00> : vector<16x256xf32>
    %739 = tpu.matmul %738, %736, %cst_396 {dimension_numbers = #tpu.dot_dimension_numbers<[1], [0], [0], [1], [0, 0, 1, 1], [], []>} : vector<16x16xf32>, vector<16x256xf32>, vector<16x256xf32> -> vector<16x256xf32>
    %740 = vector.extract_strided_slice %724 {offsets = [0, 2], sizes = [16, 1], strides = [1, 1]} : vector<16x5xf32> to vector<16x1xf32>
    %741 = vector.broadcast %740 : vector<16x1xf32> to vector<16x256xf32>
    %742 = arith.addf %739, %741 : vector<16x256xf32>
    %cst_397 = arith.constant 0.000000e+00 : f32
    %743 = vector.broadcast %cst_397 : f32 to vector<16x256xf32>
    %744 = arith.cmpf ogt, %742, %743 : vector<16x256xf32>
    %cst_398 = arith.constant 0.00999999977 : f32
    %745 = vector.broadcast %cst_398 : f32 to vector<16x256xf32>
    %746 = arith.mulf %745, %742 : vector<16x256xf32>
    %747 = arith.select %744, %742, %746 : vector<16x256xi1>, vector<16x256xf32>
    %c12_399 = arith.constant 12 : index
    %c1_400 = arith.constant 1 : index
    %c0_401 = arith.constant 0 : index
    %c0_402 = arith.constant 0 : index
    %748 = vector.load %arg3[%c12_399, %c1_400, %c0_401, %c0_402] : memref<15x3x16x16xf32, #tpu.memory_space<vmem>>, vector<1x1x16x16xf32>
    %749 = vector.shape_cast %748 : vector<1x1x16x16xf32> to vector<16x16xf32>
    %cst_403 = arith.constant dense<0.000000e+00> : vector<16x256xf32>
    %750 = tpu.matmul %749, %747, %cst_403 {dimension_numbers = #tpu.dot_dimension_numbers<[1], [0], [0], [1], [0, 0, 1, 1], [], []>} : vector<16x16xf32>, vector<16x256xf32>, vector<16x256xf32> -> vector<16x256xf32>
    %751 = vector.extract_strided_slice %724 {offsets = [0, 3], sizes = [16, 1], strides = [1, 1]} : vector<16x5xf32> to vector<16x1xf32>
    %752 = vector.broadcast %751 : vector<16x1xf32> to vector<16x256xf32>
    %753 = arith.addf %750, %752 : vector<16x256xf32>
    %cst_404 = arith.constant 0.000000e+00 : f32
    %754 = vector.broadcast %cst_404 : f32 to vector<16x256xf32>
    %755 = arith.cmpf ogt, %753, %754 : vector<16x256xf32>
    %cst_405 = arith.constant 0.00999999977 : f32
    %756 = vector.broadcast %cst_405 : f32 to vector<16x256xf32>
    %757 = arith.mulf %756, %753 : vector<16x256xf32>
    %758 = arith.select %755, %753, %757 : vector<16x256xi1>, vector<16x256xf32>
    %c12_406 = arith.constant 12 : index
    %c2_407 = arith.constant 2 : index
    %c0_408 = arith.constant 0 : index
    %c0_409 = arith.constant 0 : index
    %759 = vector.load %arg3[%c12_406, %c2_407, %c0_408, %c0_409] : memref<15x3x16x16xf32, #tpu.memory_space<vmem>>, vector<1x1x16x16xf32>
    %760 = vector.shape_cast %759 : vector<1x1x16x16xf32> to vector<16x16xf32>
    %cst_410 = arith.constant dense<0.000000e+00> : vector<16x256xf32>
    %761 = tpu.matmul %760, %758, %cst_410 {dimension_numbers = #tpu.dot_dimension_numbers<[1], [0], [0], [1], [0, 0, 1, 1], [], []>} : vector<16x16xf32>, vector<16x256xf32>, vector<16x256xf32> -> vector<16x256xf32>
    %762 = vector.extract_strided_slice %724 {offsets = [0, 4], sizes = [16, 1], strides = [1, 1]} : vector<16x5xf32> to vector<16x1xf32>
    %763 = vector.broadcast %762 : vector<16x1xf32> to vector<16x256xf32>
    %764 = arith.addf %761, %763 : vector<16x256xf32>
    %cst_411 = arith.constant 0.000000e+00 : f32
    %765 = vector.broadcast %cst_411 : f32 to vector<16x256xf32>
    %766 = arith.cmpf ogt, %764, %765 : vector<16x256xf32>
    %cst_412 = arith.constant 0.00999999977 : f32
    %767 = vector.broadcast %cst_412 : f32 to vector<16x256xf32>
    %768 = arith.mulf %767, %764 : vector<16x256xf32>
    %769 = arith.select %766, %764, %768 : vector<16x256xi1>, vector<16x256xf32>
    %c12_413 = arith.constant 12 : index
    %c0_414 = arith.constant 0 : index
    %c0_415 = arith.constant 0 : index
    %770 = vector.load %arg4[%c12_413, %c0_414, %c0_415] : memref<15x2x16xf32, #tpu.memory_space<vmem>>, vector<1x2x16xf32>
    %771 = vector.shape_cast %770 : vector<1x2x16xf32> to vector<2x16xf32>
    %cst_416 = arith.constant dense<0.000000e+00> : vector<2x256xf32>
    %772 = tpu.matmul %771, %769, %cst_416 {dimension_numbers = #tpu.dot_dimension_numbers<[1], [0], [0], [1], [0, 0, 1, 1], [], []>} : vector<2x16xf32>, vector<16x256xf32>, vector<2x256xf32> -> vector<2x256xf32>
    %c12_417 = arith.constant 12 : index
    %c0_418 = arith.constant 0 : index
    %c0_419 = arith.constant 0 : index
    %773 = vector.load %arg5[%c12_417, %c0_418, %c0_419] : memref<15x2x1xf32, #tpu.memory_space<vmem>>, vector<1x2x1xf32>
    %774 = vector.shape_cast %773 : vector<1x2x1xf32> to vector<2x1xf32>
    %775 = vector.broadcast %774 : vector<2x1xf32> to vector<2x256xf32>
    %776 = arith.addf %772, %775 : vector<2x256xf32>
    %777 = vector.extract_strided_slice %776 {offsets = [0, 0], sizes = [1, 256], strides = [1, 1]} : vector<2x256xf32> to vector<1x256xf32>
    %778 = vector.extract_strided_slice %776 {offsets = [1, 0], sizes = [1, 256], strides = [1, 1]} : vector<2x256xf32> to vector<1x256xf32>
    %779 = math.exp %777 : vector<1x256xf32>
    %780 = arith.mulf %779, %601 : vector<1x256xf32>
    %781 = arith.addf %780, %778 : vector<1x256xf32>
    %782 = arith.addf %722, %777 : vector<1x256xf32>
    %c13 = arith.constant 13 : index
    %c0_420 = arith.constant 0 : index
    %c0_421 = arith.constant 0 : index
    %783 = vector.load %arg2[%c13, %c0_420, %c0_421] : memref<15x16x5xf32, #tpu.memory_space<vmem>>, vector<1x16x5xf32>
    %784 = vector.shape_cast %783 : vector<1x16x5xf32> to vector<16x5xf32>
    %785 = vector.extract_strided_slice %784 {offsets = [0, 0], sizes = [16, 1], strides = [1, 1]} : vector<16x5xf32> to vector<16x1xf32>
    %786 = vector.broadcast %785 : vector<16x1xf32> to vector<16x256xf32>
    %787 = vector.broadcast %781 : vector<1x256xf32> to vector<16x256xf32>
    %788 = arith.mulf %786, %787 : vector<16x256xf32>
    %789 = vector.extract_strided_slice %784 {offsets = [0, 1], sizes = [16, 1], strides = [1, 1]} : vector<16x5xf32> to vector<16x1xf32>
    %790 = vector.broadcast %789 : vector<16x1xf32> to vector<16x256xf32>
    %791 = arith.addf %788, %790 : vector<16x256xf32>
    %cst_422 = arith.constant 0.000000e+00 : f32
    %792 = vector.broadcast %cst_422 : f32 to vector<16x256xf32>
    %793 = arith.cmpf ogt, %791, %792 : vector<16x256xf32>
    %cst_423 = arith.constant 0.00999999977 : f32
    %794 = vector.broadcast %cst_423 : f32 to vector<16x256xf32>
    %795 = arith.mulf %794, %791 : vector<16x256xf32>
    %796 = arith.select %793, %791, %795 : vector<16x256xi1>, vector<16x256xf32>
    %c13_424 = arith.constant 13 : index
    %c0_425 = arith.constant 0 : index
    %c0_426 = arith.constant 0 : index
    %c0_427 = arith.constant 0 : index
    %797 = vector.load %arg3[%c13_424, %c0_425, %c0_426, %c0_427] : memref<15x3x16x16xf32, #tpu.memory_space<vmem>>, vector<1x1x16x16xf32>
    %798 = vector.shape_cast %797 : vector<1x1x16x16xf32> to vector<16x16xf32>
    %cst_428 = arith.constant dense<0.000000e+00> : vector<16x256xf32>
    %799 = tpu.matmul %798, %796, %cst_428 {dimension_numbers = #tpu.dot_dimension_numbers<[1], [0], [0], [1], [0, 0, 1, 1], [], []>} : vector<16x16xf32>, vector<16x256xf32>, vector<16x256xf32> -> vector<16x256xf32>
    %800 = vector.extract_strided_slice %784 {offsets = [0, 2], sizes = [16, 1], strides = [1, 1]} : vector<16x5xf32> to vector<16x1xf32>
    %801 = vector.broadcast %800 : vector<16x1xf32> to vector<16x256xf32>
    %802 = arith.addf %799, %801 : vector<16x256xf32>
    %cst_429 = arith.constant 0.000000e+00 : f32
    %803 = vector.broadcast %cst_429 : f32 to vector<16x256xf32>
    %804 = arith.cmpf ogt, %802, %803 : vector<16x256xf32>
    %cst_430 = arith.constant 0.00999999977 : f32
    %805 = vector.broadcast %cst_430 : f32 to vector<16x256xf32>
    %806 = arith.mulf %805, %802 : vector<16x256xf32>
    %807 = arith.select %804, %802, %806 : vector<16x256xi1>, vector<16x256xf32>
    %c13_431 = arith.constant 13 : index
    %c1_432 = arith.constant 1 : index
    %c0_433 = arith.constant 0 : index
    %c0_434 = arith.constant 0 : index
    %808 = vector.load %arg3[%c13_431, %c1_432, %c0_433, %c0_434] : memref<15x3x16x16xf32, #tpu.memory_space<vmem>>, vector<1x1x16x16xf32>
    %809 = vector.shape_cast %808 : vector<1x1x16x16xf32> to vector<16x16xf32>
    %cst_435 = arith.constant dense<0.000000e+00> : vector<16x256xf32>
    %810 = tpu.matmul %809, %807, %cst_435 {dimension_numbers = #tpu.dot_dimension_numbers<[1], [0], [0], [1], [0, 0, 1, 1], [], []>} : vector<16x16xf32>, vector<16x256xf32>, vector<16x256xf32> -> vector<16x256xf32>
    %811 = vector.extract_strided_slice %784 {offsets = [0, 3], sizes = [16, 1], strides = [1, 1]} : vector<16x5xf32> to vector<16x1xf32>
    %812 = vector.broadcast %811 : vector<16x1xf32> to vector<16x256xf32>
    %813 = arith.addf %810, %812 : vector<16x256xf32>
    %cst_436 = arith.constant 0.000000e+00 : f32
    %814 = vector.broadcast %cst_436 : f32 to vector<16x256xf32>
    %815 = arith.cmpf ogt, %813, %814 : vector<16x256xf32>
    %cst_437 = arith.constant 0.00999999977 : f32
    %816 = vector.broadcast %cst_437 : f32 to vector<16x256xf32>
    %817 = arith.mulf %816, %813 : vector<16x256xf32>
    %818 = arith.select %815, %813, %817 : vector<16x256xi1>, vector<16x256xf32>
    %c13_438 = arith.constant 13 : index
    %c2_439 = arith.constant 2 : index
    %c0_440 = arith.constant 0 : index
    %c0_441 = arith.constant 0 : index
    %819 = vector.load %arg3[%c13_438, %c2_439, %c0_440, %c0_441] : memref<15x3x16x16xf32, #tpu.memory_space<vmem>>, vector<1x1x16x16xf32>
    %820 = vector.shape_cast %819 : vector<1x1x16x16xf32> to vector<16x16xf32>
    %cst_442 = arith.constant dense<0.000000e+00> : vector<16x256xf32>
    %821 = tpu.matmul %820, %818, %cst_442 {dimension_numbers = #tpu.dot_dimension_numbers<[1], [0], [0], [1], [0, 0, 1, 1], [], []>} : vector<16x16xf32>, vector<16x256xf32>, vector<16x256xf32> -> vector<16x256xf32>
    %822 = vector.extract_strided_slice %784 {offsets = [0, 4], sizes = [16, 1], strides = [1, 1]} : vector<16x5xf32> to vector<16x1xf32>
    %823 = vector.broadcast %822 : vector<16x1xf32> to vector<16x256xf32>
    %824 = arith.addf %821, %823 : vector<16x256xf32>
    %cst_443 = arith.constant 0.000000e+00 : f32
    %825 = vector.broadcast %cst_443 : f32 to vector<16x256xf32>
    %826 = arith.cmpf ogt, %824, %825 : vector<16x256xf32>
    %cst_444 = arith.constant 0.00999999977 : f32
    %827 = vector.broadcast %cst_444 : f32 to vector<16x256xf32>
    %828 = arith.mulf %827, %824 : vector<16x256xf32>
    %829 = arith.select %826, %824, %828 : vector<16x256xi1>, vector<16x256xf32>
    %c13_445 = arith.constant 13 : index
    %c0_446 = arith.constant 0 : index
    %c0_447 = arith.constant 0 : index
    %830 = vector.load %arg4[%c13_445, %c0_446, %c0_447] : memref<15x2x16xf32, #tpu.memory_space<vmem>>, vector<1x2x16xf32>
    %831 = vector.shape_cast %830 : vector<1x2x16xf32> to vector<2x16xf32>
    %cst_448 = arith.constant dense<0.000000e+00> : vector<2x256xf32>
    %832 = tpu.matmul %831, %829, %cst_448 {dimension_numbers = #tpu.dot_dimension_numbers<[1], [0], [0], [1], [0, 0, 1, 1], [], []>} : vector<2x16xf32>, vector<16x256xf32>, vector<2x256xf32> -> vector<2x256xf32>
    %c13_449 = arith.constant 13 : index
    %c0_450 = arith.constant 0 : index
    %c0_451 = arith.constant 0 : index
    %833 = vector.load %arg5[%c13_449, %c0_450, %c0_451] : memref<15x2x1xf32, #tpu.memory_space<vmem>>, vector<1x2x1xf32>
    %834 = vector.shape_cast %833 : vector<1x2x1xf32> to vector<2x1xf32>
    %835 = vector.broadcast %834 : vector<2x1xf32> to vector<2x256xf32>
    %836 = arith.addf %832, %835 : vector<2x256xf32>
    %837 = vector.extract_strided_slice %836 {offsets = [0, 0], sizes = [1, 256], strides = [1, 1]} : vector<2x256xf32> to vector<1x256xf32>
    %838 = vector.extract_strided_slice %836 {offsets = [1, 0], sizes = [1, 256], strides = [1, 1]} : vector<2x256xf32> to vector<1x256xf32>
    %839 = math.exp %837 : vector<1x256xf32>
    %840 = arith.mulf %839, %721 : vector<1x256xf32>
    %841 = arith.addf %840, %838 : vector<1x256xf32>
    %842 = arith.addf %782, %837 : vector<1x256xf32>
    %c14 = arith.constant 14 : index
    %c0_452 = arith.constant 0 : index
    %c0_453 = arith.constant 0 : index
    %843 = vector.load %arg2[%c14, %c0_452, %c0_453] : memref<15x16x5xf32, #tpu.memory_space<vmem>>, vector<1x16x5xf32>
    %844 = vector.shape_cast %843 : vector<1x16x5xf32> to vector<16x5xf32>
    %845 = vector.extract_strided_slice %844 {offsets = [0, 0], sizes = [16, 1], strides = [1, 1]} : vector<16x5xf32> to vector<16x1xf32>
    %846 = vector.broadcast %845 : vector<16x1xf32> to vector<16x256xf32>
    %847 = vector.broadcast %781 : vector<1x256xf32> to vector<16x256xf32>
    %848 = arith.mulf %846, %847 : vector<16x256xf32>
    %849 = vector.extract_strided_slice %844 {offsets = [0, 1], sizes = [16, 1], strides = [1, 1]} : vector<16x5xf32> to vector<16x1xf32>
    %850 = vector.broadcast %849 : vector<16x1xf32> to vector<16x256xf32>
    %851 = arith.addf %848, %850 : vector<16x256xf32>
    %cst_454 = arith.constant 0.000000e+00 : f32
    %852 = vector.broadcast %cst_454 : f32 to vector<16x256xf32>
    %853 = arith.cmpf ogt, %851, %852 : vector<16x256xf32>
    %cst_455 = arith.constant 0.00999999977 : f32
    %854 = vector.broadcast %cst_455 : f32 to vector<16x256xf32>
    %855 = arith.mulf %854, %851 : vector<16x256xf32>
    %856 = arith.select %853, %851, %855 : vector<16x256xi1>, vector<16x256xf32>
    %c14_456 = arith.constant 14 : index
    %c0_457 = arith.constant 0 : index
    %c0_458 = arith.constant 0 : index
    %c0_459 = arith.constant 0 : index
    %857 = vector.load %arg3[%c14_456, %c0_457, %c0_458, %c0_459] : memref<15x3x16x16xf32, #tpu.memory_space<vmem>>, vector<1x1x16x16xf32>
    %858 = vector.shape_cast %857 : vector<1x1x16x16xf32> to vector<16x16xf32>
    %cst_460 = arith.constant dense<0.000000e+00> : vector<16x256xf32>
    %859 = tpu.matmul %858, %856, %cst_460 {dimension_numbers = #tpu.dot_dimension_numbers<[1], [0], [0], [1], [0, 0, 1, 1], [], []>} : vector<16x16xf32>, vector<16x256xf32>, vector<16x256xf32> -> vector<16x256xf32>
    %860 = vector.extract_strided_slice %844 {offsets = [0, 2], sizes = [16, 1], strides = [1, 1]} : vector<16x5xf32> to vector<16x1xf32>
    %861 = vector.broadcast %860 : vector<16x1xf32> to vector<16x256xf32>
    %862 = arith.addf %859, %861 : vector<16x256xf32>
    %cst_461 = arith.constant 0.000000e+00 : f32
    %863 = vector.broadcast %cst_461 : f32 to vector<16x256xf32>
    %864 = arith.cmpf ogt, %862, %863 : vector<16x256xf32>
    %cst_462 = arith.constant 0.00999999977 : f32
    %865 = vector.broadcast %cst_462 : f32 to vector<16x256xf32>
    %866 = arith.mulf %865, %862 : vector<16x256xf32>
    %867 = arith.select %864, %862, %866 : vector<16x256xi1>, vector<16x256xf32>
    %c14_463 = arith.constant 14 : index
    %c1_464 = arith.constant 1 : index
    %c0_465 = arith.constant 0 : index
    %c0_466 = arith.constant 0 : index
    %868 = vector.load %arg3[%c14_463, %c1_464, %c0_465, %c0_466] : memref<15x3x16x16xf32, #tpu.memory_space<vmem>>, vector<1x1x16x16xf32>
    %869 = vector.shape_cast %868 : vector<1x1x16x16xf32> to vector<16x16xf32>
    %cst_467 = arith.constant dense<0.000000e+00> : vector<16x256xf32>
    %870 = tpu.matmul %869, %867, %cst_467 {dimension_numbers = #tpu.dot_dimension_numbers<[1], [0], [0], [1], [0, 0, 1, 1], [], []>} : vector<16x16xf32>, vector<16x256xf32>, vector<16x256xf32> -> vector<16x256xf32>
    %871 = vector.extract_strided_slice %844 {offsets = [0, 3], sizes = [16, 1], strides = [1, 1]} : vector<16x5xf32> to vector<16x1xf32>
    %872 = vector.broadcast %871 : vector<16x1xf32> to vector<16x256xf32>
    %873 = arith.addf %870, %872 : vector<16x256xf32>
    %cst_468 = arith.constant 0.000000e+00 : f32
    %874 = vector.broadcast %cst_468 : f32 to vector<16x256xf32>
    %875 = arith.cmpf ogt, %873, %874 : vector<16x256xf32>
    %cst_469 = arith.constant 0.00999999977 : f32
    %876 = vector.broadcast %cst_469 : f32 to vector<16x256xf32>
    %877 = arith.mulf %876, %873 : vector<16x256xf32>
    %878 = arith.select %875, %873, %877 : vector<16x256xi1>, vector<16x256xf32>
    %c14_470 = arith.constant 14 : index
    %c2_471 = arith.constant 2 : index
    %c0_472 = arith.constant 0 : index
    %c0_473 = arith.constant 0 : index
    %879 = vector.load %arg3[%c14_470, %c2_471, %c0_472, %c0_473] : memref<15x3x16x16xf32, #tpu.memory_space<vmem>>, vector<1x1x16x16xf32>
    %880 = vector.shape_cast %879 : vector<1x1x16x16xf32> to vector<16x16xf32>
    %cst_474 = arith.constant dense<0.000000e+00> : vector<16x256xf32>
    %881 = tpu.matmul %880, %878, %cst_474 {dimension_numbers = #tpu.dot_dimension_numbers<[1], [0], [0], [1], [0, 0, 1, 1], [], []>} : vector<16x16xf32>, vector<16x256xf32>, vector<16x256xf32> -> vector<16x256xf32>
    %882 = vector.extract_strided_slice %844 {offsets = [0, 4], sizes = [16, 1], strides = [1, 1]} : vector<16x5xf32> to vector<16x1xf32>
    %883 = vector.broadcast %882 : vector<16x1xf32> to vector<16x256xf32>
    %884 = arith.addf %881, %883 : vector<16x256xf32>
    %cst_475 = arith.constant 0.000000e+00 : f32
    %885 = vector.broadcast %cst_475 : f32 to vector<16x256xf32>
    %886 = arith.cmpf ogt, %884, %885 : vector<16x256xf32>
    %cst_476 = arith.constant 0.00999999977 : f32
    %887 = vector.broadcast %cst_476 : f32 to vector<16x256xf32>
    %888 = arith.mulf %887, %884 : vector<16x256xf32>
    %889 = arith.select %886, %884, %888 : vector<16x256xi1>, vector<16x256xf32>
    %c14_477 = arith.constant 14 : index
    %c0_478 = arith.constant 0 : index
    %c0_479 = arith.constant 0 : index
    %890 = vector.load %arg4[%c14_477, %c0_478, %c0_479] : memref<15x2x16xf32, #tpu.memory_space<vmem>>, vector<1x2x16xf32>
    %891 = vector.shape_cast %890 : vector<1x2x16xf32> to vector<2x16xf32>
    %cst_480 = arith.constant dense<0.000000e+00> : vector<2x256xf32>
    %892 = tpu.matmul %891, %889, %cst_480 {dimension_numbers = #tpu.dot_dimension_numbers<[1], [0], [0], [1], [0, 0, 1, 1], [], []>} : vector<2x16xf32>, vector<16x256xf32>, vector<2x256xf32> -> vector<2x256xf32>
    %c14_481 = arith.constant 14 : index
    %c0_482 = arith.constant 0 : index
    %c0_483 = arith.constant 0 : index
    %893 = vector.load %arg5[%c14_481, %c0_482, %c0_483] : memref<15x2x1xf32, #tpu.memory_space<vmem>>, vector<1x2x1xf32>
    %894 = vector.shape_cast %893 : vector<1x2x1xf32> to vector<2x1xf32>
    %895 = vector.broadcast %894 : vector<2x1xf32> to vector<2x256xf32>
    %896 = arith.addf %892, %895 : vector<2x256xf32>
    %897 = vector.extract_strided_slice %896 {offsets = [0, 0], sizes = [1, 256], strides = [1, 1]} : vector<2x256xf32> to vector<1x256xf32>
    %898 = vector.extract_strided_slice %896 {offsets = [1, 0], sizes = [1, 256], strides = [1, 1]} : vector<2x256xf32> to vector<1x256xf32>
    %899 = math.exp %897 : vector<1x256xf32>
    %900 = arith.mulf %899, %841 : vector<1x256xf32>
    %901 = arith.addf %900, %898 : vector<1x256xf32>
    %902 = arith.addf %842, %897 : vector<1x256xf32>
    %903 = tpu.concatenate %781, %901 in 0 : vector<1x256xf32>, vector<1x256xf32> -> vector<2x256xf32>
    %c0_484 = arith.constant 0 : index
    %c0_485 = arith.constant 0 : index
    %904 = vector.load %arg6[%c0_484, %c0_485] : memref<2x256xf32, #tpu.memory_space<vmem>>, vector<2x256xf32>
    tpu.vector_store %arg6[%c0_484, %c0_485], %903 {strides = array<i32>} : memref<2x256xf32, #tpu.memory_space<vmem>>, vector<2x256xf32>,
    %c0_486 = arith.constant 0 : index
    %c0_487 = arith.constant 0 : index
    %905 = vector.load %arg7[%c0_486, %c0_487] : memref<1x256xf32, #tpu.memory_space<vmem>>, vector<1x256xf32>
    tpu.vector_store %arg7[%c0_486, %c0_487], %902 {strides = array<i32>} : memref<1x256xf32, #tpu.memory_space<vmem>>, vector<1x256xf32>,
    return
  }
  func.func @transform_0(%arg0: i32) -> (i32, i32) {
    %c0_i32 = arith.constant 0 : i32
    %c0_i32_0 = arith.constant 0 : i32
    return %c0_i32, %arg0 : i32, i32
  }
  func.func @transform_1(%arg0: i32) -> (i32, i32, i32) {
    %c0_i32 = arith.constant 0 : i32
    %c0_i32_0 = arith.constant 0 : i32
    %c0_i32_1 = arith.constant 0 : i32
    %c0_i32_2 = arith.constant 0 : i32
    return %c0_i32, %c0_i32_0, %c0_i32_1 : i32, i32, i32
  }
  func.func @transform_2(%arg0: i32) -> (i32, i32, i32, i32) {
    %c0_i32 = arith.constant 0 : i32
    %c0_i32_0 = arith.constant 0 : i32
    %c0_i32_1 = arith.constant 0 : i32
    %c0_i32_2 = arith.constant 0 : i32
    %c0_i32_3 = arith.constant 0 : i32
    return %c0_i32, %c0_i32_0, %c0_i32_1, %c0_i32_2 : i32, i32, i32, i32
  }
  func.func @transform_3(%arg0: i32) -> (i32, i32, i32) {
    %c0_i32 = arith.constant 0 : i32
    %c0_i32_0 = arith.constant 0 : i32
    %c0_i32_1 = arith.constant 0 : i32
    %c0_i32_2 = arith.constant 0 : i32
    return %c0_i32, %c0_i32_0, %c0_i32_1 : i32, i32, i32
  }
  func.func @transform_4(%arg0: i32) -> (i32, i32, i32) {
    %c0_i32 = arith.constant 0 : i32
    %c0_i32_0 = arith.constant 0 : i32
    %c0_i32_1 = arith.constant 0 : i32
    %c0_i32_2 = arith.constant 0 : i32
    return %c0_i32, %c0_i32_0, %c0_i32_1 : i32, i32, i32
  }
  func.func @transform_5(%arg0: i32) -> (i32, i32) {
    %c0_i32 = arith.constant 0 : i32
    %c0_i32_0 = arith.constant 0 : i32
    return %c0_i32, %arg0 : i32, i32
  }
  func.func @transform_6(%arg0: i32) -> (i32, i32) {
    %c0_i32 = arith.constant 0 : i32
    %c0_i32_0 = arith.constant 0 : i32
    return %c0_i32, %arg0 : i32, i32
  }
}

</mosaic_0001>

<llo_original>
// kernel: tpu_custom_call.1
$region0: #{tpu_custom_call.1}
  #allocation0 [shape = 'u32[]', space=smem, size = 0x4, offset = 0x4, fixed_abs, tag = 'smem constant byte address 0x4 - core index']
  #allocation1 [shape = 'u32[144,128]{1,0:T(1,128)}', space=vmem, size = 0x12000, scoped, tag = 'internal scratch']
  %s0 = inlined_call_operand.vmem [shape: f32[2,512], index: 0, kind: input, shape index: {}]
  %s1 = inlined_call_operand.vmem [shape: f32[15,16,5], index: 1, kind: input, shape index: {}]
  %s2 = inlined_call_operand.hbm [shape: f32[15,3,16,16], index: 2, kind: input, shape index: {}]
  %s3 = inlined_call_operand.vmem [shape: f32[15,2,16], index: 3, kind: input, shape index: {}]
  %s4 = inlined_call_operand.vmem [shape: f32[15,2,1], index: 4, kind: input, shape index: {}]
  %s5 = inlined_call_operand.hbm [shape: f32[2,512], index: 5, kind: output, shape index: {0}]
  %s6 = inlined_call_operand.hbm [shape: f32[1,512], index: 6, kind: output, shape index: {1}]
  %7 = xla_tuple %s5, %s6
  %s8 = sld [smem:[#allocation0]]
  $region65: #{tpu_custom_call.1} parent=0
    _
  %s10 = ssub.s32 1, %s8
  %s11 = scalar_select 0, %s10, %s8
  $region1: #{tpu_custom_call.1} parent=0
    #allocation2 [shape = 'u8[368640]{0}', space=vmem, size = 0x5a000, scoped, tag = 'input window, operand 2, single buffered']
    #allocation3 [shape = 's32[2]{0}', space=sflag, size = 0x8, scoped, tag = 'scoped memory for tpu_custom_call.1']
    #allocation4 [shape = 's32[2]{0}', space=sflag, size = 0x8, scoped, tag = 'scoped memory for tpu_custom_call.1']
    #allocation5 [shape = 'u8[4096]{0}', space=vmem, size = 0x1000, scoped, tag = 'output window, operand 0']
    #allocation6 [shape = 'u8[2048]{0}', space=vmem, size = 0x800, scoped, tag = 'output window, operand 1']
    #allocation7 [shape = 's32[2]{0}', space=sflag, size = 0x8, scoped, tag = 'scoped memory for tpu_custom_call.1']
    %12 = vsyncpa [#allocation3], 0
    %13 = vsyncpa [#allocation4], 0
    %s14 = scalar_lea.sflag [#allocation4], 1
    %15 = vsyncpa %s14, 0
    %16 = vsyncpa [#allocation7], 0
    %s17 = scalar_lea.sflag [#allocation7], 1
    %18 = vsyncpa %s17, 0
    loop: start=0, step=1, limit=4
    $region2: #{tpu_custom_call.1} parent=1 // loop_pre_header
      _
    $region3: #{tpu_custom_call.1} parent=1 // loop_header
      %s20 = sphi 0, %s24
      %p21 = scmp.ge.s32.totalorder %s20, 4
      %s30 = sphi 0, %s32
      %s33 = sphi 0, %s30
      %s34 = sphi 0, %s33
      %s50 = sphi 0, %s34
      %s54 = sphi 0, %s54
      %s56 = sphi 0, %s54
      %s57 = sphi 0, %s56
      %s71 = sphi 0, %s57
      %s75 = sphi 0, %s75
      %s77 = sphi 0, %s75
      %s78 = sphi 0, %s77
      %s92 = sphi 0, %s78
      %s96 = sphi 0, %s96
      %s98 = sphi 0, %s96
      %s99 = sphi 0, %s98
      %s113 = sphi 0, %s99
      %s117 = sphi 0, %s117
      %s119 = sphi 0, %s117
      %s120 = sphi 0, %s119
      %s134 = sphi 0, %s120
      %s140 = sphi 0, %s142
      %s143 = sphi 0, %s140
      %s144 = sphi 0, %s143
      %s160 = sphi 0, %s144
      %s166 = sphi 0, %s168
      %s169 = sphi 0, %s166
      %s170 = sphi 0, %s169
      %s186 = sphi 0, %s170
    $region4: #{tpu_custom_call.1} parent=1 // loop_header_branch
      %23 = sbr.rel (%p21) target = $region8
    $region5: #{tpu_custom_call.1} parent=1 // loop_body
      %s25 = ssub.s32 %s20, 1
      %s26 = ssub.s32 %s20, 2
      %s27 = sadd.s32 %s20, 1
      %s28 = ssub.s32 %s20, %s27
      %p29 = scmp.eq.s32.totalorder %s28, 0
      %s31 = sadd.s32 %s30, 1
      %s32 = scalar_select %p29, %s30, %s31
      %p35 = pneg %p29
      %p36 = scmp.eq.s32.totalorder %s20, 1
      %p37 = por %p35, %p36
      %p38 = scmp.ne.s32.totalorder %s30, %s33
      %p39 = scmp.eq.s32.totalorder %s20, 0
      %p40 = por %p38, %p39
      %p41 = scmp.ne.s32.totalorder %s30, %s33
      %p42 = scmp.eq.s32.totalorder %s25, 1
      %p43 = por %p41, %p42
      %p44 = scmp.ne.s32.totalorder %s33, %s34
      %p45 = scmp.eq.s32.totalorder %s25, 0
      %p46 = por %p44, %p45
      %p47 = scmp.ne.s32.totalorder %s33, %s34
      %p48 = scmp.eq.s32.totalorder %s26, 1
      %p49 = por %p47, %p48
      %p51 = scmp.ne.s32.totalorder %s34, %s50
      %p52 = scmp.eq.s32.totalorder %s26, 0
      %p53 = por %p51, %p52
      %s55 = sadd.s32 %s54, 1
      %p58 = scmp.eq.s32.totalorder %s20, 1
      %p59 = scmp.ne.s32.totalorder %s54, %s56
      %p60 = scmp.eq.s32.totalorder %s20, 0
      %p61 = por %p59, %p60
      %p62 = scmp.ne.s32.totalorder %s54, %s56
      %p63 = scmp.eq.s32.totalorder %s25, 1
      %p64 = por %p62, %p63
      %p65 = scmp.ne.s32.totalorder %s56, %s57
      %p66 = scmp.eq.s32.totalorder %s25, 0
      %p67 = por %p65, %p66
      %p68 = scmp.ne.s32.totalorder %s56, %s57
      %p69 = scmp.eq.s32.totalorder %s26, 1
      %p70 = por %p68, %p69
      %p72 = scmp.ne.s32.totalorder %s57, %s71
      %p73 = scmp.eq.s32.totalorder %s26, 0
      %p74 = por %p72, %p73
      %s76 = sadd.s32 %s75, 1
      %p79 = scmp.eq.s32.totalorder %s20, 1
      %p80 = scmp.ne.s32.totalorder %s75, %s77
      %p81 = scmp.eq.s32.totalorder %s20, 0
      %p82 = por %p80, %p81
      %p83 = scmp.ne.s32.totalorder %s75, %s77
      %p84 = scmp.eq.s32.totalorder %s25, 1
      %p85 = por %p83, %p84
      %p86 = scmp.ne.s32.totalorder %s77, %s78
      %p87 = scmp.eq.s32.totalorder %s25, 0
      %p88 = por %p86, %p87
      %p89 = scmp.ne.s32.totalorder %s77, %s78
      %p90 = scmp.eq.s32.totalorder %s26, 1
      %p91 = por %p89, %p90
      %p93 = scmp.ne.s32.totalorder %s78, %s92
      %p94 = scmp.eq.s32.totalorder %s26, 0
      %p95 = por %p93, %p94
      %s97 = sadd.s32 %s96, 1
      %p100 = scmp.eq.s32.totalorder %s20, 1
      %p101 = scmp.ne.s32.totalorder %s96, %s98
      %p102 = scmp.eq.s32.totalorder %s20, 0
      %p103 = por %p101, %p102
      %p104 = scmp.ne.s32.totalorder %s96, %s98
      %p105 = scmp.eq.s32.totalorder %s25, 1
      %p106 = por %p104, %p105
      %p107 = scmp.ne.s32.totalorder %s98, %s99
      %p108 = scmp.eq.s32.totalorder %s25, 0
      %p109 = por %p107, %p108
      %p110 = scmp.ne.s32.totalorder %s98, %s99
      %p111 = scmp.eq.s32.totalorder %s26, 1
      %p112 = por %p110, %p111
      %p114 = scmp.ne.s32.totalorder %s99, %s113
      %p115 = scmp.eq.s32.totalorder %s26, 0
      %p116 = por %p114, %p115
      %s118 = sadd.s32 %s117, 1
      %p121 = scmp.eq.s32.totalorder %s20, 1
      %p122 = scmp.ne.s32.totalorder %s117, %s119
      %p123 = scmp.eq.s32.totalorder %s20, 0
      %p124 = por %p122, %p123
      %p125 = scmp.ne.s32.totalorder %s117, %s119
      %p126 = scmp.eq.s32.totalorder %s25, 1
      %p127 = por %p125, %p126
      %p128 = scmp.ne.s32.totalorder %s119, %s120
      %p129 = scmp.eq.s32.totalorder %s25, 0
      %p130 = por %p128, %p129
      %p131 = scmp.ne.s32.totalorder %s119, %s120
      %p132 = scmp.eq.s32.totalorder %s26, 1
      %p133 = por %p131, %p132
      %p135 = scmp.ne.s32.totalorder %s120, %s134
      %p136 = scmp.eq.s32.totalorder %s26, 0
      %p137 = por %p135, %p136
      %s138 = ssub.s32 %s20, %s27
      %p139 = scmp.eq.s32.totalorder %s138, 0
      %s141 = sadd.s32 %s140, 1
      %s142 = scalar_select %p139, %s140, %s141
      %p145 = pneg %p139
      %p146 = scmp.eq.s32.totalorder %s20, 1
      %p147 = por %p145, %p146
      %p148 = scmp.ne.s32.totalorder %s140, %s143
      %p149 = scmp.eq.s32.totalorder %s20, 0
      %p150 = por %p148, %p149
      %p151 = scmp.ne.s32.totalorder %s140, %s143
      %p152 = scmp.eq.s32.totalorder %s25, 1
      %p153 = por %p151, %p152
      %p154 = scmp.ne.s32.totalorder %s143, %s144
      %p155 = scmp.eq.s32.totalorder %s25, 0
      %p156 = por %p154, %p155
      %p157 = scmp.ne.s32.totalorder %s143, %s144
      %p158 = scmp.eq.s32.totalorder %s26, 1
      %p159 = por %p157, %p158
      %p161 = scmp.ne.s32.totalorder %s144, %s160
      %p162 = scmp.eq.s32.totalorder %s26, 0
      %p163 = por %p161, %p162
      %s164 = ssub.s32 %s20, %s27
      %p165 = scmp.eq.s32.totalorder %s164, 0
      %s167 = sadd.s32 %s166, 1
      %s168 = scalar_select %p165, %s166, %s167
      %p171 = pneg %p165
      %p172 = scmp.eq.s32.totalorder %s20, 1
      %p173 = por %p171, %p172
      %p174 = scmp.ne.s32.totalorder %s166, %s169
      %p175 = scmp.eq.s32.totalorder %s20, 0
      %p176 = por %p174, %p175
      %p177 = scmp.ne.s32.totalorder %s166, %s169
      %p178 = scmp.eq.s32.totalorder %s25, 1
      %p179 = por %p177, %p178
      %p180 = scmp.ne.s32.totalorder %s169, %s170
      %p181 = scmp.eq.s32.totalorder %s25, 0
      %p182 = por %p180, %p181
      %p183 = scmp.ne.s32.totalorder %s169, %s170
      %p184 = scmp.eq.s32.totalorder %s26, 1
      %p185 = por %p183, %p184
      %p187 = scmp.ne.s32.totalorder %s170, %s186
      %p188 = scmp.eq.s32.totalorder %s26, 0
      %p189 = por %p187, %p188
      %p190 = scmp.le.s32.totalorder 1, %s20
      %p191 = scmp.lt.s32.totalorder %s20, 3
      %p192 = pnand %p190, %p191
      %p193 = pneg %p192
      // Predicated region
      $region9: #{tpu_custom_call.1} parent=5 // pred_check
        _
      $region10: #{tpu_custom_call.1} parent=5 // pred_check_branch
        %195 = sbr.rel (%p192) target = $region12
      $region11: #{tpu_custom_call.1} parent=5 // pred_region
        %s196 = ssub.s32 %s20, 1
        // Predicated region
        $region13: #{tpu_custom_call.1} parent=11 // pred_check
          %p197 = pneg %p67
        $region14: #{tpu_custom_call.1} parent=11 // pred_check_branch
          %199 = sbr.rel (%p197) target = $region16
        $region15: #{tpu_custom_call.1} parent=11 // pred_region
          _
        $region16: #{tpu_custom_call.1} parent=11 // pred_fallthru
          _
        // Predicated region
        $region17: #{tpu_custom_call.1} parent=11 // pred_check
          %p200 = pneg %p88
        $region18: #{tpu_custom_call.1} parent=11 // pred_check_branch
          %202 = sbr.rel (%p200) target = $region20
        $region19: #{tpu_custom_call.1} parent=11 // pred_region
          %s204 = ssub.s32 11520, 11520
          %205 = vsyncadd [#allocation3], %s204
          %s206 = sshll.u32 [#allocation2], 4
          %s207 = int_to_ptr.vmem [resolvable:$true] %s206
          %212 = dma.hbm_to_vmem [thread:$0]  %s2, 11520, %s207, [#allocation3], 128, 128, 8
        $region20: #{tpu_custom_call.1} parent=11 // pred_fallthru
          _
        // Predicated region
        $region21: #{tpu_custom_call.1} parent=11 // pred_check
          %p213 = pneg %p109
        $region22: #{tpu_custom_call.1} parent=11 // pred_check_branch
          %215 = sbr.rel (%p213) target = $region24
        $region23: #{tpu_custom_call.1} parent=11 // pred_region
          _
        $region24: #{tpu_custom_call.1} parent=11 // pred_fallthru
          _
        // Predicated region
        $region25: #{tpu_custom_call.1} parent=11 // pred_check
          %p216 = pneg %p130
        $region26: #{tpu_custom_call.1} parent=11 // pred_check_branch
          %218 = sbr.rel (%p216) target = $region28
        $region27: #{tpu_custom_call.1} parent=11 // pred_region
          _
        $region28: #{tpu_custom_call.1} parent=11 // pred_fallthru
          _
      $region12: #{tpu_custom_call.1} parent=5 // pred_fallthru
        _
      %p219 = scmp.lt.s32.totalorder %s20, 2
      // Predicated region
      $region29: #{tpu_custom_call.1} parent=5 // pred_check
        %p220 = pneg %p219
      $region30: #{tpu_custom_call.1} parent=5 // pred_check_branch
        %222 = sbr.rel (%p220) target = $region32
      $region31: #{tpu_custom_call.1} parent=5 // pred_region
        // Predicated region
        $region33: #{tpu_custom_call.1} parent=31 // pred_check
          %p223 = pneg %p40
        $region34: #{tpu_custom_call.1} parent=31 // pred_check_branch
          %225 = sbr.rel (%p223) target = $region36
        $region35: #{tpu_custom_call.1} parent=31 // pred_region
          %s226 = smul.u32 2, %s20
          %p227 = scmp.lt.s32.totalorder %s226, 3
          %s228 = scalar_select %p227, %s226, 3
          %s229 = smul.addr %s228, 2
          %s230 = scalar_lea.vmem %s0, %s229
          %s231 = smul.u32 2, %s20
        $region36: #{tpu_custom_call.1} parent=31 // pred_fallthru
          _
      $region32: #{tpu_custom_call.1} parent=5 // pred_fallthru
        _
      %p232 = scmp.le.s32.totalorder 1, %s20
      %p233 = scmp.lt.s32.totalorder %s20, 3
      %p234 = pnand %p232, %p233
      %p235 = pneg %p234
      // Predicated region
      $region37: #{tpu_custom_call.1} parent=5 // pred_check
        _
      $region38: #{tpu_custom_call.1} parent=5 // pred_check_branch
        %237 = sbr.rel (%p234) target = $region40
      $region39: #{tpu_custom_call.1} parent=5 // pred_region
        %s238 = ssub.s32 %s20, 1
        // Predicated region
        $region41: #{tpu_custom_call.1} parent=39 // pred_check
          %p239 = pneg %p88
        $region42: #{tpu_custom_call.1} parent=39 // pred_check_branch
          %241 = sbr.rel (%p239) target = $region44
        $region43: #{tpu_custom_call.1} parent=39 // pred_region
          %242 = dma.done [#allocation3], 11520
        $region44: #{tpu_custom_call.1} parent=39 // pred_fallthru
          _
        %s243 = smul.u32 2, %s25
        %p244 = scmp.lt.s32.totalorder %s243, 3
        %s245 = scalar_select %p244, %s243, 3
        %s246 = smul.addr %s245, 2
        %s247 = scalar_lea.vmem %s0, %s246
        %p248 = pneg %p46
        %p249 = pneg %p43
        %p250 = pneg %p67
        %p251 = pneg %p64
        %p252 = pneg %p88
        %p253 = pneg %p85
        %p254 = pneg %p109
        %p255 = pneg %p106
        %p256 = pneg %p130
        %p257 = pneg %p127
        %p258 = pneg %p156
        %p259 = pneg %p153
        %s260 = sand.u32 %s143, 1
        %s261 = scalar_lea.sflag [#allocation4], %s260
        %s262 = sand.u32 %s143, 1
        %s263 = smul.addr %s262, 4
        %s264 = scalar_lea.vmem [#allocation5], %s263
        %p265 = pneg %p182
        %p266 = pneg %p179
        %s267 = sand.u32 %s169, 1
        %s268 = scalar_lea.sflag [#allocation7], %s267
        %s269 = sand.u32 %s169, 1
        %s270 = smul.addr %s269, 2
        %s271 = scalar_lea.vmem [#allocation6], %s270
        %s272 = smul.u32 2, %s25
        %p273 = scmp.lt.s32.totalorder %s272, 3
        %s274 = scalar_select %p273, %s272, 3
        %s275 = smul.addr %s274, 2
        %s276 = scalar_lea.vmem %s0, %s275
        %s277 = smul.u32 2, %s25
        %s278 = smul.u32 2, %s25
        %s279 = smul.u32 2, %s25
        %v280 = vld [vmem:[%s276] ss:$2 sm:$0x3]
        %s281 = scalar_lea.vmem %s276, 1
        %v282 = vld [vmem:[%s281] ss:$2 sm:$0x3]
        %v283 = vld [vmem:[%s1] sm:$0xff]
        %v284 = vld [vmem:[%s1 + $0x8] sm:$0xff]
        %286 = vset.pattern.permute.xlu0 0
        %287 = vperm.xlu0 %286, %v283
        %v288 = vpop.permute.xlu0 %287
        %291 = vset.pattern.permute.xlu0 0
        %292 = vperm.xlu0 %291, %v284
        %v293 = vpop.permute.xlu0 %292
        %v296 = vlaneseq
        %v297 = vshrl.u32 %v296, 7
        %v298 = vsub.s32 0, %v297
        %v299 = vrot.slane %v280, %v298
        %v300 = vlaneseq
        %v301 = vshrl.u32 %v300, 7
        %v302 = vsub.s32 1, %v301
        %v303 = vrot.slane %v280, %v302
        %v306 = vmul.f32 %v288, %v299
        %v307 = vmul.f32 %v288, %v303
        %v308 = vmul.f32 %v293, %v299
        %v309 = vmul.f32 %v293, %v303
        %310 = vset.pattern.permute.xlu0 1
        %311 = vperm.xlu0 %310, %v283
        %v312 = vpop.permute.xlu0 %311
        %314 = vset.pattern.permute.xlu0 1
        %315 = vperm.xlu0 %314, %v284
        %v316 = vpop.permute.xlu0 %315
        %v318 = vadd.f32 %v306, %v312
        %v319 = vadd.f32 %v307, %v312
        %v320 = vadd.f32 %v308, %v316
        %v321 = vadd.f32 %v309, %v316
        %vm322 = vcmp.gt.f32.partialorder %v318, 0.0
        %vm323 = vcmp.gt.f32.partialorder %v319, 0.0
        %vm324 = vcmp.gt.f32.partialorder %v320, 0.0
        %vm325 = vcmp.gt.f32.partialorder %v321, 0.0
        %v326 = vmul.f32 %v318, 0.01
        %v327 = vmul.f32 %v319, 0.01
        %v328 = vmul.f32 %v320, 0.01
        %v329 = vmul.f32 %v321, 0.01
        %v330 = vsel %vm322, %v318, %v326
        %v331 = vsel %vm323, %v319, %v327
        %v332 = vsel %vm324, %v320, %v328
        %v333 = vsel %vm325, %v321, %v329
        %v334 = vld [vmem:[#allocation2] sm:$0xff]
        %v335 = vld [vmem:[#allocation2 + $0x8] sm:$0xff]
        %336 = vset.pattern.permute.xlu0 2
        %337 = vperm.xlu0 %336, %v283
        %v338 = vpop.permute.xlu0 %337
        %340 = vset.pattern.permute.xlu0 2
        %341 = vperm.xlu0 %340, %v284
        %v342 = vpop.permute.xlu0 %341
        %vm344 = vcmask 130048
        %v346 = vsel %vm344, %v334, 0
        %v349 = vsel %vm344, %v335, 0
        %351 = vmatprep.subr.mxu0 %v331
        %352 = vmatpush1.msra.mxu0 %v330
        %353 = vmatprep.subr.mxu0 %v333
        %354 = vmatpush1.msra.mxu0 %v332
        %355 = vmatprep.subr.mxu0 0.0
        %356 = vmatpush1.msra.mxu0 0.0
        %357 = vmatprep.subr.mxu0 0.0
        %358 = vmatpush1.msra.mxu0 0.0
        %359 = vmatprep.subr.mxu0 0.0
        %360 = vmatpush1.msra.mxu0 0.0
        %361 = vmatprep.subr.mxu0 0.0
        %362 = vmatpush1.msra.mxu0 0.0
        %363 = vmatprep.subr.mxu0 0.0
        %364 = vmatpush1.msra.mxu0 0.0
        %365 = vmatprep.subr.mxu0 0.0
        %366 = vmatpush1.msra.mxu0 0.0
        %367 = vmatprep.subr.mxu0 0.0
        %368 = vmatpush1.msra.mxu0 0.0
        %369 = vmatprep.subr.mxu0 0.0
        %370 = vmatpush1.msra.mxu0 0.0
        %371 = vmatprep.subr.mxu0 0.0
        %372 = vmatpush1.msra.mxu0 0.0
        %373 = vmatprep.subr.mxu0 0.0
        %374 = vmatpush1.msra.mxu0 0.0
        %375 = vmatprep.subr.mxu0 0.0
        %376 = vmatpush1.msra.mxu0 0.0
        %377 = vmatprep.subr.mxu0 0.0
        %378 = vmatpush1.msra.mxu0 0.0
        %379 = vmatprep.subr.mxu0 0.0
        %380 = vmatpush1.msra.mxu0 0.0
        %381 = vmatprep.subr.mxu0 0.0
        %382 = vmatpush1.msra.mxu0 0.0
        %383 = vmatprep.subr.mxu0 0.0
        %384 = vmatpush1.msra.mxu0 0.0
        %385 = vmatprep.subr.mxu0 0.0
        %386 = vmatpush1.msra.mxu0 0.0
        %387 = vmatprep.subr.mxu0 0.0
        %388 = vmatpush1.msra.mxu0 0.0
        %389 = vmatprep.subr.mxu0 0.0
        %390 = vmatpush1.msra.mxu0 0.0
        %391 = vmatprep.subr.mxu0 0.0
        %392 = vmatpush1.msra.mxu0 0.0
        %393 = vmatprep.subr.mxu0 0.0
        %394 = vmatpush1.msra.mxu0 0.0
        %395 = vmatprep.subr.mxu0 0.0
        %396 = vmatpush1.msra.mxu0 0.0
        %397 = vmatprep.subr.mxu0 0.0
        %398 = vmatpush1.msra.mxu0 0.0
        %399 = vmatprep.subr.mxu0 0.0
        %400 = vmatpush1.msra.mxu0 0.0
        %401 = vmatprep.subr.mxu0 0.0
        %402 = vmatpush1.msra.mxu0 0.0
        %403 = vmatprep.subr.mxu0 0.0
        %404 = vmatpush1.msra.mxu0 0.0
        %405 = vmatprep.subr.mxu0 0.0
        %406 = vmatpush1.msra.mxu0 0.0
        %407 = vmatprep.subr.mxu0 0.0
        %408 = vmatpush1.msra.mxu0 0.0
        %409 = vmatprep.subr.mxu0 0.0
        %410 = vmatpush1.msra.mxu0 0.0
        %411 = vmatprep.subr.mxu0 0.0
        %412 = vmatpush1.msra.mxu0 0.0
        %413 = vmatprep.subr.mxu0 0.0
        %414 = vmatpush1.msra.mxu0 0.0
        %415 = vmatprep.mubr.f32.mxu0 0.0
        %416 = vmatmul.mubr.f32.gmra.mrb[0].mxu0 %v346
        %v417 = vpop.f32.mrb[0].mxu0
        %v418 = vadd.f32 %v338, %v417
        %v419 = vpop.f32.mrb[0].mxu0
        %v420 = vadd.f32 %v338, %v419
        %421 = vmatprep.mubr.f32.mxu0 0.0
        %422 = vmatmul.mubr.f32.gmra.mrb[0].mxu0 %v349
        %v423 = vpop.f32.mrb[0].mxu0
        %v424 = vadd.f32 %v342, %v423
        %v425 = vpop.f32.mrb[0].mxu0
        %v426 = vadd.f32 %v342, %v425
        %427 = vdwg.mxu0
        %vm428 = vcmp.gt.f32.partialorder %v418, 0.0
        %vm429 = vcmp.gt.f32.partialorder %v420, 0.0
        %vm430 = vcmp.gt.f32.partialorder %v424, 0.0
        %vm431 = vcmp.gt.f32.partialorder %v426, 0.0
        %v432 = vmul.f32 %v418, 0.01
        %v433 = vmul.f32 %v420, 0.01
        %v434 = vmul.f32 %v424, 0.01
        %v435 = vmul.f32 %v426, 0.01
        %v436 = vsel %vm428, %v418, %v432
        %v437 = vsel %vm429, %v420, %v433
        %v438 = vsel %vm430, %v424, %v434
        %v439 = vsel %vm431, %v426, %v435
        %s440 = scalar_lea.vmem [#allocation2], 16
        %v441 = vld [vmem:[%s440] sm:$0xff]
        %v442 = vld [vmem:[%s440 + $0x8] sm:$0xff]
        %443 = vset.pattern.permute.xlu0 3
        %444 = vperm.xlu0 %443, %v283
        %v445 = vpop.permute.xlu0 %444
        %447 = vset.pattern.permute.xlu0 3
        %448 = vperm.xlu0 %447, %v284
        %v449 = vpop.permute.xlu0 %448
        %v452 = vsel %vm344, %v441, 0
        %v455 = vsel %vm344, %v442, 0
        %457 = vmatprep.subr.mxu0 %v437
        %458 = vmatpush1.msra.mxu0 %v436
        %459 = vmatprep.subr.mxu0 %v439
        %460 = vmatpush1.msra.mxu0 %v438
        %461 = vmatprep.subr.mxu0 0.0
        %462 = vmatpush1.msra.mxu0 0.0
        %463 = vmatprep.subr.mxu0 0.0
        %464 = vmatpush1.msra.mxu0 0.0
        %465 = vmatprep.subr.mxu0 0.0
        %466 = vmatpush1.msra.mxu0 0.0
        %467 = vmatprep.subr.mxu0 0.0
        %468 = vmatpush1.msra.mxu0 0.0
        %469 = vmatprep.subr.mxu0 0.0
        %470 = vmatpush1.msra.mxu0 0.0
        %471 = vmatprep.subr.mxu0 0.0
        %472 = vmatpush1.msra.mxu0 0.0
        %473 = vmatprep.subr.mxu0 0.0
        %474 = vmatpush1.msra.mxu0 0.0
        %475 = vmatprep.subr.mxu0 0.0
        %476 = vmatpush1.msra.mxu0 0.0
        %477 = vmatprep.subr.mxu0 0.0
        %478 = vmatpush1.msra.mxu0 0.0
        %479 = vmatprep.subr.mxu0 0.0
        %480 = vmatpush1.msra.mxu0 0.0
        %481 = vmatprep.subr.mxu0 0.0
        %482 = vmatpush1.msra.mxu0 0.0
        %483 = vmatprep.subr.mxu0 0.0
        %484 = vmatpush1.msra.mxu0 0.0
        %485 = vmatprep.subr.mxu0 0.0
        %486 = vmatpush1.msra.mxu0 0.0
        %487 = vmatprep.subr.mxu0 0.0
        %488 = vmatpush1.msra.mxu0 0.0
        %489 = vmatprep.subr.mxu0 0.0
        %490 = vmatpush1.msra.mxu0 0.0
        %491 = vmatprep.subr.mxu0 0.0
        %492 = vmatpush1.msra.mxu0 0.0
        %493 = vmatprep.subr.mxu0 0.0
        %494 = vmatpush1.msra.mxu0 0.0
        %495 = vmatprep.subr.mxu0 0.0
        %496 = vmatpush1.msra.mxu0 0.0
        %497 = vmatprep.subr.mxu0 0.0
        %498 = vmatpush1.msra.mxu0 0.0
        %499 = vmatprep.subr.mxu0 0.0
        %500 = vmatpush1.msra.mxu0 0.0
        %501 = vmatprep.subr.mxu0 0.0
        %502 = vmatpush1.msra.mxu0 0.0
        %503 = vmatprep.subr.mxu0 0.0
        %504 = vmatpush1.msra.mxu0 0.0
        %505 = vmatprep.subr.mxu0 0.0
        %506 = vmatpush1.msra.mxu0 0.0
        %507 = vmatprep.subr.mxu0 0.0
        %508 = vmatpush1.msra.mxu0 0.0
        %509 = vmatprep.subr.mxu0 0.0
        %510 = vmatpush1.msra.mxu0 0.0
        %511 = vmatprep.subr.mxu0 0.0
        %512 = vmatpush1.msra.mxu0 0.0
        %513 = vmatprep.subr.mxu0 0.0
        %514 = vmatpush1.msra.mxu0 0.0
        %515 = vmatprep.subr.mxu0 0.0
        %516 = vmatpush1.msra.mxu0 0.0
        %517 = vmatprep.subr.mxu0 0.0
        %518 = vmatpush1.msra.mxu0 0.0
        %519 = vmatprep.subr.mxu0 0.0
        %520 = vmatpush1.msra.mxu0 0.0
        %521 = vmatprep.mubr.f32.mxu0 0.0
        %522 = vmatmul.mubr.f32.gmra.mrb[0].mxu0 %v452
        %v523 = vpop.f32.mrb[0].mxu0
        %v524 = vadd.f32 %v445, %v523
        %v525 = vpop.f32.mrb[0].mxu0
        %v526 = vadd.f32 %v445, %v525
        %527 = vmatprep.mubr.f32.mxu0 0.0
        %528 = vmatmul.mubr.f32.gmra.mrb[0].mxu0 %v455
        %v529 = vpop.f32.mrb[0].mxu0
        %v530 = vadd.f32 %v449, %v529
        %v531 = vpop.f32.mrb[0].mxu0
        %v532 = vadd.f32 %v449, %v531
        %533 = vdwg.mxu0
        %vm534 = vcmp.gt.f32.partialorder %v524, 0.0
        %vm535 = vcmp.gt.f32.partialorder %v526, 0.0
        %vm536 = vcmp.gt.f32.partialorder %v530, 0.0
        %vm537 = vcmp.gt.f32.partialorder %v532, 0.0
        %v538 = vmul.f32 %v524, 0.01
        %v539 = vmul.f32 %v526, 0.01
        %v540 = vmul.f32 %v530, 0.01
        %v541 = vmul.f32 %v532, 0.01
        %v542 = vsel %vm534, %v524, %v538
        %v543 = vsel %vm535, %v526, %v539
        %v544 = vsel %vm536, %v530, %v540
        %v545 = vsel %vm537, %v532, %v541
        %s546 = scalar_lea.vmem [#allocation2], 32
        %v547 = vld [vmem:[%s546] sm:$0xff]
        %v548 = vld [vmem:[%s546 + $0x8] sm:$0xff]
        %549 = vset.pattern.permute.xlu0 4
        %550 = vperm.xlu0 %549, %v283
        %v551 = vpop.permute.xlu0 %550
        %553 = vset.pattern.permute.xlu0 4
        %554 = vperm.xlu0 %553, %v284
        %v555 = vpop.permute.xlu0 %554
        %v558 = vsel %vm344, %v547, 0
        %v561 = vsel %vm344, %v548, 0
        %563 = vmatprep.subr.mxu0 %v543
        %564 = vmatpush1.msra.mxu0 %v542
        %565 = vmatprep.subr.mxu0 %v545
        %566 = vmatpush1.msra.mxu0 %v544
        %567 = vmatprep.subr.mxu0 0.0
        %568 = vmatpush1.msra.mxu0 0.0
        %569 = vmatprep.subr.mxu0 0.0
        %570 = vmatpush1.msra.mxu0 0.0
        %571 = vmatprep.subr.mxu0 0.0
        %572 = vmatpush1.msra.mxu0 0.0
        %573 = vmatprep.subr.mxu0 0.0
        %574 = vmatpush1.msra.mxu0 0.0
        %575 = vmatprep.subr.mxu0 0.0
        %576 = vmatpush1.msra.mxu0 0.0
        %577 = vmatprep.subr.mxu0 0.0
        %578 = vmatpush1.msra.mxu0 0.0
        %579 = vmatprep.subr.mxu0 0.0
        %580 = vmatpush1.msra.mxu0 0.0
        %581 = vmatprep.subr.mxu0 0.0
        %582 = vmatpush1.msra.mxu0 0.0
        %583 = vmatprep.subr.mxu0 0.0
        %584 = vmatpush1.msra.mxu0 0.0
        %585 = vmatprep.subr.mxu0 0.0
        %586 = vmatpush1.msra.mxu0 0.0
        %587 = vmatprep.subr.mxu0 0.0
        %588 = vmatpush1.msra.mxu0 0.0
        %589 = vmatprep.subr.mxu0 0.0
        %590 = vmatpush1.msra.mxu0 0.0
        %591 = vmatprep.subr.mxu0 0.0
        %592 = vmatpush1.msra.mxu0 0.0
        %593 = vmatprep.subr.mxu0 0.0
        %594 = vmatpush1.msra.mxu0 0.0
        %595 = vmatprep.subr.mxu0 0.0
        %596 = vmatpush1.msra.mxu0 0.0
        %597 = vmatprep.subr.mxu0 0.0
        %598 = vmatpush1.msra.mxu0 0.0
        %599 = vmatprep.subr.mxu0 0.0
        %600 = vmatpush1.msra.mxu0 0.0
        %601 = vmatprep.subr.mxu0 0.0
        %602 = vmatpush1.msra.mxu0 0.0
        %603 = vmatprep.subr.mxu0 0.0
        %604 = vmatpush1.msra.mxu0 0.0
        %605 = vmatprep.subr.mxu0 0.0
        %606 = vmatpush1.msra.mxu0 0.0
        %607 = vmatprep.subr.mxu0 0.0
        %608 = vmatpush1.msra.mxu0 0.0
        %609 = vmatprep.subr.mxu0 0.0
        %610 = vmatpush1.msra.mxu0 0.0
        %611 = vmatprep.subr.mxu0 0.0
        %612 = vmatpush1.msra.mxu0 0.0
        %613 = vmatprep.subr.mxu0 0.0
        %614 = vmatpush1.msra.mxu0 0.0
        %615 = vmatprep.subr.mxu0 0.0
        %616 = vmatpush1.msra.mxu0 0.0
        %617 = vmatprep.subr.mxu0 0.0
        %618 = vmatpush1.msra.mxu0 0.0
        %619 = vmatprep.subr.mxu0 0.0
        %620 = vmatpush1.msra.mxu0 0.0
        %621 = vmatprep.subr.mxu0 0.0
        %622 = vmatpush1.msra.mxu0 0.0
        %623 = vmatprep.subr.mxu0 0.0
        %624 = vmatpush1.msra.mxu0 0.0
        %625 = vmatprep.subr.mxu0 0.0
        %626 = vmatpush1.msra.mxu0 0.0
        %627 = vmatprep.mubr.f32.mxu0 0.0
        %628 = vmatmul.mubr.f32.gmra.mrb[0].mxu0 %v558
        %v629 = vpop.f32.mrb[0].mxu0
        %v630 = vadd.f32 %v551, %v629
        %v631 = vpop.f32.mrb[0].mxu0
        %v632 = vadd.f32 %v551, %v631
        %633 = vmatprep.mubr.f32.mxu0 0.0
        %634 = vmatmul.mubr.f32.gmra.mrb[0].mxu0 %v561
        %v635 = vpop.f32.mrb[0].mxu0
        %v636 = vadd.f32 %v555, %v635
        %v637 = vpop.f32.mrb[0].mxu0
        %v638 = vadd.f32 %v555, %v637
        %639 = vdwg.mxu0
        %vm640 = vcmp.gt.f32.partialorder %v630, 0.0
        %vm641 = vcmp.gt.f32.partialorder %v632, 0.0
        %vm642 = vcmp.gt.f32.partialorder %v636, 0.0
        %vm643 = vcmp.gt.f32.partialorder %v638, 0.0
        %v644 = vmul.f32 %v630, 0.01
        %v645 = vmul.f32 %v632, 0.01
        %v646 = vmul.f32 %v636, 0.01
        %v647 = vmul.f32 %v638, 0.01
        %v648 = vsel %vm640, %v630, %v644
        %v649 = vsel %vm641, %v632, %v645
        %v650 = vsel %vm642, %v636, %v646
        %v651 = vsel %vm643, %v638, %v647
        %v652 = vld [vmem:[%s3] sm:$0x3]
        %v653 = vld [vmem:[%s4] sm:$0x3]
        %655 = vset.pattern.permute.xlu0 0
        %656 = vperm.xlu0 %655, %v653
        %v657 = vpop.permute.xlu0 %656
        %v660 = vsel %vm344, %v652, 0
        %662 = vmatprep.subr.mxu0 %v649
        %663 = vmatpush1.msra.mxu0 %v648
        %664 = vmatprep.subr.mxu0 %v651
        %665 = vmatpush1.msra.mxu0 %v650
        %666 = vmatprep.subr.mxu0 0.0
        %667 = vmatpush1.msra.mxu0 0.0
        %668 = vmatprep.subr.mxu0 0.0
        %669 = vmatpush1.msra.mxu0 0.0
        %670 = vmatprep.subr.mxu0 0.0
        %671 = vmatpush1.msra.mxu0 0.0
        %672 = vmatprep.subr.mxu0 0.0
        %673 = vmatpush1.msra.mxu0 0.0
        %674 = vmatprep.subr.mxu0 0.0
        %675 = vmatpush1.msra.mxu0 0.0
        %676 = vmatprep.subr.mxu0 0.0
        %677 = vmatpush1.msra.mxu0 0.0
        %678 = vmatprep.subr.mxu0 0.0
        %679 = vmatpush1.msra.mxu0 0.0
        %680 = vmatprep.subr.mxu0 0.0
        %681 = vmatpush1.msra.mxu0 0.0
        %682 = vmatprep.subr.mxu0 0.0
        %683 = vmatpush1.msra.mxu0 0.0
        %684 = vmatprep.subr.mxu0 0.0
        %685 = vmatpush1.msra.mxu0 0.0
        %686 = vmatprep.subr.mxu0 0.0
        %687 = vmatpush1.msra.mxu0 0.0
        %688 = vmatprep.subr.mxu0 0.0
        %689 = vmatpush1.msra.mxu0 0.0
        %690 = vmatprep.subr.mxu0 0.0
        %691 = vmatpush1.msra.mxu0 0.0
        %692 = vmatprep.subr.mxu0 0.0
        %693 = vmatpush1.msra.mxu0 0.0
        %694 = vmatprep.subr.mxu0 0.0
        %695 = vmatpush1.msra.mxu0 0.0
        %696 = vmatprep.subr.mxu0 0.0
        %697 = vmatpush1.msra.mxu0 0.0
        %698 = vmatprep.subr.mxu0 0.0
        %699 = vmatpush1.msra.mxu0 0.0
        %700 = vmatprep.subr.mxu0 0.0
        %701 = vmatpush1.msra.mxu0 0.0
        %702 = vmatprep.subr.mxu0 0.0
        %703 = vmatpush1.msra.mxu0 0.0
        %704 = vmatprep.subr.mxu0 0.0
        %705 = vmatpush1.msra.mxu0 0.0
        %706 = vmatprep.subr.mxu0 0.0
        %707 = vmatpush1.msra.mxu0 0.0
        %708 = vmatprep.subr.mxu0 0.0
        %709 = vmatpush1.msra.mxu0 0.0
        %710 = vmatprep.subr.mxu0 0.0
        %711 = vmatpush1.msra.mxu0 0.0
        %712 = vmatprep.subr.mxu0 0.0
        %713 = vmatpush1.msra.mxu0 0.0
        %714 = vmatprep.subr.mxu0 0.0
        %715 = vmatpush1.msra.mxu0 0.0
        %716 = vmatprep.subr.mxu0 0.0
        %717 = vmatpush1.msra.mxu0 0.0
        %718 = vmatprep.subr.mxu0 0.0
        %719 = vmatpush1.msra.mxu0 0.0
        %720 = vmatprep.subr.mxu0 0.0
        %721 = vmatpush1.msra.mxu0 0.0
        %722 = vmatprep.subr.mxu0 0.0
        %723 = vmatpush1.msra.mxu0 0.0
        %724 = vmatprep.subr.mxu0 0.0
        %725 = vmatpush1.msra.mxu0 0.0
        %726 = vmatprep.mubr.f32.mxu0 0.0
        %727 = vmatmul.mubr.f32.gmra.mrb[0].mxu0 %v660
        %v728 = vpop.f32.mrb[0].mxu0
        %v729 = vadd.f32 %v657, %v728
        %v730 = vpop.f32.mrb[0].mxu0
        %v731 = vadd.f32 %v657, %v730
        %732 = vdwg.mxu0
        %v733 = vmul.f32 %v729, 1.442695
        %v734 = vpow.pop %v733
        %v735 = vmul.f32 %v731, 1.442695
        %v736 = vpow.pop %v735
        %v738 = vlaneseq
        %v739 = vshrl.u32 %v738, 7
        %v740 = vsub.s32 0, %v739
        %v741 = vrot.slane %v282, %v740
        %v742 = vlaneseq
        %v743 = vshrl.u32 %v742, 7
        %v744 = vsub.s32 1, %v743
        %v745 = vrot.slane %v282, %v744
        %v748 = vmul.f32 %v734, %v741
        %v749 = vmul.f32 %v736, %v745
        %v752 = vrot.slane %v729, 1
        %v753 = vrot.slane %v731, 1
        %v756 = vadd.f32 %v748, %v752
        %v757 = vadd.f32 %v749, %v753
        %v758 = vadd.f32 %v729, 0.0
        %v759 = vadd.f32 %v731, 0.0
        %s760 = scalar_lea.vmem %s1, 16
        %v761 = vld [vmem:[%s760] sm:$0xff]
        %v762 = vld [vmem:[%s760 + $0x8] sm:$0xff]
        %764 = vset.pattern.permute.xlu0 0
        %765 = vperm.xlu0 %764, %v761
        %v766 = vpop.permute.xlu0 %765
        %769 = vset.pattern.permute.xlu0 0
        %770 = vperm.xlu0 %769, %v762
        %v771 = vpop.permute.xlu0 %770
        %v773 = vmul.f32 %v766, %v299
        %v774 = vmul.f32 %v766, %v303
        %v775 = vmul.f32 %v771, %v299
        %v776 = vmul.f32 %v771, %v303
        %777 = vset.pattern.permute.xlu0 1
        %778 = vperm.xlu0 %777, %v761
        %v779 = vpop.permute.xlu0 %778
        %781 = vset.pattern.permute.xlu0 1
        %782 = vperm.xlu0 %781, %v762
        %v783 = vpop.permute.xlu0 %782
        %v785 = vadd.f32 %v773, %v779
        %v786 = vadd.f32 %v774, %v779
        %v787 = vadd.f32 %v775, %v783
        %v788 = vadd.f32 %v776, %v783
        %vm789 = vcmp.gt.f32.partialorder %v785, 0.0
        %vm790 = vcmp.gt.f32.partialorder %v786, 0.0
        %vm791 = vcmp.gt.f32.partialorder %v787, 0.0
        %vm792 = vcmp.gt.f32.partialorder %v788, 0.0
        %v793 = vmul.f32 %v785, 0.01
        %v794 = vmul.f32 %v786, 0.01
        %v795 = vmul.f32 %v787, 0.01
        %v796 = vmul.f32 %v788, 0.01
        %v797 = vsel %vm789, %v785, %v793
        %v798 = vsel %vm790, %v786, %v794
        %v799 = vsel %vm791, %v787, %v795
        %v800 = vsel %vm792, %v788, %v796
        %s801 = scalar_lea.vmem [#allocation2], 48
        %v802 = vld [vmem:[%s801] sm:$0xff]
        %v803 = vld [vmem:[%s801 + $0x8] sm:$0xff]
        %804 = vset.pattern.permute.xlu0 2
        %805 = vperm.xlu0 %804, %v761
        %v806 = vpop.permute.xlu0 %805
        %808 = vset.pattern.permute.xlu0 2
        %809 = vperm.xlu0 %808, %v762
        %v810 = vpop.permute.xlu0 %809
        %v813 = vsel %vm344, %v802, 0
        %v816 = vsel %vm344, %v803, 0
        %818 = vmatprep.subr.mxu0 %v798
        %819 = vmatpush1.msra.mxu0 %v797
        %820 = vmatprep.subr.mxu0 %v800
        %821 = vmatpush1.msra.mxu0 %v799
        %822 = vmatprep.subr.mxu0 0.0
        %823 = vmatpush1.msra.mxu0 0.0
        %824 = vmatprep.subr.mxu0 0.0
        %825 = vmatpush1.msra.mxu0 0.0
        %826 = vmatprep.subr.mxu0 0.0
        %827 = vmatpush1.msra.mxu0 0.0
        %828 = vmatprep.subr.mxu0 0.0
        %829 = vmatpush1.msra.mxu0 0.0
        %830 = vmatprep.subr.mxu0 0.0
        %831 = vmatpush1.msra.mxu0 0.0
        %832 = vmatprep.subr.mxu0 0.0
        %833 = vmatpush1.msra.mxu0 0.0
        %834 = vmatprep.subr.mxu0 0.0
        %835 = vmatpush1.msra.mxu0 0.0
        %836 = vmatprep.subr.mxu0 0.0
        %837 = vmatpush1.msra.mxu0 0.0
        %838 = vmatprep.subr.mxu0 0.0
        %839 = vmatpush1.msra.mxu0 0.0
        %840 = vmatprep.subr.mxu0 0.0
        %841 = vmatpush1.msra.mxu0 0.0
        %842 = vmatprep.subr.mxu0 0.0
        %843 = vmatpush1.msra.mxu0 0.0
        %844 = vmatprep.subr.mxu0 0.0
        %845 = vmatpush1.msra.mxu0 0.0
        %846 = vmatprep.subr.mxu0 0.0
        %847 = vmatpush1.msra.mxu0 0.0
        %848 = vmatprep.subr.mxu0 0.0
        %849 = vmatpush1.msra.mxu0 0.0
        %850 = vmatprep.subr.mxu0 0.0
        %851 = vmatpush1.msra.mxu0 0.0
        %852 = vmatprep.subr.mxu0 0.0
        %853 = vmatpush1.msra.mxu0 0.0
        %854 = vmatprep.subr.mxu0 0.0
        %855 = vmatpush1.msra.mxu0 0.0
        %856 = vmatprep.subr.mxu0 0.0
        %857 = vmatpush1.msra.mxu0 0.0
        %858 = vmatprep.subr.mxu0 0.0
        %859 = vmatpush1.msra.mxu0 0.0
        %860 = vmatprep.subr.mxu0 0.0
        %861 = vmatpush1.msra.mxu0 0.0
        %862 = vmatprep.subr.mxu0 0.0
        %863 = vmatpush1.msra.mxu0 0.0
        %864 = vmatprep.subr.mxu0 0.0
        %865 = vmatpush1.msra.mxu0 0.0
        %866 = vmatprep.subr.mxu0 0.0
        %867 = vmatpush1.msra.mxu0 0.0
        %868 = vmatprep.subr.mxu0 0.0
        %869 = vmatpush1.msra.mxu0 0.0
        %870 = vmatprep.subr.mxu0 0.0
        %871 = vmatpush1.msra.mxu0 0.0
        %872 = vmatprep.subr.mxu0 0.0
        %873 = vmatpush1.msra.mxu0 0.0
        %874 = vmatprep.subr.mxu0 0.0
        %875 = vmatpush1.msra.mxu0 0.0
        %876 = vmatprep.subr.mxu0 0.0
        %877 = vmatpush1.msra.mxu0 0.0
        %878 = vmatprep.subr.mxu0 0.0
        %879 = vmatpush1.msra.mxu0 0.0
        %880 = vmatprep.subr.mxu0 0.0
        %881 = vmatpush1.msra.mxu0 0.0
        %882 = vmatprep.mubr.f32.mxu0 0.0
        %883 = vmatmul.mubr.f32.gmra.mrb[0].mxu0 %v813
        %v884 = vpop.f32.mrb[0].mxu0
        %v885 = vadd.f32 %v806, %v884
        %v886 = vpop.f32.mrb[0].mxu0
        %v887 = vadd.f32 %v806, %v886
        %888 = vmatprep.mubr.f32.mxu0 0.0
        %889 = vmatmul.mubr.f32.gmra.mrb[0].mxu0 %v816
        %v890 = vpop.f32.mrb[0].mxu0
        %v891 = vadd.f32 %v810, %v890
        %v892 = vpop.f32.mrb[0].mxu0
        %v893 = vadd.f32 %v810, %v892
        %894 = vdwg.mxu0
        %vm895 = vcmp.gt.f32.partialorder %v885, 0.0
        %vm896 = vcmp.gt.f32.partialorder %v887, 0.0
        %vm897 = vcmp.gt.f32.partialorder %v891, 0.0
        %vm898 = vcmp.gt.f32.partialorder %v893, 0.0
        %v899 = vmul.f32 %v885, 0.01
        %v900 = vmul.f32 %v887, 0.01
        %v901 = vmul.f32 %v891, 0.01
        %v902 = vmul.f32 %v893, 0.01
        %v903 = vsel %vm895, %v885, %v899
        %v904 = vsel %vm896, %v887, %v900
        %v905 = vsel %vm897, %v891, %v901
        %v906 = vsel %vm898, %v893, %v902
        %s907 = scalar_lea.vmem [#allocation2], 64
        %v908 = vld [vmem:[%s907] sm:$0xff]
        %v909 = vld [vmem:[%s907 + $0x8] sm:$0xff]
        %910 = vset.pattern.permute.xlu0 3
        %911 = vperm.xlu0 %910, %v761
        %v912 = vpop.permute.xlu0 %911
        %914 = vset.pattern.permute.xlu0 3
        %915 = vperm.xlu0 %914, %v762
        %v916 = vpop.permute.xlu0 %915
        %v919 = vsel %vm344, %v908, 0
        %v922 = vsel %vm344, %v909, 0
        %924 = vmatprep.subr.mxu0 %v904
        %925 = vmatpush1.msra.mxu0 %v903
        %926 = vmatprep.subr.mxu0 %v906
        %927 = vmatpush1.msra.mxu0 %v905
        %928 = vmatprep.subr.mxu0 0.0
        %929 = vmatpush1.msra.mxu0 0.0
        %930 = vmatprep.subr.mxu0 0.0
        %931 = vmatpush1.msra.mxu0 0.0
        %932 = vmatprep.subr.mxu0 0.0
        %933 = vmatpush1.msra.mxu0 0.0
        %934 = vmatprep.subr.mxu0 0.0
        %935 = vmatpush1.msra.mxu0 0.0
        %936 = vmatprep.subr.mxu0 0.0
        %937 = vmatpush1.msra.mxu0 0.0
        %938 = vmatprep.subr.mxu0 0.0
        %939 = vmatpush1.msra.mxu0 0.0
        %940 = vmatprep.subr.mxu0 0.0
        %941 = vmatpush1.msra.mxu0 0.0
        %942 = vmatprep.subr.mxu0 0.0
        %943 = vmatpush1.msra.mxu0 0.0
        %944 = vmatprep.subr.mxu0 0.0
        %945 = vmatpush1.msra.mxu0 0.0
        %946 = vmatprep.subr.mxu0 0.0
        %947 = vmatpush1.msra.mxu0 0.0
        %948 = vmatprep.subr.mxu0 0.0
        %949 = vmatpush1.msra.mxu0 0.0
        %950 = vmatprep.subr.mxu0 0.0
        %951 = vmatpush1.msra.mxu0 0.0
        %952 = vmatprep.subr.mxu0 0.0
        %953 = vmatpush1.msra.mxu0 0.0
        %954 = vmatprep.subr.mxu0 0.0
        %955 = vmatpush1.msra.mxu0 0.0
        %956 = vmatprep.subr.mxu0 0.0
        %957 = vmatpush1.msra.mxu0 0.0
        %958 = vmatprep.subr.mxu0 0.0
        %959 = vmatpush1.msra.mxu0 0.0
        %960 = vmatprep.subr.mxu0 0.0
        %961 = vmatpush1.msra.mxu0 0.0
        %962 = vmatprep.subr.mxu0 0.0
        %963 = vmatpush1.msra.mxu0 0.0
        %964 = vmatprep.subr.mxu0 0.0
        %965 = vmatpush1.msra.mxu0 0.0
        %966 = vmatprep.subr.mxu0 0.0
        %967 = vmatpush1.msra.mxu0 0.0
        %968 = vmatprep.subr.mxu0 0.0
        %969 = vmatpush1.msra.mxu0 0.0
        %970 = vmatprep.subr.mxu0 0.0
        %971 = vmatpush1.msra.mxu0 0.0
        %972 = vmatprep.subr.mxu0 0.0
        %973 = vmatpush1.msra.mxu0 0.0
        %974 = vmatprep.subr.mxu0 0.0
        %975 = vmatpush1.msra.mxu0 0.0
        %976 = vmatprep.subr.mxu0 0.0
        %977 = vmatpush1.msra.mxu0 0.0
        %978 = vmatprep.subr.mxu0 0.0
        %979 = vmatpush1.msra.mxu0 0.0
        %980 = vmatprep.subr.mxu0 0.0
        %981 = vmatpush1.msra.mxu0 0.0
        %982 = vmatprep.subr.mxu0 0.0
        %983 = vmatpush1.msra.mxu0 0.0
        %984 = vmatprep.subr.mxu0 0.0
        %985 = vmatpush1.msra.mxu0 0.0
        %986 = vmatprep.subr.mxu0 0.0
        %987 = vmatpush1.msra.mxu0 0.0
        %988 = vmatprep.mubr.f32.mxu0 0.0
        %989 = vmatmul.mubr.f32.gmra.mrb[0].mxu0 %v919
        %v990 = vpop.f32.mrb[0].mxu0
        %v991 = vadd.f32 %v912, %v990
        %v992 = vpop.f32.mrb[0].mxu0
        %v993 = vadd.f32 %v912, %v992
        %994 = vmatprep.mubr.f32.mxu0 0.0
        %995 = vmatmul.mubr.f32.gmra.mrb[0].mxu0 %v922
        %v996 = vpop.f32.mrb[0].mxu0
        %v997 = vadd.f32 %v916, %v996
        %v998 = vpop.f32.mrb[0].mxu0
        %v999 = vadd.f32 %v916, %v998
        %1000 = vdwg.mxu0
        %vm1001 = vcmp.gt.f32.partialorder %v991, 0.0
        %vm1002 = vcmp.gt.f32.partialorder %v993, 0.0
        %vm1003 = vcmp.gt.f32.partialorder %v997, 0.0
        %vm1004 = vcmp.gt.f32.partialorder %v999, 0.0
        %v1005 = vmul.f32 %v991, 0.01
        %v1006 = vmul.f32 %v993, 0.01
        %v1007 = vmul.f32 %v997, 0.01
        %v1008 = vmul.f32 %v999, 0.01
        %v1009 = vsel %vm1001, %v991, %v1005
        %v1010 = vsel %vm1002, %v993, %v1006
        %v1011 = vsel %vm1003, %v997, %v1007
        %v1012 = vsel %vm1004, %v999, %v1008
        %s1013 = scalar_lea.vmem [#allocation2], 80
        %v1014 = vld [vmem:[%s1013] sm:$0xff]
        %v1015 = vld [vmem:[%s1013 + $0x8] sm:$0xff]
        %1016 = vset.pattern.permute.xlu0 4
        %1017 = vperm.xlu0 %1016, %v761
        %v1018 = vpop.permute.xlu0 %1017
        %1020 = vset.pattern.permute.xlu0 4
        %1021 = vperm.xlu0 %1020, %v762
        %v1022 = vpop.permute.xlu0 %1021
        %v1025 = vsel %vm344, %v1014, 0
        %v1028 = vsel %vm344, %v1015, 0
        %1030 = vmatprep.subr.mxu0 %v1010
        %1031 = vmatpush1.msra.mxu0 %v1009
        %1032 = vmatprep.subr.mxu0 %v1012
        %1033 = vmatpush1.msra.mxu0 %v1011
        %1034 = vmatprep.subr.mxu0 0.0
        %1035 = vmatpush1.msra.mxu0 0.0
        %1036 = vmatprep.subr.mxu0 0.0
        %1037 = vmatpush1.msra.mxu0 0.0
        %1038 = vmatprep.subr.mxu0 0.0
        %1039 = vmatpush1.msra.mxu0 0.0
        %1040 = vmatprep.subr.mxu0 0.0
        %1041 = vmatpush1.msra.mxu0 0.0
        %1042 = vmatprep.subr.mxu0 0.0
        %1043 = vmatpush1.msra.mxu0 0.0
        %1044 = vmatprep.subr.mxu0 0.0
        %1045 = vmatpush1.msra.mxu0 0.0
        %1046 = vmatprep.subr.mxu0 0.0
        %1047 = vmatpush1.msra.mxu0 0.0
        %1048 = vmatprep.subr.mxu0 0.0
        %1049 = vmatpush1.msra.mxu0 0.0
        %1050 = vmatprep.subr.mxu0 0.0
        %1051 = vmatpush1.msra.mxu0 0.0
        %1052 = vmatprep.subr.mxu0 0.0
        %1053 = vmatpush1.msra.mxu0 0.0
        %1054 = vmatprep.subr.mxu0 0.0
        %1055 = vmatpush1.msra.mxu0 0.0
        %1056 = vmatprep.subr.mxu0 0.0
        %1057 = vmatpush1.msra.mxu0 0.0
        %1058 = vmatprep.subr.mxu0 0.0
        %1059 = vmatpush1.msra.mxu0 0.0
        %1060 = vmatprep.subr.mxu0 0.0
        %1061 = vmatpush1.msra.mxu0 0.0
        %1062 = vmatprep.subr.mxu0 0.0
        %1063 = vmatpush1.msra.mxu0 0.0
        %1064 = vmatprep.subr.mxu0 0.0
        %1065 = vmatpush1.msra.mxu0 0.0
        %1066 = vmatprep.subr.mxu0 0.0
        %1067 = vmatpush1.msra.mxu0 0.0
        %1068 = vmatprep.subr.mxu0 0.0
        %1069 = vmatpush1.msra.mxu0 0.0
        %1070 = vmatprep.subr.mxu0 0.0
        %1071 = vmatpush1.msra.mxu0 0.0
        %1072 = vmatprep.subr.mxu0 0.0
        %1073 = vmatpush1.msra.mxu0 0.0
        %1074 = vmatprep.subr.mxu0 0.0
        %1075 = vmatpush1.msra.mxu0 0.0
        %1076 = vmatprep.subr.mxu0 0.0
        %1077 = vmatpush1.msra.mxu0 0.0
        %1078 = vmatprep.subr.mxu0 0.0
        %1079 = vmatpush1.msra.mxu0 0.0
        %1080 = vmatprep.subr.mxu0 0.0
        %1081 = vmatpush1.msra.mxu0 0.0
        %1082 = vmatprep.subr.mxu0 0.0
        %1083 = vmatpush1.msra.mxu0 0.0
        %1084 = vmatprep.subr.mxu0 0.0
        %1085 = vmatpush1.msra.mxu0 0.0
        %1086 = vmatprep.subr.mxu0 0.0
        %1087 = vmatpush1.msra.mxu0 0.0
        %1088 = vmatprep.subr.mxu0 0.0
        %1089 = vmatpush1.msra.mxu0 0.0
        %1090 = vmatprep.subr.mxu0 0.0
        %1091 = vmatpush1.msra.mxu0 0.0
        %1092 = vmatprep.subr.mxu0 0.0
        %1093 = vmatpush1.msra.mxu0 0.0
        %1094 = vmatprep.mubr.f32.mxu0 0.0
        %1095 = vmatmul.mubr.f32.gmra.mrb[0].mxu0 %v1025
        %v1096 = vpop.f32.mrb[0].mxu0
        %v1097 = vadd.f32 %v1018, %v1096
        %v1098 = vpop.f32.mrb[0].mxu0
        %v1099 = vadd.f32 %v1018, %v1098
        %1100 = vmatprep.mubr.f32.mxu0 0.0
        %1101 = vmatmul.mubr.f32.gmra.mrb[0].mxu0 %v1028
        %v1102 = vpop.f32.mrb[0].mxu0
        %v1103 = vadd.f32 %v1022, %v1102
        %v1104 = vpop.f32.mrb[0].mxu0
        %v1105 = vadd.f32 %v1022, %v1104
        %1106 = vdwg.mxu0
        %vm1107 = vcmp.gt.f32.partialorder %v1097, 0.0
        %vm1108 = vcmp.gt.f32.partialorder %v1099, 0.0
        %vm1109 = vcmp.gt.f32.partialorder %v1103, 0.0
        %vm1110 = vcmp.gt.f32.partialorder %v1105, 0.0
        %v1111 = vmul.f32 %v1097, 0.01
        %v1112 = vmul.f32 %v1099, 0.01
        %v1113 = vmul.f32 %v1103, 0.01
        %v1114 = vmul.f32 %v1105, 0.01
        %v1115 = vsel %vm1107, %v1097, %v1111
        %v1116 = vsel %vm1108, %v1099, %v1112
        %v1117 = vsel %vm1109, %v1103, %v1113
        %v1118 = vsel %vm1110, %v1105, %v1114
        %s1119 = scalar_lea.vmem %s3, 2
        %v1120 = vld [vmem:[%s1119] sm:$0x3]
        %s1121 = scalar_lea.vmem %s4, 2
        %v1122 = vld [vmem:[%s1121] sm:$0x3]
        %1124 = vset.pattern.permute.xlu0 0
        %1125 = vperm.xlu0 %1124, %v1122
        %v1126 = vpop.permute.xlu0 %1125
        %v1129 = vsel %vm344, %v1120, 0
        %1131 = vmatprep.subr.mxu0 %v1116
        %1132 = vmatpush1.msra.mxu0 %v1115
        %1133 = vmatprep.subr.mxu0 %v1118
        %1134 = vmatpush1.msra.mxu0 %v1117
        %1135 = vmatprep.subr.mxu0 0.0
        %1136 = vmatpush1.msra.mxu0 0.0
        %1137 = vmatprep.subr.mxu0 0.0
        %1138 = vmatpush1.msra.mxu0 0.0
        %1139 = vmatprep.subr.mxu0 0.0
        %1140 = vmatpush1.msra.mxu0 0.0
        %1141 = vmatprep.subr.mxu0 0.0
        %1142 = vmatpush1.msra.mxu0 0.0
        %1143 = vmatprep.subr.mxu0 0.0
        %1144 = vmatpush1.msra.mxu0 0.0
        %1145 = vmatprep.subr.mxu0 0.0
        %1146 = vmatpush1.msra.mxu0 0.0
        %1147 = vmatprep.subr.mxu0 0.0
        %1148 = vmatpush1.msra.mxu0 0.0
        %1149 = vmatprep.subr.mxu0 0.0
        %1150 = vmatpush1.msra.mxu0 0.0
        %1151 = vmatprep.subr.mxu0 0.0
        %1152 = vmatpush1.msra.mxu0 0.0
        %1153 = vmatprep.subr.mxu0 0.0
        %1154 = vmatpush1.msra.mxu0 0.0
        %1155 = vmatprep.subr.mxu0 0.0
        %1156 = vmatpush1.msra.mxu0 0.0
        %1157 = vmatprep.subr.mxu0 0.0
        %1158 = vmatpush1.msra.mxu0 0.0
        %1159 = vmatprep.subr.mxu0 0.0
        %1160 = vmatpush1.msra.mxu0 0.0
        %1161 = vmatprep.subr.mxu0 0.0
        %1162 = vmatpush1.msra.mxu0 0.0
        %1163 = vmatprep.subr.mxu0 0.0
        %1164 = vmatpush1.msra.mxu0 0.0
        %1165 = vmatprep.subr.mxu0 0.0
        %1166 = vmatpush1.msra.mxu0 0.0
        %1167 = vmatprep.subr.mxu0 0.0
        %1168 = vmatpush1.msra.mxu0 0.0
        %1169 = vmatprep.subr.mxu0 0.0
        %1170 = vmatpush1.msra.mxu0 0.0
        %1171 = vmatprep.subr.mxu0 0.0
        %1172 = vmatpush1.msra.mxu0 0.0
        %1173 = vmatprep.subr.mxu0 0.0
        %1174 = vmatpush1.msra.mxu0 0.0
        %1175 = vmatprep.subr.mxu0 0.0
        %1176 = vmatpush1.msra.mxu0 0.0
        %1177 = vmatprep.subr.mxu0 0.0
        %1178 = vmatpush1.msra.mxu0 0.0
        %1179 = vmatprep.subr.mxu0 0.0
        %1180 = vmatpush1.msra.mxu0 0.0
        %1181 = vmatprep.subr.mxu0 0.0
        %1182 = vmatpush1.msra.mxu0 0.0
        %1183 = vmatprep.subr.mxu0 0.0
        %1184 = vmatpush1.msra.mxu0 0.0
        %1185 = vmatprep.subr.mxu0 0.0
        %1186 = vmatpush1.msra.mxu0 0.0
        %1187 = vmatprep.subr.mxu0 0.0
        %1188 = vmatpush1.msra.mxu0 0.0
        %1189 = vmatprep.subr.mxu0 0.0
        %1190 = vmatpush1.msra.mxu0 0.0
        %1191 = vmatprep.subr.mxu0 0.0
        %1192 = vmatpush1.msra.mxu0 0.0
        %1193 = vmatprep.subr.mxu0 0.0
        %1194 = vmatpush1.msra.mxu0 0.0
        %1195 = vmatprep.mubr.f32.mxu0 0.0
        %1196 = vmatmul.mubr.f32.gmra.mrb[0].mxu0 %v1129
        %v1197 = vpop.f32.mrb[0].mxu0
        %v1198 = vadd.f32 %v1126, %v1197
        %v1199 = vpop.f32.mrb[0].mxu0
        %v1200 = vadd.f32 %v1126, %v1199
        %1201 = vdwg.mxu0
        %v1202 = vmul.f32 %v1198, 1.442695
        %v1203 = vpow.pop %v1202
        %v1204 = vmul.f32 %v1200, 1.442695
        %v1205 = vpow.pop %v1204
        %v1206 = vmul.f32 %v1203, %v756
        %v1207 = vmul.f32 %v1205, %v757
        %v1210 = vrot.slane %v1198, 1
        %v1211 = vrot.slane %v1200, 1
        %v1214 = vadd.f32 %v1206, %v1210
        %v1215 = vadd.f32 %v1207, %v1211
        %v1216 = vadd.f32 %v758, %v1198
        %v1217 = vadd.f32 %v759, %v1200
        %s1218 = scalar_lea.vmem %s1, 32
        %v1219 = vld [vmem:[%s1218] sm:$0xff]
        %v1220 = vld [vmem:[%s1218 + $0x8] sm:$0xff]
        %1222 = vset.pattern.permute.xlu0 0
        %1223 = vperm.xlu0 %1222, %v1219
        %v1224 = vpop.permute.xlu0 %1223
        %1227 = vset.pattern.permute.xlu0 0
        %1228 = vperm.xlu0 %1227, %v1220
        %v1229 = vpop.permute.xlu0 %1228
        %v1231 = vmul.f32 %v1224, %v299
        %v1232 = vmul.f32 %v1224, %v303
        %v1233 = vmul.f32 %v1229, %v299
        %v1234 = vmul.f32 %v1229, %v303
        %1235 = vset.pattern.permute.xlu0 1
        %1236 = vperm.xlu0 %1235, %v1219
        %v1237 = vpop.permute.xlu0 %1236
        %1239 = vset.pattern.permute.xlu0 1
        %1240 = vperm.xlu0 %1239, %v1220
        %v1241 = vpop.permute.xlu0 %1240
        %v1243 = vadd.f32 %v1231, %v1237
        %v1244 = vadd.f32 %v1232, %v1237
        %v1245 = vadd.f32 %v1233, %v1241
        %v1246 = vadd.f32 %v1234, %v1241
        %vm1247 = vcmp.gt.f32.partialorder %v1243, 0.0
        %vm1248 = vcmp.gt.f32.partialorder %v1244, 0.0
        %vm1249 = vcmp.gt.f32.partialorder %v1245, 0.0
        %vm1250 = vcmp.gt.f32.partialorder %v1246, 0.0
        %v1251 = vmul.f32 %v1243, 0.01
        %v1252 = vmul.f32 %v1244, 0.01
        %v1253 = vmul.f32 %v1245, 0.01
        %v1254 = vmul.f32 %v1246, 0.01
        %v1255 = vsel %vm1247, %v1243, %v1251
        %v1256 = vsel %vm1248, %v1244, %v1252
        %v1257 = vsel %vm1249, %v1245, %v1253
        %v1258 = vsel %vm1250, %v1246, %v1254
        %s1259 = scalar_lea.vmem [#allocation2], 96
        %v1260 = vld [vmem:[%s1259] sm:$0xff]
        %v1261 = vld [vmem:[%s1259 + $0x8] sm:$0xff]
        %1262 = vset.pattern.permute.xlu0 2
        %1263 = vperm.xlu0 %1262, %v1219
        %v1264 = vpop.permute.xlu0 %1263
        %1266 = vset.pattern.permute.xlu0 2
        %1267 = vperm.xlu0 %1266, %v1220
        %v1268 = vpop.permute.xlu0 %1267
        %v1271 = vsel %vm344, %v1260, 0
        %v1274 = vsel %vm344, %v1261, 0
        %1276 = vmatprep.subr.mxu0 %v1256
        %1277 = vmatpush1.msra.mxu0 %v1255
        %1278 = vmatprep.subr.mxu0 %v1258
        %1279 = vmatpush1.msra.mxu0 %v1257
        %1280 = vmatprep.subr.mxu0 0.0
        %1281 = vmatpush1.msra.mxu0 0.0
        %1282 = vmatprep.subr.mxu0 0.0
        %1283 = vmatpush1.msra.mxu0 0.0
        %1284 = vmatprep.subr.mxu0 0.0
        %1285 = vmatpush1.msra.mxu0 0.0
        %1286 = vmatprep.subr.mxu0 0.0
        %1287 = vmatpush1.msra.mxu0 0.0
        %1288 = vmatprep.subr.mxu0 0.0
        %1289 = vmatpush1.msra.mxu0 0.0
        %1290 = vmatprep.subr.mxu0 0.0
        %1291 = vmatpush1.msra.mxu0 0.0
        %1292 = vmatprep.subr.mxu0 0.0
        %1293 = vmatpush1.msra.mxu0 0.0
        %1294 = vmatprep.subr.mxu0 0.0
        %1295 = vmatpush1.msra.mxu0 0.0
        %1296 = vmatprep.subr.mxu0 0.0
        %1297 = vmatpush1.msra.mxu0 0.0
        %1298 = vmatprep.subr.mxu0 0.0
        %1299 = vmatpush1.msra.mxu0 0.0
        %1300 = vmatprep.subr.mxu0 0.0
        %1301 = vmatpush1.msra.mxu0 0.0
        %1302 = vmatprep.subr.mxu0 0.0
        %1303 = vmatpush1.msra.mxu0 0.0
        %1304 = vmatprep.subr.mxu0 0.0
        %1305 = vmatpush1.msra.mxu0 0.0
        %1306 = vmatprep.subr.mxu0 0.0
        %1307 = vmatpush1.msra.mxu0 0.0
        %1308 = vmatprep.subr.mxu0 0.0
        %1309 = vmatpush1.msra.mxu0 0.0
        %1310 = vmatprep.subr.mxu0 0.0
        %1311 = vmatpush1.msra.mxu0 0.0
        %1312 = vmatprep.subr.mxu0 0.0
        %1313 = vmatpush1.msra.mxu0 0.0
        %1314 = vmatprep.subr.mxu0 0.0
        %1315 = vmatpush1.msra.mxu0 0.0
        %1316 = vmatprep.subr.mxu0 0.0
        %1317 = vmatpush1.msra.mxu0 0.0
        %1318 = vmatprep.subr.mxu0 0.0
        %1319 = vmatpush1.msra.mxu0 0.0
        %1320 = vmatprep.subr.mxu0 0.0
        %1321 = vmatpush1.msra.mxu0 0.0
        %1322 = vmatprep.subr.mxu0 0.0
        %1323 = vmatpush1.msra.mxu0 0.0
        %1324 = vmatprep.subr.mxu0 0.0
        %1325 = vmatpush1.msra.mxu0 0.0
        %1326 = vmatprep.subr.mxu0 0.0
        %1327 = vmatpush1.msra.mxu0 0.0
        %1328 = vmatprep.subr.mxu0 0.0
        %1329 = vmatpush1.msra.mxu0 0.0
        %1330 = vmatprep.subr.mxu0 0.0
        %1331 = vmatpush1.msra.mxu0 0.0
        %1332 = vmatprep.subr.mxu0 0.0
        %1333 = vmatpush1.msra.mxu0 0.0
        %1334 = vmatprep.subr.mxu0 0.0
        %1335 = vmatpush1.msra.mxu0 0.0
        %1336 = vmatprep.subr.mxu0 0.0
        %1337 = vmatpush1.msra.mxu0 0.0
        %1338 = vmatprep.subr.mxu0 0.0
        %1339 = vmatpush1.msra.mxu0 0.0
        %1340 = vmatprep.mubr.f32.mxu0 0.0
        %1341 = vmatmul.mubr.f32.gmra.mrb[0].mxu0 %v1271
        %v1342 = vpop.f32.mrb[0].mxu0
        %v1343 = vadd.f32 %v1264, %v1342
        %v1344 = vpop.f32.mrb[0].mxu0
        %v1345 = vadd.f32 %v1264, %v1344
        %1346 = vmatprep.mubr.f32.mxu0 0.0
        %1347 = vmatmul.mubr.f32.gmra.mrb[0].mxu0 %v1274
        %v1348 = vpop.f32.mrb[0].mxu0
        %v1349 = vadd.f32 %v1268, %v1348
        %v1350 = vpop.f32.mrb[0].mxu0
        %v1351 = vadd.f32 %v1268, %v1350
        %1352 = vdwg.mxu0
        %vm1353 = vcmp.gt.f32.partialorder %v1343, 0.0
        %vm1354 = vcmp.gt.f32.partialorder %v1345, 0.0
        %vm1355 = vcmp.gt.f32.partialorder %v1349, 0.0
        %vm1356 = vcmp.gt.f32.partialorder %v1351, 0.0
        %v1357 = vmul.f32 %v1343, 0.01
        %v1358 = vmul.f32 %v1345, 0.01
        %v1359 = vmul.f32 %v1349, 0.01
        %v1360 = vmul.f32 %v1351, 0.01
        %v1361 = vsel %vm1353, %v1343, %v1357
        %v1362 = vsel %vm1354, %v1345, %v1358
        %v1363 = vsel %vm1355, %v1349, %v1359
        %v1364 = vsel %vm1356, %v1351, %v1360
        %s1365 = scalar_lea.vmem [#allocation2], 112
        %v1366 = vld [vmem:[%s1365] sm:$0xff]
        %v1367 = vld [vmem:[%s1365 + $0x8] sm:$0xff]
        %1368 = vset.pattern.permute.xlu0 3
        %1369 = vperm.xlu0 %1368, %v1219
        %v1370 = vpop.permute.xlu0 %1369
        %1372 = vset.pattern.permute.xlu0 3
        %1373 = vperm.xlu0 %1372, %v1220
        %v1374 = vpop.permute.xlu0 %1373
        %v1377 = vsel %vm344, %v1366, 0
        %v1380 = vsel %vm344, %v1367, 0
        %1382 = vmatprep.subr.mxu0 %v1362
        %1383 = vmatpush1.msra.mxu0 %v1361
        %1384 = vmatprep.subr.mxu0 %v1364
        %1385 = vmatpush1.msra.mxu0 %v1363
        %1386 = vmatprep.subr.mxu0 0.0
        %1387 = vmatpush1.msra.mxu0 0.0
        %1388 = vmatprep.subr.mxu0 0.0
        %1389 = vmatpush1.msra.mxu0 0.0
        %1390 = vmatprep.subr.mxu0 0.0
        %1391 = vmatpush1.msra.mxu0 0.0
        %1392 = vmatprep.subr.mxu0 0.0
        %1393 = vmatpush1.msra.mxu0 0.0
        %1394 = vmatprep.subr.mxu0 0.0
        %1395 = vmatpush1.msra.mxu0 0.0
        %1396 = vmatprep.subr.mxu0 0.0
        %1397 = vmatpush1.msra.mxu0 0.0
        %1398 = vmatprep.subr.mxu0 0.0
        %1399 = vmatpush1.msra.mxu0 0.0
        %1400 = vmatprep.subr.mxu0 0.0
        %1401 = vmatpush1.msra.mxu0 0.0
        %1402 = vmatprep.subr.mxu0 0.0
        %1403 = vmatpush1.msra.mxu0 0.0
        %1404 = vmatprep.subr.mxu0 0.0
        %1405 = vmatpush1.msra.mxu0 0.0
        %1406 = vmatprep.subr.mxu0 0.0
        %1407 = vmatpush1.msra.mxu0 0.0
        %1408 = vmatprep.subr.mxu0 0.0
        %1409 = vmatpush1.msra.mxu0 0.0
        %1410 = vmatprep.subr.mxu0 0.0
        %1411 = vmatpush1.msra.mxu0 0.0
        %1412 = vmatprep.subr.mxu0 0.0
        %1413 = vmatpush1.msra.mxu0 0.0
        %1414 = vmatprep.subr.mxu0 0.0
        %1415 = vmatpush1.msra.mxu0 0.0
        %1416 = vmatprep.subr.mxu0 0.0
        %1417 = vmatpush1.msra.mxu0 0.0
        %1418 = vmatprep.subr.mxu0 0.0
        %1419 = vmatpush1.msra.mxu0 0.0
        %1420 = vmatprep.subr.mxu0 0.0
        %1421 = vmatpush1.msra.mxu0 0.0
        %1422 = vmatprep.subr.mxu0 0.0
        %1423 = vmatpush1.msra.mxu0 0.0
        %1424 = vmatprep.subr.mxu0 0.0
        %1425 = vmatpush1.msra.mxu0 0.0
        %1426 = vmatprep.subr.mxu0 0.0
        %1427 = vmatpush1.msra.mxu0 0.0
        %1428 = vmatprep.subr.mxu0 0.0
        %1429 = vmatpush1.msra.mxu0 0.0
        %1430 = vmatprep.subr.mxu0 0.0
        %1431 = vmatpush1.msra.mxu0 0.0
        %1432 = vmatprep.subr.mxu0 0.0
        %1433 = vmatpush1.msra.mxu0 0.0
        %1434 = vmatprep.subr.mxu0 0.0
        %1435 = vmatpush1.msra.mxu0 0.0
        %1436 = vmatprep.subr.mxu0 0.0
        %1437 = vmatpush1.msra.mxu0 0.0
        %1438 = vmatprep.subr.mxu0 0.0
        %1439 = vmatpush1.msra.mxu0 0.0
        %1440 = vmatprep.subr.mxu0 0.0
        %1441 = vmatpush1.msra.mxu0 0.0
        %1442 = vmatprep.subr.mxu0 0.0
        %1443 = vmatpush1.msra.mxu0 0.0
        %1444 = vmatprep.subr.mxu0 0.0
        %1445 = vmatpush1.msra.mxu0 0.0
        %1446 = vmatprep.mubr.f32.mxu0 0.0
        %1447 = vmatmul.mubr.f32.gmra.mrb[0].mxu0 %v1377
        %v1448 = vpop.f32.mrb[0].mxu0
        %v1449 = vadd.f32 %v1370, %v1448
        %v1450 = vpop.f32.mrb[0].mxu0
        %v1451 = vadd.f32 %v1370, %v1450
        %1452 = vmatprep.mubr.f32.mxu0 0.0
        %1453 = vmatmul.mubr.f32.gmra.mrb[0].mxu0 %v1380
        %v1454 = vpop.f32.mrb[0].mxu0
        %v1455 = vadd.f32 %v1374, %v1454
        %v1456 = vpop.f32.mrb[0].mxu0
        %v1457 = vadd.f32 %v1374, %v1456
        %1458 = vdwg.mxu0
        %vm1459 = vcmp.gt.f32.partialorder %v1449, 0.0
        %vm1460 = vcmp.gt.f32.partialorder %v1451, 0.0
        %vm1461 = vcmp.gt.f32.partialorder %v1455, 0.0
        %vm1462 = vcmp.gt.f32.partialorder %v1457, 0.0
        %v1463 = vmul.f32 %v1449, 0.01
        %v1464 = vmul.f32 %v1451, 0.01
        %v1465 = vmul.f32 %v1455, 0.01
        %v1466 = vmul.f32 %v1457, 0.01
        %v1467 = vsel %vm1459, %v1449, %v1463
        %v1468 = vsel %vm1460, %v1451, %v1464
        %v1469 = vsel %vm1461, %v1455, %v1465
        %v1470 = vsel %vm1462, %v1457, %v1466
        %s1471 = scalar_lea.vmem [#allocation2], 128
        %v1472 = vld [vmem:[%s1471] sm:$0xff]
        %v1473 = vld [vmem:[%s1471 + $0x8] sm:$0xff]
        %1474 = vset.pattern.permute.xlu0 4
        %1475 = vperm.xlu0 %1474, %v1219
        %v1476 = vpop.permute.xlu0 %1475
        %1478 = vset.pattern.permute.xlu0 4
        %1479 = vperm.xlu0 %1478, %v1220
        %v1480 = vpop.permute.xlu0 %1479
        %v1483 = vsel %vm344, %v1472, 0
        %v1486 = vsel %vm344, %v1473, 0
        %1488 = vmatprep.subr.mxu0 %v1468
        %1489 = vmatpush1.msra.mxu0 %v1467
        %1490 = vmatprep.subr.mxu0 %v1470
        %1491 = vmatpush1.msra.mxu0 %v1469
        %1492 = vmatprep.subr.mxu0 0.0
        %1493 = vmatpush1.msra.mxu0 0.0
        %1494 = vmatprep.subr.mxu0 0.0
        %1495 = vmatpush1.msra.mxu0 0.0
        %1496 = vmatprep.subr.mxu0 0.0
        %1497 = vmatpush1.msra.mxu0 0.0
        %1498 = vmatprep.subr.mxu0 0.0
        %1499 = vmatpush1.msra.mxu0 0.0
        %1500 = vmatprep.subr.mxu0 0.0
        %1501 = vmatpush1.msra.mxu0 0.0
        %1502 = vmatprep.subr.mxu0 0.0
        %1503 = vmatpush1.msra.mxu0 0.0
        %1504 = vmatprep.subr.mxu0 0.0
        %1505 = vmatpush1.msra.mxu0 0.0
        %1506 = vmatprep.subr.mxu0 0.0
        %1507 = vmatpush1.msra.mxu0 0.0
        %1508 = vmatprep.subr.mxu0 0.0
        %1509 = vmatpush1.msra.mxu0 0.0
        %1510 = vmatprep.subr.mxu0 0.0
        %1511 = vmatpush1.msra.mxu0 0.0
        %1512 = vmatprep.subr.mxu0 0.0
        %1513 = vmatpush1.msra.mxu0 0.0
        %1514 = vmatprep.subr.mxu0 0.0
        %1515 = vmatpush1.msra.mxu0 0.0
        %1516 = vmatprep.subr.mxu0 0.0
        %1517 = vmatpush1.msra.mxu0 0.0
        %1518 = vmatprep.subr.mxu0 0.0
        %1519 = vmatpush1.msra.mxu0 0.0
        %1520 = vmatprep.subr.mxu0 0.0
        %1521 = vmatpush1.msra.mxu0 0.0
        %1522 = vmatprep.subr.mxu0 0.0
        %1523 = vmatpush1.msra.mxu0 0.0
        %1524 = vmatprep.subr.mxu0 0.0
        %1525 = vmatpush1.msra.mxu0 0.0
        %1526 = vmatprep.subr.mxu0 0.0
        %1527 = vmatpush1.msra.mxu0 0.0
        %1528 = vmatprep.subr.mxu0 0.0
        %1529 = vmatpush1.msra.mxu0 0.0
        %1530 = vmatprep.subr.mxu0 0.0
        %1531 = vmatpush1.msra.mxu0 0.0
        %1532 = vmatprep.subr.mxu0 0.0
        %1533 = vmatpush1.msra.mxu0 0.0
        %1534 = vmatprep.subr.mxu0 0.0
        %1535 = vmatpush1.msra.mxu0 0.0
        %1536 = vmatprep.subr.mxu0 0.0
        %1537 = vmatpush1.msra.mxu0 0.0
        %1538 = vmatprep.subr.mxu0 0.0
        %1539 = vmatpush1.msra.mxu0 0.0
        %1540 = vmatprep.subr.mxu0 0.0
        %1541 = vmatpush1.msra.mxu0 0.0
        %1542 = vmatprep.subr.mxu0 0.0
        %1543 = vmatpush1.msra.mxu0 0.0
        %1544 = vmatprep.subr.mxu0 0.0
        %1545 = vmatpush1.msra.mxu0 0.0
        %1546 = vmatprep.subr.mxu0 0.0
        %1547 = vmatpush1.msra.mxu0 0.0
        %1548 = vmatprep.subr.mxu0 0.0
        %1549 = vmatpush1.msra.mxu0 0.0
        %1550 = vmatprep.subr.mxu0 0.0
        %1551 = vmatpush1.msra.mxu0 0.0
        %1552 = vmatprep.mubr.f32.mxu0 0.0
        %1553 = vmatmul.mubr.f32.gmra.mrb[0].mxu0 %v1483
        %v1554 = vpop.f32.mrb[0].mxu0
        %v1555 = vadd.f32 %v1476, %v1554
        %v1556 = vpop.f32.mrb[0].mxu0
        %v1557 = vadd.f32 %v1476, %v1556
        %1558 = vmatprep.mubr.f32.mxu0 0.0
        %1559 = vmatmul.mubr.f32.gmra.mrb[0].mxu0 %v1486
        %v1560 = vpop.f32.mrb[0].mxu0
        %v1561 = vadd.f32 %v1480, %v1560
        %v1562 = vpop.f32.mrb[0].mxu0
        %v1563 = vadd.f32 %v1480, %v1562
        %1564 = vdwg.mxu0
        %vm1565 = vcmp.gt.f32.partialorder %v1555, 0.0
        %vm1566 = vcmp.gt.f32.partialorder %v1557, 0.0
        %vm1567 = vcmp.gt.f32.partialorder %v1561, 0.0
        %vm1568 = vcmp.gt.f32.partialorder %v1563, 0.0
        %v1569 = vmul.f32 %v1555, 0.01
        %v1570 = vmul.f32 %v1557, 0.01
        %v1571 = vmul.f32 %v1561, 0.01
        %v1572 = vmul.f32 %v1563, 0.01
        %v1573 = vsel %vm1565, %v1555, %v1569
        %v1574 = vsel %vm1566, %v1557, %v1570
        %v1575 = vsel %vm1567, %v1561, %v1571
        %v1576 = vsel %vm1568, %v1563, %v1572
        %s1577 = scalar_lea.vmem %s3, 4
        %v1578 = vld [vmem:[%s1577] sm:$0x3]
        %s1579 = scalar_lea.vmem %s4, 4
        %v1580 = vld [vmem:[%s1579] sm:$0x3]
        %1582 = vset.pattern.permute.xlu0 0
        %1583 = vperm.xlu0 %1582, %v1580
        %v1584 = vpop.permute.xlu0 %1583
        %v1587 = vsel %vm344, %v1578, 0
        %1589 = vmatprep.subr.mxu0 %v1574
        %1590 = vmatpush1.msra.mxu0 %v1573
        %1591 = vmatprep.subr.mxu0 %v1576
        %1592 = vmatpush1.msra.mxu0 %v1575
        %1593 = vmatprep.subr.mxu0 0.0
        %1594 = vmatpush1.msra.mxu0 0.0
        %1595 = vmatprep.subr.mxu0 0.0
        %1596 = vmatpush1.msra.mxu0 0.0
        %1597 = vmatprep.subr.mxu0 0.0
        %1598 = vmatpush1.msra.mxu0 0.0
        %1599 = vmatprep.subr.mxu0 0.0
        %1600 = vmatpush1.msra.mxu0 0.0
        %1601 = vmatprep.subr.mxu0 0.0
        %1602 = vmatpush1.msra.mxu0 0.0
        %1603 = vmatprep.subr.mxu0 0.0
        %1604 = vmatpush1.msra.mxu0 0.0
        %1605 = vmatprep.subr.mxu0 0.0
        %1606 = vmatpush1.msra.mxu0 0.0
        %1607 = vmatprep.subr.mxu0 0.0
        %1608 = vmatpush1.msra.mxu0 0.0
        %1609 = vmatprep.subr.mxu0 0.0
        %1610 = vmatpush1.msra.mxu0 0.0
        %1611 = vmatprep.subr.mxu0 0.0
        %1612 = vmatpush1.msra.mxu0 0.0
        %1613 = vmatprep.subr.mxu0 0.0
        %1614 = vmatpush1.msra.mxu0 0.0
        %1615 = vmatprep.subr.mxu0 0.0
        %1616 = vmatpush1.msra.mxu0 0.0
        %1617 = vmatprep.subr.mxu0 0.0
        %1618 = vmatpush1.msra.mxu0 0.0
        %1619 = vmatprep.subr.mxu0 0.0
        %1620 = vmatpush1.msra.mxu0 0.0
        %1621 = vmatprep.subr.mxu0 0.0
        %1622 = vmatpush1.msra.mxu0 0.0
        %1623 = vmatprep.subr.mxu0 0.0
        %1624 = vmatpush1.msra.mxu0 0.0
        %1625 = vmatprep.subr.mxu0 0.0
        %1626 = vmatpush1.msra.mxu0 0.0
        %1627 = vmatprep.subr.mxu0 0.0
        %1628 = vmatpush1.msra.mxu0 0.0
        %1629 = vmatprep.subr.mxu0 0.0
        %1630 = vmatpush1.msra.mxu0 0.0
        %1631 = vmatprep.subr.mxu0 0.0
        %1632 = vmatpush1.msra.mxu0 0.0
        %1633 = vmatprep.subr.mxu0 0.0
        %1634 = vmatpush1.msra.mxu0 0.0
        %1635 = vmatprep.subr.mxu0 0.0
        %1636 = vmatpush1.msra.mxu0 0.0
        %1637 = vmatprep.subr.mxu0 0.0
        %1638 = vmatpush1.msra.mxu0 0.0
        %1639 = vmatprep.subr.mxu0 0.0
        %1640 = vmatpush1.msra.mxu0 0.0
        %1641 = vmatprep.subr.mxu0 0.0
        %1642 = vmatpush1.msra.mxu0 0.0
        %1643 = vmatprep.subr.mxu0 0.0
        %1644 = vmatpush1.msra.mxu0 0.0
        %1645 = vmatprep.subr.mxu0 0.0
        %1646 = vmatpush1.msra.mxu0 0.0
        %1647 = vmatprep.subr.mxu0 0.0
        %1648 = vmatpush1.msra.mxu0 0.0
        %1649 = vmatprep.subr.mxu0 0.0
        %1650 = vmatpush1.msra.mxu0 0.0
        %1651 = vmatprep.subr.mxu0 0.0
        %1652 = vmatpush1.msra.mxu0 0.0
        %1653 = vmatprep.mubr.f32.mxu0 0.0
        %1654 = vmatmul.mubr.f32.gmra.mrb[0].mxu0 %v1587
        %v1655 = vpop.f32.mrb[0].mxu0
        %v1656 = vadd.f32 %v1584, %v1655
        %v1657 = vpop.f32.mrb[0].mxu0
        %v1658 = vadd.f32 %v1584, %v1657
        %1659 = vdwg.mxu0
        %v1660 = vmul.f32 %v1656, 1.442695
        %v1661 = vpow.pop %v1660
        %v1662 = vmul.f32 %v1658, 1.442695
        %v1663 = vpow.pop %v1662
        %v1664 = vmul.f32 %v1661, %v1214
        %v1665 = vmul.f32 %v1663, %v1215
        %v1668 = vrot.slane %v1656, 1
        %v1669 = vrot.slane %v1658, 1
        %v1672 = vadd.f32 %v1664, %v1668
        %v1673 = vadd.f32 %v1665, %v1669
        %v1674 = vadd.f32 %v1216, %v1656
        %v1675 = vadd.f32 %v1217, %v1658
        %s1676 = scalar_lea.vmem %s1, 48
        %v1677 = vld [vmem:[%s1676] sm:$0xff]
        %v1678 = vld [vmem:[%s1676 + $0x8] sm:$0xff]
        %1680 = vset.pattern.permute.xlu0 0
        %1681 = vperm.xlu0 %1680, %v1677
        %v1682 = vpop.permute.xlu0 %1681
        %1685 = vset.pattern.permute.xlu0 0
        %1686 = vperm.xlu0 %1685, %v1678
        %v1687 = vpop.permute.xlu0 %1686
        %v1689 = vmul.f32 %v1682, %v299
        %v1690 = vmul.f32 %v1682, %v303
        %v1691 = vmul.f32 %v1687, %v299
        %v1692 = vmul.f32 %v1687, %v303
        %1693 = vset.pattern.permute.xlu0 1
        %1694 = vperm.xlu0 %1693, %v1677
        %v1695 = vpop.permute.xlu0 %1694
        %1697 = vset.pattern.permute.xlu0 1
        %1698 = vperm.xlu0 %1697, %v1678
        %v1699 = vpop.permute.xlu0 %1698
        %v1701 = vadd.f32 %v1689, %v1695
        %v1702 = vadd.f32 %v1690, %v1695
        %v1703 = vadd.f32 %v1691, %v1699
        %v1704 = vadd.f32 %v1692, %v1699
        %vm1705 = vcmp.gt.f32.partialorder %v1701, 0.0
        %vm1706 = vcmp.gt.f32.partialorder %v1702, 0.0
        %vm1707 = vcmp.gt.f32.partialorder %v1703, 0.0
        %vm1708 = vcmp.gt.f32.partialorder %v1704, 0.0
        %v1709 = vmul.f32 %v1701, 0.01
        %v1710 = vmul.f32 %v1702, 0.01
        %v1711 = vmul.f32 %v1703, 0.01
        %v1712 = vmul.f32 %v1704, 0.01
        %v1713 = vsel %vm1705, %v1701, %v1709
        %v1714 = vsel %vm1706, %v1702, %v1710
        %v1715 = vsel %vm1707, %v1703, %v1711
        %v1716 = vsel %vm1708, %v1704, %v1712
        %s1717 = scalar_lea.vmem [#allocation2], 144
        %v1718 = vld [vmem:[%s1717] sm:$0xff]
        %v1719 = vld [vmem:[%s1717 + $0x8] sm:$0xff]
        %1720 = vset.pattern.permute.xlu0 2
        %1721 = vperm.xlu0 %1720, %v1677
        %v1722 = vpop.permute.xlu0 %1721
        %1724 = vset.pattern.permute.xlu0 2
        %1725 = vperm.xlu0 %1724, %v1678
        %v1726 = vpop.permute.xlu0 %1725
        %v1729 = vsel %vm344, %v1718, 0
        %v1732 = vsel %vm344, %v1719, 0
        %1734 = vmatprep.subr.mxu0 %v1714
        %1735 = vmatpush1.msra.mxu0 %v1713
        %1736 = vmatprep.subr.mxu0 %v1716
        %1737 = vmatpush1.msra.mxu0 %v1715
        %1738 = vmatprep.subr.mxu0 0.0
        %1739 = vmatpush1.msra.mxu0 0.0
        %1740 = vmatprep.subr.mxu0 0.0
        %1741 = vmatpush1.msra.mxu0 0.0
        %1742 = vmatprep.subr.mxu0 0.0
        %1743 = vmatpush1.msra.mxu0 0.0
        %1744 = vmatprep.subr.mxu0 0.0
        %1745 = vmatpush1.msra.mxu0 0.0
        %1746 = vmatprep.subr.mxu0 0.0
        %1747 = vmatpush1.msra.mxu0 0.0
        %1748 = vmatprep.subr.mxu0 0.0
        %1749 = vmatpush1.msra.mxu0 0.0
        %1750 = vmatprep.subr.mxu0 0.0
        %1751 = vmatpush1.msra.mxu0 0.0
        %1752 = vmatprep.subr.mxu0 0.0
        %1753 = vmatpush1.msra.mxu0 0.0
        %1754 = vmatprep.subr.mxu0 0.0
        %1755 = vmatpush1.msra.mxu0 0.0
        %1756 = vmatprep.subr.mxu0 0.0
        %1757 = vmatpush1.msra.mxu0 0.0
        %1758 = vmatprep.subr.mxu0 0.0
        %1759 = vmatpush1.msra.mxu0 0.0
        %1760 = vmatprep.subr.mxu0 0.0
        %1761 = vmatpush1.msra.mxu0 0.0
        %1762 = vmatprep.subr.mxu0 0.0
        %1763 = vmatpush1.msra.mxu0 0.0
        %1764 = vmatprep.subr.mxu0 0.0
        %1765 = vmatpush1.msra.mxu0 0.0
        %1766 = vmatprep.subr.mxu0 0.0
        %1767 = vmatpush1.msra.mxu0 0.0
        %1768 = vmatprep.subr.mxu0 0.0
        %1769 = vmatpush1.msra.mxu0 0.0
        %1770 = vmatprep.subr.mxu0 0.0
        %1771 = vmatpush1.msra.mxu0 0.0
        %1772 = vmatprep.subr.mxu0 0.0
        %1773 = vmatpush1.msra.mxu0 0.0
        %1774 = vmatprep.subr.mxu0 0.0
        %1775 = vmatpush1.msra.mxu0 0.0
        %1776 = vmatprep.subr.mxu0 0.0
        %1777 = vmatpush1.msra.mxu0 0.0
        %1778 = vmatprep.subr.mxu0 0.0
        %1779 = vmatpush1.msra.mxu0 0.0
        %1780 = vmatprep.subr.mxu0 0.0
        %1781 = vmatpush1.msra.mxu0 0.0
        %1782 = vmatprep.subr.mxu0 0.0
        %1783 = vmatpush1.msra.mxu0 0.0
        %1784 = vmatprep.subr.mxu0 0.0
        %1785 = vmatpush1.msra.mxu0 0.0
        %1786 = vmatprep.subr.mxu0 0.0
        %1787 = vmatpush1.msra.mxu0 0.0
        %1788 = vmatprep.subr.mxu0 0.0
        %1789 = vmatpush1.msra.mxu0 0.0
        %1790 = vmatprep.subr.mxu0 0.0
        %1791 = vmatpush1.msra.mxu0 0.0
        %1792 = vmatprep.subr.mxu0 0.0
        %1793 = vmatpush1.msra.mxu0 0.0
        %1794 = vmatprep.subr.mxu0 0.0
        %1795 = vmatpush1.msra.mxu0 0.0
        %1796 = vmatprep.subr.mxu0 0.0
        %1797 = vmatpush1.msra.mxu0 0.0
        %1798 = vmatprep.mubr.f32.mxu0 0.0
        %1799 = vmatmul.mubr.f32.gmra.mrb[0].mxu0 %v1729
        %v1800 = vpop.f32.mrb[0].mxu0
        %v1801 = vadd.f32 %v1722, %v1800
        %v1802 = vpop.f32.mrb[0].mxu0
        %v1803 = vadd.f32 %v1722, %v1802
        %1804 = vmatprep.mubr.f32.mxu0 0.0
        %1805 = vmatmul.mubr.f32.gmra.mrb[0].mxu0 %v1732
        %v1806 = vpop.f32.mrb[0].mxu0
        %v1807 = vadd.f32 %v1726, %v1806
        %v1808 = vpop.f32.mrb[0].mxu0
        %v1809 = vadd.f32 %v1726, %v1808
        %1810 = vdwg.mxu0
        %vm1811 = vcmp.gt.f32.partialorder %v1801, 0.0
        %vm1812 = vcmp.gt.f32.partialorder %v1803, 0.0
        %vm1813 = vcmp.gt.f32.partialorder %v1807, 0.0
        %vm1814 = vcmp.gt.f32.partialorder %v1809, 0.0
        %v1815 = vmul.f32 %v1801, 0.01
        %v1816 = vmul.f32 %v1803, 0.01
        %v1817 = vmul.f32 %v1807, 0.01
        %v1818 = vmul.f32 %v1809, 0.01
        %v1819 = vsel %vm1811, %v1801, %v1815
        %v1820 = vsel %vm1812, %v1803, %v1816
        %v1821 = vsel %vm1813, %v1807, %v1817
        %v1822 = vsel %vm1814, %v1809, %v1818
        %s1823 = scalar_lea.vmem [#allocation2], 160
        %v1824 = vld [vmem:[%s1823] sm:$0xff]
        %v1825 = vld [vmem:[%s1823 + $0x8] sm:$0xff]
        %1826 = vset.pattern.permute.xlu0 3
        %1827 = vperm.xlu0 %1826, %v1677
        %v1828 = vpop.permute.xlu0 %1827
        %1830 = vset.pattern.permute.xlu0 3
        %1831 = vperm.xlu0 %1830, %v1678
        %v1832 = vpop.permute.xlu0 %1831
        %v1835 = vsel %vm344, %v1824, 0
        %v1838 = vsel %vm344, %v1825, 0
        %1840 = vmatprep.subr.mxu0 %v1820
        %1841 = vmatpush1.msra.mxu0 %v1819
        %1842 = vmatprep.subr.mxu0 %v1822
        %1843 = vmatpush1.msra.mxu0 %v1821
        %1844 = vmatprep.subr.mxu0 0.0
        %1845 = vmatpush1.msra.mxu0 0.0
        %1846 = vmatprep.subr.mxu0 0.0
        %1847 = vmatpush1.msra.mxu0 0.0
        %1848 = vmatprep.subr.mxu0 0.0
        %1849 = vmatpush1.msra.mxu0 0.0
        %1850 = vmatprep.subr.mxu0 0.0
        %1851 = vmatpush1.msra.mxu0 0.0
        %1852 = vmatprep.subr.mxu0 0.0
        %1853 = vmatpush1.msra.mxu0 0.0
        %1854 = vmatprep.subr.mxu0 0.0
        %1855 = vmatpush1.msra.mxu0 0.0
        %1856 = vmatprep.subr.mxu0 0.0
        %1857 = vmatpush1.msra.mxu0 0.0
        %1858 = vmatprep.subr.mxu0 0.0
        %1859 = vmatpush1.msra.mxu0 0.0
        %1860 = vmatprep.subr.mxu0 0.0
        %1861 = vmatpush1.msra.mxu0 0.0
        %1862 = vmatprep.subr.mxu0 0.0
        %1863 = vmatpush1.msra.mxu0 0.0
        %1864 = vmatprep.subr.mxu0 0.0
        %1865 = vmatpush1.msra.mxu0 0.0
        %1866 = vmatprep.subr.mxu0 0.0
        %1867 = vmatpush1.msra.mxu0 0.0
        %1868 = vmatprep.subr.mxu0 0.0
        %1869 = vmatpush1.msra.mxu0 0.0
        %1870 = vmatprep.subr.mxu0 0.0
        %1871 = vmatpush1.msra.mxu0 0.0
        %1872 = vmatprep.subr.mxu0 0.0
        %1873 = vmatpush1.msra.mxu0 0.0
        %1874 = vmatprep.subr.mxu0 0.0
        %1875 = vmatpush1.msra.mxu0 0.0
        %1876 = vmatprep.subr.mxu0 0.0
        %1877 = vmatpush1.msra.mxu0 0.0
        %1878 = vmatprep.subr.mxu0 0.0
        %1879 = vmatpush1.msra.mxu0 0.0
        %1880 = vmatprep.subr.mxu0 0.0
        %1881 = vmatpush1.msra.mxu0 0.0
        %1882 = vmatprep.subr.mxu0 0.0
        %1883 = vmatpush1.msra.mxu0 0.0
        %1884 = vmatprep.subr.mxu0 0.0
        %1885 = vmatpush1.msra.mxu0 0.0
        %1886 = vmatprep.subr.mxu0 0.0
        %1887 = vmatpush1.msra.mxu0 0.0
        %1888 = vmatprep.subr.mxu0 0.0
        %1889 = vmatpush1.msra.mxu0 0.0
        %1890 = vmatprep.subr.mxu0 0.0
        %1891 = vmatpush1.msra.mxu0 0.0
        %1892 = vmatprep.subr.mxu0 0.0
        %1893 = vmatpush1.msra.mxu0 0.0
        %1894 = vmatprep.subr.mxu0 0.0
        %1895 = vmatpush1.msra.mxu0 0.0
        %1896 = vmatprep.subr.mxu0 0.0
        %1897 = vmatpush1.msra.mxu0 0.0
        %1898 = vmatprep.subr.mxu0 0.0
        %1899 = vmatpush1.msra.mxu0 0.0
        %1900 = vmatprep.subr.mxu0 0.0
        %1901 = vmatpush1.msra.mxu0 0.0
        %1902 = vmatprep.subr.mxu0 0.0
        %1903 = vmatpush1.msra.mxu0 0.0
        %1904 = vmatprep.mubr.f32.mxu0 0.0
        %1905 = vmatmul.mubr.f32.gmra.mrb[0].mxu0 %v1835
        %v1906 = vpop.f32.mrb[0].mxu0
        %v1907 = vadd.f32 %v1828, %v1906
        %v1908 = vpop.f32.mrb[0].mxu0
        %v1909 = vadd.f32 %v1828, %v1908
        %1910 = vmatprep.mubr.f32.mxu0 0.0
        %1911 = vmatmul.mubr.f32.gmra.mrb[0].mxu0 %v1838
        %v1912 = vpop.f32.mrb[0].mxu0
        %v1913 = vadd.f32 %v1832, %v1912
        %v1914 = vpop.f32.mrb[0].mxu0
        %v1915 = vadd.f32 %v1832, %v1914
        %1916 = vdwg.mxu0
        %vm1917 = vcmp.gt.f32.partialorder %v1907, 0.0
        %vm1918 = vcmp.gt.f32.partialorder %v1909, 0.0
        %vm1919 = vcmp.gt.f32.partialorder %v1913, 0.0
        %vm1920 = vcmp.gt.f32.partialorder %v1915, 0.0
        %v1921 = vmul.f32 %v1907, 0.01
        %v1922 = vmul.f32 %v1909, 0.01
        %v1923 = vmul.f32 %v1913, 0.01
        %v1924 = vmul.f32 %v1915, 0.01
        %v1925 = vsel %vm1917, %v1907, %v1921
        %v1926 = vsel %vm1918, %v1909, %v1922
        %v1927 = vsel %vm1919, %v1913, %v1923
        %v1928 = vsel %vm1920, %v1915, %v1924
        %s1929 = scalar_lea.vmem [#allocation2], 176
        %v1930 = vld [vmem:[%s1929] sm:$0xff]
        %v1931 = vld [vmem:[%s1929 + $0x8] sm:$0xff]
        %1932 = vset.pattern.permute.xlu0 4
        %1933 = vperm.xlu0 %1932, %v1677
        %v1934 = vpop.permute.xlu0 %1933
        %1936 = vset.pattern.permute.xlu0 4
        %1937 = vperm.xlu0 %1936, %v1678
        %v1938 = vpop.permute.xlu0 %1937
        %v1941 = vsel %vm344, %v1930, 0
        %v1944 = vsel %vm344, %v1931, 0
        %1946 = vmatprep.subr.mxu0 %v1926
        %1947 = vmatpush1.msra.mxu0 %v1925
        %1948 = vmatprep.subr.mxu0 %v1928
        %1949 = vmatpush1.msra.mxu0 %v1927
        %1950 = vmatprep.subr.mxu0 0.0
        %1951 = vmatpush1.msra.mxu0 0.0
        %1952 = vmatprep.subr.mxu0 0.0
        %1953 = vmatpush1.msra.mxu0 0.0
        %1954 = vmatprep.subr.mxu0 0.0
        %1955 = vmatpush1.msra.mxu0 0.0
        %1956 = vmatprep.subr.mxu0 0.0
        %1957 = vmatpush1.msra.mxu0 0.0
        %1958 = vmatprep.subr.mxu0 0.0
        %1959 = vmatpush1.msra.mxu0 0.0
        %1960 = vmatprep.subr.mxu0 0.0
        %1961 = vmatpush1.msra.mxu0 0.0
        %1962 = vmatprep.subr.mxu0 0.0
        %1963 = vmatpush1.msra.mxu0 0.0
        %1964 = vmatprep.subr.mxu0 0.0
        %1965 = vmatpush1.msra.mxu0 0.0
        %1966 = vmatprep.subr.mxu0 0.0
        %1967 = vmatpush1.msra.mxu0 0.0
        %1968 = vmatprep.subr.mxu0 0.0
        %1969 = vmatpush1.msra.mxu0 0.0
        %1970 = vmatprep.subr.mxu0 0.0
        %1971 = vmatpush1.msra.mxu0 0.0
        %1972 = vmatprep.subr.mxu0 0.0
        %1973 = vmatpush1.msra.mxu0 0.0
        %1974 = vmatprep.subr.mxu0 0.0
        %1975 = vmatpush1.msra.mxu0 0.0
        %1976 = vmatprep.subr.mxu0 0.0
        %1977 = vmatpush1.msra.mxu0 0.0
        %1978 = vmatprep.subr.mxu0 0.0
        %1979 = vmatpush1.msra.mxu0 0.0
        %1980 = vmatprep.subr.mxu0 0.0
        %1981 = vmatpush1.msra.mxu0 0.0
        %1982 = vmatprep.subr.mxu0 0.0
        %1983 = vmatpush1.msra.mxu0 0.0
        %1984 = vmatprep.subr.mxu0 0.0
        %1985 = vmatpush1.msra.mxu0 0.0
        %1986 = vmatprep.subr.mxu0 0.0
        %1987 = vmatpush1.msra.mxu0 0.0
        %1988 = vmatprep.subr.mxu0 0.0
        %1989 = vmatpush1.msra.mxu0 0.0
        %1990 = vmatprep.subr.mxu0 0.0
        %1991 = vmatpush1.msra.mxu0 0.0
        %1992 = vmatprep.subr.mxu0 0.0
        %1993 = vmatpush1.msra.mxu0 0.0
        %1994 = vmatprep.subr.mxu0 0.0
        %1995 = vmatpush1.msra.mxu0 0.0
        %1996 = vmatprep.subr.mxu0 0.0
        %1997 = vmatpush1.msra.mxu0 0.0
        %1998 = vmatprep.subr.mxu0 0.0
        %1999 = vmatpush1.msra.mxu0 0.0
        %2000 = vmatprep.subr.mxu0 0.0
        %2001 = vmatpush1.msra.mxu0 0.0
        %2002 = vmatprep.subr.mxu0 0.0
        %2003 = vmatpush1.msra.mxu0 0.0
        %2004 = vmatprep.subr.mxu0 0.0
        %2005 = vmatpush1.msra.mxu0 0.0
        %2006 = vmatprep.subr.mxu0 0.0
        %2007 = vmatpush1.msra.mxu0 0.0
        %2008 = vmatprep.subr.mxu0 0.0
        %2009 = vmatpush1.msra.mxu0 0.0
        %2010 = vmatprep.mubr.f32.mxu0 0.0
        %2011 = vmatmul.mubr.f32.gmra.mrb[0].mxu0 %v1941
        %v2012 = vpop.f32.mrb[0].mxu0
        %v2013 = vadd.f32 %v1934, %v2012
        %v2014 = vpop.f32.mrb[0].mxu0
        %v2015 = vadd.f32 %v1934, %v2014
        %2016 = vmatprep.mubr.f32.mxu0 0.0
        %2017 = vmatmul.mubr.f32.gmra.mrb[0].mxu0 %v1944
        %v2018 = vpop.f32.mrb[0].mxu0
        %v2019 = vadd.f32 %v1938, %v2018
        %v2020 = vpop.f32.mrb[0].mxu0
        %v2021 = vadd.f32 %v1938, %v2020
        %2022 = vdwg.mxu0
        %vm2023 = vcmp.gt.f32.partialorder %v2013, 0.0
        %vm2024 = vcmp.gt.f32.partialorder %v2015, 0.0
        %vm2025 = vcmp.gt.f32.partialorder %v2019, 0.0
        %vm2026 = vcmp.gt.f32.partialorder %v2021, 0.0
        %v2027 = vmul.f32 %v2013, 0.01
        %v2028 = vmul.f32 %v2015, 0.01
        %v2029 = vmul.f32 %v2019, 0.01
        %v2030 = vmul.f32 %v2021, 0.01
        %v2031 = vsel %vm2023, %v2013, %v2027
        %v2032 = vsel %vm2024, %v2015, %v2028
        %v2033 = vsel %vm2025, %v2019, %v2029
        %v2034 = vsel %vm2026, %v2021, %v2030
        %s2035 = scalar_lea.vmem %s3, 6
        %v2036 = vld [vmem:[%s2035] sm:$0x3]
        %s2037 = scalar_lea.vmem %s4, 6
        %v2038 = vld [vmem:[%s2037] sm:$0x3]
        %2040 = vset.pattern.permute.xlu0 0
        %2041 = vperm.xlu0 %2040, %v2038
        %v2042 = vpop.permute.xlu0 %2041
        %v2045 = vsel %vm344, %v2036, 0
        %2047 = vmatprep.subr.mxu0 %v2032
        %2048 = vmatpush1.msra.mxu0 %v2031
        %2049 = vmatprep.subr.mxu0 %v2034
        %2050 = vmatpush1.msra.mxu0 %v2033
        %2051 = vmatprep.subr.mxu0 0.0
        %2052 = vmatpush1.msra.mxu0 0.0
        %2053 = vmatprep.subr.mxu0 0.0
        %2054 = vmatpush1.msra.mxu0 0.0
        %2055 = vmatprep.subr.mxu0 0.0
        %2056 = vmatpush1.msra.mxu0 0.0
        %2057 = vmatprep.subr.mxu0 0.0
        %2058 = vmatpush1.msra.mxu0 0.0
        %2059 = vmatprep.subr.mxu0 0.0
        %2060 = vmatpush1.msra.mxu0 0.0
        %2061 = vmatprep.subr.mxu0 0.0
        %2062 = vmatpush1.msra.mxu0 0.0
        %2063 = vmatprep.subr.mxu0 0.0
        %2064 = vmatpush1.msra.mxu0 0.0
        %2065 = vmatprep.subr.mxu0 0.0
        %2066 = vmatpush1.msra.mxu0 0.0
        %2067 = vmatprep.subr.mxu0 0.0
        %2068 = vmatpush1.msra.mxu0 0.0
        %2069 = vmatprep.subr.mxu0 0.0
        %2070 = vmatpush1.msra.mxu0 0.0
        %2071 = vmatprep.subr.mxu0 0.0
        %2072 = vmatpush1.msra.mxu0 0.0
        %2073 = vmatprep.subr.mxu0 0.0
        %2074 = vmatpush1.msra.mxu0 0.0
        %2075 = vmatprep.subr.mxu0 0.0
        %2076 = vmatpush1.msra.mxu0 0.0
        %2077 = vmatprep.subr.mxu0 0.0
        %2078 = vmatpush1.msra.mxu0 0.0
        %2079 = vmatprep.subr.mxu0 0.0
        %2080 = vmatpush1.msra.mxu0 0.0
        %2081 = vmatprep.subr.mxu0 0.0
        %2082 = vmatpush1.msra.mxu0 0.0
        %2083 = vmatprep.subr.mxu0 0.0
        %2084 = vmatpush1.msra.mxu0 0.0
        %2085 = vmatprep.subr.mxu0 0.0
        %2086 = vmatpush1.msra.mxu0 0.0
        %2087 = vmatprep.subr.mxu0 0.0
        %2088 = vmatpush1.msra.mxu0 0.0
        %2089 = vmatprep.subr.mxu0 0.0
        %2090 = vmatpush1.msra.mxu0 0.0
        %2091 = vmatprep.subr.mxu0 0.0
        %2092 = vmatpush1.msra.mxu0 0.0
        %2093 = vmatprep.subr.mxu0 0.0
        %2094 = vmatpush1.msra.mxu0 0.0
        %2095 = vmatprep.subr.mxu0 0.0
        %2096 = vmatpush1.msra.mxu0 0.0
        %2097 = vmatprep.subr.mxu0 0.0
        %2098 = vmatpush1.msra.mxu0 0.0
        %2099 = vmatprep.subr.mxu0 0.0
        %2100 = vmatpush1.msra.mxu0 0.0
        %2101 = vmatprep.subr.mxu0 0.0
        %2102 = vmatpush1.msra.mxu0 0.0
        %2103 = vmatprep.subr.mxu0 0.0
        %2104 = vmatpush1.msra.mxu0 0.0
        %2105 = vmatprep.subr.mxu0 0.0
        %2106 = vmatpush1.msra.mxu0 0.0
        %2107 = vmatprep.subr.mxu0 0.0
        %2108 = vmatpush1.msra.mxu0 0.0
        %2109 = vmatprep.subr.mxu0 0.0
        %2110 = vmatpush1.msra.mxu0 0.0
        %2111 = vmatprep.mubr.f32.mxu0 0.0
        %2112 = vmatmul.mubr.f32.gmra.mrb[0].mxu0 %v2045
        %v2113 = vpop.f32.mrb[0].mxu0
        %v2114 = vadd.f32 %v2042, %v2113
        %v2115 = vpop.f32.mrb[0].mxu0
        %v2116 = vadd.f32 %v2042, %v2115
        %2117 = vdwg.mxu0
        %v2118 = vmul.f32 %v2114, 1.442695
        %v2119 = vpow.pop %v2118
        %v2120 = vmul.f32 %v2116, 1.442695
        %v2121 = vpow.pop %v2120
        %v2122 = vmul.f32 %v2119, %v1672
        %v2123 = vmul.f32 %v2121, %v1673
        %v2126 = vrot.slane %v2114, 1
        %v2127 = vrot.slane %v2116, 1
        %v2130 = vadd.f32 %v2122, %v2126
        %v2131 = vadd.f32 %v2123, %v2127
        %v2132 = vadd.f32 %v1674, %v2114
        %v2133 = vadd.f32 %v1675, %v2116
        %s2134 = scalar_lea.vmem %s1, 64
        %v2135 = vld [vmem:[%s2134] sm:$0xff]
        %v2136 = vld [vmem:[%s2134 + $0x8] sm:$0xff]
        %2138 = vset.pattern.permute.xlu0 0
        %2139 = vperm.xlu0 %2138, %v2135
        %v2140 = vpop.permute.xlu0 %2139
        %2143 = vset.pattern.permute.xlu0 0
        %2144 = vperm.xlu0 %2143, %v2136
        %v2145 = vpop.permute.xlu0 %2144
        %v2147 = vmul.f32 %v2140, %v299
        %v2148 = vmul.f32 %v2140, %v303
        %v2149 = vmul.f32 %v2145, %v299
        %v2150 = vmul.f32 %v2145, %v303
        %2151 = vset.pattern.permute.xlu0 1
        %2152 = vperm.xlu0 %2151, %v2135
        %v2153 = vpop.permute.xlu0 %2152
        %2155 = vset.pattern.permute.xlu0 1
        %2156 = vperm.xlu0 %2155, %v2136
        %v2157 = vpop.permute.xlu0 %2156
        %v2159 = vadd.f32 %v2147, %v2153
        %v2160 = vadd.f32 %v2148, %v2153
        %v2161 = vadd.f32 %v2149, %v2157
        %v2162 = vadd.f32 %v2150, %v2157
        %vm2163 = vcmp.gt.f32.partialorder %v2159, 0.0
        %vm2164 = vcmp.gt.f32.partialorder %v2160, 0.0
        %vm2165 = vcmp.gt.f32.partialorder %v2161, 0.0
        %vm2166 = vcmp.gt.f32.partialorder %v2162, 0.0
        %v2167 = vmul.f32 %v2159, 0.01
        %v2168 = vmul.f32 %v2160, 0.01
        %v2169 = vmul.f32 %v2161, 0.01
        %v2170 = vmul.f32 %v2162, 0.01
        %v2171 = vsel %vm2163, %v2159, %v2167
        %v2172 = vsel %vm2164, %v2160, %v2168
        %v2173 = vsel %vm2165, %v2161, %v2169
        %v2174 = vsel %vm2166, %v2162, %v2170
        %s2175 = scalar_lea.vmem [#allocation2], 192
        %v2176 = vld [vmem:[%s2175] sm:$0xff]
        %v2177 = vld [vmem:[%s2175 + $0x8] sm:$0xff]
        %2178 = vset.pattern.permute.xlu0 2
        %2179 = vperm.xlu0 %2178, %v2135
        %v2180 = vpop.permute.xlu0 %2179
        %2182 = vset.pattern.permute.xlu0 2
        %2183 = vperm.xlu0 %2182, %v2136
        %v2184 = vpop.permute.xlu0 %2183
        %v2187 = vsel %vm344, %v2176, 0
        %v2190 = vsel %vm344, %v2177, 0
        %2192 = vmatprep.subr.mxu0 %v2172
        %2193 = vmatpush1.msra.mxu0 %v2171
        %2194 = vmatprep.subr.mxu0 %v2174
        %2195 = vmatpush1.msra.mxu0 %v2173
        %2196 = vmatprep.subr.mxu0 0.0
        %2197 = vmatpush1.msra.mxu0 0.0
        %2198 = vmatprep.subr.mxu0 0.0
        %2199 = vmatpush1.msra.mxu0 0.0
        %2200 = vmatprep.subr.mxu0 0.0
        %2201 = vmatpush1.msra.mxu0 0.0
        %2202 = vmatprep.subr.mxu0 0.0
        %2203 = vmatpush1.msra.mxu0 0.0
        %2204 = vmatprep.subr.mxu0 0.0
        %2205 = vmatpush1.msra.mxu0 0.0
        %2206 = vmatprep.subr.mxu0 0.0
        %2207 = vmatpush1.msra.mxu0 0.0
        %2208 = vmatprep.subr.mxu0 0.0
        %2209 = vmatpush1.msra.mxu0 0.0
        %2210 = vmatprep.subr.mxu0 0.0
        %2211 = vmatpush1.msra.mxu0 0.0
        %2212 = vmatprep.subr.mxu0 0.0
        %2213 = vmatpush1.msra.mxu0 0.0
        %2214 = vmatprep.subr.mxu0 0.0
        %2215 = vmatpush1.msra.mxu0 0.0
        %2216 = vmatprep.subr.mxu0 0.0
        %2217 = vmatpush1.msra.mxu0 0.0
        %2218 = vmatprep.subr.mxu0 0.0
        %2219 = vmatpush1.msra.mxu0 0.0
        %2220 = vmatprep.subr.mxu0 0.0
        %2221 = vmatpush1.msra.mxu0 0.0
        %2222 = vmatprep.subr.mxu0 0.0
        %2223 = vmatpush1.msra.mxu0 0.0
        %2224 = vmatprep.subr.mxu0 0.0
        %2225 = vmatpush1.msra.mxu0 0.0
        %2226 = vmatprep.subr.mxu0 0.0
        %2227 = vmatpush1.msra.mxu0 0.0
        %2228 = vmatprep.subr.mxu0 0.0
        %2229 = vmatpush1.msra.mxu0 0.0
        %2230 = vmatprep.subr.mxu0 0.0
        %2231 = vmatpush1.msra.mxu0 0.0
        %2232 = vmatprep.subr.mxu0 0.0
        %2233 = vmatpush1.msra.mxu0 0.0
        %2234 = vmatprep.subr.mxu0 0.0
        %2235 = vmatpush1.msra.mxu0 0.0
        %2236 = vmatprep.subr.mxu0 0.0
        %2237 = vmatpush1.msra.mxu0 0.0
        %2238 = vmatprep.subr.mxu0 0.0
        %2239 = vmatpush1.msra.mxu0 0.0
        %2240 = vmatprep.subr.mxu0 0.0
        %2241 = vmatpush1.msra.mxu0 0.0
        %2242 = vmatprep.subr.mxu0 0.0
        %2243 = vmatpush1.msra.mxu0 0.0
        %2244 = vmatprep.subr.mxu0 0.0
        %2245 = vmatpush1.msra.mxu0 0.0
        %2246 = vmatprep.subr.mxu0 0.0
        %2247 = vmatpush1.msra.mxu0 0.0
        %2248 = vmatprep.subr.mxu0 0.0
        %2249 = vmatpush1.msra.mxu0 0.0
        %2250 = vmatprep.subr.mxu0 0.0
        %2251 = vmatpush1.msra.mxu0 0.0
        %2252 = vmatprep.subr.mxu0 0.0
        %2253 = vmatpush1.msra.mxu0 0.0
        %2254 = vmatprep.subr.mxu0 0.0
        %2255 = vmatpush1.msra.mxu0 0.0
        %2256 = vmatprep.mubr.f32.mxu0 0.0
        %2257 = vmatmul.mubr.f32.gmra.mrb[0].mxu0 %v2187
        %v2258 = vpop.f32.mrb[0].mxu0
        %v2259 = vadd.f32 %v2180, %v2258
        %v2260 = vpop.f32.mrb[0].mxu0
        %v2261 = vadd.f32 %v2180, %v2260
        %2262 = vmatprep.mubr.f32.mxu0 0.0
        %2263 = vmatmul.mubr.f32.gmra.mrb[0].mxu0 %v2190
        %v2264 = vpop.f32.mrb[0].mxu0
        %v2265 = vadd.f32 %v2184, %v2264
        %v2266 = vpop.f32.mrb[0].mxu0
        %v2267 = vadd.f32 %v2184, %v2266
        %2268 = vdwg.mxu0
        %vm2269 = vcmp.gt.f32.partialorder %v2259, 0.0
        %vm2270 = vcmp.gt.f32.partialorder %v2261, 0.0
        %vm2271 = vcmp.gt.f32.partialorder %v2265, 0.0
        %vm2272 = vcmp.gt.f32.partialorder %v2267, 0.0
        %v2273 = vmul.f32 %v2259, 0.01
        %v2274 = vmul.f32 %v2261, 0.01
        %v2275 = vmul.f32 %v2265, 0.01
        %v2276 = vmul.f32 %v2267, 0.01
        %v2277 = vsel %vm2269, %v2259, %v2273
        %v2278 = vsel %vm2270, %v2261, %v2274
        %v2279 = vsel %vm2271, %v2265, %v2275
        %v2280 = vsel %vm2272, %v2267, %v2276
        %s2281 = scalar_lea.vmem [#allocation2], 208
        %v2282 = vld [vmem:[%s2281] sm:$0xff]
        %v2283 = vld [vmem:[%s2281 + $0x8] sm:$0xff]
        %2284 = vset.pattern.permute.xlu0 3
        %2285 = vperm.xlu0 %2284, %v2135
        %v2286 = vpop.permute.xlu0 %2285
        %2288 = vset.pattern.permute.xlu0 3
        %2289 = vperm.xlu0 %2288, %v2136
        %v2290 = vpop.permute.xlu0 %2289
        %v2293 = vsel %vm344, %v2282, 0
        %v2296 = vsel %vm344, %v2283, 0
        %2298 = vmatprep.subr.mxu0 %v2278
        %2299 = vmatpush1.msra.mxu0 %v2277
        %2300 = vmatprep.subr.mxu0 %v2280
        %2301 = vmatpush1.msra.mxu0 %v2279
        %2302 = vmatprep.subr.mxu0 0.0
        %2303 = vmatpush1.msra.mxu0 0.0
        %2304 = vmatprep.subr.mxu0 0.0
        %2305 = vmatpush1.msra.mxu0 0.0
        %2306 = vmatprep.subr.mxu0 0.0
        %2307 = vmatpush1.msra.mxu0 0.0
        %2308 = vmatprep.subr.mxu0 0.0
        %2309 = vmatpush1.msra.mxu0 0.0
        %2310 = vmatprep.subr.mxu0 0.0
        %2311 = vmatpush1.msra.mxu0 0.0
        %2312 = vmatprep.subr.mxu0 0.0
        %2313 = vmatpush1.msra.mxu0 0.0
        %2314 = vmatprep.subr.mxu0 0.0
        %2315 = vmatpush1.msra.mxu0 0.0
        %2316 = vmatprep.subr.mxu0 0.0
        %2317 = vmatpush1.msra.mxu0 0.0
        %2318 = vmatprep.subr.mxu0 0.0
        %2319 = vmatpush1.msra.mxu0 0.0
        %2320 = vmatprep.subr.mxu0 0.0
        %2321 = vmatpush1.msra.mxu0 0.0
        %2322 = vmatprep.subr.mxu0 0.0
        %2323 = vmatpush1.msra.mxu0 0.0
        %2324 = vmatprep.subr.mxu0 0.0
        %2325 = vmatpush1.msra.mxu0 0.0
        %2326 = vmatprep.subr.mxu0 0.0
        %2327 = vmatpush1.msra.mxu0 0.0
        %2328 = vmatprep.subr.mxu0 0.0
        %2329 = vmatpush1.msra.mxu0 0.0
        %2330 = vmatprep.subr.mxu0 0.0
        %2331 = vmatpush1.msra.mxu0 0.0
        %2332 = vmatprep.subr.mxu0 0.0
        %2333 = vmatpush1.msra.mxu0 0.0
        %2334 = vmatprep.subr.mxu0 0.0
        %2335 = vmatpush1.msra.mxu0 0.0
        %2336 = vmatprep.subr.mxu0 0.0
        %2337 = vmatpush1.msra.mxu0 0.0
        %2338 = vmatprep.subr.mxu0 0.0
        %2339 = vmatpush1.msra.mxu0 0.0
        %2340 = vmatprep.subr.mxu0 0.0
        %2341 = vmatpush1.msra.mxu0 0.0
        %2342 = vmatprep.subr.mxu0 0.0
        %2343 = vmatpush1.msra.mxu0 0.0
        %2344 = vmatprep.subr.mxu0 0.0
        %2345 = vmatpush1.msra.mxu0 0.0
        %2346 = vmatprep.subr.mxu0 0.0
        %2347 = vmatpush1.msra.mxu0 0.0
        %2348 = vmatprep.subr.mxu0 0.0
        %2349 = vmatpush1.msra.mxu0 0.0
        %2350 = vmatprep.subr.mxu0 0.0
        %2351 = vmatpush1.msra.mxu0 0.0
        %2352 = vmatprep.subr.mxu0 0.0
        %2353 = vmatpush1.msra.mxu0 0.0
        %2354 = vmatprep.subr.mxu0 0.0
        %2355 = vmatpush1.msra.mxu0 0.0
        %2356 = vmatprep.subr.mxu0 0.0
        %2357 = vmatpush1.msra.mxu0 0.0
        %2358 = vmatprep.subr.mxu0 0.0
        %2359 = vmatpush1.msra.mxu0 0.0
        %2360 = vmatprep.subr.mxu0 0.0
        %2361 = vmatpush1.msra.mxu0 0.0
        %2362 = vmatprep.mubr.f32.mxu0 0.0
        %2363 = vmatmul.mubr.f32.gmra.mrb[0].mxu0 %v2293
        %v2364 = vpop.f32.mrb[0].mxu0
        %v2365 = vadd.f32 %v2286, %v2364
        %v2366 = vpop.f32.mrb[0].mxu0
        %v2367 = vadd.f32 %v2286, %v2366
        %2368 = vmatprep.mubr.f32.mxu0 0.0
        %2369 = vmatmul.mubr.f32.gmra.mrb[0].mxu0 %v2296
        %v2370 = vpop.f32.mrb[0].mxu0
        %v2371 = vadd.f32 %v2290, %v2370
        %v2372 = vpop.f32.mrb[0].mxu0
        %v2373 = vadd.f32 %v2290, %v2372
        %2374 = vdwg.mxu0
        %vm2375 = vcmp.gt.f32.partialorder %v2365, 0.0
        %vm2376 = vcmp.gt.f32.partialorder %v2367, 0.0
        %vm2377 = vcmp.gt.f32.partialorder %v2371, 0.0
        %vm2378 = vcmp.gt.f32.partialorder %v2373, 0.0
        %v2379 = vmul.f32 %v2365, 0.01
        %v2380 = vmul.f32 %v2367, 0.01
        %v2381 = vmul.f32 %v2371, 0.01
        %v2382 = vmul.f32 %v2373, 0.01
        %v2383 = vsel %vm2375, %v2365, %v2379
        %v2384 = vsel %vm2376, %v2367, %v2380
        %v2385 = vsel %vm2377, %v2371, %v2381
        %v2386 = vsel %vm2378, %v2373, %v2382
        %s2387 = scalar_lea.vmem [#allocation2], 224
        %v2388 = vld [vmem:[%s2387] sm:$0xff]
        %v2389 = vld [vmem:[%s2387 + $0x8] sm:$0xff]
        %2390 = vset.pattern.permute.xlu0 4
        %2391 = vperm.xlu0 %2390, %v2135
        %v2392 = vpop.permute.xlu0 %2391
        %2394 = vset.pattern.permute.xlu0 4
        %2395 = vperm.xlu0 %2394, %v2136
        %v2396 = vpop.permute.xlu0 %2395
        %v2399 = vsel %vm344, %v2388, 0
        %v2402 = vsel %vm344, %v2389, 0
        %2404 = vmatprep.subr.mxu0 %v2384
        %2405 = vmatpush1.msra.mxu0 %v2383
        %2406 = vmatprep.subr.mxu0 %v2386
        %2407 = vmatpush1.msra.mxu0 %v2385
        %2408 = vmatprep.subr.mxu0 0.0
        %2409 = vmatpush1.msra.mxu0 0.0
        %2410 = vmatprep.subr.mxu0 0.0
        %2411 = vmatpush1.msra.mxu0 0.0
        %2412 = vmatprep.subr.mxu0 0.0
        %2413 = vmatpush1.msra.mxu0 0.0
        %2414 = vmatprep.subr.mxu0 0.0
        %2415 = vmatpush1.msra.mxu0 0.0
        %2416 = vmatprep.subr.mxu0 0.0
        %2417 = vmatpush1.msra.mxu0 0.0
        %2418 = vmatprep.subr.mxu0 0.0
        %2419 = vmatpush1.msra.mxu0 0.0
        %2420 = vmatprep.subr.mxu0 0.0
        %2421 = vmatpush1.msra.mxu0 0.0
        %2422 = vmatprep.subr.mxu0 0.0
        %2423 = vmatpush1.msra.mxu0 0.0
        %2424 = vmatprep.subr.mxu0 0.0
        %2425 = vmatpush1.msra.mxu0 0.0
        %2426 = vmatprep.subr.mxu0 0.0
        %2427 = vmatpush1.msra.mxu0 0.0
        %2428 = vmatprep.subr.mxu0 0.0
        %2429 = vmatpush1.msra.mxu0 0.0
        %2430 = vmatprep.subr.mxu0 0.0
        %2431 = vmatpush1.msra.mxu0 0.0
        %2432 = vmatprep.subr.mxu0 0.0
        %2433 = vmatpush1.msra.mxu0 0.0
        %2434 = vmatprep.subr.mxu0 0.0
        %2435 = vmatpush1.msra.mxu0 0.0
        %2436 = vmatprep.subr.mxu0 0.0
        %2437 = vmatpush1.msra.mxu0 0.0
        %2438 = vmatprep.subr.mxu0 0.0
        %2439 = vmatpush1.msra.mxu0 0.0
        %2440 = vmatprep.subr.mxu0 0.0
        %2441 = vmatpush1.msra.mxu0 0.0
        %2442 = vmatprep.subr.mxu0 0.0
        %2443 = vmatpush1.msra.mxu0 0.0
        %2444 = vmatprep.subr.mxu0 0.0
        %2445 = vmatpush1.msra.mxu0 0.0
        %2446 = vmatprep.subr.mxu0 0.0
        %2447 = vmatpush1.msra.mxu0 0.0
        %2448 = vmatprep.subr.mxu0 0.0
        %2449 = vmatpush1.msra.mxu0 0.0
        %2450 = vmatprep.subr.mxu0 0.0
        %2451 = vmatpush1.msra.mxu0 0.0
        %2452 = vmatprep.subr.mxu0 0.0
        %2453 = vmatpush1.msra.mxu0 0.0
        %2454 = vmatprep.subr.mxu0 0.0
        %2455 = vmatpush1.msra.mxu0 0.0
        %2456 = vmatprep.subr.mxu0 0.0
        %2457 = vmatpush1.msra.mxu0 0.0
        %2458 = vmatprep.subr.mxu0 0.0
        %2459 = vmatpush1.msra.mxu0 0.0
        %2460 = vmatprep.subr.mxu0 0.0
        %2461 = vmatpush1.msra.mxu0 0.0
        %2462 = vmatprep.subr.mxu0 0.0
        %2463 = vmatpush1.msra.mxu0 0.0
        %2464 = vmatprep.subr.mxu0 0.0
        %2465 = vmatpush1.msra.mxu0 0.0
        %2466 = vmatprep.subr.mxu0 0.0
        %2467 = vmatpush1.msra.mxu0 0.0
        %2468 = vmatprep.mubr.f32.mxu0 0.0
        %2469 = vmatmul.mubr.f32.gmra.mrb[0].mxu0 %v2399
        %v2470 = vpop.f32.mrb[0].mxu0
        %v2471 = vadd.f32 %v2392, %v2470
        %v2472 = vpop.f32.mrb[0].mxu0
        %v2473 = vadd.f32 %v2392, %v2472
        %2474 = vmatprep.mubr.f32.mxu0 0.0
        %2475 = vmatmul.mubr.f32.gmra.mrb[0].mxu0 %v2402
        %v2476 = vpop.f32.mrb[0].mxu0
        %v2477 = vadd.f32 %v2396, %v2476
        %v2478 = vpop.f32.mrb[0].mxu0
        %v2479 = vadd.f32 %v2396, %v2478
        %2480 = vdwg.mxu0
        %vm2481 = vcmp.gt.f32.partialorder %v2471, 0.0
        %vm2482 = vcmp.gt.f32.partialorder %v2473, 0.0
        %vm2483 = vcmp.gt.f32.partialorder %v2477, 0.0
        %vm2484 = vcmp.gt.f32.partialorder %v2479, 0.0
        %v2485 = vmul.f32 %v2471, 0.01
        %v2486 = vmul.f32 %v2473, 0.01
        %v2487 = vmul.f32 %v2477, 0.01
        %v2488 = vmul.f32 %v2479, 0.01
        %v2489 = vsel %vm2481, %v2471, %v2485
        %v2490 = vsel %vm2482, %v2473, %v2486
        %v2491 = vsel %vm2483, %v2477, %v2487
        %v2492 = vsel %vm2484, %v2479, %v2488
        %s2493 = scalar_lea.vmem %s3, 8
        %v2494 = vld [vmem:[%s2493] sm:$0x3]
        %s2495 = scalar_lea.vmem %s4, 8
        %v2496 = vld [vmem:[%s2495] sm:$0x3]
        %2498 = vset.pattern.permute.xlu0 0
        %2499 = vperm.xlu0 %2498, %v2496
        %v2500 = vpop.permute.xlu0 %2499
        %v2503 = vsel %vm344, %v2494, 0
        %2505 = vmatprep.subr.mxu0 %v2490
        %2506 = vmatpush1.msra.mxu0 %v2489
        %2507 = vmatprep.subr.mxu0 %v2492
        %2508 = vmatpush1.msra.mxu0 %v2491
        %2509 = vmatprep.subr.mxu0 0.0
        %2510 = vmatpush1.msra.mxu0 0.0
        %2511 = vmatprep.subr.mxu0 0.0
        %2512 = vmatpush1.msra.mxu0 0.0
        %2513 = vmatprep.subr.mxu0 0.0
        %2514 = vmatpush1.msra.mxu0 0.0
        %2515 = vmatprep.subr.mxu0 0.0
        %2516 = vmatpush1.msra.mxu0 0.0
        %2517 = vmatprep.subr.mxu0 0.0
        %2518 = vmatpush1.msra.mxu0 0.0
        %2519 = vmatprep.subr.mxu0 0.0
        %2520 = vmatpush1.msra.mxu0 0.0
        %2521 = vmatprep.subr.mxu0 0.0
        %2522 = vmatpush1.msra.mxu0 0.0
        %2523 = vmatprep.subr.mxu0 0.0
        %2524 = vmatpush1.msra.mxu0 0.0
        %2525 = vmatprep.subr.mxu0 0.0
        %2526 = vmatpush1.msra.mxu0 0.0
        %2527 = vmatprep.subr.mxu0 0.0
        %2528 = vmatpush1.msra.mxu0 0.0
        %2529 = vmatprep.subr.mxu0 0.0
        %2530 = vmatpush1.msra.mxu0 0.0
        %2531 = vmatprep.subr.mxu0 0.0
        %2532 = vmatpush1.msra.mxu0 0.0
        %2533 = vmatprep.subr.mxu0 0.0
        %2534 = vmatpush1.msra.mxu0 0.0
        %2535 = vmatprep.subr.mxu0 0.0
        %2536 = vmatpush1.msra.mxu0 0.0
        %2537 = vmatprep.subr.mxu0 0.0
        %2538 = vmatpush1.msra.mxu0 0.0
        %2539 = vmatprep.subr.mxu0 0.0
        %2540 = vmatpush1.msra.mxu0 0.0
        %2541 = vmatprep.subr.mxu0 0.0
        %2542 = vmatpush1.msra.mxu0 0.0
        %2543 = vmatprep.subr.mxu0 0.0
        %2544 = vmatpush1.msra.mxu0 0.0
        %2545 = vmatprep.subr.mxu0 0.0
        %2546 = vmatpush1.msra.mxu0 0.0
        %2547 = vmatprep.subr.mxu0 0.0
        %2548 = vmatpush1.msra.mxu0 0.0
        %2549 = vmatprep.subr.mxu0 0.0
        %2550 = vmatpush1.msra.mxu0 0.0
        %2551 = vmatprep.subr.mxu0 0.0
        %2552 = vmatpush1.msra.mxu0 0.0
        %2553 = vmatprep.subr.mxu0 0.0
        %2554 = vmatpush1.msra.mxu0 0.0
        %2555 = vmatprep.subr.mxu0 0.0
        %2556 = vmatpush1.msra.mxu0 0.0
        %2557 = vmatprep.subr.mxu0 0.0
        %2558 = vmatpush1.msra.mxu0 0.0
        %2559 = vmatprep.subr.mxu0 0.0
        %2560 = vmatpush1.msra.mxu0 0.0
        %2561 = vmatprep.subr.mxu0 0.0
        %2562 = vmatpush1.msra.mxu0 0.0
        %2563 = vmatprep.subr.mxu0 0.0
        %2564 = vmatpush1.msra.mxu0 0.0
        %2565 = vmatprep.subr.mxu0 0.0
        %2566 = vmatpush1.msra.mxu0 0.0
        %2567 = vmatprep.subr.mxu0 0.0
        %2568 = vmatpush1.msra.mxu0 0.0
        %2569 = vmatprep.mubr.f32.mxu0 0.0
        %2570 = vmatmul.mubr.f32.gmra.mrb[0].mxu0 %v2503
        %v2571 = vpop.f32.mrb[0].mxu0
        %v2572 = vadd.f32 %v2500, %v2571
        %v2573 = vpop.f32.mrb[0].mxu0
        %v2574 = vadd.f32 %v2500, %v2573
        %2575 = vdwg.mxu0
        %v2576 = vmul.f32 %v2572, 1.442695
        %v2577 = vpow.pop %v2576
        %v2578 = vmul.f32 %v2574, 1.442695
        %v2579 = vpow.pop %v2578
        %v2580 = vmul.f32 %v2577, %v2130
        %v2581 = vmul.f32 %v2579, %v2131
        %v2584 = vrot.slane %v2572, 1
        %v2585 = vrot.slane %v2574, 1
        %v2588 = vadd.f32 %v2580, %v2584
        %v2589 = vadd.f32 %v2581, %v2585
        %v2590 = vadd.f32 %v2132, %v2572
        %v2591 = vadd.f32 %v2133, %v2574
        %s2592 = scalar_lea.vmem %s1, 80
        %v2593 = vld [vmem:[%s2592] sm:$0xff]
        %v2594 = vld [vmem:[%s2592 + $0x8] sm:$0xff]
        %2596 = vset.pattern.permute.xlu0 0
        %2597 = vperm.xlu0 %2596, %v2593
        %v2598 = vpop.permute.xlu0 %2597
        %2601 = vset.pattern.permute.xlu0 0
        %2602 = vperm.xlu0 %2601, %v2594
        %v2603 = vpop.permute.xlu0 %2602
        %v2605 = vmul.f32 %v2598, %v299
        %v2606 = vmul.f32 %v2598, %v303
        %v2607 = vmul.f32 %v2603, %v299
        %v2608 = vmul.f32 %v2603, %v303
        %2609 = vset.pattern.permute.xlu0 1
        %2610 = vperm.xlu0 %2609, %v2593
        %v2611 = vpop.permute.xlu0 %2610
        %2613 = vset.pattern.permute.xlu0 1
        %2614 = vperm.xlu0 %2613, %v2594
        %v2615 = vpop.permute.xlu0 %2614
        %v2617 = vadd.f32 %v2605, %v2611
        %v2618 = vadd.f32 %v2606, %v2611
        %v2619 = vadd.f32 %v2607, %v2615
        %v2620 = vadd.f32 %v2608, %v2615
        %vm2621 = vcmp.gt.f32.partialorder %v2617, 0.0
        %vm2622 = vcmp.gt.f32.partialorder %v2618, 0.0
        %vm2623 = vcmp.gt.f32.partialorder %v2619, 0.0
        %vm2624 = vcmp.gt.f32.partialorder %v2620, 0.0
        %v2625 = vmul.f32 %v2617, 0.01
        %v2626 = vmul.f32 %v2618, 0.01
        %v2627 = vmul.f32 %v2619, 0.01
        %v2628 = vmul.f32 %v2620, 0.01
        %v2629 = vsel %vm2621, %v2617, %v2625
        %v2630 = vsel %vm2622, %v2618, %v2626
        %v2631 = vsel %vm2623, %v2619, %v2627
        %v2632 = vsel %vm2624, %v2620, %v2628
        %s2633 = scalar_lea.vmem [#allocation2], 240
        %v2634 = vld [vmem:[%s2633] sm:$0xff]
        %v2635 = vld [vmem:[%s2633 + $0x8] sm:$0xff]
        %2636 = vset.pattern.permute.xlu0 2
        %2637 = vperm.xlu0 %2636, %v2593
        %v2638 = vpop.permute.xlu0 %2637
        %2640 = vset.pattern.permute.xlu0 2
        %2641 = vperm.xlu0 %2640, %v2594
        %v2642 = vpop.permute.xlu0 %2641
        %v2645 = vsel %vm344, %v2634, 0
        %v2648 = vsel %vm344, %v2635, 0
        %2650 = vmatprep.subr.mxu0 %v2630
        %2651 = vmatpush1.msra.mxu0 %v2629
        %2652 = vmatprep.subr.mxu0 %v2632
        %2653 = vmatpush1.msra.mxu0 %v2631
        %2654 = vmatprep.subr.mxu0 0.0
        %2655 = vmatpush1.msra.mxu0 0.0
        %2656 = vmatprep.subr.mxu0 0.0
        %2657 = vmatpush1.msra.mxu0 0.0
        %2658 = vmatprep.subr.mxu0 0.0
        %2659 = vmatpush1.msra.mxu0 0.0
        %2660 = vmatprep.subr.mxu0 0.0
        %2661 = vmatpush1.msra.mxu0 0.0
        %2662 = vmatprep.subr.mxu0 0.0
        %2663 = vmatpush1.msra.mxu0 0.0
        %2664 = vmatprep.subr.mxu0 0.0
        %2665 = vmatpush1.msra.mxu0 0.0
        %2666 = vmatprep.subr.mxu0 0.0
        %2667 = vmatpush1.msra.mxu0 0.0
        %2668 = vmatprep.subr.mxu0 0.0
        %2669 = vmatpush1.msra.mxu0 0.0
        %2670 = vmatprep.subr.mxu0 0.0
        %2671 = vmatpush1.msra.mxu0 0.0
        %2672 = vmatprep.subr.mxu0 0.0
        %2673 = vmatpush1.msra.mxu0 0.0
        %2674 = vmatprep.subr.mxu0 0.0
        %2675 = vmatpush1.msra.mxu0 0.0
        %2676 = vmatprep.subr.mxu0 0.0
        %2677 = vmatpush1.msra.mxu0 0.0
        %2678 = vmatprep.subr.mxu0 0.0
        %2679 = vmatpush1.msra.mxu0 0.0
        %2680 = vmatprep.subr.mxu0 0.0
        %2681 = vmatpush1.msra.mxu0 0.0
        %2682 = vmatprep.subr.mxu0 0.0
        %2683 = vmatpush1.msra.mxu0 0.0
        %2684 = vmatprep.subr.mxu0 0.0
        %2685 = vmatpush1.msra.mxu0 0.0
        %2686 = vmatprep.subr.mxu0 0.0
        %2687 = vmatpush1.msra.mxu0 0.0
        %2688 = vmatprep.subr.mxu0 0.0
        %2689 = vmatpush1.msra.mxu0 0.0
        %2690 = vmatprep.subr.mxu0 0.0
        %2691 = vmatpush1.msra.mxu0 0.0
        %2692 = vmatprep.subr.mxu0 0.0
        %2693 = vmatpush1.msra.mxu0 0.0
        %2694 = vmatprep.subr.mxu0 0.0
        %2695 = vmatpush1.msra.mxu0 0.0
        %2696 = vmatprep.subr.mxu0 0.0
        %2697 = vmatpush1.msra.mxu0 0.0
        %2698 = vmatprep.subr.mxu0 0.0
        %2699 = vmatpush1.msra.mxu0 0.0
        %2700 = vmatprep.subr.mxu0 0.0
        %2701 = vmatpush1.msra.mxu0 0.0
        %2702 = vmatprep.subr.mxu0 0.0
        %2703 = vmatpush1.msra.mxu0 0.0
        %2704 = vmatprep.subr.mxu0 0.0
        %2705 = vmatpush1.msra.mxu0 0.0
        %2706 = vmatprep.subr.mxu0 0.0
        %2707 = vmatpush1.msra.mxu0 0.0
        %2708 = vmatprep.subr.mxu0 0.0
        %2709 = vmatpush1.msra.mxu0 0.0
        %2710 = vmatprep.subr.mxu0 0.0
        %2711 = vmatpush1.msra.mxu0 0.0
        %2712 = vmatprep.subr.mxu0 0.0
        %2713 = vmatpush1.msra.mxu0 0.0
        %2714 = vmatprep.mubr.f32.mxu0 0.0
        %2715 = vmatmul.mubr.f32.gmra.mrb[0].mxu0 %v2645
        %v2716 = vpop.f32.mrb[0].mxu0
        %v2717 = vadd.f32 %v2638, %v2716
        %v2718 = vpop.f32.mrb[0].mxu0
        %v2719 = vadd.f32 %v2638, %v2718
        %2720 = vmatprep.mubr.f32.mxu0 0.0
        %2721 = vmatmul.mubr.f32.gmra.mrb[0].mxu0 %v2648
        %v2722 = vpop.f32.mrb[0].mxu0
        %v2723 = vadd.f32 %v2642, %v2722
        %v2724 = vpop.f32.mrb[0].mxu0
        %v2725 = vadd.f32 %v2642, %v2724
        %2726 = vdwg.mxu0
        %vm2727 = vcmp.gt.f32.partialorder %v2717, 0.0
        %vm2728 = vcmp.gt.f32.partialorder %v2719, 0.0
        %vm2729 = vcmp.gt.f32.partialorder %v2723, 0.0
        %vm2730 = vcmp.gt.f32.partialorder %v2725, 0.0
        %v2731 = vmul.f32 %v2717, 0.01
        %v2732 = vmul.f32 %v2719, 0.01
        %v2733 = vmul.f32 %v2723, 0.01
        %v2734 = vmul.f32 %v2725, 0.01
        %v2735 = vsel %vm2727, %v2717, %v2731
        %v2736 = vsel %vm2728, %v2719, %v2732
        %v2737 = vsel %vm2729, %v2723, %v2733
        %v2738 = vsel %vm2730, %v2725, %v2734
        %s2739 = scalar_lea.vmem [#allocation2], 256
        %v2740 = vld [vmem:[%s2739] sm:$0xff]
        %v2741 = vld [vmem:[%s2739 + $0x8] sm:$0xff]
        %2742 = vset.pattern.permute.xlu0 3
        %2743 = vperm.xlu0 %2742, %v2593
        %v2744 = vpop.permute.xlu0 %2743
        %2746 = vset.pattern.permute.xlu0 3
        %2747 = vperm.xlu0 %2746, %v2594
        %v2748 = vpop.permute.xlu0 %2747
        %v2751 = vsel %vm344, %v2740, 0
        %v2754 = vsel %vm344, %v2741, 0
        %2756 = vmatprep.subr.mxu0 %v2736
        %2757 = vmatpush1.msra.mxu0 %v2735
        %2758 = vmatprep.subr.mxu0 %v2738
        %2759 = vmatpush1.msra.mxu0 %v2737
        %2760 = vmatprep.subr.mxu0 0.0
        %2761 = vmatpush1.msra.mxu0 0.0
        %2762 = vmatprep.subr.mxu0 0.0
        %2763 = vmatpush1.msra.mxu0 0.0
        %2764 = vmatprep.subr.mxu0 0.0
        %2765 = vmatpush1.msra.mxu0 0.0
        %2766 = vmatprep.subr.mxu0 0.0
        %2767 = vmatpush1.msra.mxu0 0.0
        %2768 = vmatprep.subr.mxu0 0.0
        %2769 = vmatpush1.msra.mxu0 0.0
        %2770 = vmatprep.subr.mxu0 0.0
        %2771 = vmatpush1.msra.mxu0 0.0
        %2772 = vmatprep.subr.mxu0 0.0
        %2773 = vmatpush1.msra.mxu0 0.0
        %2774 = vmatprep.subr.mxu0 0.0
        %2775 = vmatpush1.msra.mxu0 0.0
        %2776 = vmatprep.subr.mxu0 0.0
        %2777 = vmatpush1.msra.mxu0 0.0
        %2778 = vmatprep.subr.mxu0 0.0
        %2779 = vmatpush1.msra.mxu0 0.0
        %2780 = vmatprep.subr.mxu0 0.0
        %2781 = vmatpush1.msra.mxu0 0.0
        %2782 = vmatprep.subr.mxu0 0.0
        %2783 = vmatpush1.msra.mxu0 0.0
        %2784 = vmatprep.subr.mxu0 0.0
        %2785 = vmatpush1.msra.mxu0 0.0
        %2786 = vmatprep.subr.mxu0 0.0
        %2787 = vmatpush1.msra.mxu0 0.0
        %2788 = vmatprep.subr.mxu0 0.0
        %2789 = vmatpush1.msra.mxu0 0.0
        %2790 = vmatprep.subr.mxu0 0.0
        %2791 = vmatpush1.msra.mxu0 0.0
        %2792 = vmatprep.subr.mxu0 0.0
        %2793 = vmatpush1.msra.mxu0 0.0
        %2794 = vmatprep.subr.mxu0 0.0
        %2795 = vmatpush1.msra.mxu0 0.0
        %2796 = vmatprep.subr.mxu0 0.0
        %2797 = vmatpush1.msra.mxu0 0.0
        %2798 = vmatprep.subr.mxu0 0.0
        %2799 = vmatpush1.msra.mxu0 0.0
        %2800 = vmatprep.subr.mxu0 0.0
        %2801 = vmatpush1.msra.mxu0 0.0
        %2802 = vmatprep.subr.mxu0 0.0
        %2803 = vmatpush1.msra.mxu0 0.0
        %2804 = vmatprep.subr.mxu0 0.0
        %2805 = vmatpush1.msra.mxu0 0.0
        %2806 = vmatprep.subr.mxu0 0.0
        %2807 = vmatpush1.msra.mxu0 0.0
        %2808 = vmatprep.subr.mxu0 0.0
        %2809 = vmatpush1.msra.mxu0 0.0
        %2810 = vmatprep.subr.mxu0 0.0
        %2811 = vmatpush1.msra.mxu0 0.0
        %2812 = vmatprep.subr.mxu0 0.0
        %2813 = vmatpush1.msra.mxu0 0.0
        %2814 = vmatprep.subr.mxu0 0.0
        %2815 = vmatpush1.msra.mxu0 0.0
        %2816 = vmatprep.subr.mxu0 0.0
        %2817 = vmatpush1.msra.mxu0 0.0
        %2818 = vmatprep.subr.mxu0 0.0
        %2819 = vmatpush1.msra.mxu0 0.0
        %2820 = vmatprep.mubr.f32.mxu0 0.0
        %2821 = vmatmul.mubr.f32.gmra.mrb[0].mxu0 %v2751
        %v2822 = vpop.f32.mrb[0].mxu0
        %v2823 = vadd.f32 %v2744, %v2822
        %v2824 = vpop.f32.mrb[0].mxu0
        %v2825 = vadd.f32 %v2744, %v2824
        %2826 = vmatprep.mubr.f32.mxu0 0.0
        %2827 = vmatmul.mubr.f32.gmra.mrb[0].mxu0 %v2754
        %v2828 = vpop.f32.mrb[0].mxu0
        %v2829 = vadd.f32 %v2748, %v2828
        %v2830 = vpop.f32.mrb[0].mxu0
        %v2831 = vadd.f32 %v2748, %v2830
        %2832 = vdwg.mxu0
        %vm2833 = vcmp.gt.f32.partialorder %v2823, 0.0
        %vm2834 = vcmp.gt.f32.partialorder %v2825, 0.0
        %vm2835 = vcmp.gt.f32.partialorder %v2829, 0.0
        %vm2836 = vcmp.gt.f32.partialorder %v2831, 0.0
        %v2837 = vmul.f32 %v2823, 0.01
        %v2838 = vmul.f32 %v2825, 0.01
        %v2839 = vmul.f32 %v2829, 0.01
        %v2840 = vmul.f32 %v2831, 0.01
        %v2841 = vsel %vm2833, %v2823, %v2837
        %v2842 = vsel %vm2834, %v2825, %v2838
        %v2843 = vsel %vm2835, %v2829, %v2839
        %v2844 = vsel %vm2836, %v2831, %v2840
        %s2845 = scalar_lea.vmem [#allocation2], 272
        %v2846 = vld [vmem:[%s2845] sm:$0xff]
        %v2847 = vld [vmem:[%s2845 + $0x8] sm:$0xff]
        %2848 = vset.pattern.permute.xlu0 4
        %2849 = vperm.xlu0 %2848, %v2593
        %v2850 = vpop.permute.xlu0 %2849
        %2852 = vset.pattern.permute.xlu0 4
        %2853 = vperm.xlu0 %2852, %v2594
        %v2854 = vpop.permute.xlu0 %2853
        %v2857 = vsel %vm344, %v2846, 0
        %v2860 = vsel %vm344, %v2847, 0
        %2862 = vmatprep.subr.mxu0 %v2842
        %2863 = vmatpush1.msra.mxu0 %v2841
        %2864 = vmatprep.subr.mxu0 %v2844
        %2865 = vmatpush1.msra.mxu0 %v2843
        %2866 = vmatprep.subr.mxu0 0.0
        %2867 = vmatpush1.msra.mxu0 0.0
        %2868 = vmatprep.subr.mxu0 0.0
        %2869 = vmatpush1.msra.mxu0 0.0
        %2870 = vmatprep.subr.mxu0 0.0
        %2871 = vmatpush1.msra.mxu0 0.0
        %2872 = vmatprep.subr.mxu0 0.0
        %2873 = vmatpush1.msra.mxu0 0.0
        %2874 = vmatprep.subr.mxu0 0.0
        %2875 = vmatpush1.msra.mxu0 0.0
        %2876 = vmatprep.subr.mxu0 0.0
        %2877 = vmatpush1.msra.mxu0 0.0
        %2878 = vmatprep.subr.mxu0 0.0
        %2879 = vmatpush1.msra.mxu0 0.0
        %2880 = vmatprep.subr.mxu0 0.0
        %2881 = vmatpush1.msra.mxu0 0.0
        %2882 = vmatprep.subr.mxu0 0.0
        %2883 = vmatpush1.msra.mxu0 0.0
        %2884 = vmatprep.subr.mxu0 0.0
        %2885 = vmatpush1.msra.mxu0 0.0
        %2886 = vmatprep.subr.mxu0 0.0
        %2887 = vmatpush1.msra.mxu0 0.0
        %2888 = vmatprep.subr.mxu0 0.0
        %2889 = vmatpush1.msra.mxu0 0.0
        %2890 = vmatprep.subr.mxu0 0.0
        %2891 = vmatpush1.msra.mxu0 0.0
        %2892 = vmatprep.subr.mxu0 0.0
        %2893 = vmatpush1.msra.mxu0 0.0
        %2894 = vmatprep.subr.mxu0 0.0
        %2895 = vmatpush1.msra.mxu0 0.0
        %2896 = vmatprep.subr.mxu0 0.0
        %2897 = vmatpush1.msra.mxu0 0.0
        %2898 = vmatprep.subr.mxu0 0.0
        %2899 = vmatpush1.msra.mxu0 0.0
        %2900 = vmatprep.subr.mxu0 0.0
        %2901 = vmatpush1.msra.mxu0 0.0
        %2902 = vmatprep.subr.mxu0 0.0
        %2903 = vmatpush1.msra.mxu0 0.0
        %2904 = vmatprep.subr.mxu0 0.0
        %2905 = vmatpush1.msra.mxu0 0.0
        %2906 = vmatprep.subr.mxu0 0.0
        %2907 = vmatpush1.msra.mxu0 0.0
        %2908 = vmatprep.subr.mxu0 0.0
        %2909 = vmatpush1.msra.mxu0 0.0
        %2910 = vmatprep.subr.mxu0 0.0
        %2911 = vmatpush1.msra.mxu0 0.0
        %2912 = vmatprep.subr.mxu0 0.0
        %2913 = vmatpush1.msra.mxu0 0.0
        %2914 = vmatprep.subr.mxu0 0.0
        %2915 = vmatpush1.msra.mxu0 0.0
        %2916 = vmatprep.subr.mxu0 0.0
        %2917 = vmatpush1.msra.mxu0 0.0
        %2918 = vmatprep.subr.mxu0 0.0
        %2919 = vmatpush1.msra.mxu0 0.0
        %2920 = vmatprep.subr.mxu0 0.0
        %2921 = vmatpush1.msra.mxu0 0.0
        %2922 = vmatprep.subr.mxu0 0.0
        %2923 = vmatpush1.msra.mxu0 0.0
        %2924 = vmatprep.subr.mxu0 0.0
        %2925 = vmatpush1.msra.mxu0 0.0
        %2926 = vmatprep.mubr.f32.mxu0 0.0
        %2927 = vmatmul.mubr.f32.gmra.mrb[0].mxu0 %v2857
        %v2928 = vpop.f32.mrb[0].mxu0
        %v2929 = vadd.f32 %v2850, %v2928
        %v2930 = vpop.f32.mrb[0].mxu0
        %v2931 = vadd.f32 %v2850, %v2930
        %2932 = vmatprep.mubr.f32.mxu0 0.0
        %2933 = vmatmul.mubr.f32.gmra.mrb[0].mxu0 %v2860
        %v2934 = vpop.f32.mrb[0].mxu0
        %v2935 = vadd.f32 %v2854, %v2934
        %v2936 = vpop.f32.mrb[0].mxu0
        %v2937 = vadd.f32 %v2854, %v2936
        %2938 = vdwg.mxu0
        %vm2939 = vcmp.gt.f32.partialorder %v2929, 0.0
        %vm2940 = vcmp.gt.f32.partialorder %v2931, 0.0
        %vm2941 = vcmp.gt.f32.partialorder %v2935, 0.0
        %vm2942 = vcmp.gt.f32.partialorder %v2937, 0.0
        %v2943 = vmul.f32 %v2929, 0.01
        %v2944 = vmul.f32 %v2931, 0.01
        %v2945 = vmul.f32 %v2935, 0.01
        %v2946 = vmul.f32 %v2937, 0.01
        %v2947 = vsel %vm2939, %v2929, %v2943
        %v2948 = vsel %vm2940, %v2931, %v2944
        %v2949 = vsel %vm2941, %v2935, %v2945
        %v2950 = vsel %vm2942, %v2937, %v2946
        %s2951 = scalar_lea.vmem %s3, 10
        %v2952 = vld [vmem:[%s2951] sm:$0x3]
        %s2953 = scalar_lea.vmem %s4, 10
        %v2954 = vld [vmem:[%s2953] sm:$0x3]
        %2956 = vset.pattern.permute.xlu0 0
        %2957 = vperm.xlu0 %2956, %v2954
        %v2958 = vpop.permute.xlu0 %2957
        %v2961 = vsel %vm344, %v2952, 0
        %2963 = vmatprep.subr.mxu0 %v2948
        %2964 = vmatpush1.msra.mxu0 %v2947
        %2965 = vmatprep.subr.mxu0 %v2950
        %2966 = vmatpush1.msra.mxu0 %v2949
        %2967 = vmatprep.subr.mxu0 0.0
        %2968 = vmatpush1.msra.mxu0 0.0
        %2969 = vmatprep.subr.mxu0 0.0
        %2970 = vmatpush1.msra.mxu0 0.0
        %2971 = vmatprep.subr.mxu0 0.0
        %2972 = vmatpush1.msra.mxu0 0.0
        %2973 = vmatprep.subr.mxu0 0.0
        %2974 = vmatpush1.msra.mxu0 0.0
        %2975 = vmatprep.subr.mxu0 0.0
        %2976 = vmatpush1.msra.mxu0 0.0
        %2977 = vmatprep.subr.mxu0 0.0
        %2978 = vmatpush1.msra.mxu0 0.0
        %2979 = vmatprep.subr.mxu0 0.0
        %2980 = vmatpush1.msra.mxu0 0.0
        %2981 = vmatprep.subr.mxu0 0.0
        %2982 = vmatpush1.msra.mxu0 0.0
        %2983 = vmatprep.subr.mxu0 0.0
        %2984 = vmatpush1.msra.mxu0 0.0
        %2985 = vmatprep.subr.mxu0 0.0
        %2986 = vmatpush1.msra.mxu0 0.0
        %2987 = vmatprep.subr.mxu0 0.0
        %2988 = vmatpush1.msra.mxu0 0.0
        %2989 = vmatprep.subr.mxu0 0.0
        %2990 = vmatpush1.msra.mxu0 0.0
        %2991 = vmatprep.subr.mxu0 0.0
        %2992 = vmatpush1.msra.mxu0 0.0
        %2993 = vmatprep.subr.mxu0 0.0
        %2994 = vmatpush1.msra.mxu0 0.0
        %2995 = vmatprep.subr.mxu0 0.0
        %2996 = vmatpush1.msra.mxu0 0.0
        %2997 = vmatprep.subr.mxu0 0.0
        %2998 = vmatpush1.msra.mxu0 0.0
        %2999 = vmatprep.subr.mxu0 0.0
        %3000 = vmatpush1.msra.mxu0 0.0
        %3001 = vmatprep.subr.mxu0 0.0
        %3002 = vmatpush1.msra.mxu0 0.0
        %3003 = vmatprep.subr.mxu0 0.0
        %3004 = vmatpush1.msra.mxu0 0.0
        %3005 = vmatprep.subr.mxu0 0.0
        %3006 = vmatpush1.msra.mxu0 0.0
        %3007 = vmatprep.subr.mxu0 0.0
        %3008 = vmatpush1.msra.mxu0 0.0
        %3009 = vmatprep.subr.mxu0 0.0
        %3010 = vmatpush1.msra.mxu0 0.0
        %3011 = vmatprep.subr.mxu0 0.0
        %3012 = vmatpush1.msra.mxu0 0.0
        %3013 = vmatprep.subr.mxu0 0.0
        %3014 = vmatpush1.msra.mxu0 0.0
        %3015 = vmatprep.subr.mxu0 0.0
        %3016 = vmatpush1.msra.mxu0 0.0
        %3017 = vmatprep.subr.mxu0 0.0
        %3018 = vmatpush1.msra.mxu0 0.0
        %3019 = vmatprep.subr.mxu0 0.0
        %3020 = vmatpush1.msra.mxu0 0.0
        %3021 = vmatprep.subr.mxu0 0.0
        %3022 = vmatpush1.msra.mxu0 0.0
        %3023 = vmatprep.subr.mxu0 0.0
        %3024 = vmatpush1.msra.mxu0 0.0
        %3025 = vmatprep.subr.mxu0 0.0
        %3026 = vmatpush1.msra.mxu0 0.0
        %3027 = vmatprep.mubr.f32.mxu0 0.0
        %3028 = vmatmul.mubr.f32.gmra.mrb[0].mxu0 %v2961
        %v3029 = vpop.f32.mrb[0].mxu0
        %v3030 = vadd.f32 %v2958, %v3029
        %v3031 = vpop.f32.mrb[0].mxu0
        %v3032 = vadd.f32 %v2958, %v3031
        %3033 = vdwg.mxu0
        %v3034 = vmul.f32 %v3030, 1.442695
        %v3035 = vpow.pop %v3034
        %v3036 = vmul.f32 %v3032, 1.442695
        %v3037 = vpow.pop %v3036
        %v3038 = vmul.f32 %v3035, %v2588
        %v3039 = vmul.f32 %v3037, %v2589
        %v3042 = vrot.slane %v3030, 1
        %v3043 = vrot.slane %v3032, 1
        %v3046 = vadd.f32 %v3038, %v3042
        %v3047 = vadd.f32 %v3039, %v3043
        %v3048 = vadd.f32 %v2590, %v3030
        %v3049 = vadd.f32 %v2591, %v3032
        %s3050 = scalar_lea.vmem %s1, 96
        %v3051 = vld [vmem:[%s3050] sm:$0xff]
        %v3052 = vld [vmem:[%s3050 + $0x8] sm:$0xff]
        %3054 = vset.pattern.permute.xlu0 0
        %3055 = vperm.xlu0 %3054, %v3051
        %v3056 = vpop.permute.xlu0 %3055
        %3059 = vset.pattern.permute.xlu0 0
        %3060 = vperm.xlu0 %3059, %v3052
        %v3061 = vpop.permute.xlu0 %3060
        %v3063 = vlaneseq
        %v3064 = vshrl.u32 %v3063, 7
        %v3065 = vsub.s32 0, %v3064
        %v3066 = vrot.slane %v3046, %v3065
        %v3067 = vlaneseq
        %v3068 = vshrl.u32 %v3067, 7
        %v3069 = vsub.s32 0, %v3068
        %v3070 = vrot.slane %v3047, %v3069
        %v3071 = vmul.f32 %v3056, %v3066
        %v3072 = vmul.f32 %v3056, %v3070
        %v3073 = vmul.f32 %v3061, %v3066
        %v3074 = vmul.f32 %v3061, %v3070
        %3075 = vset.pattern.permute.xlu0 1
        %3076 = vperm.xlu0 %3075, %v3051
        %v3077 = vpop.permute.xlu0 %3076
        %3079 = vset.pattern.permute.xlu0 1
        %3080 = vperm.xlu0 %3079, %v3052
        %v3081 = vpop.permute.xlu0 %3080
        %v3083 = vadd.f32 %v3071, %v3077
        %v3084 = vadd.f32 %v3072, %v3077
        %v3085 = vadd.f32 %v3073, %v3081
        %v3086 = vadd.f32 %v3074, %v3081
        %vm3087 = vcmp.gt.f32.partialorder %v3083, 0.0
        %vm3088 = vcmp.gt.f32.partialorder %v3084, 0.0
        %vm3089 = vcmp.gt.f32.partialorder %v3085, 0.0
        %vm3090 = vcmp.gt.f32.partialorder %v3086, 0.0
        %v3091 = vmul.f32 %v3083, 0.01
        %v3092 = vmul.f32 %v3084, 0.01
        %v3093 = vmul.f32 %v3085, 0.01
        %v3094 = vmul.f32 %v3086, 0.01
        %v3095 = vsel %vm3087, %v3083, %v3091
        %v3096 = vsel %vm3088, %v3084, %v3092
        %v3097 = vsel %vm3089, %v3085, %v3093
        %v3098 = vsel %vm3090, %v3086, %v3094
        %s3099 = scalar_lea.vmem [#allocation2], 288
        %v3100 = vld [vmem:[%s3099] sm:$0xff]
        %v3101 = vld [vmem:[%s3099 + $0x8] sm:$0xff]
        %3102 = vset.pattern.permute.xlu0 2
        %3103 = vperm.xlu0 %3102, %v3051
        %v3104 = vpop.permute.xlu0 %3103
        %3106 = vset.pattern.permute.xlu0 2
        %3107 = vperm.xlu0 %3106, %v3052
        %v3108 = vpop.permute.xlu0 %3107
        %v3111 = vsel %vm344, %v3100, 0
        %v3114 = vsel %vm344, %v3101, 0
        %3116 = vmatprep.subr.mxu0 %v3096
        %3117 = vmatpush1.msra.mxu0 %v3095
        %3118 = vmatprep.subr.mxu0 %v3098
        %3119 = vmatpush1.msra.mxu0 %v3097
        %3120 = vmatprep.subr.mxu0 0.0
        %3121 = vmatpush1.msra.mxu0 0.0
        %3122 = vmatprep.subr.mxu0 0.0
        %3123 = vmatpush1.msra.mxu0 0.0
        %3124 = vmatprep.subr.mxu0 0.0
        %3125 = vmatpush1.msra.mxu0 0.0
        %3126 = vmatprep.subr.mxu0 0.0
        %3127 = vmatpush1.msra.mxu0 0.0
        %3128 = vmatprep.subr.mxu0 0.0
        %3129 = vmatpush1.msra.mxu0 0.0
        %3130 = vmatprep.subr.mxu0 0.0
        %3131 = vmatpush1.msra.mxu0 0.0
        %3132 = vmatprep.subr.mxu0 0.0
        %3133 = vmatpush1.msra.mxu0 0.0
        %3134 = vmatprep.subr.mxu0 0.0
        %3135 = vmatpush1.msra.mxu0 0.0
        %3136 = vmatprep.subr.mxu0 0.0
        %3137 = vmatpush1.msra.mxu0 0.0
        %3138 = vmatprep.subr.mxu0 0.0
        %3139 = vmatpush1.msra.mxu0 0.0
        %3140 = vmatprep.subr.mxu0 0.0
        %3141 = vmatpush1.msra.mxu0 0.0
        %3142 = vmatprep.subr.mxu0 0.0
        %3143 = vmatpush1.msra.mxu0 0.0
        %3144 = vmatprep.subr.mxu0 0.0
        %3145 = vmatpush1.msra.mxu0 0.0
        %3146 = vmatprep.subr.mxu0 0.0
        %3147 = vmatpush1.msra.mxu0 0.0
        %3148 = vmatprep.subr.mxu0 0.0
        %3149 = vmatpush1.msra.mxu0 0.0
        %3150 = vmatprep.subr.mxu0 0.0
        %3151 = vmatpush1.msra.mxu0 0.0
        %3152 = vmatprep.subr.mxu0 0.0
        %3153 = vmatpush1.msra.mxu0 0.0
        %3154 = vmatprep.subr.mxu0 0.0
        %3155 = vmatpush1.msra.mxu0 0.0
        %3156 = vmatprep.subr.mxu0 0.0
        %3157 = vmatpush1.msra.mxu0 0.0
        %3158 = vmatprep.subr.mxu0 0.0
        %3159 = vmatpush1.msra.mxu0 0.0
        %3160 = vmatprep.subr.mxu0 0.0
        %3161 = vmatpush1.msra.mxu0 0.0
        %3162 = vmatprep.subr.mxu0 0.0
        %3163 = vmatpush1.msra.mxu0 0.0
        %3164 = vmatprep.subr.mxu0 0.0
        %3165 = vmatpush1.msra.mxu0 0.0
        %3166 = vmatprep.subr.mxu0 0.0
        %3167 = vmatpush1.msra.mxu0 0.0
        %3168 = vmatprep.subr.mxu0 0.0
        %3169 = vmatpush1.msra.mxu0 0.0
        %3170 = vmatprep.subr.mxu0 0.0
        %3171 = vmatpush1.msra.mxu0 0.0
        %3172 = vmatprep.subr.mxu0 0.0
        %3173 = vmatpush1.msra.mxu0 0.0
        %3174 = vmatprep.subr.mxu0 0.0
        %3175 = vmatpush1.msra.mxu0 0.0
        %3176 = vmatprep.subr.mxu0 0.0
        %3177 = vmatpush1.msra.mxu0 0.0
        %3178 = vmatprep.subr.mxu0 0.0
        %3179 = vmatpush1.msra.mxu0 0.0
        %3180 = vmatprep.mubr.f32.mxu0 0.0
        %3181 = vmatmul.mubr.f32.gmra.mrb[0].mxu0 %v3111
        %v3182 = vpop.f32.mrb[0].mxu0
        %v3183 = vadd.f32 %v3104, %v3182
        %v3184 = vpop.f32.mrb[0].mxu0
        %v3185 = vadd.f32 %v3104, %v3184
        %3186 = vmatprep.mubr.f32.mxu0 0.0
        %3187 = vmatmul.mubr.f32.gmra.mrb[0].mxu0 %v3114
        %v3188 = vpop.f32.mrb[0].mxu0
        %v3189 = vadd.f32 %v3108, %v3188
        %v3190 = vpop.f32.mrb[0].mxu0
        %v3191 = vadd.f32 %v3108, %v3190
        %3192 = vdwg.mxu0
        %vm3193 = vcmp.gt.f32.partialorder %v3183, 0.0
        %vm3194 = vcmp.gt.f32.partialorder %v3185, 0.0
        %vm3195 = vcmp.gt.f32.partialorder %v3189, 0.0
        %vm3196 = vcmp.gt.f32.partialorder %v3191, 0.0
        %v3197 = vmul.f32 %v3183, 0.01
        %v3198 = vmul.f32 %v3185, 0.01
        %v3199 = vmul.f32 %v3189, 0.01
        %v3200 = vmul.f32 %v3191, 0.01
        %v3201 = vsel %vm3193, %v3183, %v3197
        %v3202 = vsel %vm3194, %v3185, %v3198
        %v3203 = vsel %vm3195, %v3189, %v3199
        %v3204 = vsel %vm3196, %v3191, %v3200
        %s3205 = scalar_lea.vmem [#allocation2], 304
        %v3206 = vld [vmem:[%s3205] sm:$0xff]
        %v3207 = vld [vmem:[%s3205 + $0x8] sm:$0xff]
        %3208 = vset.pattern.permute.xlu0 3
        %3209 = vperm.xlu0 %3208, %v3051
        %v3210 = vpop.permute.xlu0 %3209
        %3212 = vset.pattern.permute.xlu0 3
        %3213 = vperm.xlu0 %3212, %v3052
        %v3214 = vpop.permute.xlu0 %3213
        %v3217 = vsel %vm344, %v3206, 0
        %v3220 = vsel %vm344, %v3207, 0
        %3222 = vmatprep.subr.mxu0 %v3202
        %3223 = vmatpush1.msra.mxu0 %v3201
        %3224 = vmatprep.subr.mxu0 %v3204
        %3225 = vmatpush1.msra.mxu0 %v3203
        %3226 = vmatprep.subr.mxu0 0.0
        %3227 = vmatpush1.msra.mxu0 0.0
        %3228 = vmatprep.subr.mxu0 0.0
        %3229 = vmatpush1.msra.mxu0 0.0
        %3230 = vmatprep.subr.mxu0 0.0
        %3231 = vmatpush1.msra.mxu0 0.0
        %3232 = vmatprep.subr.mxu0 0.0
        %3233 = vmatpush1.msra.mxu0 0.0
        %3234 = vmatprep.subr.mxu0 0.0
        %3235 = vmatpush1.msra.mxu0 0.0
        %3236 = vmatprep.subr.mxu0 0.0
        %3237 = vmatpush1.msra.mxu0 0.0
        %3238 = vmatprep.subr.mxu0 0.0
        %3239 = vmatpush1.msra.mxu0 0.0
        %3240 = vmatprep.subr.mxu0 0.0
        %3241 = vmatpush1.msra.mxu0 0.0
        %3242 = vmatprep.subr.mxu0 0.0
        %3243 = vmatpush1.msra.mxu0 0.0
        %3244 = vmatprep.subr.mxu0 0.0
        %3245 = vmatpush1.msra.mxu0 0.0
        %3246 = vmatprep.subr.mxu0 0.0
        %3247 = vmatpush1.msra.mxu0 0.0
        %3248 = vmatprep.subr.mxu0 0.0
        %3249 = vmatpush1.msra.mxu0 0.0
        %3250 = vmatprep.subr.mxu0 0.0
        %3251 = vmatpush1.msra.mxu0 0.0
        %3252 = vmatprep.subr.mxu0 0.0
        %3253 = vmatpush1.msra.mxu0 0.0
        %3254 = vmatprep.subr.mxu0 0.0
        %3255 = vmatpush1.msra.mxu0 0.0
        %3256 = vmatprep.subr.mxu0 0.0
        %3257 = vmatpush1.msra.mxu0 0.0
        %3258 = vmatprep.subr.mxu0 0.0
        %3259 = vmatpush1.msra.mxu0 0.0
        %3260 = vmatprep.subr.mxu0 0.0
        %3261 = vmatpush1.msra.mxu0 0.0
        %3262 = vmatprep.subr.mxu0 0.0
        %3263 = vmatpush1.msra.mxu0 0.0
        %3264 = vmatprep.subr.mxu0 0.0
        %3265 = vmatpush1.msra.mxu0 0.0
        %3266 = vmatprep.subr.mxu0 0.0
        %3267 = vmatpush1.msra.mxu0 0.0
        %3268 = vmatprep.subr.mxu0 0.0
        %3269 = vmatpush1.msra.mxu0 0.0
        %3270 = vmatprep.subr.mxu0 0.0
        %3271 = vmatpush1.msra.mxu0 0.0
        %3272 = vmatprep.subr.mxu0 0.0
        %3273 = vmatpush1.msra.mxu0 0.0
        %3274 = vmatprep.subr.mxu0 0.0
        %3275 = vmatpush1.msra.mxu0 0.0
        %3276 = vmatprep.subr.mxu0 0.0
        %3277 = vmatpush1.msra.mxu0 0.0
        %3278 = vmatprep.subr.mxu0 0.0
        %3279 = vmatpush1.msra.mxu0 0.0
        %3280 = vmatprep.subr.mxu0 0.0
        %3281 = vmatpush1.msra.mxu0 0.0
        %3282 = vmatprep.subr.mxu0 0.0
        %3283 = vmatpush1.msra.mxu0 0.0
        %3284 = vmatprep.subr.mxu0 0.0
        %3285 = vmatpush1.msra.mxu0 0.0
        %3286 = vmatprep.mubr.f32.mxu0 0.0
        %3287 = vmatmul.mubr.f32.gmra.mrb[0].mxu0 %v3217
        %v3288 = vpop.f32.mrb[0].mxu0
        %v3289 = vadd.f32 %v3210, %v3288
        %v3290 = vpop.f32.mrb[0].mxu0
        %v3291 = vadd.f32 %v3210, %v3290
        %3292 = vmatprep.mubr.f32.mxu0 0.0
        %3293 = vmatmul.mubr.f32.gmra.mrb[0].mxu0 %v3220
        %v3294 = vpop.f32.mrb[0].mxu0
        %v3295 = vadd.f32 %v3214, %v3294
        %v3296 = vpop.f32.mrb[0].mxu0
        %v3297 = vadd.f32 %v3214, %v3296
        %3298 = vdwg.mxu0
        %vm3299 = vcmp.gt.f32.partialorder %v3289, 0.0
        %vm3300 = vcmp.gt.f32.partialorder %v3291, 0.0
        %vm3301 = vcmp.gt.f32.partialorder %v3295, 0.0
        %vm3302 = vcmp.gt.f32.partialorder %v3297, 0.0
        %v3303 = vmul.f32 %v3289, 0.01
        %v3304 = vmul.f32 %v3291, 0.01
        %v3305 = vmul.f32 %v3295, 0.01
        %v3306 = vmul.f32 %v3297, 0.01
        %v3307 = vsel %vm3299, %v3289, %v3303
        %v3308 = vsel %vm3300, %v3291, %v3304
        %v3309 = vsel %vm3301, %v3295, %v3305
        %v3310 = vsel %vm3302, %v3297, %v3306
        %s3311 = scalar_lea.vmem [#allocation2], 320
        %v3312 = vld [vmem:[%s3311] sm:$0xff]
        %v3313 = vld [vmem:[%s3311 + $0x8] sm:$0xff]
        %3314 = vset.pattern.permute.xlu0 4
        %3315 = vperm.xlu0 %3314, %v3051
        %v3316 = vpop.permute.xlu0 %3315
        %3318 = vset.pattern.permute.xlu0 4
        %3319 = vperm.xlu0 %3318, %v3052
        %v3320 = vpop.permute.xlu0 %3319
        %v3323 = vsel %vm344, %v3312, 0
        %v3326 = vsel %vm344, %v3313, 0
        %3328 = vmatprep.subr.mxu0 %v3308
        %3329 = vmatpush1.msra.mxu0 %v3307
        %3330 = vmatprep.subr.mxu0 %v3310
        %3331 = vmatpush1.msra.mxu0 %v3309
        %3332 = vmatprep.subr.mxu0 0.0
        %3333 = vmatpush1.msra.mxu0 0.0
        %3334 = vmatprep.subr.mxu0 0.0
        %3335 = vmatpush1.msra.mxu0 0.0
        %3336 = vmatprep.subr.mxu0 0.0
        %3337 = vmatpush1.msra.mxu0 0.0
        %3338 = vmatprep.subr.mxu0 0.0
        %3339 = vmatpush1.msra.mxu0 0.0
        %3340 = vmatprep.subr.mxu0 0.0
        %3341 = vmatpush1.msra.mxu0 0.0
        %3342 = vmatprep.subr.mxu0 0.0
        %3343 = vmatpush1.msra.mxu0 0.0
        %3344 = vmatprep.subr.mxu0 0.0
        %3345 = vmatpush1.msra.mxu0 0.0
        %3346 = vmatprep.subr.mxu0 0.0
        %3347 = vmatpush1.msra.mxu0 0.0
        %3348 = vmatprep.subr.mxu0 0.0
        %3349 = vmatpush1.msra.mxu0 0.0
        %3350 = vmatprep.subr.mxu0 0.0
        %3351 = vmatpush1.msra.mxu0 0.0
        %3352 = vmatprep.subr.mxu0 0.0
        %3353 = vmatpush1.msra.mxu0 0.0
        %3354 = vmatprep.subr.mxu0 0.0
        %3355 = vmatpush1.msra.mxu0 0.0
        %3356 = vmatprep.subr.mxu0 0.0
        %3357 = vmatpush1.msra.mxu0 0.0
        %3358 = vmatprep.subr.mxu0 0.0
        %3359 = vmatpush1.msra.mxu0 0.0
        %3360 = vmatprep.subr.mxu0 0.0
        %3361 = vmatpush1.msra.mxu0 0.0
        %3362 = vmatprep.subr.mxu0 0.0
        %3363 = vmatpush1.msra.mxu0 0.0
        %3364 = vmatprep.subr.mxu0 0.0
        %3365 = vmatpush1.msra.mxu0 0.0
        %3366 = vmatprep.subr.mxu0 0.0
        %3367 = vmatpush1.msra.mxu0 0.0
        %3368 = vmatprep.subr.mxu0 0.0
        %3369 = vmatpush1.msra.mxu0 0.0
        %3370 = vmatprep.subr.mxu0 0.0
        %3371 = vmatpush1.msra.mxu0 0.0
        %3372 = vmatprep.subr.mxu0 0.0
        %3373 = vmatpush1.msra.mxu0 0.0
        %3374 = vmatprep.subr.mxu0 0.0
        %3375 = vmatpush1.msra.mxu0 0.0
        %3376 = vmatprep.subr.mxu0 0.0
        %3377 = vmatpush1.msra.mxu0 0.0
        %3378 = vmatprep.subr.mxu0 0.0
        %3379 = vmatpush1.msra.mxu0 0.0
        %3380 = vmatprep.subr.mxu0 0.0
        %3381 = vmatpush1.msra.mxu0 0.0
        %3382 = vmatprep.subr.mxu0 0.0
        %3383 = vmatpush1.msra.mxu0 0.0
        %3384 = vmatprep.subr.mxu0 0.0
        %3385 = vmatpush1.msra.mxu0 0.0
        %3386 = vmatprep.subr.mxu0 0.0
        %3387 = vmatpush1.msra.mxu0 0.0
        %3388 = vmatprep.subr.mxu0 0.0
        %3389 = vmatpush1.msra.mxu0 0.0
        %3390 = vmatprep.subr.mxu0 0.0
        %3391 = vmatpush1.msra.mxu0 0.0
        %3392 = vmatprep.mubr.f32.mxu0 0.0
        %3393 = vmatmul.mubr.f32.gmra.mrb[0].mxu0 %v3323
        %v3394 = vpop.f32.mrb[0].mxu0
        %v3395 = vadd.f32 %v3316, %v3394
        %v3396 = vpop.f32.mrb[0].mxu0
        %v3397 = vadd.f32 %v3316, %v3396
        %3398 = vmatprep.mubr.f32.mxu0 0.0
        %3399 = vmatmul.mubr.f32.gmra.mrb[0].mxu0 %v3326
        %v3400 = vpop.f32.mrb[0].mxu0
        %v3401 = vadd.f32 %v3320, %v3400
        %v3402 = vpop.f32.mrb[0].mxu0
        %v3403 = vadd.f32 %v3320, %v3402
        %3404 = vdwg.mxu0
        %vm3405 = vcmp.gt.f32.partialorder %v3395, 0.0
        %vm3406 = vcmp.gt.f32.partialorder %v3397, 0.0
        %vm3407 = vcmp.gt.f32.partialorder %v3401, 0.0
        %vm3408 = vcmp.gt.f32.partialorder %v3403, 0.0
        %v3409 = vmul.f32 %v3395, 0.01
        %v3410 = vmul.f32 %v3397, 0.01
        %v3411 = vmul.f32 %v3401, 0.01
        %v3412 = vmul.f32 %v3403, 0.01
        %v3413 = vsel %vm3405, %v3395, %v3409
        %v3414 = vsel %vm3406, %v3397, %v3410
        %v3415 = vsel %vm3407, %v3401, %v3411
        %v3416 = vsel %vm3408, %v3403, %v3412
        %s3417 = scalar_lea.vmem %s3, 12
        %v3418 = vld [vmem:[%s3417] sm:$0x3]
        %s3419 = scalar_lea.vmem %s4, 12
        %v3420 = vld [vmem:[%s3419] sm:$0x3]
        %3422 = vset.pattern.permute.xlu0 0
        %3423 = vperm.xlu0 %3422, %v3420
        %v3424 = vpop.permute.xlu0 %3423
        %v3427 = vsel %vm344, %v3418, 0
        %3429 = vmatprep.subr.mxu0 %v3414
        %3430 = vmatpush1.msra.mxu0 %v3413
        %3431 = vmatprep.subr.mxu0 %v3416
        %3432 = vmatpush1.msra.mxu0 %v3415
        %3433 = vmatprep.subr.mxu0 0.0
        %3434 = vmatpush1.msra.mxu0 0.0
        %3435 = vmatprep.subr.mxu0 0.0
        %3436 = vmatpush1.msra.mxu0 0.0
        %3437 = vmatprep.subr.mxu0 0.0
        %3438 = vmatpush1.msra.mxu0 0.0
        %3439 = vmatprep.subr.mxu0 0.0
        %3440 = vmatpush1.msra.mxu0 0.0
        %3441 = vmatprep.subr.mxu0 0.0
        %3442 = vmatpush1.msra.mxu0 0.0
        %3443 = vmatprep.subr.mxu0 0.0
        %3444 = vmatpush1.msra.mxu0 0.0
        %3445 = vmatprep.subr.mxu0 0.0
        %3446 = vmatpush1.msra.mxu0 0.0
        %3447 = vmatprep.subr.mxu0 0.0
        %3448 = vmatpush1.msra.mxu0 0.0
        %3449 = vmatprep.subr.mxu0 0.0
        %3450 = vmatpush1.msra.mxu0 0.0
        %3451 = vmatprep.subr.mxu0 0.0
        %3452 = vmatpush1.msra.mxu0 0.0
        %3453 = vmatprep.subr.mxu0 0.0
        %3454 = vmatpush1.msra.mxu0 0.0
        %3455 = vmatprep.subr.mxu0 0.0
        %3456 = vmatpush1.msra.mxu0 0.0
        %3457 = vmatprep.subr.mxu0 0.0
        %3458 = vmatpush1.msra.mxu0 0.0
        %3459 = vmatprep.subr.mxu0 0.0
        %3460 = vmatpush1.msra.mxu0 0.0
        %3461 = vmatprep.subr.mxu0 0.0
        %3462 = vmatpush1.msra.mxu0 0.0
        %3463 = vmatprep.subr.mxu0 0.0
        %3464 = vmatpush1.msra.mxu0 0.0
        %3465 = vmatprep.subr.mxu0 0.0
        %3466 = vmatpush1.msra.mxu0 0.0
        %3467 = vmatprep.subr.mxu0 0.0
        %3468 = vmatpush1.msra.mxu0 0.0
        %3469 = vmatprep.subr.mxu0 0.0
        %3470 = vmatpush1.msra.mxu0 0.0
        %3471 = vmatprep.subr.mxu0 0.0
        %3472 = vmatpush1.msra.mxu0 0.0
        %3473 = vmatprep.subr.mxu0 0.0
        %3474 = vmatpush1.msra.mxu0 0.0
        %3475 = vmatprep.subr.mxu0 0.0
        %3476 = vmatpush1.msra.mxu0 0.0
        %3477 = vmatprep.subr.mxu0 0.0
        %3478 = vmatpush1.msra.mxu0 0.0
        %3479 = vmatprep.subr.mxu0 0.0
        %3480 = vmatpush1.msra.mxu0 0.0
        %3481 = vmatprep.subr.mxu0 0.0
        %3482 = vmatpush1.msra.mxu0 0.0
        %3483 = vmatprep.subr.mxu0 0.0
        %3484 = vmatpush1.msra.mxu0 0.0
        %3485 = vmatprep.subr.mxu0 0.0
        %3486 = vmatpush1.msra.mxu0 0.0
        %3487 = vmatprep.subr.mxu0 0.0
        %3488 = vmatpush1.msra.mxu0 0.0
        %3489 = vmatprep.subr.mxu0 0.0
        %3490 = vmatpush1.msra.mxu0 0.0
        %3491 = vmatprep.subr.mxu0 0.0
        %3492 = vmatpush1.msra.mxu0 0.0
        %3493 = vmatprep.mubr.f32.mxu0 0.0
        %3494 = vmatmul.mubr.f32.gmra.mrb[0].mxu0 %v3427
        %v3495 = vpop.f32.mrb[0].mxu0
        %v3496 = vadd.f32 %v3424, %v3495
        %v3497 = vpop.f32.mrb[0].mxu0
        %v3498 = vadd.f32 %v3424, %v3497
        %3499 = vdwg.mxu0
        %v3500 = vmul.f32 %v3496, 1.442695
        %v3501 = vpow.pop %v3500
        %v3502 = vmul.f32 %v3498, 1.442695
        %v3503 = vpow.pop %v3502
        %v3504 = vmul.f32 %v3501, %v299
        %v3505 = vmul.f32 %v3503, %v303
        %v3508 = vrot.slane %v3496, 1
        %v3509 = vrot.slane %v3498, 1
        %v3512 = vadd.f32 %v3504, %v3508
        %v3513 = vadd.f32 %v3505, %v3509
        %v3514 = vadd.f32 %v3048, %v3496
        %v3515 = vadd.f32 %v3049, %v3498
        %s3516 = scalar_lea.vmem %s1, 112
        %v3517 = vld [vmem:[%s3516] sm:$0xff]
        %v3518 = vld [vmem:[%s3516 + $0x8] sm:$0xff]
        %3520 = vset.pattern.permute.xlu0 0
        %3521 = vperm.xlu0 %3520, %v3517
        %v3522 = vpop.permute.xlu0 %3521
        %3525 = vset.pattern.permute.xlu0 0
        %3526 = vperm.xlu0 %3525, %v3518
        %v3527 = vpop.permute.xlu0 %3526
        %v3529 = vmul.f32 %v3522, %v3066
        %v3530 = vmul.f32 %v3522, %v3070
        %v3531 = vmul.f32 %v3527, %v3066
        %v3532 = vmul.f32 %v3527, %v3070
        %3533 = vset.pattern.permute.xlu0 1
        %3534 = vperm.xlu0 %3533, %v3517
        %v3535 = vpop.permute.xlu0 %3534
        %3537 = vset.pattern.permute.xlu0 1
        %3538 = vperm.xlu0 %3537, %v3518
        %v3539 = vpop.permute.xlu0 %3538
        %v3541 = vadd.f32 %v3529, %v3535
        %v3542 = vadd.f32 %v3530, %v3535
        %v3543 = vadd.f32 %v3531, %v3539
        %v3544 = vadd.f32 %v3532, %v3539
        %vm3545 = vcmp.gt.f32.partialorder %v3541, 0.0
        %vm3546 = vcmp.gt.f32.partialorder %v3542, 0.0
        %vm3547 = vcmp.gt.f32.partialorder %v3543, 0.0
        %vm3548 = vcmp.gt.f32.partialorder %v3544, 0.0
        %v3549 = vmul.f32 %v3541, 0.01
        %v3550 = vmul.f32 %v3542, 0.01
        %v3551 = vmul.f32 %v3543, 0.01
        %v3552 = vmul.f32 %v3544, 0.01
        %v3553 = vsel %vm3545, %v3541, %v3549
        %v3554 = vsel %vm3546, %v3542, %v3550
        %v3555 = vsel %vm3547, %v3543, %v3551
        %v3556 = vsel %vm3548, %v3544, %v3552
        %s3557 = scalar_lea.vmem [#allocation2], 336
        %v3558 = vld [vmem:[%s3557] sm:$0xff]
        %v3559 = vld [vmem:[%s3557 + $0x8] sm:$0xff]
        %3560 = vset.pattern.permute.xlu0 2
        %3561 = vperm.xlu0 %3560, %v3517
        %v3562 = vpop.permute.xlu0 %3561
        %3564 = vset.pattern.permute.xlu0 2
        %3565 = vperm.xlu0 %3564, %v3518
        %v3566 = vpop.permute.xlu0 %3565
        %v3569 = vsel %vm344, %v3558, 0
        %v3572 = vsel %vm344, %v3559, 0
        %3574 = vmatprep.subr.mxu0 %v3554
        %3575 = vmatpush1.msra.mxu0 %v3553
        %3576 = vmatprep.subr.mxu0 %v3556
        %3577 = vmatpush1.msra.mxu0 %v3555
        %3578 = vmatprep.subr.mxu0 0.0
        %3579 = vmatpush1.msra.mxu0 0.0
        %3580 = vmatprep.subr.mxu0 0.0
        %3581 = vmatpush1.msra.mxu0 0.0
        %3582 = vmatprep.subr.mxu0 0.0
        %3583 = vmatpush1.msra.mxu0 0.0
        %3584 = vmatprep.subr.mxu0 0.0
        %3585 = vmatpush1.msra.mxu0 0.0
        %3586 = vmatprep.subr.mxu0 0.0
        %3587 = vmatpush1.msra.mxu0 0.0
        %3588 = vmatprep.subr.mxu0 0.0
        %3589 = vmatpush1.msra.mxu0 0.0
        %3590 = vmatprep.subr.mxu0 0.0
        %3591 = vmatpush1.msra.mxu0 0.0
        %3592 = vmatprep.subr.mxu0 0.0
        %3593 = vmatpush1.msra.mxu0 0.0
        %3594 = vmatprep.subr.mxu0 0.0
        %3595 = vmatpush1.msra.mxu0 0.0
        %3596 = vmatprep.subr.mxu0 0.0
        %3597 = vmatpush1.msra.mxu0 0.0
        %3598 = vmatprep.subr.mxu0 0.0
        %3599 = vmatpush1.msra.mxu0 0.0
        %3600 = vmatprep.subr.mxu0 0.0
        %3601 = vmatpush1.msra.mxu0 0.0
        %3602 = vmatprep.subr.mxu0 0.0
        %3603 = vmatpush1.msra.mxu0 0.0
        %3604 = vmatprep.subr.mxu0 0.0
        %3605 = vmatpush1.msra.mxu0 0.0
        %3606 = vmatprep.subr.mxu0 0.0
        %3607 = vmatpush1.msra.mxu0 0.0
        %3608 = vmatprep.subr.mxu0 0.0
        %3609 = vmatpush1.msra.mxu0 0.0
        %3610 = vmatprep.subr.mxu0 0.0
        %3611 = vmatpush1.msra.mxu0 0.0
        %3612 = vmatprep.subr.mxu0 0.0
        %3613 = vmatpush1.msra.mxu0 0.0
        %3614 = vmatprep.subr.mxu0 0.0
        %3615 = vmatpush1.msra.mxu0 0.0
        %3616 = vmatprep.subr.mxu0 0.0
        %3617 = vmatpush1.msra.mxu0 0.0
        %3618 = vmatprep.subr.mxu0 0.0
        %3619 = vmatpush1.msra.mxu0 0.0
        %3620 = vmatprep.subr.mxu0 0.0
        %3621 = vmatpush1.msra.mxu0 0.0
        %3622 = vmatprep.subr.mxu0 0.0
        %3623 = vmatpush1.msra.mxu0 0.0
        %3624 = vmatprep.subr.mxu0 0.0
        %3625 = vmatpush1.msra.mxu0 0.0
        %3626 = vmatprep.subr.mxu0 0.0
        %3627 = vmatpush1.msra.mxu0 0.0
        %3628 = vmatprep.subr.mxu0 0.0
        %3629 = vmatpush1.msra.mxu0 0.0
        %3630 = vmatprep.subr.mxu0 0.0
        %3631 = vmatpush1.msra.mxu0 0.0
        %3632 = vmatprep.subr.mxu0 0.0
        %3633 = vmatpush1.msra.mxu0 0.0
        %3634 = vmatprep.subr.mxu0 0.0
        %3635 = vmatpush1.msra.mxu0 0.0
        %3636 = vmatprep.subr.mxu0 0.0
        %3637 = vmatpush1.msra.mxu0 0.0
        %3638 = vmatprep.mubr.f32.mxu0 0.0
        %3639 = vmatmul.mubr.f32.gmra.mrb[0].mxu0 %v3569
        %v3640 = vpop.f32.mrb[0].mxu0
        %v3641 = vadd.f32 %v3562, %v3640
        %v3642 = vpop.f32.mrb[0].mxu0
        %v3643 = vadd.f32 %v3562, %v3642
        %3644 = vmatprep.mubr.f32.mxu0 0.0
        %3645 = vmatmul.mubr.f32.gmra.mrb[0].mxu0 %v3572
        %v3646 = vpop.f32.mrb[0].mxu0
        %v3647 = vadd.f32 %v3566, %v3646
        %v3648 = vpop.f32.mrb[0].mxu0
        %v3649 = vadd.f32 %v3566, %v3648
        %3650 = vdwg.mxu0
        %vm3651 = vcmp.gt.f32.partialorder %v3641, 0.0
        %vm3652 = vcmp.gt.f32.partialorder %v3643, 0.0
        %vm3653 = vcmp.gt.f32.partialorder %v3647, 0.0
        %vm3654 = vcmp.gt.f32.partialorder %v3649, 0.0
        %v3655 = vmul.f32 %v3641, 0.01
        %v3656 = vmul.f32 %v3643, 0.01
        %v3657 = vmul.f32 %v3647, 0.01
        %v3658 = vmul.f32 %v3649, 0.01
        %v3659 = vsel %vm3651, %v3641, %v3655
        %v3660 = vsel %vm3652, %v3643, %v3656
        %v3661 = vsel %vm3653, %v3647, %v3657
        %v3662 = vsel %vm3654, %v3649, %v3658
        %s3663 = scalar_lea.vmem [#allocation2], 352
        %v3664 = vld [vmem:[%s3663] sm:$0xff]
        %v3665 = vld [vmem:[%s3663 + $0x8] sm:$0xff]
        %3666 = vset.pattern.permute.xlu0 3
        %3667 = vperm.xlu0 %3666, %v3517
        %v3668 = vpop.permute.xlu0 %3667
        %3670 = vset.pattern.permute.xlu0 3
        %3671 = vperm.xlu0 %3670, %v3518
        %v3672 = vpop.permute.xlu0 %3671
        %v3675 = vsel %vm344, %v3664, 0
        %v3678 = vsel %vm344, %v3665, 0
        %3680 = vmatprep.subr.mxu0 %v3660
        %3681 = vmatpush1.msra.mxu0 %v3659
        %3682 = vmatprep.subr.mxu0 %v3662
        %3683 = vmatpush1.msra.mxu0 %v3661
        %3684 = vmatprep.subr.mxu0 0.0
        %3685 = vmatpush1.msra.mxu0 0.0
        %3686 = vmatprep.subr.mxu0 0.0
        %3687 = vmatpush1.msra.mxu0 0.0
        %3688 = vmatprep.subr.mxu0 0.0
        %3689 = vmatpush1.msra.mxu0 0.0
        %3690 = vmatprep.subr.mxu0 0.0
        %3691 = vmatpush1.msra.mxu0 0.0
        %3692 = vmatprep.subr.mxu0 0.0
        %3693 = vmatpush1.msra.mxu0 0.0
        %3694 = vmatprep.subr.mxu0 0.0
        %3695 = vmatpush1.msra.mxu0 0.0
        %3696 = vmatprep.subr.mxu0 0.0
        %3697 = vmatpush1.msra.mxu0 0.0
        %3698 = vmatprep.subr.mxu0 0.0
        %3699 = vmatpush1.msra.mxu0 0.0
        %3700 = vmatprep.subr.mxu0 0.0
        %3701 = vmatpush1.msra.mxu0 0.0
        %3702 = vmatprep.subr.mxu0 0.0
        %3703 = vmatpush1.msra.mxu0 0.0
        %3704 = vmatprep.subr.mxu0 0.0
        %3705 = vmatpush1.msra.mxu0 0.0
        %3706 = vmatprep.subr.mxu0 0.0
        %3707 = vmatpush1.msra.mxu0 0.0
        %3708 = vmatprep.subr.mxu0 0.0
        %3709 = vmatpush1.msra.mxu0 0.0
        %3710 = vmatprep.subr.mxu0 0.0
        %3711 = vmatpush1.msra.mxu0 0.0
        %3712 = vmatprep.subr.mxu0 0.0
        %3713 = vmatpush1.msra.mxu0 0.0
        %3714 = vmatprep.subr.mxu0 0.0
        %3715 = vmatpush1.msra.mxu0 0.0
        %3716 = vmatprep.subr.mxu0 0.0
        %3717 = vmatpush1.msra.mxu0 0.0
        %3718 = vmatprep.subr.mxu0 0.0
        %3719 = vmatpush1.msra.mxu0 0.0
        %3720 = vmatprep.subr.mxu0 0.0
        %3721 = vmatpush1.msra.mxu0 0.0
        %3722 = vmatprep.subr.mxu0 0.0
        %3723 = vmatpush1.msra.mxu0 0.0
        %3724 = vmatprep.subr.mxu0 0.0
        %3725 = vmatpush1.msra.mxu0 0.0
        %3726 = vmatprep.subr.mxu0 0.0
        %3727 = vmatpush1.msra.mxu0 0.0
        %3728 = vmatprep.subr.mxu0 0.0
        %3729 = vmatpush1.msra.mxu0 0.0
        %3730 = vmatprep.subr.mxu0 0.0
        %3731 = vmatpush1.msra.mxu0 0.0
        %3732 = vmatprep.subr.mxu0 0.0
        %3733 = vmatpush1.msra.mxu0 0.0
        %3734 = vmatprep.subr.mxu0 0.0
        %3735 = vmatpush1.msra.mxu0 0.0
        %3736 = vmatprep.subr.mxu0 0.0
        %3737 = vmatpush1.msra.mxu0 0.0
        %3738 = vmatprep.subr.mxu0 0.0
        %3739 = vmatpush1.msra.mxu0 0.0
        %3740 = vmatprep.subr.mxu0 0.0
        %3741 = vmatpush1.msra.mxu0 0.0
        %3742 = vmatprep.subr.mxu0 0.0
        %3743 = vmatpush1.msra.mxu0 0.0
        %3744 = vmatprep.mubr.f32.mxu0 0.0
        %3745 = vmatmul.mubr.f32.gmra.mrb[0].mxu0 %v3675
        %v3746 = vpop.f32.mrb[0].mxu0
        %v3747 = vadd.f32 %v3668, %v3746
        %v3748 = vpop.f32.mrb[0].mxu0
        %v3749 = vadd.f32 %v3668, %v3748
        %3750 = vmatprep.mubr.f32.mxu0 0.0
        %3751 = vmatmul.mubr.f32.gmra.mrb[0].mxu0 %v3678
        %v3752 = vpop.f32.mrb[0].mxu0
        %v3753 = vadd.f32 %v3672, %v3752
        %v3754 = vpop.f32.mrb[0].mxu0
        %v3755 = vadd.f32 %v3672, %v3754
        %3756 = vdwg.mxu0
        %vm3757 = vcmp.gt.f32.partialorder %v3747, 0.0
        %vm3758 = vcmp.gt.f32.partialorder %v3749, 0.0
        %vm3759 = vcmp.gt.f32.partialorder %v3753, 0.0
        %vm3760 = vcmp.gt.f32.partialorder %v3755, 0.0
        %v3761 = vmul.f32 %v3747, 0.01
        %v3762 = vmul.f32 %v3749, 0.01
        %v3763 = vmul.f32 %v3753, 0.01
        %v3764 = vmul.f32 %v3755, 0.01
        %v3765 = vsel %vm3757, %v3747, %v3761
        %v3766 = vsel %vm3758, %v3749, %v3762
        %v3767 = vsel %vm3759, %v3753, %v3763
        %v3768 = vsel %vm3760, %v3755, %v3764
        %s3769 = scalar_lea.vmem [#allocation2], 368
        %v3770 = vld [vmem:[%s3769] sm:$0xff]
        %v3771 = vld [vmem:[%s3769 + $0x8] sm:$0xff]
        %3772 = vset.pattern.permute.xlu0 4
        %3773 = vperm.xlu0 %3772, %v3517
        %v3774 = vpop.permute.xlu0 %3773
        %3776 = vset.pattern.permute.xlu0 4
        %3777 = vperm.xlu0 %3776, %v3518
        %v3778 = vpop.permute.xlu0 %3777
        %v3781 = vsel %vm344, %v3770, 0
        %v3784 = vsel %vm344, %v3771, 0
        %3786 = vmatprep.subr.mxu0 %v3766
        %3787 = vmatpush1.msra.mxu0 %v3765
        %3788 = vmatprep.subr.mxu0 %v3768
        %3789 = vmatpush1.msra.mxu0 %v3767
        %3790 = vmatprep.subr.mxu0 0.0
        %3791 = vmatpush1.msra.mxu0 0.0
        %3792 = vmatprep.subr.mxu0 0.0
        %3793 = vmatpush1.msra.mxu0 0.0
        %3794 = vmatprep.subr.mxu0 0.0
        %3795 = vmatpush1.msra.mxu0 0.0
        %3796 = vmatprep.subr.mxu0 0.0
        %3797 = vmatpush1.msra.mxu0 0.0
        %3798 = vmatprep.subr.mxu0 0.0
        %3799 = vmatpush1.msra.mxu0 0.0
        %3800 = vmatprep.subr.mxu0 0.0
        %3801 = vmatpush1.msra.mxu0 0.0
        %3802 = vmatprep.subr.mxu0 0.0
        %3803 = vmatpush1.msra.mxu0 0.0
        %3804 = vmatprep.subr.mxu0 0.0
        %3805 = vmatpush1.msra.mxu0 0.0
        %3806 = vmatprep.subr.mxu0 0.0
        %3807 = vmatpush1.msra.mxu0 0.0
        %3808 = vmatprep.subr.mxu0 0.0
        %3809 = vmatpush1.msra.mxu0 0.0
        %3810 = vmatprep.subr.mxu0 0.0
        %3811 = vmatpush1.msra.mxu0 0.0
        %3812 = vmatprep.subr.mxu0 0.0
        %3813 = vmatpush1.msra.mxu0 0.0
        %3814 = vmatprep.subr.mxu0 0.0
        %3815 = vmatpush1.msra.mxu0 0.0
        %3816 = vmatprep.subr.mxu0 0.0
        %3817 = vmatpush1.msra.mxu0 0.0
        %3818 = vmatprep.subr.mxu0 0.0
        %3819 = vmatpush1.msra.mxu0 0.0
        %3820 = vmatprep.subr.mxu0 0.0
        %3821 = vmatpush1.msra.mxu0 0.0
        %3822 = vmatprep.subr.mxu0 0.0
        %3823 = vmatpush1.msra.mxu0 0.0
        %3824 = vmatprep.subr.mxu0 0.0
        %3825 = vmatpush1.msra.mxu0 0.0
        %3826 = vmatprep.subr.mxu0 0.0
        %3827 = vmatpush1.msra.mxu0 0.0
        %3828 = vmatprep.subr.mxu0 0.0
        %3829 = vmatpush1.msra.mxu0 0.0
        %3830 = vmatprep.subr.mxu0 0.0
        %3831 = vmatpush1.msra.mxu0 0.0
        %3832 = vmatprep.subr.mxu0 0.0
        %3833 = vmatpush1.msra.mxu0 0.0
        %3834 = vmatprep.subr.mxu0 0.0
        %3835 = vmatpush1.msra.mxu0 0.0
        %3836 = vmatprep.subr.mxu0 0.0
        %3837 = vmatpush1.msra.mxu0 0.0
        %3838 = vmatprep.subr.mxu0 0.0
        %3839 = vmatpush1.msra.mxu0 0.0
        %3840 = vmatprep.subr.mxu0 0.0
        %3841 = vmatpush1.msra.mxu0 0.0
        %3842 = vmatprep.subr.mxu0 0.0
        %3843 = vmatpush1.msra.mxu0 0.0
        %3844 = vmatprep.subr.mxu0 0.0
        %3845 = vmatpush1.msra.mxu0 0.0
        %3846 = vmatprep.subr.mxu0 0.0
        %3847 = vmatpush1.msra.mxu0 0.0
        %3848 = vmatprep.subr.mxu0 0.0
        %3849 = vmatpush1.msra.mxu0 0.0
        %3850 = vmatprep.mubr.f32.mxu0 0.0
        %3851 = vmatmul.mubr.f32.gmra.mrb[0].mxu0 %v3781
        %v3852 = vpop.f32.mrb[0].mxu0
        %v3853 = vadd.f32 %v3774, %v3852
        %v3854 = vpop.f32.mrb[0].mxu0
        %v3855 = vadd.f32 %v3774, %v3854
        %3856 = vmatprep.mubr.f32.mxu0 0.0
        %3857 = vmatmul.mubr.f32.gmra.mrb[0].mxu0 %v3784
        %v3858 = vpop.f32.mrb[0].mxu0
        %v3859 = vadd.f32 %v3778, %v3858
        %v3860 = vpop.f32.mrb[0].mxu0
        %v3861 = vadd.f32 %v3778, %v3860
        %3862 = vdwg.mxu0
        %vm3863 = vcmp.gt.f32.partialorder %v3853, 0.0
        %vm3864 = vcmp.gt.f32.partialorder %v3855, 0.0
        %vm3865 = vcmp.gt.f32.partialorder %v3859, 0.0
        %vm3866 = vcmp.gt.f32.partialorder %v3861, 0.0
        %v3867 = vmul.f32 %v3853, 0.01
        %v3868 = vmul.f32 %v3855, 0.01
        %v3869 = vmul.f32 %v3859, 0.01
        %v3870 = vmul.f32 %v3861, 0.01
        %v3871 = vsel %vm3863, %v3853, %v3867
        %v3872 = vsel %vm3864, %v3855, %v3868
        %v3873 = vsel %vm3865, %v3859, %v3869
        %v3874 = vsel %vm3866, %v3861, %v3870
        %s3875 = scalar_lea.vmem %s3, 14
        %v3876 = vld [vmem:[%s3875] sm:$0x3]
        %s3877 = scalar_lea.vmem %s4, 14
        %v3878 = vld [vmem:[%s3877] sm:$0x3]
        %3880 = vset.pattern.permute.xlu0 0
        %3881 = vperm.xlu0 %3880, %v3878
        %v3882 = vpop.permute.xlu0 %3881
        %v3885 = vsel %vm344, %v3876, 0
        %3887 = vmatprep.subr.mxu0 %v3872
        %3888 = vmatpush1.msra.mxu0 %v3871
        %3889 = vmatprep.subr.mxu0 %v3874
        %3890 = vmatpush1.msra.mxu0 %v3873
        %3891 = vmatprep.subr.mxu0 0.0
        %3892 = vmatpush1.msra.mxu0 0.0
        %3893 = vmatprep.subr.mxu0 0.0
        %3894 = vmatpush1.msra.mxu0 0.0
        %3895 = vmatprep.subr.mxu0 0.0
        %3896 = vmatpush1.msra.mxu0 0.0
        %3897 = vmatprep.subr.mxu0 0.0
        %3898 = vmatpush1.msra.mxu0 0.0
        %3899 = vmatprep.subr.mxu0 0.0
        %3900 = vmatpush1.msra.mxu0 0.0
        %3901 = vmatprep.subr.mxu0 0.0
        %3902 = vmatpush1.msra.mxu0 0.0
        %3903 = vmatprep.subr.mxu0 0.0
        %3904 = vmatpush1.msra.mxu0 0.0
        %3905 = vmatprep.subr.mxu0 0.0
        %3906 = vmatpush1.msra.mxu0 0.0
        %3907 = vmatprep.subr.mxu0 0.0
        %3908 = vmatpush1.msra.mxu0 0.0
        %3909 = vmatprep.subr.mxu0 0.0
        %3910 = vmatpush1.msra.mxu0 0.0
        %3911 = vmatprep.subr.mxu0 0.0
        %3912 = vmatpush1.msra.mxu0 0.0
        %3913 = vmatprep.subr.mxu0 0.0
        %3914 = vmatpush1.msra.mxu0 0.0
        %3915 = vmatprep.subr.mxu0 0.0
        %3916 = vmatpush1.msra.mxu0 0.0
        %3917 = vmatprep.subr.mxu0 0.0
        %3918 = vmatpush1.msra.mxu0 0.0
        %3919 = vmatprep.subr.mxu0 0.0
        %3920 = vmatpush1.msra.mxu0 0.0
        %3921 = vmatprep.subr.mxu0 0.0
        %3922 = vmatpush1.msra.mxu0 0.0
        %3923 = vmatprep.subr.mxu0 0.0
        %3924 = vmatpush1.msra.mxu0 0.0
        %3925 = vmatprep.subr.mxu0 0.0
        %3926 = vmatpush1.msra.mxu0 0.0
        %3927 = vmatprep.subr.mxu0 0.0
        %3928 = vmatpush1.msra.mxu0 0.0
        %3929 = vmatprep.subr.mxu0 0.0
        %3930 = vmatpush1.msra.mxu0 0.0
        %3931 = vmatprep.subr.mxu0 0.0
        %3932 = vmatpush1.msra.mxu0 0.0
        %3933 = vmatprep.subr.mxu0 0.0
        %3934 = vmatpush1.msra.mxu0 0.0
        %3935 = vmatprep.subr.mxu0 0.0
        %3936 = vmatpush1.msra.mxu0 0.0
        %3937 = vmatprep.subr.mxu0 0.0
        %3938 = vmatpush1.msra.mxu0 0.0
        %3939 = vmatprep.subr.mxu0 0.0
        %3940 = vmatpush1.msra.mxu0 0.0
        %3941 = vmatprep.subr.mxu0 0.0
        %3942 = vmatpush1.msra.mxu0 0.0
        %3943 = vmatprep.subr.mxu0 0.0
        %3944 = vmatpush1.msra.mxu0 0.0
        %3945 = vmatprep.subr.mxu0 0.0
        %3946 = vmatpush1.msra.mxu0 0.0
        %3947 = vmatprep.subr.mxu0 0.0
        %3948 = vmatpush1.msra.mxu0 0.0
        %3949 = vmatprep.subr.mxu0 0.0
        %3950 = vmatpush1.msra.mxu0 0.0
        %3951 = vmatprep.mubr.f32.mxu0 0.0
        %3952 = vmatmul.mubr.f32.gmra.mrb[0].mxu0 %v3885
        %v3953 = vpop.f32.mrb[0].mxu0
        %v3954 = vadd.f32 %v3882, %v3953
        %v3955 = vpop.f32.mrb[0].mxu0
        %v3956 = vadd.f32 %v3882, %v3955
        %3957 = vdwg.mxu0
        %v3958 = vmul.f32 %v3954, 1.442695
        %v3959 = vpow.pop %v3958
        %v3960 = vmul.f32 %v3956, 1.442695
        %v3961 = vpow.pop %v3960
        %v3962 = vmul.f32 %v3959, %v3512
        %v3963 = vmul.f32 %v3961, %v3513
        %v3966 = vrot.slane %v3954, 1
        %v3967 = vrot.slane %v3956, 1
        %v3970 = vadd.f32 %v3962, %v3966
        %v3971 = vadd.f32 %v3963, %v3967
        %v3972 = vadd.f32 %v3514, %v3954
        %v3973 = vadd.f32 %v3515, %v3956
        %s3974 = scalar_lea.vmem %s1, 128
        %v3975 = vld [vmem:[%s3974] sm:$0xff]
        %v3976 = vld [vmem:[%s3974 + $0x8] sm:$0xff]
        %3978 = vset.pattern.permute.xlu0 0
        %3979 = vperm.xlu0 %3978, %v3975
        %v3980 = vpop.permute.xlu0 %3979
        %3983 = vset.pattern.permute.xlu0 0
        %3984 = vperm.xlu0 %3983, %v3976
        %v3985 = vpop.permute.xlu0 %3984
        %v3987 = vmul.f32 %v3980, %v3066
        %v3988 = vmul.f32 %v3980, %v3070
        %v3989 = vmul.f32 %v3985, %v3066
        %v3990 = vmul.f32 %v3985, %v3070
        %3991 = vset.pattern.permute.xlu0 1
        %3992 = vperm.xlu0 %3991, %v3975
        %v3993 = vpop.permute.xlu0 %3992
        %3995 = vset.pattern.permute.xlu0 1
        %3996 = vperm.xlu0 %3995, %v3976
        %v3997 = vpop.permute.xlu0 %3996
        %v3999 = vadd.f32 %v3987, %v3993
        %v4000 = vadd.f32 %v3988, %v3993
        %v4001 = vadd.f32 %v3989, %v3997
        %v4002 = vadd.f32 %v3990, %v3997
        %vm4003 = vcmp.gt.f32.partialorder %v3999, 0.0
        %vm4004 = vcmp.gt.f32.partialorder %v4000, 0.0
        %vm4005 = vcmp.gt.f32.partialorder %v4001, 0.0
        %vm4006 = vcmp.gt.f32.partialorder %v4002, 0.0
        %v4007 = vmul.f32 %v3999, 0.01
        %v4008 = vmul.f32 %v4000, 0.01
        %v4009 = vmul.f32 %v4001, 0.01
        %v4010 = vmul.f32 %v4002, 0.01
        %v4011 = vsel %vm4003, %v3999, %v4007
        %v4012 = vsel %vm4004, %v4000, %v4008
        %v4013 = vsel %vm4005, %v4001, %v4009
        %v4014 = vsel %vm4006, %v4002, %v4010
        %s4015 = scalar_lea.vmem [#allocation2], 384
        %v4016 = vld [vmem:[%s4015] sm:$0xff]
        %v4017 = vld [vmem:[%s4015 + $0x8] sm:$0xff]
        %4018 = vset.pattern.permute.xlu0 2
        %4019 = vperm.xlu0 %4018, %v3975
        %v4020 = vpop.permute.xlu0 %4019
        %4022 = vset.pattern.permute.xlu0 2
        %4023 = vperm.xlu0 %4022, %v3976
        %v4024 = vpop.permute.xlu0 %4023
        %v4027 = vsel %vm344, %v4016, 0
        %v4030 = vsel %vm344, %v4017, 0
        %4032 = vmatprep.subr.mxu0 %v4012
        %4033 = vmatpush1.msra.mxu0 %v4011
        %4034 = vmatprep.subr.mxu0 %v4014
        %4035 = vmatpush1.msra.mxu0 %v4013
        %4036 = vmatprep.subr.mxu0 0.0
        %4037 = vmatpush1.msra.mxu0 0.0
        %4038 = vmatprep.subr.mxu0 0.0
        %4039 = vmatpush1.msra.mxu0 0.0
        %4040 = vmatprep.subr.mxu0 0.0
        %4041 = vmatpush1.msra.mxu0 0.0
        %4042 = vmatprep.subr.mxu0 0.0
        %4043 = vmatpush1.msra.mxu0 0.0
        %4044 = vmatprep.subr.mxu0 0.0
        %4045 = vmatpush1.msra.mxu0 0.0
        %4046 = vmatprep.subr.mxu0 0.0
        %4047 = vmatpush1.msra.mxu0 0.0
        %4048 = vmatprep.subr.mxu0 0.0
        %4049 = vmatpush1.msra.mxu0 0.0
        %4050 = vmatprep.subr.mxu0 0.0
        %4051 = vmatpush1.msra.mxu0 0.0
        %4052 = vmatprep.subr.mxu0 0.0
        %4053 = vmatpush1.msra.mxu0 0.0
        %4054 = vmatprep.subr.mxu0 0.0
        %4055 = vmatpush1.msra.mxu0 0.0
        %4056 = vmatprep.subr.mxu0 0.0
        %4057 = vmatpush1.msra.mxu0 0.0
        %4058 = vmatprep.subr.mxu0 0.0
        %4059 = vmatpush1.msra.mxu0 0.0
        %4060 = vmatprep.subr.mxu0 0.0
        %4061 = vmatpush1.msra.mxu0 0.0
        %4062 = vmatprep.subr.mxu0 0.0
        %4063 = vmatpush1.msra.mxu0 0.0
        %4064 = vmatprep.subr.mxu0 0.0
        %4065 = vmatpush1.msra.mxu0 0.0
        %4066 = vmatprep.subr.mxu0 0.0
        %4067 = vmatpush1.msra.mxu0 0.0
        %4068 = vmatprep.subr.mxu0 0.0
        %4069 = vmatpush1.msra.mxu0 0.0
        %4070 = vmatprep.subr.mxu0 0.0
        %4071 = vmatpush1.msra.mxu0 0.0
        %4072 = vmatprep.subr.mxu0 0.0
        %4073 = vmatpush1.msra.mxu0 0.0
        %4074 = vmatprep.subr.mxu0 0.0
        %4075 = vmatpush1.msra.mxu0 0.0
        %4076 = vmatprep.subr.mxu0 0.0
        %4077 = vmatpush1.msra.mxu0 0.0
        %4078 = vmatprep.subr.mxu0 0.0
        %4079 = vmatpush1.msra.mxu0 0.0
        %4080 = vmatprep.subr.mxu0 0.0
        %4081 = vmatpush1.msra.mxu0 0.0
        %4082 = vmatprep.subr.mxu0 0.0
        %4083 = vmatpush1.msra.mxu0 0.0
        %4084 = vmatprep.subr.mxu0 0.0
        %4085 = vmatpush1.msra.mxu0 0.0
        %4086 = vmatprep.subr.mxu0 0.0
        %4087 = vmatpush1.msra.mxu0 0.0
        %4088 = vmatprep.subr.mxu0 0.0
        %4089 = vmatpush1.msra.mxu0 0.0
        %4090 = vmatprep.subr.mxu0 0.0
        %4091 = vmatpush1.msra.mxu0 0.0
        %4092 = vmatprep.subr.mxu0 0.0
        %4093 = vmatpush1.msra.mxu0 0.0
        %4094 = vmatprep.subr.mxu0 0.0
        %4095 = vmatpush1.msra.mxu0 0.0
        %4096 = vmatprep.mubr.f32.mxu0 0.0
        %4097 = vmatmul.mubr.f32.gmra.mrb[0].mxu0 %v4027
        %v4098 = vpop.f32.mrb[0].mxu0
        %v4099 = vadd.f32 %v4020, %v4098
        %v4100 = vpop.f32.mrb[0].mxu0
        %v4101 = vadd.f32 %v4020, %v4100
        %4102 = vmatprep.mubr.f32.mxu0 0.0
        %4103 = vmatmul.mubr.f32.gmra.mrb[0].mxu0 %v4030
        %v4104 = vpop.f32.mrb[0].mxu0
        %v4105 = vadd.f32 %v4024, %v4104
        %v4106 = vpop.f32.mrb[0].mxu0
        %v4107 = vadd.f32 %v4024, %v4106
        %4108 = vdwg.mxu0
        %vm4109 = vcmp.gt.f32.partialorder %v4099, 0.0
        %vm4110 = vcmp.gt.f32.partialorder %v4101, 0.0
        %vm4111 = vcmp.gt.f32.partialorder %v4105, 0.0
        %vm4112 = vcmp.gt.f32.partialorder %v4107, 0.0
        %v4113 = vmul.f32 %v4099, 0.01
        %v4114 = vmul.f32 %v4101, 0.01
        %v4115 = vmul.f32 %v4105, 0.01
        %v4116 = vmul.f32 %v4107, 0.01
        %v4117 = vsel %vm4109, %v4099, %v4113
        %v4118 = vsel %vm4110, %v4101, %v4114
        %v4119 = vsel %vm4111, %v4105, %v4115
        %v4120 = vsel %vm4112, %v4107, %v4116
        %s4121 = scalar_lea.vmem [#allocation2], 400
        %v4122 = vld [vmem:[%s4121] sm:$0xff]
        %v4123 = vld [vmem:[%s4121 + $0x8] sm:$0xff]
        %4124 = vset.pattern.permute.xlu0 3
        %4125 = vperm.xlu0 %4124, %v3975
        %v4126 = vpop.permute.xlu0 %4125
        %4128 = vset.pattern.permute.xlu0 3
        %4129 = vperm.xlu0 %4128, %v3976
        %v4130 = vpop.permute.xlu0 %4129
        %v4133 = vsel %vm344, %v4122, 0
        %v4136 = vsel %vm344, %v4123, 0
        %4138 = vmatprep.subr.mxu0 %v4118
        %4139 = vmatpush1.msra.mxu0 %v4117
        %4140 = vmatprep.subr.mxu0 %v4120
        %4141 = vmatpush1.msra.mxu0 %v4119
        %4142 = vmatprep.subr.mxu0 0.0
        %4143 = vmatpush1.msra.mxu0 0.0
        %4144 = vmatprep.subr.mxu0 0.0
        %4145 = vmatpush1.msra.mxu0 0.0
        %4146 = vmatprep.subr.mxu0 0.0
        %4147 = vmatpush1.msra.mxu0 0.0
        %4148 = vmatprep.subr.mxu0 0.0
        %4149 = vmatpush1.msra.mxu0 0.0
        %4150 = vmatprep.subr.mxu0 0.0
        %4151 = vmatpush1.msra.mxu0 0.0
        %4152 = vmatprep.subr.mxu0 0.0
        %4153 = vmatpush1.msra.mxu0 0.0
        %4154 = vmatprep.subr.mxu0 0.0
        %4155 = vmatpush1.msra.mxu0 0.0
        %4156 = vmatprep.subr.mxu0 0.0
        %4157 = vmatpush1.msra.mxu0 0.0
        %4158 = vmatprep.subr.mxu0 0.0
        %4159 = vmatpush1.msra.mxu0 0.0
        %4160 = vmatprep.subr.mxu0 0.0
        %4161 = vmatpush1.msra.mxu0 0.0
        %4162 = vmatprep.subr.mxu0 0.0
        %4163 = vmatpush1.msra.mxu0 0.0
        %4164 = vmatprep.subr.mxu0 0.0
        %4165 = vmatpush1.msra.mxu0 0.0
        %4166 = vmatprep.subr.mxu0 0.0
        %4167 = vmatpush1.msra.mxu0 0.0
        %4168 = vmatprep.subr.mxu0 0.0
        %4169 = vmatpush1.msra.mxu0 0.0
        %4170 = vmatprep.subr.mxu0 0.0
        %4171 = vmatpush1.msra.mxu0 0.0
        %4172 = vmatprep.subr.mxu0 0.0
        %4173 = vmatpush1.msra.mxu0 0.0
        %4174 = vmatprep.subr.mxu0 0.0
        %4175 = vmatpush1.msra.mxu0 0.0
        %4176 = vmatprep.subr.mxu0 0.0
        %4177 = vmatpush1.msra.mxu0 0.0
        %4178 = vmatprep.subr.mxu0 0.0
        %4179 = vmatpush1.msra.mxu0 0.0
        %4180 = vmatprep.subr.mxu0 0.0
        %4181 = vmatpush1.msra.mxu0 0.0
        %4182 = vmatprep.subr.mxu0 0.0
        %4183 = vmatpush1.msra.mxu0 0.0
        %4184 = vmatprep.subr.mxu0 0.0
        %4185 = vmatpush1.msra.mxu0 0.0
        %4186 = vmatprep.subr.mxu0 0.0
        %4187 = vmatpush1.msra.mxu0 0.0
        %4188 = vmatprep.subr.mxu0 0.0
        %4189 = vmatpush1.msra.mxu0 0.0
        %4190 = vmatprep.subr.mxu0 0.0
        %4191 = vmatpush1.msra.mxu0 0.0
        %4192 = vmatprep.subr.mxu0 0.0
        %4193 = vmatpush1.msra.mxu0 0.0
        %4194 = vmatprep.subr.mxu0 0.0
        %4195 = vmatpush1.msra.mxu0 0.0
        %4196 = vmatprep.subr.mxu0 0.0
        %4197 = vmatpush1.msra.mxu0 0.0
        %4198 = vmatprep.subr.mxu0 0.0
        %4199 = vmatpush1.msra.mxu0 0.0
        %4200 = vmatprep.subr.mxu0 0.0
        %4201 = vmatpush1.msra.mxu0 0.0
        %4202 = vmatprep.mubr.f32.mxu0 0.0
        %4203 = vmatmul.mubr.f32.gmra.mrb[0].mxu0 %v4133
        %v4204 = vpop.f32.mrb[0].mxu0
        %v4205 = vadd.f32 %v4126, %v4204
        %v4206 = vpop.f32.mrb[0].mxu0
        %v4207 = vadd.f32 %v4126, %v4206
        %4208 = vmatprep.mubr.f32.mxu0 0.0
        %4209 = vmatmul.mubr.f32.gmra.mrb[0].mxu0 %v4136
        %v4210 = vpop.f32.mrb[0].mxu0
        %v4211 = vadd.f32 %v4130, %v4210
        %v4212 = vpop.f32.mrb[0].mxu0
        %v4213 = vadd.f32 %v4130, %v4212
        %4214 = vdwg.mxu0
        %vm4215 = vcmp.gt.f32.partialorder %v4205, 0.0
        %vm4216 = vcmp.gt.f32.partialorder %v4207, 0.0
        %vm4217 = vcmp.gt.f32.partialorder %v4211, 0.0
        %vm4218 = vcmp.gt.f32.partialorder %v4213, 0.0
        %v4219 = vmul.f32 %v4205, 0.01
        %v4220 = vmul.f32 %v4207, 0.01
        %v4221 = vmul.f32 %v4211, 0.01
        %v4222 = vmul.f32 %v4213, 0.01
        %v4223 = vsel %vm4215, %v4205, %v4219
        %v4224 = vsel %vm4216, %v4207, %v4220
        %v4225 = vsel %vm4217, %v4211, %v4221
        %v4226 = vsel %vm4218, %v4213, %v4222
        %s4227 = scalar_lea.vmem [#allocation2], 416
        %v4228 = vld [vmem:[%s4227] sm:$0xff]
        %v4229 = vld [vmem:[%s4227 + $0x8] sm:$0xff]
        %4230 = vset.pattern.permute.xlu0 4
        %4231 = vperm.xlu0 %4230, %v3975
        %v4232 = vpop.permute.xlu0 %4231
        %4234 = vset.pattern.permute.xlu0 4
        %4235 = vperm.xlu0 %4234, %v3976
        %v4236 = vpop.permute.xlu0 %4235
        %v4239 = vsel %vm344, %v4228, 0
        %v4242 = vsel %vm344, %v4229, 0
        %4244 = vmatprep.subr.mxu0 %v4224
        %4245 = vmatpush1.msra.mxu0 %v4223
        %4246 = vmatprep.subr.mxu0 %v4226
        %4247 = vmatpush1.msra.mxu0 %v4225
        %4248 = vmatprep.subr.mxu0 0.0
        %4249 = vmatpush1.msra.mxu0 0.0
        %4250 = vmatprep.subr.mxu0 0.0
        %4251 = vmatpush1.msra.mxu0 0.0
        %4252 = vmatprep.subr.mxu0 0.0
        %4253 = vmatpush1.msra.mxu0 0.0
        %4254 = vmatprep.subr.mxu0 0.0
        %4255 = vmatpush1.msra.mxu0 0.0
        %4256 = vmatprep.subr.mxu0 0.0
        %4257 = vmatpush1.msra.mxu0 0.0
        %4258 = vmatprep.subr.mxu0 0.0
        %4259 = vmatpush1.msra.mxu0 0.0
        %4260 = vmatprep.subr.mxu0 0.0
        %4261 = vmatpush1.msra.mxu0 0.0
        %4262 = vmatprep.subr.mxu0 0.0
        %4263 = vmatpush1.msra.mxu0 0.0
        %4264 = vmatprep.subr.mxu0 0.0
        %4265 = vmatpush1.msra.mxu0 0.0
        %4266 = vmatprep.subr.mxu0 0.0
        %4267 = vmatpush1.msra.mxu0 0.0
        %4268 = vmatprep.subr.mxu0 0.0
        %4269 = vmatpush1.msra.mxu0 0.0
        %4270 = vmatprep.subr.mxu0 0.0
        %4271 = vmatpush1.msra.mxu0 0.0
        %4272 = vmatprep.subr.mxu0 0.0
        %4273 = vmatpush1.msra.mxu0 0.0
        %4274 = vmatprep.subr.mxu0 0.0
        %4275 = vmatpush1.msra.mxu0 0.0
        %4276 = vmatprep.subr.mxu0 0.0
        %4277 = vmatpush1.msra.mxu0 0.0
        %4278 = vmatprep.subr.mxu0 0.0
        %4279 = vmatpush1.msra.mxu0 0.0
        %4280 = vmatprep.subr.mxu0 0.0
        %4281 = vmatpush1.msra.mxu0 0.0
        %4282 = vmatprep.subr.mxu0 0.0
        %4283 = vmatpush1.msra.mxu0 0.0
        %4284 = vmatprep.subr.mxu0 0.0
        %4285 = vmatpush1.msra.mxu0 0.0
        %4286 = vmatprep.subr.mxu0 0.0
        %4287 = vmatpush1.msra.mxu0 0.0
        %4288 = vmatprep.subr.mxu0 0.0
        %4289 = vmatpush1.msra.mxu0 0.0
        %4290 = vmatprep.subr.mxu0 0.0
        %4291 = vmatpush1.msra.mxu0 0.0
        %4292 = vmatprep.subr.mxu0 0.0
        %4293 = vmatpush1.msra.mxu0 0.0
        %4294 = vmatprep.subr.mxu0 0.0
        %4295 = vmatpush1.msra.mxu0 0.0
        %4296 = vmatprep.subr.mxu0 0.0
        %4297 = vmatpush1.msra.mxu0 0.0
        %4298 = vmatprep.subr.mxu0 0.0
        %4299 = vmatpush1.msra.mxu0 0.0
        %4300 = vmatprep.subr.mxu0 0.0
        %4301 = vmatpush1.msra.mxu0 0.0
        %4302 = vmatprep.subr.mxu0 0.0
        %4303 = vmatpush1.msra.mxu0 0.0
        %4304 = vmatprep.subr.mxu0 0.0
        %4305 = vmatpush1.msra.mxu0 0.0
        %4306 = vmatprep.subr.mxu0 0.0
        %4307 = vmatpush1.msra.mxu0 0.0
        %4308 = vmatprep.mubr.f32.mxu0 0.0
        %4309 = vmatmul.mubr.f32.gmra.mrb[0].mxu0 %v4239
        %v4310 = vpop.f32.mrb[0].mxu0
        %v4311 = vadd.f32 %v4232, %v4310
        %v4312 = vpop.f32.mrb[0].mxu0
        %v4313 = vadd.f32 %v4232, %v4312
        %4314 = vmatprep.mubr.f32.mxu0 0.0
        %4315 = vmatmul.mubr.f32.gmra.mrb[0].mxu0 %v4242
        %v4316 = vpop.f32.mrb[0].mxu0
        %v4317 = vadd.f32 %v4236, %v4316
        %v4318 = vpop.f32.mrb[0].mxu0
        %v4319 = vadd.f32 %v4236, %v4318
        %4320 = vdwg.mxu0
        %vm4321 = vcmp.gt.f32.partialorder %v4311, 0.0
        %vm4322 = vcmp.gt.f32.partialorder %v4313, 0.0
        %vm4323 = vcmp.gt.f32.partialorder %v4317, 0.0
        %vm4324 = vcmp.gt.f32.partialorder %v4319, 0.0
        %v4325 = vmul.f32 %v4311, 0.01
        %v4326 = vmul.f32 %v4313, 0.01
        %v4327 = vmul.f32 %v4317, 0.01
        %v4328 = vmul.f32 %v4319, 0.01
        %v4329 = vsel %vm4321, %v4311, %v4325
        %v4330 = vsel %vm4322, %v4313, %v4326
        %v4331 = vsel %vm4323, %v4317, %v4327
        %v4332 = vsel %vm4324, %v4319, %v4328
        %s4333 = scalar_lea.vmem %s3, 16
        %v4334 = vld [vmem:[%s4333] sm:$0x3]
        %s4335 = scalar_lea.vmem %s4, 16
        %v4336 = vld [vmem:[%s4335] sm:$0x3]
        %4338 = vset.pattern.permute.xlu0 0
        %4339 = vperm.xlu0 %4338, %v4336
        %v4340 = vpop.permute.xlu0 %4339
        %v4343 = vsel %vm344, %v4334, 0
        %4345 = vmatprep.subr.mxu0 %v4330
        %4346 = vmatpush1.msra.mxu0 %v4329
        %4347 = vmatprep.subr.mxu0 %v4332
        %4348 = vmatpush1.msra.mxu0 %v4331
        %4349 = vmatprep.subr.mxu0 0.0
        %4350 = vmatpush1.msra.mxu0 0.0
        %4351 = vmatprep.subr.mxu0 0.0
        %4352 = vmatpush1.msra.mxu0 0.0
        %4353 = vmatprep.subr.mxu0 0.0
        %4354 = vmatpush1.msra.mxu0 0.0
        %4355 = vmatprep.subr.mxu0 0.0
        %4356 = vmatpush1.msra.mxu0 0.0
        %4357 = vmatprep.subr.mxu0 0.0
        %4358 = vmatpush1.msra.mxu0 0.0
        %4359 = vmatprep.subr.mxu0 0.0
        %4360 = vmatpush1.msra.mxu0 0.0
        %4361 = vmatprep.subr.mxu0 0.0
        %4362 = vmatpush1.msra.mxu0 0.0
        %4363 = vmatprep.subr.mxu0 0.0
        %4364 = vmatpush1.msra.mxu0 0.0
        %4365 = vmatprep.subr.mxu0 0.0
        %4366 = vmatpush1.msra.mxu0 0.0
        %4367 = vmatprep.subr.mxu0 0.0
        %4368 = vmatpush1.msra.mxu0 0.0
        %4369 = vmatprep.subr.mxu0 0.0
        %4370 = vmatpush1.msra.mxu0 0.0
        %4371 = vmatprep.subr.mxu0 0.0
        %4372 = vmatpush1.msra.mxu0 0.0
        %4373 = vmatprep.subr.mxu0 0.0
        %4374 = vmatpush1.msra.mxu0 0.0
        %4375 = vmatprep.subr.mxu0 0.0
        %4376 = vmatpush1.msra.mxu0 0.0
        %4377 = vmatprep.subr.mxu0 0.0
        %4378 = vmatpush1.msra.mxu0 0.0
        %4379 = vmatprep.subr.mxu0 0.0
        %4380 = vmatpush1.msra.mxu0 0.0
        %4381 = vmatprep.subr.mxu0 0.0
        %4382 = vmatpush1.msra.mxu0 0.0
        %4383 = vmatprep.subr.mxu0 0.0
        %4384 = vmatpush1.msra.mxu0 0.0
        %4385 = vmatprep.subr.mxu0 0.0
        %4386 = vmatpush1.msra.mxu0 0.0
        %4387 = vmatprep.subr.mxu0 0.0
        %4388 = vmatpush1.msra.mxu0 0.0
        %4389 = vmatprep.subr.mxu0 0.0
        %4390 = vmatpush1.msra.mxu0 0.0
        %4391 = vmatprep.subr.mxu0 0.0
        %4392 = vmatpush1.msra.mxu0 0.0
        %4393 = vmatprep.subr.mxu0 0.0
        %4394 = vmatpush1.msra.mxu0 0.0
        %4395 = vmatprep.subr.mxu0 0.0
        %4396 = vmatpush1.msra.mxu0 0.0
        %4397 = vmatprep.subr.mxu0 0.0
        %4398 = vmatpush1.msra.mxu0 0.0
        %4399 = vmatprep.subr.mxu0 0.0
        %4400 = vmatpush1.msra.mxu0 0.0
        %4401 = vmatprep.subr.mxu0 0.0
        %4402 = vmatpush1.msra.mxu0 0.0
        %4403 = vmatprep.subr.mxu0 0.0
        %4404 = vmatpush1.msra.mxu0 0.0
        %4405 = vmatprep.subr.mxu0 0.0
        %4406 = vmatpush1.msra.mxu0 0.0
        %4407 = vmatprep.subr.mxu0 0.0
        %4408 = vmatpush1.msra.mxu0 0.0
        %4409 = vmatprep.mubr.f32.mxu0 0.0
        %4410 = vmatmul.mubr.f32.gmra.mrb[0].mxu0 %v4343
        %v4411 = vpop.f32.mrb[0].mxu0
        %v4412 = vadd.f32 %v4340, %v4411
        %v4413 = vpop.f32.mrb[0].mxu0
        %v4414 = vadd.f32 %v4340, %v4413
        %4415 = vdwg.mxu0
        %v4416 = vmul.f32 %v4412, 1.442695
        %v4417 = vpow.pop %v4416
        %v4418 = vmul.f32 %v4414, 1.442695
        %v4419 = vpow.pop %v4418
        %v4420 = vmul.f32 %v4417, %v3970
        %v4421 = vmul.f32 %v4419, %v3971
        %v4424 = vrot.slane %v4412, 1
        %v4425 = vrot.slane %v4414, 1
        %v4428 = vadd.f32 %v4420, %v4424
        %v4429 = vadd.f32 %v4421, %v4425
        %v4430 = vadd.f32 %v3972, %v4412
        %v4431 = vadd.f32 %v3973, %v4414
        %s4432 = scalar_lea.vmem %s1, 144
        %v4433 = vld [vmem:[%s4432] sm:$0xff]
        %v4434 = vld [vmem:[%s4432 + $0x8] sm:$0xff]
        %4436 = vset.pattern.permute.xlu0 0
        %4437 = vperm.xlu0 %4436, %v4433
        %v4438 = vpop.permute.xlu0 %4437
        %4441 = vset.pattern.permute.xlu0 0
        %4442 = vperm.xlu0 %4441, %v4434
        %v4443 = vpop.permute.xlu0 %4442
        %v4445 = vmul.f32 %v4438, %v3066
        %v4446 = vmul.f32 %v4438, %v3070
        %v4447 = vmul.f32 %v4443, %v3066
        %v4448 = vmul.f32 %v4443, %v3070
        %4449 = vset.pattern.permute.xlu0 1
        %4450 = vperm.xlu0 %4449, %v4433
        %v4451 = vpop.permute.xlu0 %4450
        %4453 = vset.pattern.permute.xlu0 1
        %4454 = vperm.xlu0 %4453, %v4434
        %v4455 = vpop.permute.xlu0 %4454
        %v4457 = vadd.f32 %v4445, %v4451
        %v4458 = vadd.f32 %v4446, %v4451
        %v4459 = vadd.f32 %v4447, %v4455
        %v4460 = vadd.f32 %v4448, %v4455
        %vm4461 = vcmp.gt.f32.partialorder %v4457, 0.0
        %vm4462 = vcmp.gt.f32.partialorder %v4458, 0.0
        %vm4463 = vcmp.gt.f32.partialorder %v4459, 0.0
        %vm4464 = vcmp.gt.f32.partialorder %v4460, 0.0
        %v4465 = vmul.f32 %v4457, 0.01
        %v4466 = vmul.f32 %v4458, 0.01
        %v4467 = vmul.f32 %v4459, 0.01
        %v4468 = vmul.f32 %v4460, 0.01
        %v4469 = vsel %vm4461, %v4457, %v4465
        %v4470 = vsel %vm4462, %v4458, %v4466
        %v4471 = vsel %vm4463, %v4459, %v4467
        %v4472 = vsel %vm4464, %v4460, %v4468
        %s4473 = scalar_lea.vmem [#allocation2], 432
        %v4474 = vld [vmem:[%s4473] sm:$0xff]
        %v4475 = vld [vmem:[%s4473 + $0x8] sm:$0xff]
        %4476 = vset.pattern.permute.xlu0 2
        %4477 = vperm.xlu0 %4476, %v4433
        %v4478 = vpop.permute.xlu0 %4477
        %4480 = vset.pattern.permute.xlu0 2
        %4481 = vperm.xlu0 %4480, %v4434
        %v4482 = vpop.permute.xlu0 %4481
        %v4485 = vsel %vm344, %v4474, 0
        %v4488 = vsel %vm344, %v4475, 0
        %4490 = vmatprep.subr.mxu0 %v4470
        %4491 = vmatpush1.msra.mxu0 %v4469
        %4492 = vmatprep.subr.mxu0 %v4472
        %4493 = vmatpush1.msra.mxu0 %v4471
        %4494 = vmatprep.subr.mxu0 0.0
        %4495 = vmatpush1.msra.mxu0 0.0
        %4496 = vmatprep.subr.mxu0 0.0
        %4497 = vmatpush1.msra.mxu0 0.0
        %4498 = vmatprep.subr.mxu0 0.0
        %4499 = vmatpush1.msra.mxu0 0.0
        %4500 = vmatprep.subr.mxu0 0.0
        %4501 = vmatpush1.msra.mxu0 0.0
        %4502 = vmatprep.subr.mxu0 0.0
        %4503 = vmatpush1.msra.mxu0 0.0
        %4504 = vmatprep.subr.mxu0 0.0
        %4505 = vmatpush1.msra.mxu0 0.0
        %4506 = vmatprep.subr.mxu0 0.0
        %4507 = vmatpush1.msra.mxu0 0.0
        %4508 = vmatprep.subr.mxu0 0.0
        %4509 = vmatpush1.msra.mxu0 0.0
        %4510 = vmatprep.subr.mxu0 0.0
        %4511 = vmatpush1.msra.mxu0 0.0
        %4512 = vmatprep.subr.mxu0 0.0
        %4513 = vmatpush1.msra.mxu0 0.0
        %4514 = vmatprep.subr.mxu0 0.0
        %4515 = vmatpush1.msra.mxu0 0.0
        %4516 = vmatprep.subr.mxu0 0.0
        %4517 = vmatpush1.msra.mxu0 0.0
        %4518 = vmatprep.subr.mxu0 0.0
        %4519 = vmatpush1.msra.mxu0 0.0
        %4520 = vmatprep.subr.mxu0 0.0
        %4521 = vmatpush1.msra.mxu0 0.0
        %4522 = vmatprep.subr.mxu0 0.0
        %4523 = vmatpush1.msra.mxu0 0.0
        %4524 = vmatprep.subr.mxu0 0.0
        %4525 = vmatpush1.msra.mxu0 0.0
        %4526 = vmatprep.subr.mxu0 0.0
        %4527 = vmatpush1.msra.mxu0 0.0
        %4528 = vmatprep.subr.mxu0 0.0
        %4529 = vmatpush1.msra.mxu0 0.0
        %4530 = vmatprep.subr.mxu0 0.0
        %4531 = vmatpush1.msra.mxu0 0.0
        %4532 = vmatprep.subr.mxu0 0.0
        %4533 = vmatpush1.msra.mxu0 0.0
        %4534 = vmatprep.subr.mxu0 0.0
        %4535 = vmatpush1.msra.mxu0 0.0
        %4536 = vmatprep.subr.mxu0 0.0
        %4537 = vmatpush1.msra.mxu0 0.0
        %4538 = vmatprep.subr.mxu0 0.0
        %4539 = vmatpush1.msra.mxu0 0.0
        %4540 = vmatprep.subr.mxu0 0.0
        %4541 = vmatpush1.msra.mxu0 0.0
        %4542 = vmatprep.subr.mxu0 0.0
        %4543 = vmatpush1.msra.mxu0 0.0
        %4544 = vmatprep.subr.mxu0 0.0
        %4545 = vmatpush1.msra.mxu0 0.0
        %4546 = vmatprep.subr.mxu0 0.0
        %4547 = vmatpush1.msra.mxu0 0.0
        %4548 = vmatprep.subr.mxu0 0.0
        %4549 = vmatpush1.msra.mxu0 0.0
        %4550 = vmatprep.subr.mxu0 0.0
        %4551 = vmatpush1.msra.mxu0 0.0
        %4552 = vmatprep.subr.mxu0 0.0
        %4553 = vmatpush1.msra.mxu0 0.0
        %4554 = vmatprep.mubr.f32.mxu0 0.0
        %4555 = vmatmul.mubr.f32.gmra.mrb[0].mxu0 %v4485
        %v4556 = vpop.f32.mrb[0].mxu0
        %v4557 = vadd.f32 %v4478, %v4556
        %v4558 = vpop.f32.mrb[0].mxu0
        %v4559 = vadd.f32 %v4478, %v4558
        %4560 = vmatprep.mubr.f32.mxu0 0.0
        %4561 = vmatmul.mubr.f32.gmra.mrb[0].mxu0 %v4488
        %v4562 = vpop.f32.mrb[0].mxu0
        %v4563 = vadd.f32 %v4482, %v4562
        %v4564 = vpop.f32.mrb[0].mxu0
        %v4565 = vadd.f32 %v4482, %v4564
        %4566 = vdwg.mxu0
        %vm4567 = vcmp.gt.f32.partialorder %v4557, 0.0
        %vm4568 = vcmp.gt.f32.partialorder %v4559, 0.0
        %vm4569 = vcmp.gt.f32.partialorder %v4563, 0.0
        %vm4570 = vcmp.gt.f32.partialorder %v4565, 0.0
        %v4571 = vmul.f32 %v4557, 0.01
        %v4572 = vmul.f32 %v4559, 0.01
        %v4573 = vmul.f32 %v4563, 0.01
        %v4574 = vmul.f32 %v4565, 0.01
        %v4575 = vsel %vm4567, %v4557, %v4571
        %v4576 = vsel %vm4568, %v4559, %v4572
        %v4577 = vsel %vm4569, %v4563, %v4573
        %v4578 = vsel %vm4570, %v4565, %v4574
        %s4579 = scalar_lea.vmem [#allocation2], 448
        %v4580 = vld [vmem:[%s4579] sm:$0xff]
        %v4581 = vld [vmem:[%s4579 + $0x8] sm:$0xff]
        %4582 = vset.pattern.permute.xlu0 3
        %4583 = vperm.xlu0 %4582, %v4433
        %v4584 = vpop.permute.xlu0 %4583
        %4586 = vset.pattern.permute.xlu0 3
        %4587 = vperm.xlu0 %4586, %v4434
        %v4588 = vpop.permute.xlu0 %4587
        %v4591 = vsel %vm344, %v4580, 0
        %v4594 = vsel %vm344, %v4581, 0
        %4596 = vmatprep.subr.mxu0 %v4576
        %4597 = vmatpush1.msra.mxu0 %v4575
        %4598 = vmatprep.subr.mxu0 %v4578
        %4599 = vmatpush1.msra.mxu0 %v4577
        %4600 = vmatprep.subr.mxu0 0.0
        %4601 = vmatpush1.msra.mxu0 0.0
        %4602 = vmatprep.subr.mxu0 0.0
        %4603 = vmatpush1.msra.mxu0 0.0
        %4604 = vmatprep.subr.mxu0 0.0
        %4605 = vmatpush1.msra.mxu0 0.0
        %4606 = vmatprep.subr.mxu0 0.0
        %4607 = vmatpush1.msra.mxu0 0.0
        %4608 = vmatprep.subr.mxu0 0.0
        %4609 = vmatpush1.msra.mxu0 0.0
        %4610 = vmatprep.subr.mxu0 0.0
        %4611 = vmatpush1.msra.mxu0 0.0
        %4612 = vmatprep.subr.mxu0 0.0
        %4613 = vmatpush1.msra.mxu0 0.0
        %4614 = vmatprep.subr.mxu0 0.0
        %4615 = vmatpush1.msra.mxu0 0.0
        %4616 = vmatprep.subr.mxu0 0.0
        %4617 = vmatpush1.msra.mxu0 0.0
        %4618 = vmatprep.subr.mxu0 0.0
        %4619 = vmatpush1.msra.mxu0 0.0
        %4620 = vmatprep.subr.mxu0 0.0
        %4621 = vmatpush1.msra.mxu0 0.0
        %4622 = vmatprep.subr.mxu0 0.0
        %4623 = vmatpush1.msra.mxu0 0.0
        %4624 = vmatprep.subr.mxu0 0.0
        %4625 = vmatpush1.msra.mxu0 0.0
        %4626 = vmatprep.subr.mxu0 0.0
        %4627 = vmatpush1.msra.mxu0 0.0
        %4628 = vmatprep.subr.mxu0 0.0
        %4629 = vmatpush1.msra.mxu0 0.0
        %4630 = vmatprep.subr.mxu0 0.0
        %4631 = vmatpush1.msra.mxu0 0.0
        %4632 = vmatprep.subr.mxu0 0.0
        %4633 = vmatpush1.msra.mxu0 0.0
        %4634 = vmatprep.subr.mxu0 0.0
        %4635 = vmatpush1.msra.mxu0 0.0
        %4636 = vmatprep.subr.mxu0 0.0
        %4637 = vmatpush1.msra.mxu0 0.0
        %4638 = vmatprep.subr.mxu0 0.0
        %4639 = vmatpush1.msra.mxu0 0.0
        %4640 = vmatprep.subr.mxu0 0.0
        %4641 = vmatpush1.msra.mxu0 0.0
        %4642 = vmatprep.subr.mxu0 0.0
        %4643 = vmatpush1.msra.mxu0 0.0
        %4644 = vmatprep.subr.mxu0 0.0
        %4645 = vmatpush1.msra.mxu0 0.0
        %4646 = vmatprep.subr.mxu0 0.0
        %4647 = vmatpush1.msra.mxu0 0.0
        %4648 = vmatprep.subr.mxu0 0.0
        %4649 = vmatpush1.msra.mxu0 0.0
        %4650 = vmatprep.subr.mxu0 0.0
        %4651 = vmatpush1.msra.mxu0 0.0
        %4652 = vmatprep.subr.mxu0 0.0
        %4653 = vmatpush1.msra.mxu0 0.0
        %4654 = vmatprep.subr.mxu0 0.0
        %4655 = vmatpush1.msra.mxu0 0.0
        %4656 = vmatprep.subr.mxu0 0.0
        %4657 = vmatpush1.msra.mxu0 0.0
        %4658 = vmatprep.subr.mxu0 0.0
        %4659 = vmatpush1.msra.mxu0 0.0
        %4660 = vmatprep.mubr.f32.mxu0 0.0
        %4661 = vmatmul.mubr.f32.gmra.mrb[0].mxu0 %v4591
        %v4662 = vpop.f32.mrb[0].mxu0
        %v4663 = vadd.f32 %v4584, %v4662
        %v4664 = vpop.f32.mrb[0].mxu0
        %v4665 = vadd.f32 %v4584, %v4664
        %4666 = vmatprep.mubr.f32.mxu0 0.0
        %4667 = vmatmul.mubr.f32.gmra.mrb[0].mxu0 %v4594
        %v4668 = vpop.f32.mrb[0].mxu0
        %v4669 = vadd.f32 %v4588, %v4668
        %v4670 = vpop.f32.mrb[0].mxu0
        %v4671 = vadd.f32 %v4588, %v4670
        %4672 = vdwg.mxu0
        %vm4673 = vcmp.gt.f32.partialorder %v4663, 0.0
        %vm4674 = vcmp.gt.f32.partialorder %v4665, 0.0
        %vm4675 = vcmp.gt.f32.partialorder %v4669, 0.0
        %vm4676 = vcmp.gt.f32.partialorder %v4671, 0.0
        %v4677 = vmul.f32 %v4663, 0.01
        %v4678 = vmul.f32 %v4665, 0.01
        %v4679 = vmul.f32 %v4669, 0.01
        %v4680 = vmul.f32 %v4671, 0.01
        %v4681 = vsel %vm4673, %v4663, %v4677
        %v4682 = vsel %vm4674, %v4665, %v4678
        %v4683 = vsel %vm4675, %v4669, %v4679
        %v4684 = vsel %vm4676, %v4671, %v4680
        %s4685 = scalar_lea.vmem [#allocation2], 464
        %v4686 = vld [vmem:[%s4685] sm:$0xff]
        %v4687 = vld [vmem:[%s4685 + $0x8] sm:$0xff]
        %4688 = vset.pattern.permute.xlu0 4
        %4689 = vperm.xlu0 %4688, %v4433
        %v4690 = vpop.permute.xlu0 %4689
        %4692 = vset.pattern.permute.xlu0 4
        %4693 = vperm.xlu0 %4692, %v4434
        %v4694 = vpop.permute.xlu0 %4693
        %v4697 = vsel %vm344, %v4686, 0
        %v4700 = vsel %vm344, %v4687, 0
        %4702 = vmatprep.subr.mxu0 %v4682
        %4703 = vmatpush1.msra.mxu0 %v4681
        %4704 = vmatprep.subr.mxu0 %v4684
        %4705 = vmatpush1.msra.mxu0 %v4683
        %4706 = vmatprep.subr.mxu0 0.0
        %4707 = vmatpush1.msra.mxu0 0.0
        %4708 = vmatprep.subr.mxu0 0.0
        %4709 = vmatpush1.msra.mxu0 0.0
        %4710 = vmatprep.subr.mxu0 0.0
        %4711 = vmatpush1.msra.mxu0 0.0
        %4712 = vmatprep.subr.mxu0 0.0
        %4713 = vmatpush1.msra.mxu0 0.0
        %4714 = vmatprep.subr.mxu0 0.0
        %4715 = vmatpush1.msra.mxu0 0.0
        %4716 = vmatprep.subr.mxu0 0.0
        %4717 = vmatpush1.msra.mxu0 0.0
        %4718 = vmatprep.subr.mxu0 0.0
        %4719 = vmatpush1.msra.mxu0 0.0
        %4720 = vmatprep.subr.mxu0 0.0
        %4721 = vmatpush1.msra.mxu0 0.0
        %4722 = vmatprep.subr.mxu0 0.0
        %4723 = vmatpush1.msra.mxu0 0.0
        %4724 = vmatprep.subr.mxu0 0.0
        %4725 = vmatpush1.msra.mxu0 0.0
        %4726 = vmatprep.subr.mxu0 0.0
        %4727 = vmatpush1.msra.mxu0 0.0
        %4728 = vmatprep.subr.mxu0 0.0
        %4729 = vmatpush1.msra.mxu0 0.0
        %4730 = vmatprep.subr.mxu0 0.0
        %4731 = vmatpush1.msra.mxu0 0.0
        %4732 = vmatprep.subr.mxu0 0.0
        %4733 = vmatpush1.msra.mxu0 0.0
        %4734 = vmatprep.subr.mxu0 0.0
        %4735 = vmatpush1.msra.mxu0 0.0
        %4736 = vmatprep.subr.mxu0 0.0
        %4737 = vmatpush1.msra.mxu0 0.0
        %4738 = vmatprep.subr.mxu0 0.0
        %4739 = vmatpush1.msra.mxu0 0.0
        %4740 = vmatprep.subr.mxu0 0.0
        %4741 = vmatpush1.msra.mxu0 0.0
        %4742 = vmatprep.subr.mxu0 0.0
        %4743 = vmatpush1.msra.mxu0 0.0
        %4744 = vmatprep.subr.mxu0 0.0
        %4745 = vmatpush1.msra.mxu0 0.0
        %4746 = vmatprep.subr.mxu0 0.0
        %4747 = vmatpush1.msra.mxu0 0.0
        %4748 = vmatprep.subr.mxu0 0.0
        %4749 = vmatpush1.msra.mxu0 0.0
        %4750 = vmatprep.subr.mxu0 0.0
        %4751 = vmatpush1.msra.mxu0 0.0
        %4752 = vmatprep.subr.mxu0 0.0
        %4753 = vmatpush1.msra.mxu0 0.0
        %4754 = vmatprep.subr.mxu0 0.0
        %4755 = vmatpush1.msra.mxu0 0.0
        %4756 = vmatprep.subr.mxu0 0.0
        %4757 = vmatpush1.msra.mxu0 0.0
        %4758 = vmatprep.subr.mxu0 0.0
        %4759 = vmatpush1.msra.mxu0 0.0
        %4760 = vmatprep.subr.mxu0 0.0
        %4761 = vmatpush1.msra.mxu0 0.0
        %4762 = vmatprep.subr.mxu0 0.0
        %4763 = vmatpush1.msra.mxu0 0.0
        %4764 = vmatprep.subr.mxu0 0.0
        %4765 = vmatpush1.msra.mxu0 0.0
        %4766 = vmatprep.mubr.f32.mxu0 0.0
        %4767 = vmatmul.mubr.f32.gmra.mrb[0].mxu0 %v4697
        %v4768 = vpop.f32.mrb[0].mxu0
        %v4769 = vadd.f32 %v4690, %v4768
        %v4770 = vpop.f32.mrb[0].mxu0
        %v4771 = vadd.f32 %v4690, %v4770
        %4772 = vmatprep.mubr.f32.mxu0 0.0
        %4773 = vmatmul.mubr.f32.gmra.mrb[0].mxu0 %v4700
        %v4774 = vpop.f32.mrb[0].mxu0
        %v4775 = vadd.f32 %v4694, %v4774
        %v4776 = vpop.f32.mrb[0].mxu0
        %v4777 = vadd.f32 %v4694, %v4776
        %4778 = vdwg.mxu0
        %vm4779 = vcmp.gt.f32.partialorder %v4769, 0.0
        %vm4780 = vcmp.gt.f32.partialorder %v4771, 0.0
        %vm4781 = vcmp.gt.f32.partialorder %v4775, 0.0
        %vm4782 = vcmp.gt.f32.partialorder %v4777, 0.0
        %v4783 = vmul.f32 %v4769, 0.01
        %v4784 = vmul.f32 %v4771, 0.01
        %v4785 = vmul.f32 %v4775, 0.01
        %v4786 = vmul.f32 %v4777, 0.01
        %v4787 = vsel %vm4779, %v4769, %v4783
        %v4788 = vsel %vm4780, %v4771, %v4784
        %v4789 = vsel %vm4781, %v4775, %v4785
        %v4790 = vsel %vm4782, %v4777, %v4786
        %s4791 = scalar_lea.vmem %s3, 18
        %v4792 = vld [vmem:[%s4791] sm:$0x3]
        %s4793 = scalar_lea.vmem %s4, 18
        %v4794 = vld [vmem:[%s4793] sm:$0x3]
        %4796 = vset.pattern.permute.xlu0 0
        %4797 = vperm.xlu0 %4796, %v4794
        %v4798 = vpop.permute.xlu0 %4797
        %v4801 = vsel %vm344, %v4792, 0
        %4803 = vmatprep.subr.mxu0 %v4788
        %4804 = vmatpush1.msra.mxu0 %v4787
        %4805 = vmatprep.subr.mxu0 %v4790
        %4806 = vmatpush1.msra.mxu0 %v4789
        %4807 = vmatprep.subr.mxu0 0.0
        %4808 = vmatpush1.msra.mxu0 0.0
        %4809 = vmatprep.subr.mxu0 0.0
        %4810 = vmatpush1.msra.mxu0 0.0
        %4811 = vmatprep.subr.mxu0 0.0
        %4812 = vmatpush1.msra.mxu0 0.0
        %4813 = vmatprep.subr.mxu0 0.0
        %4814 = vmatpush1.msra.mxu0 0.0
        %4815 = vmatprep.subr.mxu0 0.0
        %4816 = vmatpush1.msra.mxu0 0.0
        %4817 = vmatprep.subr.mxu0 0.0
        %4818 = vmatpush1.msra.mxu0 0.0
        %4819 = vmatprep.subr.mxu0 0.0
        %4820 = vmatpush1.msra.mxu0 0.0
        %4821 = vmatprep.subr.mxu0 0.0
        %4822 = vmatpush1.msra.mxu0 0.0
        %4823 = vmatprep.subr.mxu0 0.0
        %4824 = vmatpush1.msra.mxu0 0.0
        %4825 = vmatprep.subr.mxu0 0.0
        %4826 = vmatpush1.msra.mxu0 0.0
        %4827 = vmatprep.subr.mxu0 0.0
        %4828 = vmatpush1.msra.mxu0 0.0
        %4829 = vmatprep.subr.mxu0 0.0
        %4830 = vmatpush1.msra.mxu0 0.0
        %4831 = vmatprep.subr.mxu0 0.0
        %4832 = vmatpush1.msra.mxu0 0.0
        %4833 = vmatprep.subr.mxu0 0.0
        %4834 = vmatpush1.msra.mxu0 0.0
        %4835 = vmatprep.subr.mxu0 0.0
        %4836 = vmatpush1.msra.mxu0 0.0
        %4837 = vmatprep.subr.mxu0 0.0
        %4838 = vmatpush1.msra.mxu0 0.0
        %4839 = vmatprep.subr.mxu0 0.0
        %4840 = vmatpush1.msra.mxu0 0.0
        %4841 = vmatprep.subr.mxu0 0.0
        %4842 = vmatpush1.msra.mxu0 0.0
        %4843 = vmatprep.subr.mxu0 0.0
        %4844 = vmatpush1.msra.mxu0 0.0
        %4845 = vmatprep.subr.mxu0 0.0
        %4846 = vmatpush1.msra.mxu0 0.0
        %4847 = vmatprep.subr.mxu0 0.0
        %4848 = vmatpush1.msra.mxu0 0.0
        %4849 = vmatprep.subr.mxu0 0.0
        %4850 = vmatpush1.msra.mxu0 0.0
        %4851 = vmatprep.subr.mxu0 0.0
        %4852 = vmatpush1.msra.mxu0 0.0
        %4853 = vmatprep.subr.mxu0 0.0
        %4854 = vmatpush1.msra.mxu0 0.0
        %4855 = vmatprep.subr.mxu0 0.0
        %4856 = vmatpush1.msra.mxu0 0.0
        %4857 = vmatprep.subr.mxu0 0.0
        %4858 = vmatpush1.msra.mxu0 0.0
        %4859 = vmatprep.subr.mxu0 0.0
        %4860 = vmatpush1.msra.mxu0 0.0
        %4861 = vmatprep.subr.mxu0 0.0
        %4862 = vmatpush1.msra.mxu0 0.0
        %4863 = vmatprep.subr.mxu0 0.0
        %4864 = vmatpush1.msra.mxu0 0.0
        %4865 = vmatprep.subr.mxu0 0.0
        %4866 = vmatpush1.msra.mxu0 0.0
        %4867 = vmatprep.mubr.f32.mxu0 0.0
        %4868 = vmatmul.mubr.f32.gmra.mrb[0].mxu0 %v4801
        %v4869 = vpop.f32.mrb[0].mxu0
        %v4870 = vadd.f32 %v4798, %v4869
        %v4871 = vpop.f32.mrb[0].mxu0
        %v4872 = vadd.f32 %v4798, %v4871
        %4873 = vdwg.mxu0
        %v4874 = vmul.f32 %v4870, 1.442695
        %v4875 = vpow.pop %v4874
        %v4876 = vmul.f32 %v4872, 1.442695
        %v4877 = vpow.pop %v4876
        %v4878 = vmul.f32 %v4875, %v4428
        %v4879 = vmul.f32 %v4877, %v4429
        %v4882 = vrot.slane %v4870, 1
        %v4883 = vrot.slane %v4872, 1
        %v4886 = vadd.f32 %v4878, %v4882
        %v4887 = vadd.f32 %v4879, %v4883
        %v4888 = vadd.f32 %v4430, %v4870
        %v4889 = vadd.f32 %v4431, %v4872
        %s4890 = scalar_lea.vmem %s1, 160
        %v4891 = vld [vmem:[%s4890] sm:$0xff]
        %v4892 = vld [vmem:[%s4890 + $0x8] sm:$0xff]
        %4894 = vset.pattern.permute.xlu0 0
        %4895 = vperm.xlu0 %4894, %v4891
        %v4896 = vpop.permute.xlu0 %4895
        %4899 = vset.pattern.permute.xlu0 0
        %4900 = vperm.xlu0 %4899, %v4892
        %v4901 = vpop.permute.xlu0 %4900
        %v4903 = vlaneseq
        %v4904 = vshrl.u32 %v4903, 7
        %v4905 = vsub.s32 0, %v4904
        %v4906 = vrot.slane %v4886, %v4905
        %v4907 = vlaneseq
        %v4908 = vshrl.u32 %v4907, 7
        %v4909 = vsub.s32 0, %v4908
        %v4910 = vrot.slane %v4887, %v4909
        %v4911 = vmul.f32 %v4896, %v4906
        %v4912 = vmul.f32 %v4896, %v4910
        %v4913 = vmul.f32 %v4901, %v4906
        %v4914 = vmul.f32 %v4901, %v4910
        %4915 = vset.pattern.permute.xlu0 1
        %4916 = vperm.xlu0 %4915, %v4891
        %v4917 = vpop.permute.xlu0 %4916
        %4919 = vset.pattern.permute.xlu0 1
        %4920 = vperm.xlu0 %4919, %v4892
        %v4921 = vpop.permute.xlu0 %4920
        %v4923 = vadd.f32 %v4911, %v4917
        %v4924 = vadd.f32 %v4912, %v4917
        %v4925 = vadd.f32 %v4913, %v4921
        %v4926 = vadd.f32 %v4914, %v4921
        %vm4927 = vcmp.gt.f32.partialorder %v4923, 0.0
        %vm4928 = vcmp.gt.f32.partialorder %v4924, 0.0
        %vm4929 = vcmp.gt.f32.partialorder %v4925, 0.0
        %vm4930 = vcmp.gt.f32.partialorder %v4926, 0.0
        %v4931 = vmul.f32 %v4923, 0.01
        %v4932 = vmul.f32 %v4924, 0.01
        %v4933 = vmul.f32 %v4925, 0.01
        %v4934 = vmul.f32 %v4926, 0.01
        %v4935 = vsel %vm4927, %v4923, %v4931
        %v4936 = vsel %vm4928, %v4924, %v4932
        %v4937 = vsel %vm4929, %v4925, %v4933
        %v4938 = vsel %vm4930, %v4926, %v4934
        %s4939 = scalar_lea.vmem [#allocation2], 480
        %v4940 = vld [vmem:[%s4939] sm:$0xff]
        %v4941 = vld [vmem:[%s4939 + $0x8] sm:$0xff]
        %4942 = vset.pattern.permute.xlu0 2
        %4943 = vperm.xlu0 %4942, %v4891
        %v4944 = vpop.permute.xlu0 %4943
        %4946 = vset.pattern.permute.xlu0 2
        %4947 = vperm.xlu0 %4946, %v4892
        %v4948 = vpop.permute.xlu0 %4947
        %v4951 = vsel %vm344, %v4940, 0
        %v4954 = vsel %vm344, %v4941, 0
        %4956 = vmatprep.subr.mxu0 %v4936
        %4957 = vmatpush1.msra.mxu0 %v4935
        %4958 = vmatprep.subr.mxu0 %v4938
        %4959 = vmatpush1.msra.mxu0 %v4937
        %4960 = vmatprep.subr.mxu0 0.0
        %4961 = vmatpush1.msra.mxu0 0.0
        %4962 = vmatprep.subr.mxu0 0.0
        %4963 = vmatpush1.msra.mxu0 0.0
        %4964 = vmatprep.subr.mxu0 0.0
        %4965 = vmatpush1.msra.mxu0 0.0
        %4966 = vmatprep.subr.mxu0 0.0
        %4967 = vmatpush1.msra.mxu0 0.0
        %4968 = vmatprep.subr.mxu0 0.0
        %4969 = vmatpush1.msra.mxu0 0.0
        %4970 = vmatprep.subr.mxu0 0.0
        %4971 = vmatpush1.msra.mxu0 0.0
        %4972 = vmatprep.subr.mxu0 0.0
        %4973 = vmatpush1.msra.mxu0 0.0
        %4974 = vmatprep.subr.mxu0 0.0
        %4975 = vmatpush1.msra.mxu0 0.0
        %4976 = vmatprep.subr.mxu0 0.0
        %4977 = vmatpush1.msra.mxu0 0.0
        %4978 = vmatprep.subr.mxu0 0.0
        %4979 = vmatpush1.msra.mxu0 0.0
        %4980 = vmatprep.subr.mxu0 0.0
        %4981 = vmatpush1.msra.mxu0 0.0
        %4982 = vmatprep.subr.mxu0 0.0
        %4983 = vmatpush1.msra.mxu0 0.0
        %4984 = vmatprep.subr.mxu0 0.0
        %4985 = vmatpush1.msra.mxu0 0.0
        %4986 = vmatprep.subr.mxu0 0.0
        %4987 = vmatpush1.msra.mxu0 0.0
        %4988 = vmatprep.subr.mxu0 0.0
        %4989 = vmatpush1.msra.mxu0 0.0
        %4990 = vmatprep.subr.mxu0 0.0
        %4991 = vmatpush1.msra.mxu0 0.0
        %4992 = vmatprep.subr.mxu0 0.0
        %4993 = vmatpush1.msra.mxu0 0.0
        %4994 = vmatprep.subr.mxu0 0.0
        %4995 = vmatpush1.msra.mxu0 0.0
        %4996 = vmatprep.subr.mxu0 0.0
        %4997 = vmatpush1.msra.mxu0 0.0
        %4998 = vmatprep.subr.mxu0 0.0
        %4999 = vmatpush1.msra.mxu0 0.0
        %5000 = vmatprep.subr.mxu0 0.0
        %5001 = vmatpush1.msra.mxu0 0.0
        %5002 = vmatprep.subr.mxu0 0.0
        %5003 = vmatpush1.msra.mxu0 0.0
        %5004 = vmatprep.subr.mxu0 0.0
        %5005 = vmatpush1.msra.mxu0 0.0
        %5006 = vmatprep.subr.mxu0 0.0
        %5007 = vmatpush1.msra.mxu0 0.0
        %5008 = vmatprep.subr.mxu0 0.0
        %5009 = vmatpush1.msra.mxu0 0.0
        %5010 = vmatprep.subr.mxu0 0.0
        %5011 = vmatpush1.msra.mxu0 0.0
        %5012 = vmatprep.subr.mxu0 0.0
        %5013 = vmatpush1.msra.mxu0 0.0
        %5014 = vmatprep.subr.mxu0 0.0
        %5015 = vmatpush1.msra.mxu0 0.0
        %5016 = vmatprep.subr.mxu0 0.0
        %5017 = vmatpush1.msra.mxu0 0.0
        %5018 = vmatprep.subr.mxu0 0.0
        %5019 = vmatpush1.msra.mxu0 0.0
        %5020 = vmatprep.mubr.f32.mxu0 0.0
        %5021 = vmatmul.mubr.f32.gmra.mrb[0].mxu0 %v4951
        %v5022 = vpop.f32.mrb[0].mxu0
        %v5023 = vadd.f32 %v4944, %v5022
        %v5024 = vpop.f32.mrb[0].mxu0
        %v5025 = vadd.f32 %v4944, %v5024
        %5026 = vmatprep.mubr.f32.mxu0 0.0
        %5027 = vmatmul.mubr.f32.gmra.mrb[0].mxu0 %v4954
        %v5028 = vpop.f32.mrb[0].mxu0
        %v5029 = vadd.f32 %v4948, %v5028
        %v5030 = vpop.f32.mrb[0].mxu0
        %v5031 = vadd.f32 %v4948, %v5030
        %5032 = vdwg.mxu0
        %vm5033 = vcmp.gt.f32.partialorder %v5023, 0.0
        %vm5034 = vcmp.gt.f32.partialorder %v5025, 0.0
        %vm5035 = vcmp.gt.f32.partialorder %v5029, 0.0
        %vm5036 = vcmp.gt.f32.partialorder %v5031, 0.0
        %v5037 = vmul.f32 %v5023, 0.01
        %v5038 = vmul.f32 %v5025, 0.01
        %v5039 = vmul.f32 %v5029, 0.01
        %v5040 = vmul.f32 %v5031, 0.01
        %v5041 = vsel %vm5033, %v5023, %v5037
        %v5042 = vsel %vm5034, %v5025, %v5038
        %v5043 = vsel %vm5035, %v5029, %v5039
        %v5044 = vsel %vm5036, %v5031, %v5040
        %s5045 = scalar_lea.vmem [#allocation2], 496
        %v5046 = vld [vmem:[%s5045] sm:$0xff]
        %v5047 = vld [vmem:[%s5045 + $0x8] sm:$0xff]
        %5048 = vset.pattern.permute.xlu0 3
        %5049 = vperm.xlu0 %5048, %v4891
        %v5050 = vpop.permute.xlu0 %5049
        %5052 = vset.pattern.permute.xlu0 3
        %5053 = vperm.xlu0 %5052, %v4892
        %v5054 = vpop.permute.xlu0 %5053
        %v5057 = vsel %vm344, %v5046, 0
        %v5060 = vsel %vm344, %v5047, 0
        %5062 = vmatprep.subr.mxu0 %v5042
        %5063 = vmatpush1.msra.mxu0 %v5041
        %5064 = vmatprep.subr.mxu0 %v5044
        %5065 = vmatpush1.msra.mxu0 %v5043
        %5066 = vmatprep.subr.mxu0 0.0
        %5067 = vmatpush1.msra.mxu0 0.0
        %5068 = vmatprep.subr.mxu0 0.0
        %5069 = vmatpush1.msra.mxu0 0.0
        %5070 = vmatprep.subr.mxu0 0.0
        %5071 = vmatpush1.msra.mxu0 0.0
        %5072 = vmatprep.subr.mxu0 0.0
        %5073 = vmatpush1.msra.mxu0 0.0
        %5074 = vmatprep.subr.mxu0 0.0
        %5075 = vmatpush1.msra.mxu0 0.0
        %5076 = vmatprep.subr.mxu0 0.0
        %5077 = vmatpush1.msra.mxu0 0.0
        %5078 = vmatprep.subr.mxu0 0.0
        %5079 = vmatpush1.msra.mxu0 0.0
        %5080 = vmatprep.subr.mxu0 0.0
        %5081 = vmatpush1.msra.mxu0 0.0
        %5082 = vmatprep.subr.mxu0 0.0
        %5083 = vmatpush1.msra.mxu0 0.0
        %5084 = vmatprep.subr.mxu0 0.0
        %5085 = vmatpush1.msra.mxu0 0.0
        %5086 = vmatprep.subr.mxu0 0.0
        %5087 = vmatpush1.msra.mxu0 0.0
        %5088 = vmatprep.subr.mxu0 0.0
        %5089 = vmatpush1.msra.mxu0 0.0
        %5090 = vmatprep.subr.mxu0 0.0
        %5091 = vmatpush1.msra.mxu0 0.0
        %5092 = vmatprep.subr.mxu0 0.0
        %5093 = vmatpush1.msra.mxu0 0.0
        %5094 = vmatprep.subr.mxu0 0.0
        %5095 = vmatpush1.msra.mxu0 0.0
        %5096 = vmatprep.subr.mxu0 0.0
        %5097 = vmatpush1.msra.mxu0 0.0
        %5098 = vmatprep.subr.mxu0 0.0
        %5099 = vmatpush1.msra.mxu0 0.0
        %5100 = vmatprep.subr.mxu0 0.0
        %5101 = vmatpush1.msra.mxu0 0.0
        %5102 = vmatprep.subr.mxu0 0.0
        %5103 = vmatpush1.msra.mxu0 0.0
        %5104 = vmatprep.subr.mxu0 0.0
        %5105 = vmatpush1.msra.mxu0 0.0
        %5106 = vmatprep.subr.mxu0 0.0
        %5107 = vmatpush1.msra.mxu0 0.0
        %5108 = vmatprep.subr.mxu0 0.0
        %5109 = vmatpush1.msra.mxu0 0.0
        %5110 = vmatprep.subr.mxu0 0.0
        %5111 = vmatpush1.msra.mxu0 0.0
        %5112 = vmatprep.subr.mxu0 0.0
        %5113 = vmatpush1.msra.mxu0 0.0
        %5114 = vmatprep.subr.mxu0 0.0
        %5115 = vmatpush1.msra.mxu0 0.0
        %5116 = vmatprep.subr.mxu0 0.0
        %5117 = vmatpush1.msra.mxu0 0.0
        %5118 = vmatprep.subr.mxu0 0.0
        %5119 = vmatpush1.msra.mxu0 0.0
        %5120 = vmatprep.subr.mxu0 0.0
        %5121 = vmatpush1.msra.mxu0 0.0
        %5122 = vmatprep.subr.mxu0 0.0
        %5123 = vmatpush1.msra.mxu0 0.0
        %5124 = vmatprep.subr.mxu0 0.0
        %5125 = vmatpush1.msra.mxu0 0.0
        %5126 = vmatprep.mubr.f32.mxu0 0.0
        %5127 = vmatmul.mubr.f32.gmra.mrb[0].mxu0 %v5057
        %v5128 = vpop.f32.mrb[0].mxu0
        %v5129 = vadd.f32 %v5050, %v5128
        %v5130 = vpop.f32.mrb[0].mxu0
        %v5131 = vadd.f32 %v5050, %v5130
        %5132 = vmatprep.mubr.f32.mxu0 0.0
        %5133 = vmatmul.mubr.f32.gmra.mrb[0].mxu0 %v5060
        %v5134 = vpop.f32.mrb[0].mxu0
        %v5135 = vadd.f32 %v5054, %v5134
        %v5136 = vpop.f32.mrb[0].mxu0
        %v5137 = vadd.f32 %v5054, %v5136
        %5138 = vdwg.mxu0
        %vm5139 = vcmp.gt.f32.partialorder %v5129, 0.0
        %vm5140 = vcmp.gt.f32.partialorder %v5131, 0.0
        %vm5141 = vcmp.gt.f32.partialorder %v5135, 0.0
        %vm5142 = vcmp.gt.f32.partialorder %v5137, 0.0
        %v5143 = vmul.f32 %v5129, 0.01
        %v5144 = vmul.f32 %v5131, 0.01
        %v5145 = vmul.f32 %v5135, 0.01
        %v5146 = vmul.f32 %v5137, 0.01
        %v5147 = vsel %vm5139, %v5129, %v5143
        %v5148 = vsel %vm5140, %v5131, %v5144
        %v5149 = vsel %vm5141, %v5135, %v5145
        %v5150 = vsel %vm5142, %v5137, %v5146
        %s5151 = scalar_lea.vmem [#allocation2], 512
        %v5152 = vld [vmem:[%s5151] sm:$0xff]
        %v5153 = vld [vmem:[%s5151 + $0x8] sm:$0xff]
        %5154 = vset.pattern.permute.xlu0 4
        %5155 = vperm.xlu0 %5154, %v4891
        %v5156 = vpop.permute.xlu0 %5155
        %5158 = vset.pattern.permute.xlu0 4
        %5159 = vperm.xlu0 %5158, %v4892
        %v5160 = vpop.permute.xlu0 %5159
        %v5163 = vsel %vm344, %v5152, 0
        %v5166 = vsel %vm344, %v5153, 0
        %5168 = vmatprep.subr.mxu0 %v5148
        %5169 = vmatpush1.msra.mxu0 %v5147
        %5170 = vmatprep.subr.mxu0 %v5150
        %5171 = vmatpush1.msra.mxu0 %v5149
        %5172 = vmatprep.subr.mxu0 0.0
        %5173 = vmatpush1.msra.mxu0 0.0
        %5174 = vmatprep.subr.mxu0 0.0
        %5175 = vmatpush1.msra.mxu0 0.0
        %5176 = vmatprep.subr.mxu0 0.0
        %5177 = vmatpush1.msra.mxu0 0.0
        %5178 = vmatprep.subr.mxu0 0.0
        %5179 = vmatpush1.msra.mxu0 0.0
        %5180 = vmatprep.subr.mxu0 0.0
        %5181 = vmatpush1.msra.mxu0 0.0
        %5182 = vmatprep.subr.mxu0 0.0
        %5183 = vmatpush1.msra.mxu0 0.0
        %5184 = vmatprep.subr.mxu0 0.0
        %5185 = vmatpush1.msra.mxu0 0.0
        %5186 = vmatprep.subr.mxu0 0.0
        %5187 = vmatpush1.msra.mxu0 0.0
        %5188 = vmatprep.subr.mxu0 0.0
        %5189 = vmatpush1.msra.mxu0 0.0
        %5190 = vmatprep.subr.mxu0 0.0
        %5191 = vmatpush1.msra.mxu0 0.0
        %5192 = vmatprep.subr.mxu0 0.0
        %5193 = vmatpush1.msra.mxu0 0.0
        %5194 = vmatprep.subr.mxu0 0.0
        %5195 = vmatpush1.msra.mxu0 0.0
        %5196 = vmatprep.subr.mxu0 0.0
        %5197 = vmatpush1.msra.mxu0 0.0
        %5198 = vmatprep.subr.mxu0 0.0
        %5199 = vmatpush1.msra.mxu0 0.0
        %5200 = vmatprep.subr.mxu0 0.0
        %5201 = vmatpush1.msra.mxu0 0.0
        %5202 = vmatprep.subr.mxu0 0.0
        %5203 = vmatpush1.msra.mxu0 0.0
        %5204 = vmatprep.subr.mxu0 0.0
        %5205 = vmatpush1.msra.mxu0 0.0
        %5206 = vmatprep.subr.mxu0 0.0
        %5207 = vmatpush1.msra.mxu0 0.0
        %5208 = vmatprep.subr.mxu0 0.0
        %5209 = vmatpush1.msra.mxu0 0.0
        %5210 = vmatprep.subr.mxu0 0.0
        %5211 = vmatpush1.msra.mxu0 0.0
        %5212 = vmatprep.subr.mxu0 0.0
        %5213 = vmatpush1.msra.mxu0 0.0
        %5214 = vmatprep.subr.mxu0 0.0
        %5215 = vmatpush1.msra.mxu0 0.0
        %5216 = vmatprep.subr.mxu0 0.0
        %5217 = vmatpush1.msra.mxu0 0.0
        %5218 = vmatprep.subr.mxu0 0.0
        %5219 = vmatpush1.msra.mxu0 0.0
        %5220 = vmatprep.subr.mxu0 0.0
        %5221 = vmatpush1.msra.mxu0 0.0
        %5222 = vmatprep.subr.mxu0 0.0
        %5223 = vmatpush1.msra.mxu0 0.0
        %5224 = vmatprep.subr.mxu0 0.0
        %5225 = vmatpush1.msra.mxu0 0.0
        %5226 = vmatprep.subr.mxu0 0.0
        %5227 = vmatpush1.msra.mxu0 0.0
        %5228 = vmatprep.subr.mxu0 0.0
        %5229 = vmatpush1.msra.mxu0 0.0
        %5230 = vmatprep.subr.mxu0 0.0
        %5231 = vmatpush1.msra.mxu0 0.0
        %5232 = vmatprep.mubr.f32.mxu0 0.0
        %5233 = vmatmul.mubr.f32.gmra.mrb[0].mxu0 %v5163
        %v5234 = vpop.f32.mrb[0].mxu0
        %v5235 = vadd.f32 %v5156, %v5234
        %v5236 = vpop.f32.mrb[0].mxu0
        %v5237 = vadd.f32 %v5156, %v5236
        %5238 = vmatprep.mubr.f32.mxu0 0.0
        %5239 = vmatmul.mubr.f32.gmra.mrb[0].mxu0 %v5166
        %v5240 = vpop.f32.mrb[0].mxu0
        %v5241 = vadd.f32 %v5160, %v5240
        %v5242 = vpop.f32.mrb[0].mxu0
        %v5243 = vadd.f32 %v5160, %v5242
        %5244 = vdwg.mxu0
        %vm5245 = vcmp.gt.f32.partialorder %v5235, 0.0
        %vm5246 = vcmp.gt.f32.partialorder %v5237, 0.0
        %vm5247 = vcmp.gt.f32.partialorder %v5241, 0.0
        %vm5248 = vcmp.gt.f32.partialorder %v5243, 0.0
        %v5249 = vmul.f32 %v5235, 0.01
        %v5250 = vmul.f32 %v5237, 0.01
        %v5251 = vmul.f32 %v5241, 0.01
        %v5252 = vmul.f32 %v5243, 0.01
        %v5253 = vsel %vm5245, %v5235, %v5249
        %v5254 = vsel %vm5246, %v5237, %v5250
        %v5255 = vsel %vm5247, %v5241, %v5251
        %v5256 = vsel %vm5248, %v5243, %v5252
        %s5257 = scalar_lea.vmem %s3, 20
        %v5258 = vld [vmem:[%s5257] sm:$0x3]
        %s5259 = scalar_lea.vmem %s4, 20
        %v5260 = vld [vmem:[%s5259] sm:$0x3]
        %5262 = vset.pattern.permute.xlu0 0
        %5263 = vperm.xlu0 %5262, %v5260
        %v5264 = vpop.permute.xlu0 %5263
        %v5267 = vsel %vm344, %v5258, 0
        %5269 = vmatprep.subr.mxu0 %v5254
        %5270 = vmatpush1.msra.mxu0 %v5253
        %5271 = vmatprep.subr.mxu0 %v5256
        %5272 = vmatpush1.msra.mxu0 %v5255
        %5273 = vmatprep.subr.mxu0 0.0
        %5274 = vmatpush1.msra.mxu0 0.0
        %5275 = vmatprep.subr.mxu0 0.0
        %5276 = vmatpush1.msra.mxu0 0.0
        %5277 = vmatprep.subr.mxu0 0.0
        %5278 = vmatpush1.msra.mxu0 0.0
        %5279 = vmatprep.subr.mxu0 0.0
        %5280 = vmatpush1.msra.mxu0 0.0
        %5281 = vmatprep.subr.mxu0 0.0
        %5282 = vmatpush1.msra.mxu0 0.0
        %5283 = vmatprep.subr.mxu0 0.0
        %5284 = vmatpush1.msra.mxu0 0.0
        %5285 = vmatprep.subr.mxu0 0.0
        %5286 = vmatpush1.msra.mxu0 0.0
        %5287 = vmatprep.subr.mxu0 0.0
        %5288 = vmatpush1.msra.mxu0 0.0
        %5289 = vmatprep.subr.mxu0 0.0
        %5290 = vmatpush1.msra.mxu0 0.0
        %5291 = vmatprep.subr.mxu0 0.0
        %5292 = vmatpush1.msra.mxu0 0.0
        %5293 = vmatprep.subr.mxu0 0.0
        %5294 = vmatpush1.msra.mxu0 0.0
        %5295 = vmatprep.subr.mxu0 0.0
        %5296 = vmatpush1.msra.mxu0 0.0
        %5297 = vmatprep.subr.mxu0 0.0
        %5298 = vmatpush1.msra.mxu0 0.0
        %5299 = vmatprep.subr.mxu0 0.0
        %5300 = vmatpush1.msra.mxu0 0.0
        %5301 = vmatprep.subr.mxu0 0.0
        %5302 = vmatpush1.msra.mxu0 0.0
        %5303 = vmatprep.subr.mxu0 0.0
        %5304 = vmatpush1.msra.mxu0 0.0
        %5305 = vmatprep.subr.mxu0 0.0
        %5306 = vmatpush1.msra.mxu0 0.0
        %5307 = vmatprep.subr.mxu0 0.0
        %5308 = vmatpush1.msra.mxu0 0.0
        %5309 = vmatprep.subr.mxu0 0.0
        %5310 = vmatpush1.msra.mxu0 0.0
        %5311 = vmatprep.subr.mxu0 0.0
        %5312 = vmatpush1.msra.mxu0 0.0
        %5313 = vmatprep.subr.mxu0 0.0
        %5314 = vmatpush1.msra.mxu0 0.0
        %5315 = vmatprep.subr.mxu0 0.0
        %5316 = vmatpush1.msra.mxu0 0.0
        %5317 = vmatprep.subr.mxu0 0.0
        %5318 = vmatpush1.msra.mxu0 0.0
        %5319 = vmatprep.subr.mxu0 0.0
        %5320 = vmatpush1.msra.mxu0 0.0
        %5321 = vmatprep.subr.mxu0 0.0
        %5322 = vmatpush1.msra.mxu0 0.0
        %5323 = vmatprep.subr.mxu0 0.0
        %5324 = vmatpush1.msra.mxu0 0.0
        %5325 = vmatprep.subr.mxu0 0.0
        %5326 = vmatpush1.msra.mxu0 0.0
        %5327 = vmatprep.subr.mxu0 0.0
        %5328 = vmatpush1.msra.mxu0 0.0
        %5329 = vmatprep.subr.mxu0 0.0
        %5330 = vmatpush1.msra.mxu0 0.0
        %5331 = vmatprep.subr.mxu0 0.0
        %5332 = vmatpush1.msra.mxu0 0.0
        %5333 = vmatprep.mubr.f32.mxu0 0.0
        %5334 = vmatmul.mubr.f32.gmra.mrb[0].mxu0 %v5267
        %v5335 = vpop.f32.mrb[0].mxu0
        %v5336 = vadd.f32 %v5264, %v5335
        %v5337 = vpop.f32.mrb[0].mxu0
        %v5338 = vadd.f32 %v5264, %v5337
        %5339 = vdwg.mxu0
        %v5340 = vmul.f32 %v5336, 1.442695
        %v5341 = vpow.pop %v5340
        %v5342 = vmul.f32 %v5338, 1.442695
        %v5343 = vpow.pop %v5342
        %v5344 = vmul.f32 %v5341, %v3046
        %v5345 = vmul.f32 %v5343, %v3047
        %v5348 = vrot.slane %v5336, 1
        %v5349 = vrot.slane %v5338, 1
        %v5352 = vadd.f32 %v5344, %v5348
        %v5353 = vadd.f32 %v5345, %v5349
        %v5354 = vadd.f32 %v4888, %v5336
        %v5355 = vadd.f32 %v4889, %v5338
        %s5356 = scalar_lea.vmem %s1, 176
        %v5357 = vld [vmem:[%s5356] sm:$0xff]
        %v5358 = vld [vmem:[%s5356 + $0x8] sm:$0xff]
        %5360 = vset.pattern.permute.xlu0 0
        %5361 = vperm.xlu0 %5360, %v5357
        %v5362 = vpop.permute.xlu0 %5361
        %5365 = vset.pattern.permute.xlu0 0
        %5366 = vperm.xlu0 %5365, %v5358
        %v5367 = vpop.permute.xlu0 %5366
        %v5369 = vmul.f32 %v5362, %v4906
        %v5370 = vmul.f32 %v5362, %v4910
        %v5371 = vmul.f32 %v5367, %v4906
        %v5372 = vmul.f32 %v5367, %v4910
        %5373 = vset.pattern.permute.xlu0 1
        %5374 = vperm.xlu0 %5373, %v5357
        %v5375 = vpop.permute.xlu0 %5374
        %5377 = vset.pattern.permute.xlu0 1
        %5378 = vperm.xlu0 %5377, %v5358
        %v5379 = vpop.permute.xlu0 %5378
        %v5381 = vadd.f32 %v5369, %v5375
        %v5382 = vadd.f32 %v5370, %v5375
        %v5383 = vadd.f32 %v5371, %v5379
        %v5384 = vadd.f32 %v5372, %v5379
        %vm5385 = vcmp.gt.f32.partialorder %v5381, 0.0
        %vm5386 = vcmp.gt.f32.partialorder %v5382, 0.0
        %vm5387 = vcmp.gt.f32.partialorder %v5383, 0.0
        %vm5388 = vcmp.gt.f32.partialorder %v5384, 0.0
        %v5389 = vmul.f32 %v5381, 0.01
        %v5390 = vmul.f32 %v5382, 0.01
        %v5391 = vmul.f32 %v5383, 0.01
        %v5392 = vmul.f32 %v5384, 0.01
        %v5393 = vsel %vm5385, %v5381, %v5389
        %v5394 = vsel %vm5386, %v5382, %v5390
        %v5395 = vsel %vm5387, %v5383, %v5391
        %v5396 = vsel %vm5388, %v5384, %v5392
        %s5397 = scalar_lea.vmem [#allocation2], 528
        %v5398 = vld [vmem:[%s5397] sm:$0xff]
        %v5399 = vld [vmem:[%s5397 + $0x8] sm:$0xff]
        %5400 = vset.pattern.permute.xlu0 2
        %5401 = vperm.xlu0 %5400, %v5357
        %v5402 = vpop.permute.xlu0 %5401
        %5404 = vset.pattern.permute.xlu0 2
        %5405 = vperm.xlu0 %5404, %v5358
        %v5406 = vpop.permute.xlu0 %5405
        %v5409 = vsel %vm344, %v5398, 0
        %v5412 = vsel %vm344, %v5399, 0
        %5414 = vmatprep.subr.mxu0 %v5394
        %5415 = vmatpush1.msra.mxu0 %v5393
        %5416 = vmatprep.subr.mxu0 %v5396
        %5417 = vmatpush1.msra.mxu0 %v5395
        %5418 = vmatprep.subr.mxu0 0.0
        %5419 = vmatpush1.msra.mxu0 0.0
        %5420 = vmatprep.subr.mxu0 0.0
        %5421 = vmatpush1.msra.mxu0 0.0
        %5422 = vmatprep.subr.mxu0 0.0
        %5423 = vmatpush1.msra.mxu0 0.0
        %5424 = vmatprep.subr.mxu0 0.0
        %5425 = vmatpush1.msra.mxu0 0.0
        %5426 = vmatprep.subr.mxu0 0.0
        %5427 = vmatpush1.msra.mxu0 0.0
        %5428 = vmatprep.subr.mxu0 0.0
        %5429 = vmatpush1.msra.mxu0 0.0
        %5430 = vmatprep.subr.mxu0 0.0
        %5431 = vmatpush1.msra.mxu0 0.0
        %5432 = vmatprep.subr.mxu0 0.0
        %5433 = vmatpush1.msra.mxu0 0.0
        %5434 = vmatprep.subr.mxu0 0.0
        %5435 = vmatpush1.msra.mxu0 0.0
        %5436 = vmatprep.subr.mxu0 0.0
        %5437 = vmatpush1.msra.mxu0 0.0
        %5438 = vmatprep.subr.mxu0 0.0
        %5439 = vmatpush1.msra.mxu0 0.0
        %5440 = vmatprep.subr.mxu0 0.0
        %5441 = vmatpush1.msra.mxu0 0.0
        %5442 = vmatprep.subr.mxu0 0.0
        %5443 = vmatpush1.msra.mxu0 0.0
        %5444 = vmatprep.subr.mxu0 0.0
        %5445 = vmatpush1.msra.mxu0 0.0
        %5446 = vmatprep.subr.mxu0 0.0
        %5447 = vmatpush1.msra.mxu0 0.0
        %5448 = vmatprep.subr.mxu0 0.0
        %5449 = vmatpush1.msra.mxu0 0.0
        %5450 = vmatprep.subr.mxu0 0.0
        %5451 = vmatpush1.msra.mxu0 0.0
        %5452 = vmatprep.subr.mxu0 0.0
        %5453 = vmatpush1.msra.mxu0 0.0
        %5454 = vmatprep.subr.mxu0 0.0
        %5455 = vmatpush1.msra.mxu0 0.0
        %5456 = vmatprep.subr.mxu0 0.0
        %5457 = vmatpush1.msra.mxu0 0.0
        %5458 = vmatprep.subr.mxu0 0.0
        %5459 = vmatpush1.msra.mxu0 0.0
        %5460 = vmatprep.subr.mxu0 0.0
        %5461 = vmatpush1.msra.mxu0 0.0
        %5462 = vmatprep.subr.mxu0 0.0
        %5463 = vmatpush1.msra.mxu0 0.0
        %5464 = vmatprep.subr.mxu0 0.0
        %5465 = vmatpush1.msra.mxu0 0.0
        %5466 = vmatprep.subr.mxu0 0.0
        %5467 = vmatpush1.msra.mxu0 0.0
        %5468 = vmatprep.subr.mxu0 0.0
        %5469 = vmatpush1.msra.mxu0 0.0
        %5470 = vmatprep.subr.mxu0 0.0
        %5471 = vmatpush1.msra.mxu0 0.0
        %5472 = vmatprep.subr.mxu0 0.0
        %5473 = vmatpush1.msra.mxu0 0.0
        %5474 = vmatprep.subr.mxu0 0.0
        %5475 = vmatpush1.msra.mxu0 0.0
        %5476 = vmatprep.subr.mxu0 0.0
        %5477 = vmatpush1.msra.mxu0 0.0
        %5478 = vmatprep.mubr.f32.mxu0 0.0
        %5479 = vmatmul.mubr.f32.gmra.mrb[0].mxu0 %v5409
        %v5480 = vpop.f32.mrb[0].mxu0
        %v5481 = vadd.f32 %v5402, %v5480
        %v5482 = vpop.f32.mrb[0].mxu0
        %v5483 = vadd.f32 %v5402, %v5482
        %5484 = vmatprep.mubr.f32.mxu0 0.0
        %5485 = vmatmul.mubr.f32.gmra.mrb[0].mxu0 %v5412
        %v5486 = vpop.f32.mrb[0].mxu0
        %v5487 = vadd.f32 %v5406, %v5486
        %v5488 = vpop.f32.mrb[0].mxu0
        %v5489 = vadd.f32 %v5406, %v5488
        %5490 = vdwg.mxu0
        %vm5491 = vcmp.gt.f32.partialorder %v5481, 0.0
        %vm5492 = vcmp.gt.f32.partialorder %v5483, 0.0
        %vm5493 = vcmp.gt.f32.partialorder %v5487, 0.0
        %vm5494 = vcmp.gt.f32.partialorder %v5489, 0.0
        %v5495 = vmul.f32 %v5481, 0.01
        %v5496 = vmul.f32 %v5483, 0.01
        %v5497 = vmul.f32 %v5487, 0.01
        %v5498 = vmul.f32 %v5489, 0.01
        %v5499 = vsel %vm5491, %v5481, %v5495
        %v5500 = vsel %vm5492, %v5483, %v5496
        %v5501 = vsel %vm5493, %v5487, %v5497
        %v5502 = vsel %vm5494, %v5489, %v5498
        %s5503 = scalar_lea.vmem [#allocation2], 544
        %v5504 = vld [vmem:[%s5503] sm:$0xff]
        %v5505 = vld [vmem:[%s5503 + $0x8] sm:$0xff]
        %5506 = vset.pattern.permute.xlu0 3
        %5507 = vperm.xlu0 %5506, %v5357
        %v5508 = vpop.permute.xlu0 %5507
        %5510 = vset.pattern.permute.xlu0 3
        %5511 = vperm.xlu0 %5510, %v5358
        %v5512 = vpop.permute.xlu0 %5511
        %v5515 = vsel %vm344, %v5504, 0
        %v5518 = vsel %vm344, %v5505, 0
        %5520 = vmatprep.subr.mxu0 %v5500
        %5521 = vmatpush1.msra.mxu0 %v5499
        %5522 = vmatprep.subr.mxu0 %v5502
        %5523 = vmatpush1.msra.mxu0 %v5501
        %5524 = vmatprep.subr.mxu0 0.0
        %5525 = vmatpush1.msra.mxu0 0.0
        %5526 = vmatprep.subr.mxu0 0.0
        %5527 = vmatpush1.msra.mxu0 0.0
        %5528 = vmatprep.subr.mxu0 0.0
        %5529 = vmatpush1.msra.mxu0 0.0
        %5530 = vmatprep.subr.mxu0 0.0
        %5531 = vmatpush1.msra.mxu0 0.0
        %5532 = vmatprep.subr.mxu0 0.0
        %5533 = vmatpush1.msra.mxu0 0.0
        %5534 = vmatprep.subr.mxu0 0.0
        %5535 = vmatpush1.msra.mxu0 0.0
        %5536 = vmatprep.subr.mxu0 0.0
        %5537 = vmatpush1.msra.mxu0 0.0
        %5538 = vmatprep.subr.mxu0 0.0
        %5539 = vmatpush1.msra.mxu0 0.0
        %5540 = vmatprep.subr.mxu0 0.0
        %5541 = vmatpush1.msra.mxu0 0.0
        %5542 = vmatprep.subr.mxu0 0.0
        %5543 = vmatpush1.msra.mxu0 0.0
        %5544 = vmatprep.subr.mxu0 0.0
        %5545 = vmatpush1.msra.mxu0 0.0
        %5546 = vmatprep.subr.mxu0 0.0
        %5547 = vmatpush1.msra.mxu0 0.0
        %5548 = vmatprep.subr.mxu0 0.0
        %5549 = vmatpush1.msra.mxu0 0.0
        %5550 = vmatprep.subr.mxu0 0.0
        %5551 = vmatpush1.msra.mxu0 0.0
        %5552 = vmatprep.subr.mxu0 0.0
        %5553 = vmatpush1.msra.mxu0 0.0
        %5554 = vmatprep.subr.mxu0 0.0
        %5555 = vmatpush1.msra.mxu0 0.0
        %5556 = vmatprep.subr.mxu0 0.0
        %5557 = vmatpush1.msra.mxu0 0.0
        %5558 = vmatprep.subr.mxu0 0.0
        %5559 = vmatpush1.msra.mxu0 0.0
        %5560 = vmatprep.subr.mxu0 0.0
        %5561 = vmatpush1.msra.mxu0 0.0
        %5562 = vmatprep.subr.mxu0 0.0
        %5563 = vmatpush1.msra.mxu0 0.0
        %5564 = vmatprep.subr.mxu0 0.0
        %5565 = vmatpush1.msra.mxu0 0.0
        %5566 = vmatprep.subr.mxu0 0.0
        %5567 = vmatpush1.msra.mxu0 0.0
        %5568 = vmatprep.subr.mxu0 0.0
        %5569 = vmatpush1.msra.mxu0 0.0
        %5570 = vmatprep.subr.mxu0 0.0
        %5571 = vmatpush1.msra.mxu0 0.0
        %5572 = vmatprep.subr.mxu0 0.0
        %5573 = vmatpush1.msra.mxu0 0.0
        %5574 = vmatprep.subr.mxu0 0.0
        %5575 = vmatpush1.msra.mxu0 0.0
        %5576 = vmatprep.subr.mxu0 0.0
        %5577 = vmatpush1.msra.mxu0 0.0
        %5578 = vmatprep.subr.mxu0 0.0
        %5579 = vmatpush1.msra.mxu0 0.0
        %5580 = vmatprep.subr.mxu0 0.0
        %5581 = vmatpush1.msra.mxu0 0.0
        %5582 = vmatprep.subr.mxu0 0.0
        %5583 = vmatpush1.msra.mxu0 0.0
        %5584 = vmatprep.mubr.f32.mxu0 0.0
        %5585 = vmatmul.mubr.f32.gmra.mrb[0].mxu0 %v5515
        %v5586 = vpop.f32.mrb[0].mxu0
        %v5587 = vadd.f32 %v5508, %v5586
        %v5588 = vpop.f32.mrb[0].mxu0
        %v5589 = vadd.f32 %v5508, %v5588
        %5590 = vmatprep.mubr.f32.mxu0 0.0
        %5591 = vmatmul.mubr.f32.gmra.mrb[0].mxu0 %v5518
        %v5592 = vpop.f32.mrb[0].mxu0
        %v5593 = vadd.f32 %v5512, %v5592
        %v5594 = vpop.f32.mrb[0].mxu0
        %v5595 = vadd.f32 %v5512, %v5594
        %5596 = vdwg.mxu0
        %vm5597 = vcmp.gt.f32.partialorder %v5587, 0.0
        %vm5598 = vcmp.gt.f32.partialorder %v5589, 0.0
        %vm5599 = vcmp.gt.f32.partialorder %v5593, 0.0
        %vm5600 = vcmp.gt.f32.partialorder %v5595, 0.0
        %v5601 = vmul.f32 %v5587, 0.01
        %v5602 = vmul.f32 %v5589, 0.01
        %v5603 = vmul.f32 %v5593, 0.01
        %v5604 = vmul.f32 %v5595, 0.01
        %v5605 = vsel %vm5597, %v5587, %v5601
        %v5606 = vsel %vm5598, %v5589, %v5602
        %v5607 = vsel %vm5599, %v5593, %v5603
        %v5608 = vsel %vm5600, %v5595, %v5604
        %s5609 = scalar_lea.vmem [#allocation2], 560
        %v5610 = vld [vmem:[%s5609] sm:$0xff]
        %v5611 = vld [vmem:[%s5609 + $0x8] sm:$0xff]
        %5612 = vset.pattern.permute.xlu0 4
        %5613 = vperm.xlu0 %5612, %v5357
        %v5614 = vpop.permute.xlu0 %5613
        %5616 = vset.pattern.permute.xlu0 4
        %5617 = vperm.xlu0 %5616, %v5358
        %v5618 = vpop.permute.xlu0 %5617
        %v5621 = vsel %vm344, %v5610, 0
        %v5624 = vsel %vm344, %v5611, 0
        %5626 = vmatprep.subr.mxu0 %v5606
        %5627 = vmatpush1.msra.mxu0 %v5605
        %5628 = vmatprep.subr.mxu0 %v5608
        %5629 = vmatpush1.msra.mxu0 %v5607
        %5630 = vmatprep.subr.mxu0 0.0
        %5631 = vmatpush1.msra.mxu0 0.0
        %5632 = vmatprep.subr.mxu0 0.0
        %5633 = vmatpush1.msra.mxu0 0.0
        %5634 = vmatprep.subr.mxu0 0.0
        %5635 = vmatpush1.msra.mxu0 0.0
        %5636 = vmatprep.subr.mxu0 0.0
        %5637 = vmatpush1.msra.mxu0 0.0
        %5638 = vmatprep.subr.mxu0 0.0
        %5639 = vmatpush1.msra.mxu0 0.0
        %5640 = vmatprep.subr.mxu0 0.0
        %5641 = vmatpush1.msra.mxu0 0.0
        %5642 = vmatprep.subr.mxu0 0.0
        %5643 = vmatpush1.msra.mxu0 0.0
        %5644 = vmatprep.subr.mxu0 0.0
        %5645 = vmatpush1.msra.mxu0 0.0
        %5646 = vmatprep.subr.mxu0 0.0
        %5647 = vmatpush1.msra.mxu0 0.0
        %5648 = vmatprep.subr.mxu0 0.0
        %5649 = vmatpush1.msra.mxu0 0.0
        %5650 = vmatprep.subr.mxu0 0.0
        %5651 = vmatpush1.msra.mxu0 0.0
        %5652 = vmatprep.subr.mxu0 0.0
        %5653 = vmatpush1.msra.mxu0 0.0
        %5654 = vmatprep.subr.mxu0 0.0
        %5655 = vmatpush1.msra.mxu0 0.0
        %5656 = vmatprep.subr.mxu0 0.0
        %5657 = vmatpush1.msra.mxu0 0.0
        %5658 = vmatprep.subr.mxu0 0.0
        %5659 = vmatpush1.msra.mxu0 0.0
        %5660 = vmatprep.subr.mxu0 0.0
        %5661 = vmatpush1.msra.mxu0 0.0
        %5662 = vmatprep.subr.mxu0 0.0
        %5663 = vmatpush1.msra.mxu0 0.0
        %5664 = vmatprep.subr.mxu0 0.0
        %5665 = vmatpush1.msra.mxu0 0.0
        %5666 = vmatprep.subr.mxu0 0.0
        %5667 = vmatpush1.msra.mxu0 0.0
        %5668 = vmatprep.subr.mxu0 0.0
        %5669 = vmatpush1.msra.mxu0 0.0
        %5670 = vmatprep.subr.mxu0 0.0
        %5671 = vmatpush1.msra.mxu0 0.0
        %5672 = vmatprep.subr.mxu0 0.0
        %5673 = vmatpush1.msra.mxu0 0.0
        %5674 = vmatprep.subr.mxu0 0.0
        %5675 = vmatpush1.msra.mxu0 0.0
        %5676 = vmatprep.subr.mxu0 0.0
        %5677 = vmatpush1.msra.mxu0 0.0
        %5678 = vmatprep.subr.mxu0 0.0
        %5679 = vmatpush1.msra.mxu0 0.0
        %5680 = vmatprep.subr.mxu0 0.0
        %5681 = vmatpush1.msra.mxu0 0.0
        %5682 = vmatprep.subr.mxu0 0.0
        %5683 = vmatpush1.msra.mxu0 0.0
        %5684 = vmatprep.subr.mxu0 0.0
        %5685 = vmatpush1.msra.mxu0 0.0
        %5686 = vmatprep.subr.mxu0 0.0
        %5687 = vmatpush1.msra.mxu0 0.0
        %5688 = vmatprep.subr.mxu0 0.0
        %5689 = vmatpush1.msra.mxu0 0.0
        %5690 = vmatprep.mubr.f32.mxu0 0.0
        %5691 = vmatmul.mubr.f32.gmra.mrb[0].mxu0 %v5621
        %v5692 = vpop.f32.mrb[0].mxu0
        %v5693 = vadd.f32 %v5614, %v5692
        %v5694 = vpop.f32.mrb[0].mxu0
        %v5695 = vadd.f32 %v5614, %v5694
        %5696 = vmatprep.mubr.f32.mxu0 0.0
        %5697 = vmatmul.mubr.f32.gmra.mrb[0].mxu0 %v5624
        %v5698 = vpop.f32.mrb[0].mxu0
        %v5699 = vadd.f32 %v5618, %v5698
        %v5700 = vpop.f32.mrb[0].mxu0
        %v5701 = vadd.f32 %v5618, %v5700
        %5702 = vdwg.mxu0
        %vm5703 = vcmp.gt.f32.partialorder %v5693, 0.0
        %vm5704 = vcmp.gt.f32.partialorder %v5695, 0.0
        %vm5705 = vcmp.gt.f32.partialorder %v5699, 0.0
        %vm5706 = vcmp.gt.f32.partialorder %v5701, 0.0
        %v5707 = vmul.f32 %v5693, 0.01
        %v5708 = vmul.f32 %v5695, 0.01
        %v5709 = vmul.f32 %v5699, 0.01
        %v5710 = vmul.f32 %v5701, 0.01
        %v5711 = vsel %vm5703, %v5693, %v5707
        %v5712 = vsel %vm5704, %v5695, %v5708
        %v5713 = vsel %vm5705, %v5699, %v5709
        %v5714 = vsel %vm5706, %v5701, %v5710
        %s5715 = scalar_lea.vmem %s3, 22
        %v5716 = vld [vmem:[%s5715] sm:$0x3]
        %s5717 = scalar_lea.vmem %s4, 22
        %v5718 = vld [vmem:[%s5717] sm:$0x3]
        %5720 = vset.pattern.permute.xlu0 0
        %5721 = vperm.xlu0 %5720, %v5718
        %v5722 = vpop.permute.xlu0 %5721
        %v5725 = vsel %vm344, %v5716, 0
        %5727 = vmatprep.subr.mxu0 %v5712
        %5728 = vmatpush1.msra.mxu0 %v5711
        %5729 = vmatprep.subr.mxu0 %v5714
        %5730 = vmatpush1.msra.mxu0 %v5713
        %5731 = vmatprep.subr.mxu0 0.0
        %5732 = vmatpush1.msra.mxu0 0.0
        %5733 = vmatprep.subr.mxu0 0.0
        %5734 = vmatpush1.msra.mxu0 0.0
        %5735 = vmatprep.subr.mxu0 0.0
        %5736 = vmatpush1.msra.mxu0 0.0
        %5737 = vmatprep.subr.mxu0 0.0
        %5738 = vmatpush1.msra.mxu0 0.0
        %5739 = vmatprep.subr.mxu0 0.0
        %5740 = vmatpush1.msra.mxu0 0.0
        %5741 = vmatprep.subr.mxu0 0.0
        %5742 = vmatpush1.msra.mxu0 0.0
        %5743 = vmatprep.subr.mxu0 0.0
        %5744 = vmatpush1.msra.mxu0 0.0
        %5745 = vmatprep.subr.mxu0 0.0
        %5746 = vmatpush1.msra.mxu0 0.0
        %5747 = vmatprep.subr.mxu0 0.0
        %5748 = vmatpush1.msra.mxu0 0.0
        %5749 = vmatprep.subr.mxu0 0.0
        %5750 = vmatpush1.msra.mxu0 0.0
        %5751 = vmatprep.subr.mxu0 0.0
        %5752 = vmatpush1.msra.mxu0 0.0
        %5753 = vmatprep.subr.mxu0 0.0
        %5754 = vmatpush1.msra.mxu0 0.0
        %5755 = vmatprep.subr.mxu0 0.0
        %5756 = vmatpush1.msra.mxu0 0.0
        %5757 = vmatprep.subr.mxu0 0.0
        %5758 = vmatpush1.msra.mxu0 0.0
        %5759 = vmatprep.subr.mxu0 0.0
        %5760 = vmatpush1.msra.mxu0 0.0
        %5761 = vmatprep.subr.mxu0 0.0
        %5762 = vmatpush1.msra.mxu0 0.0
        %5763 = vmatprep.subr.mxu0 0.0
        %5764 = vmatpush1.msra.mxu0 0.0
        %5765 = vmatprep.subr.mxu0 0.0
        %5766 = vmatpush1.msra.mxu0 0.0
        %5767 = vmatprep.subr.mxu0 0.0
        %5768 = vmatpush1.msra.mxu0 0.0
        %5769 = vmatprep.subr.mxu0 0.0
        %5770 = vmatpush1.msra.mxu0 0.0
        %5771 = vmatprep.subr.mxu0 0.0
        %5772 = vmatpush1.msra.mxu0 0.0
        %5773 = vmatprep.subr.mxu0 0.0
        %5774 = vmatpush1.msra.mxu0 0.0
        %5775 = vmatprep.subr.mxu0 0.0
        %5776 = vmatpush1.msra.mxu0 0.0
        %5777 = vmatprep.subr.mxu0 0.0
        %5778 = vmatpush1.msra.mxu0 0.0
        %5779 = vmatprep.subr.mxu0 0.0
        %5780 = vmatpush1.msra.mxu0 0.0
        %5781 = vmatprep.subr.mxu0 0.0
        %5782 = vmatpush1.msra.mxu0 0.0
        %5783 = vmatprep.subr.mxu0 0.0
        %5784 = vmatpush1.msra.mxu0 0.0
        %5785 = vmatprep.subr.mxu0 0.0
        %5786 = vmatpush1.msra.mxu0 0.0
        %5787 = vmatprep.subr.mxu0 0.0
        %5788 = vmatpush1.msra.mxu0 0.0
        %5789 = vmatprep.subr.mxu0 0.0
        %5790 = vmatpush1.msra.mxu0 0.0
        %5791 = vmatprep.mubr.f32.mxu0 0.0
        %5792 = vmatmul.mubr.f32.gmra.mrb[0].mxu0 %v5725
        %v5793 = vpop.f32.mrb[0].mxu0
        %v5794 = vadd.f32 %v5722, %v5793
        %v5795 = vpop.f32.mrb[0].mxu0
        %v5796 = vadd.f32 %v5722, %v5795
        %5797 = vdwg.mxu0
        %v5798 = vmul.f32 %v5794, 1.442695
        %v5799 = vpow.pop %v5798
        %v5800 = vmul.f32 %v5796, 1.442695
        %v5801 = vpow.pop %v5800
        %v5802 = vmul.f32 %v5799, %v5352
        %v5803 = vmul.f32 %v5801, %v5353
        %v5806 = vrot.slane %v5794, 1
        %v5807 = vrot.slane %v5796, 1
        %v5810 = vadd.f32 %v5802, %v5806
        %v5811 = vadd.f32 %v5803, %v5807
        %v5812 = vadd.f32 %v5354, %v5794
        %v5813 = vadd.f32 %v5355, %v5796
        %s5814 = scalar_lea.vmem %s1, 192
        %v5815 = vld [vmem:[%s5814] sm:$0xff]
        %v5816 = vld [vmem:[%s5814 + $0x8] sm:$0xff]
        %5818 = vset.pattern.permute.xlu0 0
        %5819 = vperm.xlu0 %5818, %v5815
        %v5820 = vpop.permute.xlu0 %5819
        %5823 = vset.pattern.permute.xlu0 0
        %5824 = vperm.xlu0 %5823, %v5816
        %v5825 = vpop.permute.xlu0 %5824
        %v5827 = vlaneseq
        %v5828 = vshrl.u32 %v5827, 7
        %v5829 = vsub.s32 0, %v5828
        %v5830 = vrot.slane %v5810, %v5829
        %v5831 = vlaneseq
        %v5832 = vshrl.u32 %v5831, 7
        %v5833 = vsub.s32 0, %v5832
        %v5834 = vrot.slane %v5811, %v5833
        %v5835 = vmul.f32 %v5820, %v5830
        %v5836 = vmul.f32 %v5820, %v5834
        %v5837 = vmul.f32 %v5825, %v5830
        %v5838 = vmul.f32 %v5825, %v5834
        %5839 = vset.pattern.permute.xlu0 1
        %5840 = vperm.xlu0 %5839, %v5815
        %v5841 = vpop.permute.xlu0 %5840
        %5843 = vset.pattern.permute.xlu0 1
        %5844 = vperm.xlu0 %5843, %v5816
        %v5845 = vpop.permute.xlu0 %5844
        %v5847 = vadd.f32 %v5835, %v5841
        %v5848 = vadd.f32 %v5836, %v5841
        %v5849 = vadd.f32 %v5837, %v5845
        %v5850 = vadd.f32 %v5838, %v5845
        %vm5851 = vcmp.gt.f32.partialorder %v5847, 0.0
        %vm5852 = vcmp.gt.f32.partialorder %v5848, 0.0
        %vm5853 = vcmp.gt.f32.partialorder %v5849, 0.0
        %vm5854 = vcmp.gt.f32.partialorder %v5850, 0.0
        %v5855 = vmul.f32 %v5847, 0.01
        %v5856 = vmul.f32 %v5848, 0.01
        %v5857 = vmul.f32 %v5849, 0.01
        %v5858 = vmul.f32 %v5850, 0.01
        %v5859 = vsel %vm5851, %v5847, %v5855
        %v5860 = vsel %vm5852, %v5848, %v5856
        %v5861 = vsel %vm5853, %v5849, %v5857
        %v5862 = vsel %vm5854, %v5850, %v5858
        %s5863 = scalar_lea.vmem [#allocation2], 576
        %v5864 = vld [vmem:[%s5863] sm:$0xff]
        %v5865 = vld [vmem:[%s5863 + $0x8] sm:$0xff]
        %5866 = vset.pattern.permute.xlu0 2
        %5867 = vperm.xlu0 %5866, %v5815
        %v5868 = vpop.permute.xlu0 %5867
        %5870 = vset.pattern.permute.xlu0 2
        %5871 = vperm.xlu0 %5870, %v5816
        %v5872 = vpop.permute.xlu0 %5871
        %v5875 = vsel %vm344, %v5864, 0
        %v5878 = vsel %vm344, %v5865, 0
        %5880 = vmatprep.subr.mxu0 %v5860
        %5881 = vmatpush1.msra.mxu0 %v5859
        %5882 = vmatprep.subr.mxu0 %v5862
        %5883 = vmatpush1.msra.mxu0 %v5861
        %5884 = vmatprep.subr.mxu0 0.0
        %5885 = vmatpush1.msra.mxu0 0.0
        %5886 = vmatprep.subr.mxu0 0.0
        %5887 = vmatpush1.msra.mxu0 0.0
        %5888 = vmatprep.subr.mxu0 0.0
        %5889 = vmatpush1.msra.mxu0 0.0
        %5890 = vmatprep.subr.mxu0 0.0
        %5891 = vmatpush1.msra.mxu0 0.0
        %5892 = vmatprep.subr.mxu0 0.0
        %5893 = vmatpush1.msra.mxu0 0.0
        %5894 = vmatprep.subr.mxu0 0.0
        %5895 = vmatpush1.msra.mxu0 0.0
        %5896 = vmatprep.subr.mxu0 0.0
        %5897 = vmatpush1.msra.mxu0 0.0
        %5898 = vmatprep.subr.mxu0 0.0
        %5899 = vmatpush1.msra.mxu0 0.0
        %5900 = vmatprep.subr.mxu0 0.0
        %5901 = vmatpush1.msra.mxu0 0.0
        %5902 = vmatprep.subr.mxu0 0.0
        %5903 = vmatpush1.msra.mxu0 0.0
        %5904 = vmatprep.subr.mxu0 0.0
        %5905 = vmatpush1.msra.mxu0 0.0
        %5906 = vmatprep.subr.mxu0 0.0
        %5907 = vmatpush1.msra.mxu0 0.0
        %5908 = vmatprep.subr.mxu0 0.0
        %5909 = vmatpush1.msra.mxu0 0.0
        %5910 = vmatprep.subr.mxu0 0.0
        %5911 = vmatpush1.msra.mxu0 0.0
        %5912 = vmatprep.subr.mxu0 0.0
        %5913 = vmatpush1.msra.mxu0 0.0
        %5914 = vmatprep.subr.mxu0 0.0
        %5915 = vmatpush1.msra.mxu0 0.0
        %5916 = vmatprep.subr.mxu0 0.0
        %5917 = vmatpush1.msra.mxu0 0.0
        %5918 = vmatprep.subr.mxu0 0.0
        %5919 = vmatpush1.msra.mxu0 0.0
        %5920 = vmatprep.subr.mxu0 0.0
        %5921 = vmatpush1.msra.mxu0 0.0
        %5922 = vmatprep.subr.mxu0 0.0
        %5923 = vmatpush1.msra.mxu0 0.0
        %5924 = vmatprep.subr.mxu0 0.0
        %5925 = vmatpush1.msra.mxu0 0.0
        %5926 = vmatprep.subr.mxu0 0.0
        %5927 = vmatpush1.msra.mxu0 0.0
        %5928 = vmatprep.subr.mxu0 0.0
        %5929 = vmatpush1.msra.mxu0 0.0
        %5930 = vmatprep.subr.mxu0 0.0
        %5931 = vmatpush1.msra.mxu0 0.0
        %5932 = vmatprep.subr.mxu0 0.0
        %5933 = vmatpush1.msra.mxu0 0.0
        %5934 = vmatprep.subr.mxu0 0.0
        %5935 = vmatpush1.msra.mxu0 0.0
        %5936 = vmatprep.subr.mxu0 0.0
        %5937 = vmatpush1.msra.mxu0 0.0
        %5938 = vmatprep.subr.mxu0 0.0
        %5939 = vmatpush1.msra.mxu0 0.0
        %5940 = vmatprep.subr.mxu0 0.0
        %5941 = vmatpush1.msra.mxu0 0.0
        %5942 = vmatprep.subr.mxu0 0.0
        %5943 = vmatpush1.msra.mxu0 0.0
        %5944 = vmatprep.mubr.f32.mxu0 0.0
        %5945 = vmatmul.mubr.f32.gmra.mrb[0].mxu0 %v5875
        %v5946 = vpop.f32.mrb[0].mxu0
        %v5947 = vadd.f32 %v5868, %v5946
        %v5948 = vpop.f32.mrb[0].mxu0
        %v5949 = vadd.f32 %v5868, %v5948
        %5950 = vmatprep.mubr.f32.mxu0 0.0
        %5951 = vmatmul.mubr.f32.gmra.mrb[0].mxu0 %v5878
        %v5952 = vpop.f32.mrb[0].mxu0
        %v5953 = vadd.f32 %v5872, %v5952
        %v5954 = vpop.f32.mrb[0].mxu0
        %v5955 = vadd.f32 %v5872, %v5954
        %5956 = vdwg.mxu0
        %vm5957 = vcmp.gt.f32.partialorder %v5947, 0.0
        %vm5958 = vcmp.gt.f32.partialorder %v5949, 0.0
        %vm5959 = vcmp.gt.f32.partialorder %v5953, 0.0
        %vm5960 = vcmp.gt.f32.partialorder %v5955, 0.0
        %v5961 = vmul.f32 %v5947, 0.01
        %v5962 = vmul.f32 %v5949, 0.01
        %v5963 = vmul.f32 %v5953, 0.01
        %v5964 = vmul.f32 %v5955, 0.01
        %v5965 = vsel %vm5957, %v5947, %v5961
        %v5966 = vsel %vm5958, %v5949, %v5962
        %v5967 = vsel %vm5959, %v5953, %v5963
        %v5968 = vsel %vm5960, %v5955, %v5964
        %s5969 = scalar_lea.vmem [#allocation2], 592
        %v5970 = vld [vmem:[%s5969] sm:$0xff]
        %v5971 = vld [vmem:[%s5969 + $0x8] sm:$0xff]
        %5972 = vset.pattern.permute.xlu0 3
        %5973 = vperm.xlu0 %5972, %v5815
        %v5974 = vpop.permute.xlu0 %5973
        %5976 = vset.pattern.permute.xlu0 3
        %5977 = vperm.xlu0 %5976, %v5816
        %v5978 = vpop.permute.xlu0 %5977
        %v5981 = vsel %vm344, %v5970, 0
        %v5984 = vsel %vm344, %v5971, 0
        %5986 = vmatprep.subr.mxu0 %v5966
        %5987 = vmatpush1.msra.mxu0 %v5965
        %5988 = vmatprep.subr.mxu0 %v5968
        %5989 = vmatpush1.msra.mxu0 %v5967
        %5990 = vmatprep.subr.mxu0 0.0
        %5991 = vmatpush1.msra.mxu0 0.0
        %5992 = vmatprep.subr.mxu0 0.0
        %5993 = vmatpush1.msra.mxu0 0.0
        %5994 = vmatprep.subr.mxu0 0.0
        %5995 = vmatpush1.msra.mxu0 0.0
        %5996 = vmatprep.subr.mxu0 0.0
        %5997 = vmatpush1.msra.mxu0 0.0
        %5998 = vmatprep.subr.mxu0 0.0
        %5999 = vmatpush1.msra.mxu0 0.0
        %6000 = vmatprep.subr.mxu0 0.0
        %6001 = vmatpush1.msra.mxu0 0.0
        %6002 = vmatprep.subr.mxu0 0.0
        %6003 = vmatpush1.msra.mxu0 0.0
        %6004 = vmatprep.subr.mxu0 0.0
        %6005 = vmatpush1.msra.mxu0 0.0
        %6006 = vmatprep.subr.mxu0 0.0
        %6007 = vmatpush1.msra.mxu0 0.0
        %6008 = vmatprep.subr.mxu0 0.0
        %6009 = vmatpush1.msra.mxu0 0.0
        %6010 = vmatprep.subr.mxu0 0.0
        %6011 = vmatpush1.msra.mxu0 0.0
        %6012 = vmatprep.subr.mxu0 0.0
        %6013 = vmatpush1.msra.mxu0 0.0
        %6014 = vmatprep.subr.mxu0 0.0
        %6015 = vmatpush1.msra.mxu0 0.0
        %6016 = vmatprep.subr.mxu0 0.0
        %6017 = vmatpush1.msra.mxu0 0.0
        %6018 = vmatprep.subr.mxu0 0.0
        %6019 = vmatpush1.msra.mxu0 0.0
        %6020 = vmatprep.subr.mxu0 0.0
        %6021 = vmatpush1.msra.mxu0 0.0
        %6022 = vmatprep.subr.mxu0 0.0
        %6023 = vmatpush1.msra.mxu0 0.0
        %6024 = vmatprep.subr.mxu0 0.0
        %6025 = vmatpush1.msra.mxu0 0.0
        %6026 = vmatprep.subr.mxu0 0.0
        %6027 = vmatpush1.msra.mxu0 0.0
        %6028 = vmatprep.subr.mxu0 0.0
        %6029 = vmatpush1.msra.mxu0 0.0
        %6030 = vmatprep.subr.mxu0 0.0
        %6031 = vmatpush1.msra.mxu0 0.0
        %6032 = vmatprep.subr.mxu0 0.0
        %6033 = vmatpush1.msra.mxu0 0.0
        %6034 = vmatprep.subr.mxu0 0.0
        %6035 = vmatpush1.msra.mxu0 0.0
        %6036 = vmatprep.subr.mxu0 0.0
        %6037 = vmatpush1.msra.mxu0 0.0
        %6038 = vmatprep.subr.mxu0 0.0
        %6039 = vmatpush1.msra.mxu0 0.0
        %6040 = vmatprep.subr.mxu0 0.0
        %6041 = vmatpush1.msra.mxu0 0.0
        %6042 = vmatprep.subr.mxu0 0.0
        %6043 = vmatpush1.msra.mxu0 0.0
        %6044 = vmatprep.subr.mxu0 0.0
        %6045 = vmatpush1.msra.mxu0 0.0
        %6046 = vmatprep.subr.mxu0 0.0
        %6047 = vmatpush1.msra.mxu0 0.0
        %6048 = vmatprep.subr.mxu0 0.0
        %6049 = vmatpush1.msra.mxu0 0.0
        %6050 = vmatprep.mubr.f32.mxu0 0.0
        %6051 = vmatmul.mubr.f32.gmra.mrb[0].mxu0 %v5981
        %v6052 = vpop.f32.mrb[0].mxu0
        %v6053 = vadd.f32 %v5974, %v6052
        %v6054 = vpop.f32.mrb[0].mxu0
        %v6055 = vadd.f32 %v5974, %v6054
        %6056 = vmatprep.mubr.f32.mxu0 0.0
        %6057 = vmatmul.mubr.f32.gmra.mrb[0].mxu0 %v5984
        %v6058 = vpop.f32.mrb[0].mxu0
        %v6059 = vadd.f32 %v5978, %v6058
        %v6060 = vpop.f32.mrb[0].mxu0
        %v6061 = vadd.f32 %v5978, %v6060
        %6062 = vdwg.mxu0
        %vm6063 = vcmp.gt.f32.partialorder %v6053, 0.0
        %vm6064 = vcmp.gt.f32.partialorder %v6055, 0.0
        %vm6065 = vcmp.gt.f32.partialorder %v6059, 0.0
        %vm6066 = vcmp.gt.f32.partialorder %v6061, 0.0
        %v6067 = vmul.f32 %v6053, 0.01
        %v6068 = vmul.f32 %v6055, 0.01
        %v6069 = vmul.f32 %v6059, 0.01
        %v6070 = vmul.f32 %v6061, 0.01
        %v6071 = vsel %vm6063, %v6053, %v6067
        %v6072 = vsel %vm6064, %v6055, %v6068
        %v6073 = vsel %vm6065, %v6059, %v6069
        %v6074 = vsel %vm6066, %v6061, %v6070
        %s6075 = scalar_lea.vmem [#allocation2], 608
        %v6076 = vld [vmem:[%s6075] sm:$0xff]
        %v6077 = vld [vmem:[%s6075 + $0x8] sm:$0xff]
        %6078 = vset.pattern.permute.xlu0 4
        %6079 = vperm.xlu0 %6078, %v5815
        %v6080 = vpop.permute.xlu0 %6079
        %6082 = vset.pattern.permute.xlu0 4
        %6083 = vperm.xlu0 %6082, %v5816
        %v6084 = vpop.permute.xlu0 %6083
        %v6087 = vsel %vm344, %v6076, 0
        %v6090 = vsel %vm344, %v6077, 0
        %6092 = vmatprep.subr.mxu0 %v6072
        %6093 = vmatpush1.msra.mxu0 %v6071
        %6094 = vmatprep.subr.mxu0 %v6074
        %6095 = vmatpush1.msra.mxu0 %v6073
        %6096 = vmatprep.subr.mxu0 0.0
        %6097 = vmatpush1.msra.mxu0 0.0
        %6098 = vmatprep.subr.mxu0 0.0
        %6099 = vmatpush1.msra.mxu0 0.0
        %6100 = vmatprep.subr.mxu0 0.0
        %6101 = vmatpush1.msra.mxu0 0.0
        %6102 = vmatprep.subr.mxu0 0.0
        %6103 = vmatpush1.msra.mxu0 0.0
        %6104 = vmatprep.subr.mxu0 0.0
        %6105 = vmatpush1.msra.mxu0 0.0
        %6106 = vmatprep.subr.mxu0 0.0
        %6107 = vmatpush1.msra.mxu0 0.0
        %6108 = vmatprep.subr.mxu0 0.0
        %6109 = vmatpush1.msra.mxu0 0.0
        %6110 = vmatprep.subr.mxu0 0.0
        %6111 = vmatpush1.msra.mxu0 0.0
        %6112 = vmatprep.subr.mxu0 0.0
        %6113 = vmatpush1.msra.mxu0 0.0
        %6114 = vmatprep.subr.mxu0 0.0
        %6115 = vmatpush1.msra.mxu0 0.0
        %6116 = vmatprep.subr.mxu0 0.0
        %6117 = vmatpush1.msra.mxu0 0.0
        %6118 = vmatprep.subr.mxu0 0.0
        %6119 = vmatpush1.msra.mxu0 0.0
        %6120 = vmatprep.subr.mxu0 0.0
        %6121 = vmatpush1.msra.mxu0 0.0
        %6122 = vmatprep.subr.mxu0 0.0
        %6123 = vmatpush1.msra.mxu0 0.0
        %6124 = vmatprep.subr.mxu0 0.0
        %6125 = vmatpush1.msra.mxu0 0.0
        %6126 = vmatprep.subr.mxu0 0.0
        %6127 = vmatpush1.msra.mxu0 0.0
        %6128 = vmatprep.subr.mxu0 0.0
        %6129 = vmatpush1.msra.mxu0 0.0
        %6130 = vmatprep.subr.mxu0 0.0
        %6131 = vmatpush1.msra.mxu0 0.0
        %6132 = vmatprep.subr.mxu0 0.0
        %6133 = vmatpush1.msra.mxu0 0.0
        %6134 = vmatprep.subr.mxu0 0.0
        %6135 = vmatpush1.msra.mxu0 0.0
        %6136 = vmatprep.subr.mxu0 0.0
        %6137 = vmatpush1.msra.mxu0 0.0
        %6138 = vmatprep.subr.mxu0 0.0
        %6139 = vmatpush1.msra.mxu0 0.0
        %6140 = vmatprep.subr.mxu0 0.0
        %6141 = vmatpush1.msra.mxu0 0.0
        %6142 = vmatprep.subr.mxu0 0.0
        %6143 = vmatpush1.msra.mxu0 0.0
        %6144 = vmatprep.subr.mxu0 0.0
        %6145 = vmatpush1.msra.mxu0 0.0
        %6146 = vmatprep.subr.mxu0 0.0
        %6147 = vmatpush1.msra.mxu0 0.0
        %6148 = vmatprep.subr.mxu0 0.0
        %6149 = vmatpush1.msra.mxu0 0.0
        %6150 = vmatprep.subr.mxu0 0.0
        %6151 = vmatpush1.msra.mxu0 0.0
        %6152 = vmatprep.subr.mxu0 0.0
        %6153 = vmatpush1.msra.mxu0 0.0
        %6154 = vmatprep.subr.mxu0 0.0
        %6155 = vmatpush1.msra.mxu0 0.0
        %6156 = vmatprep.mubr.f32.mxu0 0.0
        %6157 = vmatmul.mubr.f32.gmra.mrb[0].mxu0 %v6087
        %v6158 = vpop.f32.mrb[0].mxu0
        %v6159 = vadd.f32 %v6080, %v6158
        %v6160 = vpop.f32.mrb[0].mxu0
        %v6161 = vadd.f32 %v6080, %v6160
        %6162 = vmatprep.mubr.f32.mxu0 0.0
        %6163 = vmatmul.mubr.f32.gmra.mrb[0].mxu0 %v6090
        %v6164 = vpop.f32.mrb[0].mxu0
        %v6165 = vadd.f32 %v6084, %v6164
        %v6166 = vpop.f32.mrb[0].mxu0
        %v6167 = vadd.f32 %v6084, %v6166
        %6168 = vdwg.mxu0
        %vm6169 = vcmp.gt.f32.partialorder %v6159, 0.0
        %vm6170 = vcmp.gt.f32.partialorder %v6161, 0.0
        %vm6171 = vcmp.gt.f32.partialorder %v6165, 0.0
        %vm6172 = vcmp.gt.f32.partialorder %v6167, 0.0
        %v6173 = vmul.f32 %v6159, 0.01
        %v6174 = vmul.f32 %v6161, 0.01
        %v6175 = vmul.f32 %v6165, 0.01
        %v6176 = vmul.f32 %v6167, 0.01
        %v6177 = vsel %vm6169, %v6159, %v6173
        %v6178 = vsel %vm6170, %v6161, %v6174
        %v6179 = vsel %vm6171, %v6165, %v6175
        %v6180 = vsel %vm6172, %v6167, %v6176
        %s6181 = scalar_lea.vmem %s3, 24
        %v6182 = vld [vmem:[%s6181] sm:$0x3]
        %s6183 = scalar_lea.vmem %s4, 24
        %v6184 = vld [vmem:[%s6183] sm:$0x3]
        %6186 = vset.pattern.permute.xlu0 0
        %6187 = vperm.xlu0 %6186, %v6184
        %v6188 = vpop.permute.xlu0 %6187
        %v6191 = vsel %vm344, %v6182, 0
        %6193 = vmatprep.subr.mxu0 %v6178
        %6194 = vmatpush1.msra.mxu0 %v6177
        %6195 = vmatprep.subr.mxu0 %v6180
        %6196 = vmatpush1.msra.mxu0 %v6179
        %6197 = vmatprep.subr.mxu0 0.0
        %6198 = vmatpush1.msra.mxu0 0.0
        %6199 = vmatprep.subr.mxu0 0.0
        %6200 = vmatpush1.msra.mxu0 0.0
        %6201 = vmatprep.subr.mxu0 0.0
        %6202 = vmatpush1.msra.mxu0 0.0
        %6203 = vmatprep.subr.mxu0 0.0
        %6204 = vmatpush1.msra.mxu0 0.0
        %6205 = vmatprep.subr.mxu0 0.0
        %6206 = vmatpush1.msra.mxu0 0.0
        %6207 = vmatprep.subr.mxu0 0.0
        %6208 = vmatpush1.msra.mxu0 0.0
        %6209 = vmatprep.subr.mxu0 0.0
        %6210 = vmatpush1.msra.mxu0 0.0
        %6211 = vmatprep.subr.mxu0 0.0
        %6212 = vmatpush1.msra.mxu0 0.0
        %6213 = vmatprep.subr.mxu0 0.0
        %6214 = vmatpush1.msra.mxu0 0.0
        %6215 = vmatprep.subr.mxu0 0.0
        %6216 = vmatpush1.msra.mxu0 0.0
        %6217 = vmatprep.subr.mxu0 0.0
        %6218 = vmatpush1.msra.mxu0 0.0
        %6219 = vmatprep.subr.mxu0 0.0
        %6220 = vmatpush1.msra.mxu0 0.0
        %6221 = vmatprep.subr.mxu0 0.0
        %6222 = vmatpush1.msra.mxu0 0.0
        %6223 = vmatprep.subr.mxu0 0.0
        %6224 = vmatpush1.msra.mxu0 0.0
        %6225 = vmatprep.subr.mxu0 0.0
        %6226 = vmatpush1.msra.mxu0 0.0
        %6227 = vmatprep.subr.mxu0 0.0
        %6228 = vmatpush1.msra.mxu0 0.0
        %6229 = vmatprep.subr.mxu0 0.0
        %6230 = vmatpush1.msra.mxu0 0.0
        %6231 = vmatprep.subr.mxu0 0.0
        %6232 = vmatpush1.msra.mxu0 0.0
        %6233 = vmatprep.subr.mxu0 0.0
        %6234 = vmatpush1.msra.mxu0 0.0
        %6235 = vmatprep.subr.mxu0 0.0
        %6236 = vmatpush1.msra.mxu0 0.0
        %6237 = vmatprep.subr.mxu0 0.0
        %6238 = vmatpush1.msra.mxu0 0.0
        %6239 = vmatprep.subr.mxu0 0.0
        %6240 = vmatpush1.msra.mxu0 0.0
        %6241 = vmatprep.subr.mxu0 0.0
        %6242 = vmatpush1.msra.mxu0 0.0
        %6243 = vmatprep.subr.mxu0 0.0
        %6244 = vmatpush1.msra.mxu0 0.0
        %6245 = vmatprep.subr.mxu0 0.0
        %6246 = vmatpush1.msra.mxu0 0.0
        %6247 = vmatprep.subr.mxu0 0.0
        %6248 = vmatpush1.msra.mxu0 0.0
        %6249 = vmatprep.subr.mxu0 0.0
        %6250 = vmatpush1.msra.mxu0 0.0
        %6251 = vmatprep.subr.mxu0 0.0
        %6252 = vmatpush1.msra.mxu0 0.0
        %6253 = vmatprep.subr.mxu0 0.0
        %6254 = vmatpush1.msra.mxu0 0.0
        %6255 = vmatprep.subr.mxu0 0.0
        %6256 = vmatpush1.msra.mxu0 0.0
        %6257 = vmatprep.mubr.f32.mxu0 0.0
        %6258 = vmatmul.mubr.f32.gmra.mrb[0].mxu0 %v6191
        %v6259 = vpop.f32.mrb[0].mxu0
        %v6260 = vadd.f32 %v6188, %v6259
        %v6261 = vpop.f32.mrb[0].mxu0
        %v6262 = vadd.f32 %v6188, %v6261
        %6263 = vdwg.mxu0
        %v6264 = vmul.f32 %v6260, 1.442695
        %v6265 = vpow.pop %v6264
        %v6266 = vmul.f32 %v6262, 1.442695
        %v6267 = vpow.pop %v6266
        %v6268 = vmul.f32 %v6265, %v4886
        %v6269 = vmul.f32 %v6267, %v4887
        %v6272 = vrot.slane %v6260, 1
        %v6273 = vrot.slane %v6262, 1
        %v6276 = vadd.f32 %v6268, %v6272
        %v6277 = vadd.f32 %v6269, %v6273
        %v6278 = vadd.f32 %v5812, %v6260
        %v6279 = vadd.f32 %v5813, %v6262
        %s6280 = scalar_lea.vmem %s1, 208
        %v6281 = vld [vmem:[%s6280] sm:$0xff]
        %v6282 = vld [vmem:[%s6280 + $0x8] sm:$0xff]
        %6284 = vset.pattern.permute.xlu0 0
        %6285 = vperm.xlu0 %6284, %v6281
        %v6286 = vpop.permute.xlu0 %6285
        %6289 = vset.pattern.permute.xlu0 0
        %6290 = vperm.xlu0 %6289, %v6282
        %v6291 = vpop.permute.xlu0 %6290
        %v6293 = vlaneseq
        %v6294 = vshrl.u32 %v6293, 7
        %v6295 = vsub.s32 0, %v6294
        %v6296 = vrot.slane %v6276, %v6295
        %v6297 = vlaneseq
        %v6298 = vshrl.u32 %v6297, 7
        %v6299 = vsub.s32 0, %v6298
        %v6300 = vrot.slane %v6277, %v6299
        %v6301 = vmul.f32 %v6286, %v6296
        %v6302 = vmul.f32 %v6286, %v6300
        %v6303 = vmul.f32 %v6291, %v6296
        %v6304 = vmul.f32 %v6291, %v6300
        %6305 = vset.pattern.permute.xlu0 1
        %6306 = vperm.xlu0 %6305, %v6281
        %v6307 = vpop.permute.xlu0 %6306
        %6309 = vset.pattern.permute.xlu0 1
        %6310 = vperm.xlu0 %6309, %v6282
        %v6311 = vpop.permute.xlu0 %6310
        %v6313 = vadd.f32 %v6301, %v6307
        %v6314 = vadd.f32 %v6302, %v6307
        %v6315 = vadd.f32 %v6303, %v6311
        %v6316 = vadd.f32 %v6304, %v6311
        %vm6317 = vcmp.gt.f32.partialorder %v6313, 0.0
        %vm6318 = vcmp.gt.f32.partialorder %v6314, 0.0
        %vm6319 = vcmp.gt.f32.partialorder %v6315, 0.0
        %vm6320 = vcmp.gt.f32.partialorder %v6316, 0.0
        %v6321 = vmul.f32 %v6313, 0.01
        %v6322 = vmul.f32 %v6314, 0.01
        %v6323 = vmul.f32 %v6315, 0.01
        %v6324 = vmul.f32 %v6316, 0.01
        %v6325 = vsel %vm6317, %v6313, %v6321
        %v6326 = vsel %vm6318, %v6314, %v6322
        %v6327 = vsel %vm6319, %v6315, %v6323
        %v6328 = vsel %vm6320, %v6316, %v6324
        %s6329 = scalar_lea.vmem [#allocation2], 624
        %v6330 = vld [vmem:[%s6329] sm:$0xff]
        %v6331 = vld [vmem:[%s6329 + $0x8] sm:$0xff]
        %6332 = vset.pattern.permute.xlu0 2
        %6333 = vperm.xlu0 %6332, %v6281
        %v6334 = vpop.permute.xlu0 %6333
        %6336 = vset.pattern.permute.xlu0 2
        %6337 = vperm.xlu0 %6336, %v6282
        %v6338 = vpop.permute.xlu0 %6337
        %v6341 = vsel %vm344, %v6330, 0
        %v6344 = vsel %vm344, %v6331, 0
        %6346 = vmatprep.subr.mxu0 %v6326
        %6347 = vmatpush1.msra.mxu0 %v6325
        %6348 = vmatprep.subr.mxu0 %v6328
        %6349 = vmatpush1.msra.mxu0 %v6327
        %6350 = vmatprep.subr.mxu0 0.0
        %6351 = vmatpush1.msra.mxu0 0.0
        %6352 = vmatprep.subr.mxu0 0.0
        %6353 = vmatpush1.msra.mxu0 0.0
        %6354 = vmatprep.subr.mxu0 0.0
        %6355 = vmatpush1.msra.mxu0 0.0
        %6356 = vmatprep.subr.mxu0 0.0
        %6357 = vmatpush1.msra.mxu0 0.0
        %6358 = vmatprep.subr.mxu0 0.0
        %6359 = vmatpush1.msra.mxu0 0.0
        %6360 = vmatprep.subr.mxu0 0.0
        %6361 = vmatpush1.msra.mxu0 0.0
        %6362 = vmatprep.subr.mxu0 0.0
        %6363 = vmatpush1.msra.mxu0 0.0
        %6364 = vmatprep.subr.mxu0 0.0
        %6365 = vmatpush1.msra.mxu0 0.0
        %6366 = vmatprep.subr.mxu0 0.0
        %6367 = vmatpush1.msra.mxu0 0.0
        %6368 = vmatprep.subr.mxu0 0.0
        %6369 = vmatpush1.msra.mxu0 0.0
        %6370 = vmatprep.subr.mxu0 0.0
        %6371 = vmatpush1.msra.mxu0 0.0
        %6372 = vmatprep.subr.mxu0 0.0
        %6373 = vmatpush1.msra.mxu0 0.0
        %6374 = vmatprep.subr.mxu0 0.0
        %6375 = vmatpush1.msra.mxu0 0.0
        %6376 = vmatprep.subr.mxu0 0.0
        %6377 = vmatpush1.msra.mxu0 0.0
        %6378 = vmatprep.subr.mxu0 0.0
        %6379 = vmatpush1.msra.mxu0 0.0
        %6380 = vmatprep.subr.mxu0 0.0
        %6381 = vmatpush1.msra.mxu0 0.0
        %6382 = vmatprep.subr.mxu0 0.0
        %6383 = vmatpush1.msra.mxu0 0.0
        %6384 = vmatprep.subr.mxu0 0.0
        %6385 = vmatpush1.msra.mxu0 0.0
        %6386 = vmatprep.subr.mxu0 0.0
        %6387 = vmatpush1.msra.mxu0 0.0
        %6388 = vmatprep.subr.mxu0 0.0
        %6389 = vmatpush1.msra.mxu0 0.0
        %6390 = vmatprep.subr.mxu0 0.0
        %6391 = vmatpush1.msra.mxu0 0.0
        %6392 = vmatprep.subr.mxu0 0.0
        %6393 = vmatpush1.msra.mxu0 0.0
        %6394 = vmatprep.subr.mxu0 0.0
        %6395 = vmatpush1.msra.mxu0 0.0
        %6396 = vmatprep.subr.mxu0 0.0
        %6397 = vmatpush1.msra.mxu0 0.0
        %6398 = vmatprep.subr.mxu0 0.0
        %6399 = vmatpush1.msra.mxu0 0.0
        %6400 = vmatprep.subr.mxu0 0.0
        %6401 = vmatpush1.msra.mxu0 0.0
        %6402 = vmatprep.subr.mxu0 0.0
        %6403 = vmatpush1.msra.mxu0 0.0
        %6404 = vmatprep.subr.mxu0 0.0
        %6405 = vmatpush1.msra.mxu0 0.0
        %6406 = vmatprep.subr.mxu0 0.0
        %6407 = vmatpush1.msra.mxu0 0.0
        %6408 = vmatprep.subr.mxu0 0.0
        %6409 = vmatpush1.msra.mxu0 0.0
        %6410 = vmatprep.mubr.f32.mxu0 0.0
        %6411 = vmatmul.mubr.f32.gmra.mrb[0].mxu0 %v6341
        %v6412 = vpop.f32.mrb[0].mxu0
        %v6413 = vadd.f32 %v6334, %v6412
        %v6414 = vpop.f32.mrb[0].mxu0
        %v6415 = vadd.f32 %v6334, %v6414
        %6416 = vmatprep.mubr.f32.mxu0 0.0
        %6417 = vmatmul.mubr.f32.gmra.mrb[0].mxu0 %v6344
        %v6418 = vpop.f32.mrb[0].mxu0
        %v6419 = vadd.f32 %v6338, %v6418
        %v6420 = vpop.f32.mrb[0].mxu0
        %v6421 = vadd.f32 %v6338, %v6420
        %6422 = vdwg.mxu0
        %vm6423 = vcmp.gt.f32.partialorder %v6413, 0.0
        %vm6424 = vcmp.gt.f32.partialorder %v6415, 0.0
        %vm6425 = vcmp.gt.f32.partialorder %v6419, 0.0
        %vm6426 = vcmp.gt.f32.partialorder %v6421, 0.0
        %v6427 = vmul.f32 %v6413, 0.01
        %v6428 = vmul.f32 %v6415, 0.01
        %v6429 = vmul.f32 %v6419, 0.01
        %v6430 = vmul.f32 %v6421, 0.01
        %v6431 = vsel %vm6423, %v6413, %v6427
        %v6432 = vsel %vm6424, %v6415, %v6428
        %v6433 = vsel %vm6425, %v6419, %v6429
        %v6434 = vsel %vm6426, %v6421, %v6430
        %s6435 = scalar_lea.vmem [#allocation2], 640
        %v6436 = vld [vmem:[%s6435] sm:$0xff]
        %v6437 = vld [vmem:[%s6435 + $0x8] sm:$0xff]
        %6438 = vset.pattern.permute.xlu0 3
        %6439 = vperm.xlu0 %6438, %v6281
        %v6440 = vpop.permute.xlu0 %6439
        %6442 = vset.pattern.permute.xlu0 3
        %6443 = vperm.xlu0 %6442, %v6282
        %v6444 = vpop.permute.xlu0 %6443
        %v6447 = vsel %vm344, %v6436, 0
        %v6450 = vsel %vm344, %v6437, 0
        %6452 = vmatprep.subr.mxu0 %v6432
        %6453 = vmatpush1.msra.mxu0 %v6431
        %6454 = vmatprep.subr.mxu0 %v6434
        %6455 = vmatpush1.msra.mxu0 %v6433
        %6456 = vmatprep.subr.mxu0 0.0
        %6457 = vmatpush1.msra.mxu0 0.0
        %6458 = vmatprep.subr.mxu0 0.0
        %6459 = vmatpush1.msra.mxu0 0.0
        %6460 = vmatprep.subr.mxu0 0.0
        %6461 = vmatpush1.msra.mxu0 0.0
        %6462 = vmatprep.subr.mxu0 0.0
        %6463 = vmatpush1.msra.mxu0 0.0
        %6464 = vmatprep.subr.mxu0 0.0
        %6465 = vmatpush1.msra.mxu0 0.0
        %6466 = vmatprep.subr.mxu0 0.0
        %6467 = vmatpush1.msra.mxu0 0.0
        %6468 = vmatprep.subr.mxu0 0.0
        %6469 = vmatpush1.msra.mxu0 0.0
        %6470 = vmatprep.subr.mxu0 0.0
        %6471 = vmatpush1.msra.mxu0 0.0
        %6472 = vmatprep.subr.mxu0 0.0
        %6473 = vmatpush1.msra.mxu0 0.0
        %6474 = vmatprep.subr.mxu0 0.0
        %6475 = vmatpush1.msra.mxu0 0.0
        %6476 = vmatprep.subr.mxu0 0.0
        %6477 = vmatpush1.msra.mxu0 0.0
        %6478 = vmatprep.subr.mxu0 0.0
        %6479 = vmatpush1.msra.mxu0 0.0
        %6480 = vmatprep.subr.mxu0 0.0
        %6481 = vmatpush1.msra.mxu0 0.0
        %6482 = vmatprep.subr.mxu0 0.0
        %6483 = vmatpush1.msra.mxu0 0.0
        %6484 = vmatprep.subr.mxu0 0.0
        %6485 = vmatpush1.msra.mxu0 0.0
        %6486 = vmatprep.subr.mxu0 0.0
        %6487 = vmatpush1.msra.mxu0 0.0
        %6488 = vmatprep.subr.mxu0 0.0
        %6489 = vmatpush1.msra.mxu0 0.0
        %6490 = vmatprep.subr.mxu0 0.0
        %6491 = vmatpush1.msra.mxu0 0.0
        %6492 = vmatprep.subr.mxu0 0.0
        %6493 = vmatpush1.msra.mxu0 0.0
        %6494 = vmatprep.subr.mxu0 0.0
        %6495 = vmatpush1.msra.mxu0 0.0
        %6496 = vmatprep.subr.mxu0 0.0
        %6497 = vmatpush1.msra.mxu0 0.0
        %6498 = vmatprep.subr.mxu0 0.0
        %6499 = vmatpush1.msra.mxu0 0.0
        %6500 = vmatprep.subr.mxu0 0.0
        %6501 = vmatpush1.msra.mxu0 0.0
        %6502 = vmatprep.subr.mxu0 0.0
        %6503 = vmatpush1.msra.mxu0 0.0
        %6504 = vmatprep.subr.mxu0 0.0
        %6505 = vmatpush1.msra.mxu0 0.0
        %6506 = vmatprep.subr.mxu0 0.0
        %6507 = vmatpush1.msra.mxu0 0.0
        %6508 = vmatprep.subr.mxu0 0.0
        %6509 = vmatpush1.msra.mxu0 0.0
        %6510 = vmatprep.subr.mxu0 0.0
        %6511 = vmatpush1.msra.mxu0 0.0
        %6512 = vmatprep.subr.mxu0 0.0
        %6513 = vmatpush1.msra.mxu0 0.0
        %6514 = vmatprep.subr.mxu0 0.0
        %6515 = vmatpush1.msra.mxu0 0.0
        %6516 = vmatprep.mubr.f32.mxu0 0.0
        %6517 = vmatmul.mubr.f32.gmra.mrb[0].mxu0 %v6447
        %v6518 = vpop.f32.mrb[0].mxu0
        %v6519 = vadd.f32 %v6440, %v6518
        %v6520 = vpop.f32.mrb[0].mxu0
        %v6521 = vadd.f32 %v6440, %v6520
        %6522 = vmatprep.mubr.f32.mxu0 0.0
        %6523 = vmatmul.mubr.f32.gmra.mrb[0].mxu0 %v6450
        %v6524 = vpop.f32.mrb[0].mxu0
        %v6525 = vadd.f32 %v6444, %v6524
        %v6526 = vpop.f32.mrb[0].mxu0
        %v6527 = vadd.f32 %v6444, %v6526
        %6528 = vdwg.mxu0
        %vm6529 = vcmp.gt.f32.partialorder %v6519, 0.0
        %vm6530 = vcmp.gt.f32.partialorder %v6521, 0.0
        %vm6531 = vcmp.gt.f32.partialorder %v6525, 0.0
        %vm6532 = vcmp.gt.f32.partialorder %v6527, 0.0
        %v6533 = vmul.f32 %v6519, 0.01
        %v6534 = vmul.f32 %v6521, 0.01
        %v6535 = vmul.f32 %v6525, 0.01
        %v6536 = vmul.f32 %v6527, 0.01
        %v6537 = vsel %vm6529, %v6519, %v6533
        %v6538 = vsel %vm6530, %v6521, %v6534
        %v6539 = vsel %vm6531, %v6525, %v6535
        %v6540 = vsel %vm6532, %v6527, %v6536
        %s6541 = scalar_lea.vmem [#allocation2], 656
        %v6542 = vld [vmem:[%s6541] sm:$0xff]
        %v6543 = vld [vmem:[%s6541 + $0x8] sm:$0xff]
        %6544 = vset.pattern.permute.xlu0 4
        %6545 = vperm.xlu0 %6544, %v6281
        %v6546 = vpop.permute.xlu0 %6545
        %6548 = vset.pattern.permute.xlu0 4
        %6549 = vperm.xlu0 %6548, %v6282
        %v6550 = vpop.permute.xlu0 %6549
        %v6553 = vsel %vm344, %v6542, 0
        %v6556 = vsel %vm344, %v6543, 0
        %6558 = vmatprep.subr.mxu0 %v6538
        %6559 = vmatpush1.msra.mxu0 %v6537
        %6560 = vmatprep.subr.mxu0 %v6540
        %6561 = vmatpush1.msra.mxu0 %v6539
        %6562 = vmatprep.subr.mxu0 0.0
        %6563 = vmatpush1.msra.mxu0 0.0
        %6564 = vmatprep.subr.mxu0 0.0
        %6565 = vmatpush1.msra.mxu0 0.0
        %6566 = vmatprep.subr.mxu0 0.0
        %6567 = vmatpush1.msra.mxu0 0.0
        %6568 = vmatprep.subr.mxu0 0.0
        %6569 = vmatpush1.msra.mxu0 0.0
        %6570 = vmatprep.subr.mxu0 0.0
        %6571 = vmatpush1.msra.mxu0 0.0
        %6572 = vmatprep.subr.mxu0 0.0
        %6573 = vmatpush1.msra.mxu0 0.0
        %6574 = vmatprep.subr.mxu0 0.0
        %6575 = vmatpush1.msra.mxu0 0.0
        %6576 = vmatprep.subr.mxu0 0.0
        %6577 = vmatpush1.msra.mxu0 0.0
        %6578 = vmatprep.subr.mxu0 0.0
        %6579 = vmatpush1.msra.mxu0 0.0
        %6580 = vmatprep.subr.mxu0 0.0
        %6581 = vmatpush1.msra.mxu0 0.0
        %6582 = vmatprep.subr.mxu0 0.0
        %6583 = vmatpush1.msra.mxu0 0.0
        %6584 = vmatprep.subr.mxu0 0.0
        %6585 = vmatpush1.msra.mxu0 0.0
        %6586 = vmatprep.subr.mxu0 0.0
        %6587 = vmatpush1.msra.mxu0 0.0
        %6588 = vmatprep.subr.mxu0 0.0
        %6589 = vmatpush1.msra.mxu0 0.0
        %6590 = vmatprep.subr.mxu0 0.0
        %6591 = vmatpush1.msra.mxu0 0.0
        %6592 = vmatprep.subr.mxu0 0.0
        %6593 = vmatpush1.msra.mxu0 0.0
        %6594 = vmatprep.subr.mxu0 0.0
        %6595 = vmatpush1.msra.mxu0 0.0
        %6596 = vmatprep.subr.mxu0 0.0
        %6597 = vmatpush1.msra.mxu0 0.0
        %6598 = vmatprep.subr.mxu0 0.0
        %6599 = vmatpush1.msra.mxu0 0.0
        %6600 = vmatprep.subr.mxu0 0.0
        %6601 = vmatpush1.msra.mxu0 0.0
        %6602 = vmatprep.subr.mxu0 0.0
        %6603 = vmatpush1.msra.mxu0 0.0
        %6604 = vmatprep.subr.mxu0 0.0
        %6605 = vmatpush1.msra.mxu0 0.0
        %6606 = vmatprep.subr.mxu0 0.0
        %6607 = vmatpush1.msra.mxu0 0.0
        %6608 = vmatprep.subr.mxu0 0.0
        %6609 = vmatpush1.msra.mxu0 0.0
        %6610 = vmatprep.subr.mxu0 0.0
        %6611 = vmatpush1.msra.mxu0 0.0
        %6612 = vmatprep.subr.mxu0 0.0
        %6613 = vmatpush1.msra.mxu0 0.0
        %6614 = vmatprep.subr.mxu0 0.0
        %6615 = vmatpush1.msra.mxu0 0.0
        %6616 = vmatprep.subr.mxu0 0.0
        %6617 = vmatpush1.msra.mxu0 0.0
        %6618 = vmatprep.subr.mxu0 0.0
        %6619 = vmatpush1.msra.mxu0 0.0
        %6620 = vmatprep.subr.mxu0 0.0
        %6621 = vmatpush1.msra.mxu0 0.0
        %6622 = vmatprep.mubr.f32.mxu0 0.0
        %6623 = vmatmul.mubr.f32.gmra.mrb[0].mxu0 %v6553
        %v6624 = vpop.f32.mrb[0].mxu0
        %v6625 = vadd.f32 %v6546, %v6624
        %v6626 = vpop.f32.mrb[0].mxu0
        %v6627 = vadd.f32 %v6546, %v6626
        %6628 = vmatprep.mubr.f32.mxu0 0.0
        %6629 = vmatmul.mubr.f32.gmra.mrb[0].mxu0 %v6556
        %v6630 = vpop.f32.mrb[0].mxu0
        %v6631 = vadd.f32 %v6550, %v6630
        %v6632 = vpop.f32.mrb[0].mxu0
        %v6633 = vadd.f32 %v6550, %v6632
        %6634 = vdwg.mxu0
        %vm6635 = vcmp.gt.f32.partialorder %v6625, 0.0
        %vm6636 = vcmp.gt.f32.partialorder %v6627, 0.0
        %vm6637 = vcmp.gt.f32.partialorder %v6631, 0.0
        %vm6638 = vcmp.gt.f32.partialorder %v6633, 0.0
        %v6639 = vmul.f32 %v6625, 0.01
        %v6640 = vmul.f32 %v6627, 0.01
        %v6641 = vmul.f32 %v6631, 0.01
        %v6642 = vmul.f32 %v6633, 0.01
        %v6643 = vsel %vm6635, %v6625, %v6639
        %v6644 = vsel %vm6636, %v6627, %v6640
        %v6645 = vsel %vm6637, %v6631, %v6641
        %v6646 = vsel %vm6638, %v6633, %v6642
        %s6647 = scalar_lea.vmem %s3, 26
        %v6648 = vld [vmem:[%s6647] sm:$0x3]
        %s6649 = scalar_lea.vmem %s4, 26
        %v6650 = vld [vmem:[%s6649] sm:$0x3]
        %6652 = vset.pattern.permute.xlu0 0
        %6653 = vperm.xlu0 %6652, %v6650
        %v6654 = vpop.permute.xlu0 %6653
        %v6657 = vsel %vm344, %v6648, 0
        %6659 = vmatprep.subr.mxu0 %v6644
        %6660 = vmatpush1.msra.mxu0 %v6643
        %6661 = vmatprep.subr.mxu0 %v6646
        %6662 = vmatpush1.msra.mxu0 %v6645
        %6663 = vmatprep.subr.mxu0 0.0
        %6664 = vmatpush1.msra.mxu0 0.0
        %6665 = vmatprep.subr.mxu0 0.0
        %6666 = vmatpush1.msra.mxu0 0.0
        %6667 = vmatprep.subr.mxu0 0.0
        %6668 = vmatpush1.msra.mxu0 0.0
        %6669 = vmatprep.subr.mxu0 0.0
        %6670 = vmatpush1.msra.mxu0 0.0
        %6671 = vmatprep.subr.mxu0 0.0
        %6672 = vmatpush1.msra.mxu0 0.0
        %6673 = vmatprep.subr.mxu0 0.0
        %6674 = vmatpush1.msra.mxu0 0.0
        %6675 = vmatprep.subr.mxu0 0.0
        %6676 = vmatpush1.msra.mxu0 0.0
        %6677 = vmatprep.subr.mxu0 0.0
        %6678 = vmatpush1.msra.mxu0 0.0
        %6679 = vmatprep.subr.mxu0 0.0
        %6680 = vmatpush1.msra.mxu0 0.0
        %6681 = vmatprep.subr.mxu0 0.0
        %6682 = vmatpush1.msra.mxu0 0.0
        %6683 = vmatprep.subr.mxu0 0.0
        %6684 = vmatpush1.msra.mxu0 0.0
        %6685 = vmatprep.subr.mxu0 0.0
        %6686 = vmatpush1.msra.mxu0 0.0
        %6687 = vmatprep.subr.mxu0 0.0
        %6688 = vmatpush1.msra.mxu0 0.0
        %6689 = vmatprep.subr.mxu0 0.0
        %6690 = vmatpush1.msra.mxu0 0.0
        %6691 = vmatprep.subr.mxu0 0.0
        %6692 = vmatpush1.msra.mxu0 0.0
        %6693 = vmatprep.subr.mxu0 0.0
        %6694 = vmatpush1.msra.mxu0 0.0
        %6695 = vmatprep.subr.mxu0 0.0
        %6696 = vmatpush1.msra.mxu0 0.0
        %6697 = vmatprep.subr.mxu0 0.0
        %6698 = vmatpush1.msra.mxu0 0.0
        %6699 = vmatprep.subr.mxu0 0.0
        %6700 = vmatpush1.msra.mxu0 0.0
        %6701 = vmatprep.subr.mxu0 0.0
        %6702 = vmatpush1.msra.mxu0 0.0
        %6703 = vmatprep.subr.mxu0 0.0
        %6704 = vmatpush1.msra.mxu0 0.0
        %6705 = vmatprep.subr.mxu0 0.0
        %6706 = vmatpush1.msra.mxu0 0.0
        %6707 = vmatprep.subr.mxu0 0.0
        %6708 = vmatpush1.msra.mxu0 0.0
        %6709 = vmatprep.subr.mxu0 0.0
        %6710 = vmatpush1.msra.mxu0 0.0
        %6711 = vmatprep.subr.mxu0 0.0
        %6712 = vmatpush1.msra.mxu0 0.0
        %6713 = vmatprep.subr.mxu0 0.0
        %6714 = vmatpush1.msra.mxu0 0.0
        %6715 = vmatprep.subr.mxu0 0.0
        %6716 = vmatpush1.msra.mxu0 0.0
        %6717 = vmatprep.subr.mxu0 0.0
        %6718 = vmatpush1.msra.mxu0 0.0
        %6719 = vmatprep.subr.mxu0 0.0
        %6720 = vmatpush1.msra.mxu0 0.0
        %6721 = vmatprep.subr.mxu0 0.0
        %6722 = vmatpush1.msra.mxu0 0.0
        %6723 = vmatprep.mubr.f32.mxu0 0.0
        %6724 = vmatmul.mubr.f32.gmra.mrb[0].mxu0 %v6657
        %v6725 = vpop.f32.mrb[0].mxu0
        %v6726 = vadd.f32 %v6654, %v6725
        %v6727 = vpop.f32.mrb[0].mxu0
        %v6728 = vadd.f32 %v6654, %v6727
        %6729 = vdwg.mxu0
        %v6730 = vmul.f32 %v6726, 1.442695
        %v6731 = vpow.pop %v6730
        %v6732 = vmul.f32 %v6728, 1.442695
        %v6733 = vpow.pop %v6732
        %v6734 = vmul.f32 %v6731, %v5810
        %v6735 = vmul.f32 %v6733, %v5811
        %v6738 = vrot.slane %v6726, 1
        %v6739 = vrot.slane %v6728, 1
        %v6742 = vadd.f32 %v6734, %v6738
        %v6743 = vadd.f32 %v6735, %v6739
        %v6744 = vadd.f32 %v6278, %v6726
        %v6745 = vadd.f32 %v6279, %v6728
        %s6746 = scalar_lea.vmem %s1, 224
        %v6747 = vld [vmem:[%s6746] sm:$0xff]
        %v6748 = vld [vmem:[%s6746 + $0x8] sm:$0xff]
        %6750 = vset.pattern.permute.xlu0 0
        %6751 = vperm.xlu0 %6750, %v6747
        %v6752 = vpop.permute.xlu0 %6751
        %6755 = vset.pattern.permute.xlu0 0
        %6756 = vperm.xlu0 %6755, %v6748
        %v6757 = vpop.permute.xlu0 %6756
        %v6759 = vmul.f32 %v6752, %v6296
        %v6760 = vmul.f32 %v6752, %v6300
        %v6761 = vmul.f32 %v6757, %v6296
        %v6762 = vmul.f32 %v6757, %v6300
        %6763 = vset.pattern.permute.xlu0 1
        %6764 = vperm.xlu0 %6763, %v6747
        %v6765 = vpop.permute.xlu0 %6764
        %6767 = vset.pattern.permute.xlu0 1
        %6768 = vperm.xlu0 %6767, %v6748
        %v6769 = vpop.permute.xlu0 %6768
        %v6771 = vadd.f32 %v6759, %v6765
        %v6772 = vadd.f32 %v6760, %v6765
        %v6773 = vadd.f32 %v6761, %v6769
        %v6774 = vadd.f32 %v6762, %v6769
        %vm6775 = vcmp.gt.f32.partialorder %v6771, 0.0
        %vm6776 = vcmp.gt.f32.partialorder %v6772, 0.0
        %vm6777 = vcmp.gt.f32.partialorder %v6773, 0.0
        %vm6778 = vcmp.gt.f32.partialorder %v6774, 0.0
        %v6779 = vmul.f32 %v6771, 0.01
        %v6780 = vmul.f32 %v6772, 0.01
        %v6781 = vmul.f32 %v6773, 0.01
        %v6782 = vmul.f32 %v6774, 0.01
        %v6783 = vsel %vm6775, %v6771, %v6779
        %v6784 = vsel %vm6776, %v6772, %v6780
        %v6785 = vsel %vm6777, %v6773, %v6781
        %v6786 = vsel %vm6778, %v6774, %v6782
        %s6787 = scalar_lea.vmem [#allocation2], 672
        %v6788 = vld [vmem:[%s6787] sm:$0xff]
        %v6789 = vld [vmem:[%s6787 + $0x8] sm:$0xff]
        %6790 = vset.pattern.permute.xlu0 2
        %6791 = vperm.xlu0 %6790, %v6747
        %v6792 = vpop.permute.xlu0 %6791
        %6794 = vset.pattern.permute.xlu0 2
        %6795 = vperm.xlu0 %6794, %v6748
        %v6796 = vpop.permute.xlu0 %6795
        %v6799 = vsel %vm344, %v6788, 0
        %v6802 = vsel %vm344, %v6789, 0
        %6804 = vmatprep.subr.mxu0 %v6784
        %6805 = vmatpush1.msra.mxu0 %v6783
        %6806 = vmatprep.subr.mxu0 %v6786
        %6807 = vmatpush1.msra.mxu0 %v6785
        %6808 = vmatprep.subr.mxu0 0.0
        %6809 = vmatpush1.msra.mxu0 0.0
        %6810 = vmatprep.subr.mxu0 0.0
        %6811 = vmatpush1.msra.mxu0 0.0
        %6812 = vmatprep.subr.mxu0 0.0
        %6813 = vmatpush1.msra.mxu0 0.0
        %6814 = vmatprep.subr.mxu0 0.0
        %6815 = vmatpush1.msra.mxu0 0.0
        %6816 = vmatprep.subr.mxu0 0.0
        %6817 = vmatpush1.msra.mxu0 0.0
        %6818 = vmatprep.subr.mxu0 0.0
        %6819 = vmatpush1.msra.mxu0 0.0
        %6820 = vmatprep.subr.mxu0 0.0
        %6821 = vmatpush1.msra.mxu0 0.0
        %6822 = vmatprep.subr.mxu0 0.0
        %6823 = vmatpush1.msra.mxu0 0.0
        %6824 = vmatprep.subr.mxu0 0.0
        %6825 = vmatpush1.msra.mxu0 0.0
        %6826 = vmatprep.subr.mxu0 0.0
        %6827 = vmatpush1.msra.mxu0 0.0
        %6828 = vmatprep.subr.mxu0 0.0
        %6829 = vmatpush1.msra.mxu0 0.0
        %6830 = vmatprep.subr.mxu0 0.0
        %6831 = vmatpush1.msra.mxu0 0.0
        %6832 = vmatprep.subr.mxu0 0.0
        %6833 = vmatpush1.msra.mxu0 0.0
        %6834 = vmatprep.subr.mxu0 0.0
        %6835 = vmatpush1.msra.mxu0 0.0
        %6836 = vmatprep.subr.mxu0 0.0
        %6837 = vmatpush1.msra.mxu0 0.0
        %6838 = vmatprep.subr.mxu0 0.0
        %6839 = vmatpush1.msra.mxu0 0.0
        %6840 = vmatprep.subr.mxu0 0.0
        %6841 = vmatpush1.msra.mxu0 0.0
        %6842 = vmatprep.subr.mxu0 0.0
        %6843 = vmatpush1.msra.mxu0 0.0
        %6844 = vmatprep.subr.mxu0 0.0
        %6845 = vmatpush1.msra.mxu0 0.0
        %6846 = vmatprep.subr.mxu0 0.0
        %6847 = vmatpush1.msra.mxu0 0.0
        %6848 = vmatprep.subr.mxu0 0.0
        %6849 = vmatpush1.msra.mxu0 0.0
        %6850 = vmatprep.subr.mxu0 0.0
        %6851 = vmatpush1.msra.mxu0 0.0
        %6852 = vmatprep.subr.mxu0 0.0
        %6853 = vmatpush1.msra.mxu0 0.0
        %6854 = vmatprep.subr.mxu0 0.0
        %6855 = vmatpush1.msra.mxu0 0.0
        %6856 = vmatprep.subr.mxu0 0.0
        %6857 = vmatpush1.msra.mxu0 0.0
        %6858 = vmatprep.subr.mxu0 0.0
        %6859 = vmatpush1.msra.mxu0 0.0
        %6860 = vmatprep.subr.mxu0 0.0
        %6861 = vmatpush1.msra.mxu0 0.0
        %6862 = vmatprep.subr.mxu0 0.0
        %6863 = vmatpush1.msra.mxu0 0.0
        %6864 = vmatprep.subr.mxu0 0.0
        %6865 = vmatpush1.msra.mxu0 0.0
        %6866 = vmatprep.subr.mxu0 0.0
        %6867 = vmatpush1.msra.mxu0 0.0
        %6868 = vmatprep.mubr.f32.mxu0 0.0
        %6869 = vmatmul.mubr.f32.gmra.mrb[0].mxu0 %v6799
        %v6870 = vpop.f32.mrb[0].mxu0
        %v6871 = vadd.f32 %v6792, %v6870
        %v6872 = vpop.f32.mrb[0].mxu0
        %v6873 = vadd.f32 %v6792, %v6872
        %6874 = vmatprep.mubr.f32.mxu0 0.0
        %6875 = vmatmul.mubr.f32.gmra.mrb[0].mxu0 %v6802
        %v6876 = vpop.f32.mrb[0].mxu0
        %v6877 = vadd.f32 %v6796, %v6876
        %v6878 = vpop.f32.mrb[0].mxu0
        %v6879 = vadd.f32 %v6796, %v6878
        %6880 = vdwg.mxu0
        %vm6881 = vcmp.gt.f32.partialorder %v6871, 0.0
        %vm6882 = vcmp.gt.f32.partialorder %v6873, 0.0
        %vm6883 = vcmp.gt.f32.partialorder %v6877, 0.0
        %vm6884 = vcmp.gt.f32.partialorder %v6879, 0.0
        %v6885 = vmul.f32 %v6871, 0.01
        %v6886 = vmul.f32 %v6873, 0.01
        %v6887 = vmul.f32 %v6877, 0.01
        %v6888 = vmul.f32 %v6879, 0.01
        %v6889 = vsel %vm6881, %v6871, %v6885
        %v6890 = vsel %vm6882, %v6873, %v6886
        %v6891 = vsel %vm6883, %v6877, %v6887
        %v6892 = vsel %vm6884, %v6879, %v6888
        %s6893 = scalar_lea.vmem [#allocation2], 688
        %v6894 = vld [vmem:[%s6893] sm:$0xff]
        %v6895 = vld [vmem:[%s6893 + $0x8] sm:$0xff]
        %6896 = vset.pattern.permute.xlu0 3
        %6897 = vperm.xlu0 %6896, %v6747
        %v6898 = vpop.permute.xlu0 %6897
        %6900 = vset.pattern.permute.xlu0 3
        %6901 = vperm.xlu0 %6900, %v6748
        %v6902 = vpop.permute.xlu0 %6901
        %v6905 = vsel %vm344, %v6894, 0
        %v6908 = vsel %vm344, %v6895, 0
        %6910 = vmatprep.subr.mxu0 %v6890
        %6911 = vmatpush1.msra.mxu0 %v6889
        %6912 = vmatprep.subr.mxu0 %v6892
        %6913 = vmatpush1.msra.mxu0 %v6891
        %6914 = vmatprep.subr.mxu0 0.0
        %6915 = vmatpush1.msra.mxu0 0.0
        %6916 = vmatprep.subr.mxu0 0.0
        %6917 = vmatpush1.msra.mxu0 0.0
        %6918 = vmatprep.subr.mxu0 0.0
        %6919 = vmatpush1.msra.mxu0 0.0
        %6920 = vmatprep.subr.mxu0 0.0
        %6921 = vmatpush1.msra.mxu0 0.0
        %6922 = vmatprep.subr.mxu0 0.0
        %6923 = vmatpush1.msra.mxu0 0.0
        %6924 = vmatprep.subr.mxu0 0.0
        %6925 = vmatpush1.msra.mxu0 0.0
        %6926 = vmatprep.subr.mxu0 0.0
        %6927 = vmatpush1.msra.mxu0 0.0
        %6928 = vmatprep.subr.mxu0 0.0
        %6929 = vmatpush1.msra.mxu0 0.0
        %6930 = vmatprep.subr.mxu0 0.0
        %6931 = vmatpush1.msra.mxu0 0.0
        %6932 = vmatprep.subr.mxu0 0.0
        %6933 = vmatpush1.msra.mxu0 0.0
        %6934 = vmatprep.subr.mxu0 0.0
        %6935 = vmatpush1.msra.mxu0 0.0
        %6936 = vmatprep.subr.mxu0 0.0
        %6937 = vmatpush1.msra.mxu0 0.0
        %6938 = vmatprep.subr.mxu0 0.0
        %6939 = vmatpush1.msra.mxu0 0.0
        %6940 = vmatprep.subr.mxu0 0.0
        %6941 = vmatpush1.msra.mxu0 0.0
        %6942 = vmatprep.subr.mxu0 0.0
        %6943 = vmatpush1.msra.mxu0 0.0
        %6944 = vmatprep.subr.mxu0 0.0
        %6945 = vmatpush1.msra.mxu0 0.0
        %6946 = vmatprep.subr.mxu0 0.0
        %6947 = vmatpush1.msra.mxu0 0.0
        %6948 = vmatprep.subr.mxu0 0.0
        %6949 = vmatpush1.msra.mxu0 0.0
        %6950 = vmatprep.subr.mxu0 0.0
        %6951 = vmatpush1.msra.mxu0 0.0
        %6952 = vmatprep.subr.mxu0 0.0
        %6953 = vmatpush1.msra.mxu0 0.0
        %6954 = vmatprep.subr.mxu0 0.0
        %6955 = vmatpush1.msra.mxu0 0.0
        %6956 = vmatprep.subr.mxu0 0.0
        %6957 = vmatpush1.msra.mxu0 0.0
        %6958 = vmatprep.subr.mxu0 0.0
        %6959 = vmatpush1.msra.mxu0 0.0
        %6960 = vmatprep.subr.mxu0 0.0
        %6961 = vmatpush1.msra.mxu0 0.0
        %6962 = vmatprep.subr.mxu0 0.0
        %6963 = vmatpush1.msra.mxu0 0.0
        %6964 = vmatprep.subr.mxu0 0.0
        %6965 = vmatpush1.msra.mxu0 0.0
        %6966 = vmatprep.subr.mxu0 0.0
        %6967 = vmatpush1.msra.mxu0 0.0
        %6968 = vmatprep.subr.mxu0 0.0
        %6969 = vmatpush1.msra.mxu0 0.0
        %6970 = vmatprep.subr.mxu0 0.0
        %6971 = vmatpush1.msra.mxu0 0.0
        %6972 = vmatprep.subr.mxu0 0.0
        %6973 = vmatpush1.msra.mxu0 0.0
        %6974 = vmatprep.mubr.f32.mxu0 0.0
        %6975 = vmatmul.mubr.f32.gmra.mrb[0].mxu0 %v6905
        %v6976 = vpop.f32.mrb[0].mxu0
        %v6977 = vadd.f32 %v6898, %v6976
        %v6978 = vpop.f32.mrb[0].mxu0
        %v6979 = vadd.f32 %v6898, %v6978
        %6980 = vmatprep.mubr.f32.mxu0 0.0
        %6981 = vmatmul.mubr.f32.gmra.mrb[0].mxu0 %v6908
        %v6982 = vpop.f32.mrb[0].mxu0
        %v6983 = vadd.f32 %v6902, %v6982
        %v6984 = vpop.f32.mrb[0].mxu0
        %v6985 = vadd.f32 %v6902, %v6984
        %6986 = vdwg.mxu0
        %vm6987 = vcmp.gt.f32.partialorder %v6977, 0.0
        %vm6988 = vcmp.gt.f32.partialorder %v6979, 0.0
        %vm6989 = vcmp.gt.f32.partialorder %v6983, 0.0
        %vm6990 = vcmp.gt.f32.partialorder %v6985, 0.0
        %v6991 = vmul.f32 %v6977, 0.01
        %v6992 = vmul.f32 %v6979, 0.01
        %v6993 = vmul.f32 %v6983, 0.01
        %v6994 = vmul.f32 %v6985, 0.01
        %v6995 = vsel %vm6987, %v6977, %v6991
        %v6996 = vsel %vm6988, %v6979, %v6992
        %v6997 = vsel %vm6989, %v6983, %v6993
        %v6998 = vsel %vm6990, %v6985, %v6994
        %s6999 = scalar_lea.vmem [#allocation2], 704
        %v7000 = vld [vmem:[%s6999] sm:$0xff]
        %v7001 = vld [vmem:[%s6999 + $0x8] sm:$0xff]
        %7002 = vset.pattern.permute.xlu0 4
        %7003 = vperm.xlu0 %7002, %v6747
        %v7004 = vpop.permute.xlu0 %7003
        %7006 = vset.pattern.permute.xlu0 4
        %7007 = vperm.xlu0 %7006, %v6748
        %v7008 = vpop.permute.xlu0 %7007
        %v7011 = vsel %vm344, %v7000, 0
        %v7014 = vsel %vm344, %v7001, 0
        %7016 = vmatprep.subr.mxu0 %v6996
        %7017 = vmatpush1.msra.mxu0 %v6995
        %7018 = vmatprep.subr.mxu0 %v6998
        %7019 = vmatpush1.msra.mxu0 %v6997
        %7020 = vmatprep.subr.mxu0 0.0
        %7021 = vmatpush1.msra.mxu0 0.0
        %7022 = vmatprep.subr.mxu0 0.0
        %7023 = vmatpush1.msra.mxu0 0.0
        %7024 = vmatprep.subr.mxu0 0.0
        %7025 = vmatpush1.msra.mxu0 0.0
        %7026 = vmatprep.subr.mxu0 0.0
        %7027 = vmatpush1.msra.mxu0 0.0
        %7028 = vmatprep.subr.mxu0 0.0
        %7029 = vmatpush1.msra.mxu0 0.0
        %7030 = vmatprep.subr.mxu0 0.0
        %7031 = vmatpush1.msra.mxu0 0.0
        %7032 = vmatprep.subr.mxu0 0.0
        %7033 = vmatpush1.msra.mxu0 0.0
        %7034 = vmatprep.subr.mxu0 0.0
        %7035 = vmatpush1.msra.mxu0 0.0
        %7036 = vmatprep.subr.mxu0 0.0
        %7037 = vmatpush1.msra.mxu0 0.0
        %7038 = vmatprep.subr.mxu0 0.0
        %7039 = vmatpush1.msra.mxu0 0.0
        %7040 = vmatprep.subr.mxu0 0.0
        %7041 = vmatpush1.msra.mxu0 0.0
        %7042 = vmatprep.subr.mxu0 0.0
        %7043 = vmatpush1.msra.mxu0 0.0
        %7044 = vmatprep.subr.mxu0 0.0
        %7045 = vmatpush1.msra.mxu0 0.0
        %7046 = vmatprep.subr.mxu0 0.0
        %7047 = vmatpush1.msra.mxu0 0.0
        %7048 = vmatprep.subr.mxu0 0.0
        %7049 = vmatpush1.msra.mxu0 0.0
        %7050 = vmatprep.subr.mxu0 0.0
        %7051 = vmatpush1.msra.mxu0 0.0
        %7052 = vmatprep.subr.mxu0 0.0
        %7053 = vmatpush1.msra.mxu0 0.0
        %7054 = vmatprep.subr.mxu0 0.0
        %7055 = vmatpush1.msra.mxu0 0.0
        %7056 = vmatprep.subr.mxu0 0.0
        %7057 = vmatpush1.msra.mxu0 0.0
        %7058 = vmatprep.subr.mxu0 0.0
        %7059 = vmatpush1.msra.mxu0 0.0
        %7060 = vmatprep.subr.mxu0 0.0
        %7061 = vmatpush1.msra.mxu0 0.0
        %7062 = vmatprep.subr.mxu0 0.0
        %7063 = vmatpush1.msra.mxu0 0.0
        %7064 = vmatprep.subr.mxu0 0.0
        %7065 = vmatpush1.msra.mxu0 0.0
        %7066 = vmatprep.subr.mxu0 0.0
        %7067 = vmatpush1.msra.mxu0 0.0
        %7068 = vmatprep.subr.mxu0 0.0
        %7069 = vmatpush1.msra.mxu0 0.0
        %7070 = vmatprep.subr.mxu0 0.0
        %7071 = vmatpush1.msra.mxu0 0.0
        %7072 = vmatprep.subr.mxu0 0.0
        %7073 = vmatpush1.msra.mxu0 0.0
        %7074 = vmatprep.subr.mxu0 0.0
        %7075 = vmatpush1.msra.mxu0 0.0
        %7076 = vmatprep.subr.mxu0 0.0
        %7077 = vmatpush1.msra.mxu0 0.0
        %7078 = vmatprep.subr.mxu0 0.0
        %7079 = vmatpush1.msra.mxu0 0.0
        %7080 = vmatprep.mubr.f32.mxu0 0.0
        %7081 = vmatmul.mubr.f32.gmra.mrb[0].mxu0 %v7011
        %v7082 = vpop.f32.mrb[0].mxu0
        %v7083 = vadd.f32 %v7004, %v7082
        %v7084 = vpop.f32.mrb[0].mxu0
        %v7085 = vadd.f32 %v7004, %v7084
        %7086 = vmatprep.mubr.f32.mxu0 0.0
        %7087 = vmatmul.mubr.f32.gmra.mrb[0].mxu0 %v7014
        %v7088 = vpop.f32.mrb[0].mxu0
        %v7089 = vadd.f32 %v7008, %v7088
        %v7090 = vpop.f32.mrb[0].mxu0
        %v7091 = vadd.f32 %v7008, %v7090
        %7092 = vdwg.mxu0
        %vm7093 = vcmp.gt.f32.partialorder %v7083, 0.0
        %vm7094 = vcmp.gt.f32.partialorder %v7085, 0.0
        %vm7095 = vcmp.gt.f32.partialorder %v7089, 0.0
        %vm7096 = vcmp.gt.f32.partialorder %v7091, 0.0
        %v7097 = vmul.f32 %v7083, 0.01
        %v7098 = vmul.f32 %v7085, 0.01
        %v7099 = vmul.f32 %v7089, 0.01
        %v7100 = vmul.f32 %v7091, 0.01
        %v7101 = vsel %vm7093, %v7083, %v7097
        %v7102 = vsel %vm7094, %v7085, %v7098
        %v7103 = vsel %vm7095, %v7089, %v7099
        %v7104 = vsel %vm7096, %v7091, %v7100
        %s7105 = scalar_lea.vmem %s3, 28
        %v7106 = vld [vmem:[%s7105] sm:$0x3]
        %s7107 = scalar_lea.vmem %s4, 28
        %v7108 = vld [vmem:[%s7107] sm:$0x3]
        %7110 = vset.pattern.permute.xlu0 0
        %7111 = vperm.xlu0 %7110, %v7108
        %v7112 = vpop.permute.xlu0 %7111
        %v7115 = vsel %vm344, %v7106, 0
        %7117 = vmatprep.subr.mxu0 %v7102
        %7118 = vmatpush1.msra.mxu0 %v7101
        %7119 = vmatprep.subr.mxu0 %v7104
        %7120 = vmatpush1.msra.mxu0 %v7103
        %7121 = vmatprep.subr.mxu0 0.0
        %7122 = vmatpush1.msra.mxu0 0.0
        %7123 = vmatprep.subr.mxu0 0.0
        %7124 = vmatpush1.msra.mxu0 0.0
        %7125 = vmatprep.subr.mxu0 0.0
        %7126 = vmatpush1.msra.mxu0 0.0
        %7127 = vmatprep.subr.mxu0 0.0
        %7128 = vmatpush1.msra.mxu0 0.0
        %7129 = vmatprep.subr.mxu0 0.0
        %7130 = vmatpush1.msra.mxu0 0.0
        %7131 = vmatprep.subr.mxu0 0.0
        %7132 = vmatpush1.msra.mxu0 0.0
        %7133 = vmatprep.subr.mxu0 0.0
        %7134 = vmatpush1.msra.mxu0 0.0
        %7135 = vmatprep.subr.mxu0 0.0
        %7136 = vmatpush1.msra.mxu0 0.0
        %7137 = vmatprep.subr.mxu0 0.0
        %7138 = vmatpush1.msra.mxu0 0.0
        %7139 = vmatprep.subr.mxu0 0.0
        %7140 = vmatpush1.msra.mxu0 0.0
        %7141 = vmatprep.subr.mxu0 0.0
        %7142 = vmatpush1.msra.mxu0 0.0
        %7143 = vmatprep.subr.mxu0 0.0
        %7144 = vmatpush1.msra.mxu0 0.0
        %7145 = vmatprep.subr.mxu0 0.0
        %7146 = vmatpush1.msra.mxu0 0.0
        %7147 = vmatprep.subr.mxu0 0.0
        %7148 = vmatpush1.msra.mxu0 0.0
        %7149 = vmatprep.subr.mxu0 0.0
        %7150 = vmatpush1.msra.mxu0 0.0
        %7151 = vmatprep.subr.mxu0 0.0
        %7152 = vmatpush1.msra.mxu0 0.0
        %7153 = vmatprep.subr.mxu0 0.0
        %7154 = vmatpush1.msra.mxu0 0.0
        %7155 = vmatprep.subr.mxu0 0.0
        %7156 = vmatpush1.msra.mxu0 0.0
        %7157 = vmatprep.subr.mxu0 0.0
        %7158 = vmatpush1.msra.mxu0 0.0
        %7159 = vmatprep.subr.mxu0 0.0
        %7160 = vmatpush1.msra.mxu0 0.0
        %7161 = vmatprep.subr.mxu0 0.0
        %7162 = vmatpush1.msra.mxu0 0.0
        %7163 = vmatprep.subr.mxu0 0.0
        %7164 = vmatpush1.msra.mxu0 0.0
        %7165 = vmatprep.subr.mxu0 0.0
        %7166 = vmatpush1.msra.mxu0 0.0
        %7167 = vmatprep.subr.mxu0 0.0
        %7168 = vmatpush1.msra.mxu0 0.0
        %7169 = vmatprep.subr.mxu0 0.0
        %7170 = vmatpush1.msra.mxu0 0.0
        %7171 = vmatprep.subr.mxu0 0.0
        %7172 = vmatpush1.msra.mxu0 0.0
        %7173 = vmatprep.subr.mxu0 0.0
        %7174 = vmatpush1.msra.mxu0 0.0
        %7175 = vmatprep.subr.mxu0 0.0
        %7176 = vmatpush1.msra.mxu0 0.0
        %7177 = vmatprep.subr.mxu0 0.0
        %7178 = vmatpush1.msra.mxu0 0.0
        %7179 = vmatprep.subr.mxu0 0.0
        %7180 = vmatpush1.msra.mxu0 0.0
        %7181 = vmatprep.mubr.f32.mxu0 0.0
        %7182 = vmatmul.mubr.f32.gmra.mrb[0].mxu0 %v7115
        %v7183 = vpop.f32.mrb[0].mxu0
        %v7184 = vadd.f32 %v7112, %v7183
        %v7185 = vpop.f32.mrb[0].mxu0
        %v7186 = vadd.f32 %v7112, %v7185
        %7187 = vdwg.mxu0
        %v7188 = vmul.f32 %v7184, 1.442695
        %v7189 = vpow.pop %v7188
        %v7190 = vmul.f32 %v7186, 1.442695
        %v7191 = vpow.pop %v7190
        %v7192 = vmul.f32 %v7189, %v6742
        %v7193 = vmul.f32 %v7191, %v6743
        %v7196 = vrot.slane %v7184, 1
        %v7197 = vrot.slane %v7186, 1
        %v7200 = vadd.f32 %v7192, %v7196
        %v7201 = vadd.f32 %v7193, %v7197
        %v7202 = vadd.f32 %v6744, %v7184
        %v7203 = vadd.f32 %v6745, %v7186
        %v7206 = vrot.slane %v7200, 7
        %v7207 = vrot.slane %v7201, 7
        %vm7210 = vcmask 1040384
        %v7211 = vsel %vm7210, %v6276, %v7206
        %v7212 = vsel %vm7210, %v6277, %v7207
        %v7215 = vcombine.low %v7211, %v7212
        %v7217 = vunpack.c.l.s4 1983009808
        %v7218 = vunpack.c.0.s8 %v7217
        %v7219 = vlaneseq
        %v7220 = vshrl.u32 %v7219, 7
        %v7221 = vsub.s32 %v7218, %v7220
        %v7222 = vrot.slane %v7215, %v7221
        %7224 = vst [vmem:[%s264] sm:$0xf] %v7222
        %v7227 = vcombine.low %v7202, %v7203
        %v7229 = vunpack.c.l.s4 1966171168
        %v7230 = vunpack.c.0.s8 %v7229
        %v7231 = vlaneseq
        %v7232 = vshrl.u32 %v7231, 7
        %v7233 = vsub.s32 %v7230, %v7232
        %v7234 = vrot.slane %v7227, %v7233
        %v7236 = vunpack.c.l.s4 1966171168
        %v7237 = vunpack.c.0.s8 %v7236
        %v7238 = vlaneseq
        %v7239 = vshrl.u32 %v7238, 7
        %v7240 = vsub.s32 %v7237, %v7239
        %v7241 = vrot.slane %v7234, %v7240
        %v7243 = vlaneseq
        %vm7244 = vcmp.ge.s32.totalorder %v7243, 0
        %vm7245 = vcmp.lt.s32.totalorder %v7243, 256
        %vm7246 = vmand %vm7244, %vm7245
        %7247 = vst.msk [vmem:[%s271] sm:$0x3] %vm7246, %v7241
        %s7248 = sand.u32 %s143, 1
        %s7249 = scalar_lea.sflag [#allocation4], %s7248
        %s7250 = sand.u32 %s143, 1
        %s7251 = smul.addr %s7250, 4
        %s7252 = scalar_lea.vmem [#allocation5], %s7251
        %s7253 = sand.u32 %s169, 1
        %s7254 = scalar_lea.sflag [#allocation7], %s7253
        %s7255 = sand.u32 %s169, 1
        %s7256 = smul.addr %s7255, 2
        %s7257 = scalar_lea.vmem [#allocation6], %s7256
        // Predicated region
        $region45: #{tpu_custom_call.1} parent=39 // pred_check
          %p7258 = pneg %p153
        $region46: #{tpu_custom_call.1} parent=39 // pred_check_branch
          %7260 = sbr.rel (%p7258) target = $region48
        $region47: #{tpu_custom_call.1} parent=39 // pred_region
          %s7261 = smul.u32 2, %s25
          %s7263 = ssub.s32 64, 64
          %7264 = vsyncadd %s7249, %s7263
          %s7265 = smul.addr %s7261, 32
          %s7266 = scalar_lea.hbm %s5, %s7265
          %s7268 = sshll.u32 %s7252, 4
          %s7269 = int_to_ptr.vmem [resolvable:$true] %s7268
          %7271 = dma.vmem_to_hbm [thread:$0]  %s7269, 64, %s7266, %s7249
        $region48: #{tpu_custom_call.1} parent=39 // pred_fallthru
          _
        // Predicated region
        $region49: #{tpu_custom_call.1} parent=39 // pred_check
          %p7272 = pneg %p179
        $region50: #{tpu_custom_call.1} parent=39 // pred_check_branch
          %7274 = sbr.rel (%p7272) target = $region52
        $region51: #{tpu_custom_call.1} parent=39 // pred_region
          %s7275 = smul.u32 2, %s25
          %s7277 = ssub.s32 32, 32
          %7278 = vsyncadd %s7254, %s7277
          %s7279 = smul.addr %s7275, 16
          %s7280 = scalar_lea.hbm %s6, %s7279
          %s7282 = sshll.u32 %s7257, 4
          %s7283 = int_to_ptr.vmem [resolvable:$true] %s7282
          %7285 = dma.vmem_to_hbm [thread:$0]  %s7283, 32, %s7280, %s7254
        $region52: #{tpu_custom_call.1} parent=39 // pred_fallthru
          _
      $region40: #{tpu_custom_call.1} parent=5 // pred_fallthru
        _
      %p7286 = scmp.le.s32.totalorder 2, %s20
      // Predicated region
      $region53: #{tpu_custom_call.1} parent=5 // pred_check
        %p7287 = pneg %p7286
      $region54: #{tpu_custom_call.1} parent=5 // pred_check_branch
        %7289 = sbr.rel (%p7287) target = $region56
      $region55: #{tpu_custom_call.1} parent=5 // pred_region
        %s7290 = ssub.s32 %s20, 2
        // Predicated region
        $region57: #{tpu_custom_call.1} parent=55 // pred_check
          %p7291 = pneg %p159
        $region58: #{tpu_custom_call.1} parent=55 // pred_check_branch
          %7293 = sbr.rel (%p7291) target = $region60
        $region59: #{tpu_custom_call.1} parent=55 // pred_region
          %s7294 = sand.u32 %s144, 1
          %s7295 = scalar_lea.sflag [#allocation4], %s7294
          %s7296 = sand.u32 %s144, 1
          %s7297 = smul.addr %s7296, 4
          %s7298 = scalar_lea.vmem [#allocation5], %s7297
          %7299 = dma.done %s7295, 64
        $region60: #{tpu_custom_call.1} parent=55 // pred_fallthru
          _
        // Predicated region
        $region61: #{tpu_custom_call.1} parent=55 // pred_check
          %p7300 = pneg %p185
        $region62: #{tpu_custom_call.1} parent=55 // pred_check_branch
          %7302 = sbr.rel (%p7300) target = $region64
        $region63: #{tpu_custom_call.1} parent=55 // pred_region
          %s7303 = sand.u32 %s170, 1
          %s7304 = scalar_lea.sflag [#allocation7], %s7303
          %s7305 = sand.u32 %s170, 1
          %s7306 = smul.addr %s7305, 2
          %s7307 = scalar_lea.vmem [#allocation6], %s7306
          %7308 = dma.done %s7304, 32
        $region64: #{tpu_custom_call.1} parent=55 // pred_fallthru
          _
      $region56: #{tpu_custom_call.1} parent=5 // pred_fallthru
        _
    $region6: #{tpu_custom_call.1} parent=1 // loop_footer
      %s24 = sadd.s32 1, %s20
    $region7: #{tpu_custom_call.1} parent=1 // loop_footer_branch
      %19 = sbr.rel target = $region3
    $region8: #{tpu_custom_call.1} parent=1 // loop_exit
      _
    %7309 = vsyncpa [#allocation3], 1
    %s7310 = scalar_lea.sflag [#allocation3], 1
    %7311 = vsyncpa %s7310, 1
    %7312 = vsyncpa [#allocation4], 1
    %s7313 = scalar_lea.sflag [#allocation4], 1
    %7314 = vsyncpa %s7313, 1
    %7315 = vsyncpa [#allocation7], 1
    %s7316 = scalar_lea.sflag [#allocation7], 1
    %7317 = vsyncpa %s7316, 1

</llo_original>
